<compile_context>
chip_gen: v6e
topology: v6e:2x2x1
jax: 0.10.0
libtpu: 0.0.40
codegen_flags: <defaults>
</compile_context>

<pallas_src>
import math
from functools import partial

import jax
import jax.numpy as jnp
from jax.experimental import pallas as pl
from jax.experimental.pallas import tpu as pltpu

EPS = 1e-5            # nn.LayerNorm default eps
NEG_INF = -1e30       # causal-mask fill value

# MXU operand dtype.  bf16 runs at full MXU rate on v5e/v6e/v7x (only the VPU
# lacks bf16 on v5e, and LN/softmax statistics stay f32 here anyway).
MATMUL_DTYPE = jnp.bfloat16

VMEM_LIMIT = 48 * 1024 * 1024   # explicit scoped-VMEM budget (fits v7x's 64 MiB)


# ----------------------------------------------------------------------------
# in-kernel helpers
# ----------------------------------------------------------------------------
def _mm(a, b):
    """MXU matmul: bf16 operands (weights pre-cast at init), f32 accumulation."""
    return jnp.dot(a.astype(MATMUL_DTYPE), b.astype(MATMUL_DTYPE),
                   preferred_element_type=jnp.float32)


def _qk(a, b):
    """q @ k^T without materializing a transpose (contract last dims)."""
    return jax.lax.dot_general(
        a.astype(MATMUL_DTYPE), b.astype(MATMUL_DTYPE),
        dimension_numbers=(((1,), (1,)), ((), ())),
        preferred_element_type=jnp.float32)


def _layer_norm(h, g, b):
    mu = jnp.mean(h, axis=-1, keepdims=True)
    var = jnp.mean((h - mu) ** 2, axis=-1, keepdims=True)
    return (h - mu) * jax.lax.rsqrt(var + EPS) * g + b


def _mha(q, k, v, wo, bo, nhead, *, causal):
    """Multi-head attention; all head contexts are projected through Wo with a
    single K=D MXU pass (no per-head small-K matmuls / accumulates)."""
    Tq, D = q.shape
    Tk = k.shape[0]
    dh = D // nhead
    scale = 1.0 / math.sqrt(dh)

    if causal:  # built once in-kernel, no HBM mask DMA
        rows = jax.lax.broadcasted_iota(jnp.int32, (Tq, Tk), 0)
        cols = jax.lax.broadcasted_iota(jnp.int32, (Tq, Tk), 1)
        keep = rows >= cols

    # TODO(synk): for production configs pick dh as a multiple of 128 so the
    # per-head lane slices below are tile-aligned (no lane shuffles).
    ctx_parts = []
    for h in range(nhead):
        lo = h * dh
        s = _qk(q[:, lo:lo + dh], k[:, lo:lo + dh]) * scale     # (Tq, Tk) f32
        if causal:
            s = jnp.where(keep, s, NEG_INF)
        m = jnp.max(s, axis=-1, keepdims=True)
        p = jnp.exp(s - m)
        inv = pl.reciprocal(jnp.sum(p, axis=-1, keepdims=True), approx=True)
        ctx_parts.append(_mm(p, v[:, lo:lo + dh]) * inv)        # (Tq, dh)
    ctx = jnp.concatenate(ctx_parts, axis=-1)                   # (Tq, D)
    return _mm(ctx, wo) + bo                                    # one K=D pass


# ----------------------------------------------------------------------------
# fused Pallas kernels
# ----------------------------------------------------------------------------
def _feature_encoder_kernel(x_ref, w_ref, b_ref, g_ref, beta_ref, pe_ref, o_ref):
    # Linear -> LayerNorm -> ReLU (-> Dropout=identity) -> + positional encoding
    x = x_ref[0]                                                 # (S, F)
    h = _mm(x, w_ref[...]) + b_ref[...]
    h = _layer_norm(h, g_ref[...], beta_ref[...])
    o_ref[0] = jnp.maximum(h, 0.0) + pe_ref[...]


def _encoder_stack_kernel(x_ref, wqkv_ref, bqkv_ref, wo_ref, bo_ref,
                          g1_ref, be1_ref,
                          w1_ref, fb1_ref, w2_ref, fb2_ref,
                          g2_ref, be2_ref, o_ref, *, nhead):
    # grid = (batch, layer).  o_ref's block index depends only on batch, so it
    # stays resident in VMEM across the layer axis and carries the activation.
    @pl.when(pl.program_id(1) == 0)
    def _():
        o_ref[0] = x_ref[0]

    x = o_ref[0]                                                 # (S, D)
    D = x.shape[-1]
    qkv = _mm(x, wqkv_ref[0]) + bqkv_ref[0]                      # fused QKV
    attn = _mha(qkv[:, :D], qkv[:, D:2 * D], qkv[:, 2 * D:],
                wo_ref[0], bo_ref[0], nhead, causal=False)
    x = _layer_norm(x + attn, g1_ref[0], be1_ref[0])
    h = jnp.maximum(_mm(x, w1_ref[0]) + fb1_ref[0], 0.0)
    f = _mm(h, w2_ref[0]) + fb2_ref[0]
    o_ref[0] = _layer_norm(x + f, g2_ref[0], be2_ref[0])


def _decoder_stack_kernel(t_ref, m_ref,
                          s_wqkv_ref, s_bqkv_ref, s_wo_ref, s_bo_ref,
                          g1_ref, be1_ref,
                          c_wq_ref, c_bq_ref, c_wkv_ref, c_bkv_ref,
                          c_wo_ref, c_bo_ref, g2_ref, be2_ref,
                          w1_ref, fb1_ref, w2_ref, fb2_ref,
                          g3_ref, be3_ref, o_ref, *, nhead):
    @pl.when(pl.program_id(1) == 0)
    def _():
        o_ref[0] = t_ref[0]

    t = o_ref[0]                                                 # (T, D)
    mem = m_ref[0]                                               # (S, D)
    D = t.shape[-1]

    # causal self-attention (fused QKV)
    qkv = _mm(t, s_wqkv_ref[0]) + s_bqkv_ref[0]
    a = _mha(qkv[:, :D], qkv[:, D:2 * D], qkv[:, 2 * D:],
             s_wo_ref[0], s_bo_ref[0], nhead, causal=True)
    t = _layer_norm(t + a, g1_ref[0], be1_ref[0])

    # cross-attention (fused KV on encoder memory)
    qc = _mm(t, c_wq_ref[0]) + c_bq_ref[0]
    kvc = _mm(mem, c_wkv_ref[0]) + c_bkv_ref[0]
    a2 = _mha(qc, kvc[:, :D], kvc[:, D:],
              c_wo_ref[0], c_bo_ref[0], nhead, causal=False)
    t = _layer_norm(t + a2, g2_ref[0], be2_ref[0])

    # FFN
    h = jnp.maximum(_mm(t, w1_ref[0]) + fb1_ref[0], 0.0)
    f = _mm(h, w2_ref[0]) + fb2_ref[0]
    o_ref[0] = _layer_norm(t + f, g3_ref[0], be3_ref[0])


def _output_stack_kernel(t_ref, wp_ref, bp_ref,
                         fw_ref, fb_ref, fg_ref, fbeta_ref,
                         hw_ref, hb_ref, o_ref):
    # output_projection -> BeatmapDecoder.feature_extractor -> 4 heads fused
    # into one lane-dense (128-padded) matmul.
    t = t_ref[0]                                                 # (T, D)
    out = _mm(t, wp_ref[...]) + bp_ref[...]
    feats = jnp.maximum(
        _layer_norm(_mm(out, fw_ref[...]) + fb_ref[...],
                    fg_ref[...], fbeta_ref[...]), 0.0)
    o_ref[0] = _mm(feats, hw_ref[...]) + hb_ref[...]


# ----------------------------------------------------------------------------
# BlockSpec helpers & pallas_call wrappers
# ----------------------------------------------------------------------------
def _bspec1(shape):                 # batched activation, 1-D grid (b,)
    nd = len(shape)
    return pl.BlockSpec((1,) + tuple(shape[1:]),
                        lambda b, nd=nd: (b,) + (0,) * (nd - 1))


def _fspec1(shape):                 # full (un-batched) array, 1-D grid
    nd = len(shape)
    return pl.BlockSpec(tuple(shape), lambda b, nd=nd: (0,) * nd)


def _bspec2(shape):                 # batched activation, 2-D grid (b, layer)
    nd = len(shape)
    return pl.BlockSpec((1,) + tuple(shape[1:]),
                        lambda b, l, nd=nd: (b,) + (0,) * (nd - 1))


def _lspec2(shape):                 # per-layer stacked weight, 2-D grid
    nd = len(shape)
    return pl.BlockSpec((1,) + tuple(shape[1:]),
                        lambda b, l, nd=nd: (l,) + (0,) * (nd - 1))


ENC_KEYS = ('wqkv', 'bqkv', 'wo', 'bo', 'ln1_g', 'ln1_b',
            'ffn_w1', 'ffn_b1', 'ffn_w2', 'ffn_b2', 'ln2_g', 'ln2_b')
DEC_KEYS = ('s_wqkv', 's_bqkv', 's_wo', 's_bo', 'ln1_g', 'ln1_b',
            'c_wq', 'c_bq', 'c_wkv', 'c_bkv', 'c_wo', 'c_bo',
            'ln2_g', 'ln2_b',
            'ffn_w1', 'ffn_b1', 'ffn_w2', 'ffn_b2', 'ln3_g', 'ln3_b')


def feature_encode(x, params, pe):
    B, S, _ = x.shape
    D = params['fe_w'].shape[1]
    args = [x.astype(jnp.float32), params['fe_w'], params['fe_b'],
            params['fe_g'], params['fe_beta'], pe]
    in_specs = [_bspec1(args[0].shape)] + [_fspec1(a.shape) for a in args[1:]]
    return pl.pallas_call(
        _feature_encoder_kernel,
        grid=(B,),
        out_shape=jax.ShapeDtypeStruct((B, S, D), jnp.float32),
        in_specs=in_specs,
        out_specs=_bspec1((B, S, D)),
        compiler_params=pltpu.CompilerParams(
            dimension_semantics=("parallel",),
            vmem_limit_bytes=VMEM_LIMIT),
    )(*args)


def encoder_stack(x, p, nhead):
    B, S, D = x.shape
    L = p['wqkv'].shape[0]
    ws = [p[k] for k in ENC_KEYS]
    in_specs = [_bspec2(x.shape)] + [_lspec2(w.shape) for w in ws]
    return pl.pallas_call(
        partial(_encoder_stack_kernel, nhead=nhead),
        grid=(B, L),
        out_shape=jax.ShapeDtypeStruct((B, S, D), jnp.float32),
        in_specs=in_specs,
        out_specs=_bspec2((B, S, D)),
        compiler_params=pltpu.CompilerParams(
            dimension_semantics=("parallel", "arbitrary"),
            vmem_limit_bytes=VMEM_LIMIT),
    )(x, *ws)


def decoder_stack(tgt, mem, p, nhead):
    B, T, D = tgt.shape
    L = p['s_wqkv'].shape[0]
    ws = [p[k] for k in DEC_KEYS]
    in_specs = ([_bspec2(tgt.shape), _bspec2(mem.shape)]
                + [_lspec2(w.shape) for w in ws])
    return pl.pallas_call(
        partial(_decoder_stack_kernel, nhead=nhead),
        grid=(B, L),
        out_shape=jax.ShapeDtypeStruct((B, T, D), jnp.float32),
        in_specs=in_specs,
        out_specs=_bspec2((B, T, D)),
        compiler_params=pltpu.CompilerParams(
            dimension_semantics=("parallel", "arbitrary"),
            vmem_limit_bytes=VMEM_LIMIT),
    )(tgt, mem, *ws)


def output_stack(tgt, params):
    B, T, D = tgt.shape
    n_pad = params['heads_w'].shape[1]            # 128-padded head output
    args = [tgt, params['out_proj_w'], params['out_proj_b'],
            params['bd_fe_w'], params['bd_fe_b'],
            params['bd_fe_g'], params['bd_fe_beta'],
            params['heads_w'], params['heads_b']]
    in_specs = [_bspec1(args[0].shape)] + [_fspec1(a.shape) for a in args[1:]]
    return pl.pallas_call(
        _output_stack_kernel,
        grid=(B,),
        out_shape=jax.ShapeDtypeStruct((B, T, n_pad), jnp.float32),
        in_specs=in_specs,
        out_specs=_bspec1((B, T, n_pad)),
        compiler_params=pltpu.CompilerParams(
            dimension_semantics=("parallel",),
            vmem_limit_bytes=VMEM_LIMIT),
    )(*args)


# ----------------------------------------------------------------------------
# model glue
# ----------------------------------------------------------------------------
def process_targets(params, target_seq, n_positions):
    # Embedding gathers + rank-1 time/slider embeddings + concat stay in XLA:
    # O(B*T*D) bytes, gather has no clean simple Pallas equivalent here.
    obj = target_seq[:, :, 0].astype(jnp.int32)
    px = target_seq[:, :, 1].astype(jnp.int32)
    py = target_seq[:, :, 2].astype(jnp.int32)
    time = target_seq[:, :, 3:4]
    slider = target_seq[:, :, 4:5]
    obj_e = jnp.take(params['obj_emb'], obj, axis=0)
    px_e = jnp.take(params['pos_emb'], px, axis=0)
    py_e = jnp.take(params['pos_emb'], py + n_positions, axis=0)
    t_e = time * params['time_w'] + params['time_b']
    s_e = slider * params['slider_w'] + params['slider_b']
    return jnp.concatenate([obj_e, px_e, py_e, t_e, s_e], axis=-1)


@partial(jax.jit, static_argnames=('nhead', 'n_positions', 'n_object_types'))
def beatmap_transformer_forward(params, audio_features, target_seq, *,
                                nhead, n_positions, n_object_types):
    S = audio_features.shape[1]

    mem = feature_encode(audio_features, params, params['pe'][:S])
    mem = encoder_stack(mem, params['enc'], nhead)

    tgt = process_targets(params, target_seq, n_positions)
    tgt = decoder_stack(tgt, mem, params['dec'], nhead)

    logits = output_stack(tgt, params)            # (B, T, 128-padded)
    n_obj = n_object_types
    p2 = 2 * n_positions
    return {
        'object_type':   logits[..., :n_obj],
        'position':      logits[..., n_obj:n_obj + p2],
        'time_offset':   logits[..., n_obj + p2:n_obj + p2 + 1],
        'slider_length': logits[..., n_obj + p2 + 1:n_obj + p2 + 2],
    }


# ----------------------------------------------------------------------------
# deterministic parameter construction
# ----------------------------------------------------------------------------
def _keygen(key):
    while True:
        key, sub = jax.random.split(key)
        yield sub


def _xavier(key, shape):
    bound = math.sqrt(6.0 / (shape[0] + shape[1]))
    return jax.random.uniform(key, shape, jnp.float32, -bound, bound)


def _sinusoidal_pe(max_len, d):
    pos = jnp.arange(max_len, dtype=jnp.float32)[:, None]
    div = jnp.exp(jnp.arange(0, d, 2, dtype=jnp.float32) * (-math.log(10000.0) / d))
    sin = jnp.sin(pos * div)
    cos = jnp.cos(pos * div)
    return jnp.stack([sin, cos], axis=-1).reshape(max_len, d)


def init_params(key, feature_dim, hidden_dim, n_object_types, n_positions,
                n_enc, n_dec, max_len=512):
    kg = _keygen(key)
    D = hidden_dim
    ff = 4 * D
    n_heads_out = n_object_types + 2 * n_positions + 2
    head_pad = ((n_heads_out + 127) // 128) * 128     # lane-dense fused heads

    def zeros(*s): return jnp.zeros(s, jnp.float32)
    def ones(*s): return jnp.ones(s, jnp.float32)
    def wmat(shape): return _xavier(next(kg), shape).astype(MATMUL_DTYPE)

    def enc_layer():
        wq, wk, wv, wo = [_xavier(next(kg), (D, D)) for _ in range(4)]
        return dict(
            wqkv=jnp.concatenate([wq, wk, wv], axis=1).astype(MATMUL_DTYPE),
            bqkv=zeros(1, 3 * D), wo=wo.astype(MATMUL_DTYPE), bo=zeros(1, D),
            ln1_g=ones(1, D), ln1_b=zeros(1, D),
            ffn_w1=wmat((D, ff)), ffn_b1=zeros(1, ff),
            ffn_w2=wmat((ff, D)), ffn_b2=zeros(1, D),
            ln2_g=ones(1, D), ln2_b=zeros(1, D))

    def dec_layer():
        wq, wk, wv, wo = [_xavier(next(kg), (D, D)) for _ in range(4)]
        cq, ck, cv, co = [_xavier(next(kg), (D, D)) for _ in range(4)]
        return dict(
            s_wqkv=jnp.concatenate([wq, wk, wv], axis=1).astype(MATMUL_DTYPE),
            s_bqkv=zeros(1, 3 * D), s_wo=wo.astype(MATMUL_DTYPE), s_bo=zeros(1, D),
            ln1_g=ones(1, D), ln1_b=zeros(1, D),
            c_wq=cq.astype(MATMUL_DTYPE), c_bq=zeros(1, D),
            c_wkv=jnp.concatenate([ck, cv], axis=1).astype(MATMUL_DTYPE),
            c_bkv=zeros(1, 2 * D),
            c_wo=co.astype(MATMUL_DTYPE), c_bo=zeros(1, D),
            ln2_g=ones(1, D), ln2_b=zeros(1, D),
            ffn_w1=wmat((D, ff)), ffn_b1=zeros(1, ff),
            ffn_w2=wmat((ff, D)), ffn_b2=zeros(1, D),
            ln3_g=ones(1, D), ln3_b=zeros(1, D))

    def stack(layers):
        return {k: jnp.stack([lyr[k] for lyr in layers], axis=0)
                for k in layers[0]}

    head_obj_w = _xavier(next(kg), (D // 2, n_object_types))
    head_pos_w = _xavier(next(kg), (D // 2, 2 * n_positions))
    head_time_w = _xavier(next(kg), (D // 2, 1))
    head_sl_w = _xavier(next(kg), (D // 2, 1))
    heads_w = jnp.concatenate(
        [head_obj_w, head_pos_w, head_time_w, head_sl_w], axis=1)
    heads_w = jnp.pad(heads_w, ((0, 0), (0, head_pad - n_heads_out)))

    return dict(
        fe_w=wmat((feature_dim, D)), fe_b=zeros(1, D),
        fe_g=ones(1, D), fe_beta=zeros(1, D),
        pe=_sinusoidal_pe(max_len, D),
        obj_emb=_xavier(next(kg), (n_object_types, D // 4)),
        pos_emb=_xavier(next(kg), (2 * n_positions, D // 4)),
        # TODO(synk): original module used D//4 here (sum 5*D/4 != d_model, a
        # latent bug in the PyTorch code); D//8 makes the concat equal d_model.
        time_w=_xavier(next(kg), (1, D // 8)), time_b=zeros(1, D // 8),
        slider_w=_xavier(next(kg), (1, D // 8)), slider_b=zeros(1, D // 8),
        out_proj_w=wmat((D, D)), out_proj_b=zeros(1, D),
        bd_fe_w=wmat((D, D // 2)), bd_fe_b=zeros(1, D // 2),
        bd_fe_g=ones(1, D // 2), bd_fe_beta=zeros(1, D // 2),
        heads_w=heads_w.astype(MATMUL_DTYPE), heads_b=zeros(1, head_pad),
        enc=stack([enc_layer() for _ in range(n_enc)]),
        dec=stack([dec_layer() for _ in range(n_dec)]),
    )


# ----------------------------------------------------------------------------
if __name__ == "__main__":
    # small shapes consistent with the module; D chosen lane-dense (128)
    feature_dim = 128
    hidden_dim = 128
    n_object_types = 4
    n_positions = 8
    n_encoder_layers = 2
    n_decoder_layers = 2
    nhead = 4
    B, S, T = 2, 16, 8

    key = jax.random.PRNGKey(0)
    k_param, k_audio, k1, k2, k3, k4, k5 = jax.random.split(key, 7)

    params = init_params(k_param, feature_dim, hidden_dim, n_object_types,
                         n_positions, n_encoder_layers, n_decoder_layers)

    audio_features = jax.random.normal(k_audio, (B, S, feature_dim), jnp.float32)
    obj = jax.random.randint(k1, (B, T), 0, n_object_types).astype(jnp.float32)
    px = jax.random.randint(k2, (B, T), 0, n_positions).astype(jnp.float32)
    py = jax.random.randint(k3, (B, T), 0, n_positions).astype(jnp.float32)
    tme = jax.random.uniform(k4, (B, T), jnp.float32)
    sld = jax.random.uniform(k5, (B, T), jnp.float32)
    target_seq = jnp.stack([obj, px, py, tme, sld], axis=-1)  # (B, T, 5)

    out = beatmap_transformer_forward(params, audio_features, target_seq,
                                      nhead=nhead, n_positions=n_positions,
                                      n_object_types=n_object_types)
    jax.block_until_ready(out)

    assert out['object_type'].shape == (B, T, n_object_types)
    assert out['position'].shape == (B, T, 2 * n_positions)
    assert out['time_offset'].shape == (B, T, 1)
    assert out['slider_length'].shape == (B, T, 1)
    print("KERNEL_OK")
</pallas_src>

<mosaic_0001>
module attributes {stable_mosaic.version = 11 : i64} {
  func.func @_feature_encoder_kernel(%arg0: i32, %arg1: memref<1x16x128xf32, #tpu.memory_space<vmem>>, %arg2: memref<128x128xbf16, #tpu.memory_space<vmem>>, %arg3: memref<1x128xf32, #tpu.memory_space<vmem>>, %arg4: memref<1x128xf32, #tpu.memory_space<vmem>>, %arg5: memref<1x128xf32, #tpu.memory_space<vmem>>, %arg6: memref<16x128xf32, #tpu.memory_space<vmem>>, %arg7: memref<1x16x128xf32, #tpu.memory_space<vmem>>) attributes {dimension_semantics = [#tpu.dimension_semantics<parallel>], iteration_bounds = array<i64: 2>, scalar_prefetch = 0 : i64, scratch_operands = 0 : i64, tpu.core_type = #tpu.core_type<tc>, window_params = [{transform_indices = @transform_0, window_bounds = array<i64: 1, 16, 128>}, {pipeline_mode = #tpu.pipeline_mode<synchronous>, transform_indices = @transform_1, window_bounds = array<i64: 128, 128>}, {pipeline_mode = #tpu.pipeline_mode<synchronous>, transform_indices = @transform_2, window_bounds = array<i64: 1, 128>}, {pipeline_mode = #tpu.pipeline_mode<synchronous>, transform_indices = @transform_3, window_bounds = array<i64: 1, 128>}, {pipeline_mode = #tpu.pipeline_mode<synchronous>, transform_indices = @transform_4, window_bounds = array<i64: 1, 128>}, {pipeline_mode = #tpu.pipeline_mode<synchronous>, transform_indices = @transform_5, window_bounds = array<i64: 16, 128>}, {transform_indices = @transform_6, window_bounds = array<i64: 1, 16, 128>}]} {
    %c0 = arith.constant 0 : index
    %c0_0 = arith.constant 0 : index
    %c0_1 = arith.constant 0 : index
    %0 = vector.load %arg1[%c0, %c0_0, %c0_1] : memref<1x16x128xf32, #tpu.memory_space<vmem>>, vector<1x16x128xf32>
    %1 = vector.shape_cast %0 : vector<1x16x128xf32> to vector<16x128xf32>
    %c0_2 = arith.constant 0 : index
    %c0_3 = arith.constant 0 : index
    %2 = vector.load %arg2[%c0_2, %c0_3] : memref<128x128xbf16, #tpu.memory_space<vmem>>, vector<128x128xbf16>
    %3 = arith.truncf %1 : vector<16x128xf32> to vector<16x128xbf16>
    %cst = arith.constant dense<0.000000e+00> : vector<16x128xf32>
    %4 = tpu.matmul %3, %2, %cst {dimension_numbers = #tpu.dot_dimension_numbers<[1], [0], [0], [1], [0, 0, 1, 1], [], []>} : vector<16x128xbf16>, vector<128x128xbf16>, vector<16x128xf32> -> vector<16x128xf32>
    %c0_4 = arith.constant 0 : index
    %c0_5 = arith.constant 0 : index
    %5 = vector.load %arg3[%c0_4, %c0_5] : memref<1x128xf32, #tpu.memory_space<vmem>>, vector<1x128xf32>
    %6 = vector.broadcast %5 : vector<1x128xf32> to vector<16x128xf32>
    %7 = arith.addf %4, %6 : vector<16x128xf32>
    %c0_6 = arith.constant 0 : index
    %c0_7 = arith.constant 0 : index
    %8 = vector.load %arg4[%c0_6, %c0_7] : memref<1x128xf32, #tpu.memory_space<vmem>>, vector<1x128xf32>
    %c0_8 = arith.constant 0 : index
    %c0_9 = arith.constant 0 : index
    %9 = vector.load %arg5[%c0_8, %c0_9] : memref<1x128xf32, #tpu.memory_space<vmem>>, vector<1x128xf32>
    %cst_10 = arith.constant dense<0.000000e+00> : vector<16xf32>
    %10 = vector.multi_reduction <add>, %7, %cst_10 [1] : vector<16x128xf32> to vector<16xf32>
    %11 = vector.shape_cast %10 : vector<16xf32> to vector<16x1xf32>
    %cst_11 = arith.constant 1.280000e+02 : f32
    %12 = vector.broadcast %cst_11 : f32 to vector<16x1xf32>
    %13 = arith.divf %11, %12 : vector<16x1xf32>
    %14 = vector.broadcast %13 : vector<16x1xf32> to vector<16x128xf32>
    %15 = arith.subf %7, %14 : vector<16x128xf32>
    %16 = arith.mulf %15, %15 : vector<16x128xf32>
    %cst_12 = arith.constant dense<0.000000e+00> : vector<16xf32>
    %17 = vector.multi_reduction <add>, %16, %cst_12 [1] : vector<16x128xf32> to vector<16xf32>
    %18 = vector.shape_cast %17 : vector<16xf32> to vector<16x1xf32>
    %cst_13 = arith.constant 1.280000e+02 : f32
    %19 = vector.broadcast %cst_13 : f32 to vector<16x1xf32>
    %20 = arith.divf %18, %19 : vector<16x1xf32>
    %21 = vector.broadcast %13 : vector<16x1xf32> to vector<16x128xf32>
    %22 = arith.subf %7, %21 : vector<16x128xf32>
    %cst_14 = arith.constant 9.99999974E-6 : f32
    %23 = vector.broadcast %cst_14 : f32 to vector<16x1xf32>
    %24 = arith.addf %20, %23 : vector<16x1xf32>
    %25 = math.rsqrt %24 : vector<16x1xf32>
    %26 = vector.broadcast %25 : vector<16x1xf32> to vector<16x128xf32>
    %27 = arith.mulf %22, %26 : vector<16x128xf32>
    %28 = vector.broadcast %8 : vector<1x128xf32> to vector<16x128xf32>
    %29 = arith.mulf %27, %28 : vector<16x128xf32>
    %30 = vector.broadcast %9 : vector<1x128xf32> to vector<16x128xf32>
    %31 = arith.addf %29, %30 : vector<16x128xf32>
    %cst_15 = arith.constant 0.000000e+00 : f32
    %32 = vector.broadcast %cst_15 : f32 to vector<16x128xf32>
    %33 = arith.maximumf %31, %32 : vector<16x128xf32>
    %c0_16 = arith.constant 0 : index
    %c0_17 = arith.constant 0 : index
    %34 = vector.load %arg6[%c0_16, %c0_17] : memref<16x128xf32, #tpu.memory_space<vmem>>, vector<16x128xf32>
    %35 = arith.addf %33, %34 : vector<16x128xf32>
    %c0_18 = arith.constant 0 : index
    %c0_19 = arith.constant 0 : index
    %c0_20 = arith.constant 0 : index
    %36 = vector.load %arg7[%c0_18, %c0_19, %c0_20] : memref<1x16x128xf32, #tpu.memory_space<vmem>>, vector<1x16x128xf32>
    %37 = vector.shape_cast %36 : vector<1x16x128xf32> to vector<16x128xf32>
    %38 = vector.shape_cast %35 : vector<16x128xf32> to vector<1x16x128xf32>
    tpu.vector_store %arg7[%c0_18, %c0_19, %c0_20], %38 {strides = array<i32>} : memref<1x16x128xf32, #tpu.memory_space<vmem>>, vector<1x16x128xf32>,
    return
  }
  func.func @transform_0(%arg0: i32) -> (i32, i32, i32) {
    %c0_i32 = arith.constant 0 : i32
    %c0_i32_0 = arith.constant 0 : i32
    %c0_i32_1 = arith.constant 0 : i32
    return %arg0, %c0_i32, %c0_i32_0 : i32, i32, i32
  }
  func.func @transform_1(%arg0: i32) -> (i32, i32) {
    %c0_i32 = arith.constant 0 : i32
    %c0_i32_0 = arith.constant 0 : i32
    %c0_i32_1 = arith.constant 0 : i32
    return %c0_i32, %c0_i32_0 : i32, i32
  }
  func.func @transform_2(%arg0: i32) -> (i32, i32) {
    %c0_i32 = arith.constant 0 : i32
    %c0_i32_0 = arith.constant 0 : i32
    %c0_i32_1 = arith.constant 0 : i32
    return %c0_i32, %c0_i32_0 : i32, i32
  }
  func.func @transform_3(%arg0: i32) -> (i32, i32) {
    %c0_i32 = arith.constant 0 : i32
    %c0_i32_0 = arith.constant 0 : i32
    %c0_i32_1 = arith.constant 0 : i32
    return %c0_i32, %c0_i32_0 : i32, i32
  }
  func.func @transform_4(%arg0: i32) -> (i32, i32) {
    %c0_i32 = arith.constant 0 : i32
    %c0_i32_0 = arith.constant 0 : i32
    %c0_i32_1 = arith.constant 0 : i32
    return %c0_i32, %c0_i32_0 : i32, i32
  }
  func.func @transform_5(%arg0: i32) -> (i32, i32) {
    %c0_i32 = arith.constant 0 : i32
    %c0_i32_0 = arith.constant 0 : i32
    %c0_i32_1 = arith.constant 0 : i32
    return %c0_i32, %c0_i32_0 : i32, i32
  }
  func.func @transform_6(%arg0: i32) -> (i32, i32, i32) {
    %c0_i32 = arith.constant 0 : i32
    %c0_i32_0 = arith.constant 0 : i32
    %c0_i32_1 = arith.constant 0 : i32
    return %arg0, %c0_i32, %c0_i32_0 : i32, i32, i32
  }
}

module attributes {stable_mosaic.version = 11 : i64} {
  func.func @_encoder_stack_kernel(%arg0: i32, %arg1: i32, %arg2: memref<1x16x128xf32, #tpu.memory_space<vmem>>, %arg3: memref<1x128x384xbf16, #tpu.memory_space<vmem>>, %arg4: memref<1x1x384xf32, #tpu.memory_space<vmem>>, %arg5: memref<1x128x128xbf16, #tpu.memory_space<vmem>>, %arg6: memref<1x1x128xf32, #tpu.memory_space<vmem>>, %arg7: memref<1x1x128xf32, #tpu.memory_space<vmem>>, %arg8: memref<1x1x128xf32, #tpu.memory_space<vmem>>, %arg9: memref<1x128x512xbf16, #tpu.memory_space<vmem>>, %arg10: memref<1x1x512xf32, #tpu.memory_space<vmem>>, %arg11: memref<1x512x128xbf16, #tpu.memory_space<vmem>>, %arg12: memref<1x1x128xf32, #tpu.memory_space<vmem>>, %arg13: memref<1x1x128xf32, #tpu.memory_space<vmem>>, %arg14: memref<1x1x128xf32, #tpu.memory_space<vmem>>, %arg15: memref<1x16x128xf32, #tpu.memory_space<vmem>>) attributes {dimension_semantics = [#tpu.dimension_semantics<parallel>, #tpu.dimension_semantics<arbitrary>], iteration_bounds = array<i64: 2, 2>, scalar_prefetch = 0 : i64, scratch_operands = 0 : i64, tpu.core_type = #tpu.core_type<tc>, window_params = [{transform_indices = @transform_0, window_bounds = array<i64: 1, 16, 128>}, {transform_indices = @transform_1, window_bounds = array<i64: 1, 128, 384>}, {transform_indices = @transform_2, window_bounds = array<i64: 1, 1, 384>}, {transform_indices = @transform_3, window_bounds = array<i64: 1, 128, 128>}, {transform_indices = @transform_4, window_bounds = array<i64: 1, 1, 128>}, {transform_indices = @transform_5, window_bounds = array<i64: 1, 1, 128>}, {transform_indices = @transform_6, window_bounds = array<i64: 1, 1, 128>}, {transform_indices = @transform_7, window_bounds = array<i64: 1, 128, 512>}, {transform_indices = @transform_8, window_bounds = array<i64: 1, 1, 512>}, {transform_indices = @transform_9, window_bounds = array<i64: 1, 512, 128>}, {transform_indices = @transform_10, window_bounds = array<i64: 1, 1, 128>}, {transform_indices = @transform_11, window_bounds = array<i64: 1, 1, 128>}, {transform_indices = @transform_12, window_bounds = array<i64: 1, 1, 128>}, {transform_indices = @transform_13, window_bounds = array<i64: 1, 16, 128>}]} {
    %c0_i32 = arith.constant 0 : i32
    %0 = arith.cmpi eq, %arg1, %c0_i32 : i32
    %1 = arith.extui %0 : i1 to i32
    %c0_i32_0 = arith.constant 0 : i32
    %2 = arith.cmpi ne, %1, %c0_i32_0 : i32
    scf.if %2 {
      %c0_76 = arith.constant 0 : index
      %c0_77 = arith.constant 0 : index
      %c0_78 = arith.constant 0 : index
      %184 = vector.load %arg2[%c0_76, %c0_77, %c0_78] : memref<1x16x128xf32, #tpu.memory_space<vmem>>, vector<1x16x128xf32>
      %185 = vector.shape_cast %184 : vector<1x16x128xf32> to vector<16x128xf32>
      %c0_79 = arith.constant 0 : index
      %c0_80 = arith.constant 0 : index
      %c0_81 = arith.constant 0 : index
      %186 = vector.load %arg15[%c0_79, %c0_80, %c0_81] : memref<1x16x128xf32, #tpu.memory_space<vmem>>, vector<1x16x128xf32>
      %187 = vector.shape_cast %186 : vector<1x16x128xf32> to vector<16x128xf32>
      %188 = vector.shape_cast %185 : vector<16x128xf32> to vector<1x16x128xf32>
      tpu.vector_store %arg15[%c0_79, %c0_80, %c0_81], %188 {strides = array<i32>} : memref<1x16x128xf32, #tpu.memory_space<vmem>>, vector<1x16x128xf32>,
    } else {
    }
    %c0 = arith.constant 0 : index
    %c0_1 = arith.constant 0 : index
    %c0_2 = arith.constant 0 : index
    %3 = vector.load %arg15[%c0, %c0_1, %c0_2] : memref<1x16x128xf32, #tpu.memory_space<vmem>>, vector<1x16x128xf32>
    %4 = vector.shape_cast %3 : vector<1x16x128xf32> to vector<16x128xf32>
    %c0_3 = arith.constant 0 : index
    %c0_4 = arith.constant 0 : index
    %c0_5 = arith.constant 0 : index
    %5 = vector.load %arg3[%c0_3, %c0_4, %c0_5] : memref<1x128x384xbf16, #tpu.memory_space<vmem>>, vector<1x128x384xbf16>
    %6 = vector.shape_cast %5 : vector<1x128x384xbf16> to vector<128x384xbf16>
    %7 = arith.truncf %4 : vector<16x128xf32> to vector<16x128xbf16>
    %cst = arith.constant dense<0.000000e+00> : vector<16x384xf32>
    %8 = tpu.matmul %7, %6, %cst {dimension_numbers = #tpu.dot_dimension_numbers<[1], [0], [0], [1], [0, 0, 1, 1], [], []>} : vector<16x128xbf16>, vector<128x384xbf16>, vector<16x384xf32> -> vector<16x384xf32>
    %c0_6 = arith.constant 0 : index
    %c0_7 = arith.constant 0 : index
    %c0_8 = arith.constant 0 : index
    %9 = vector.load %arg4[%c0_6, %c0_7, %c0_8] : memref<1x1x384xf32, #tpu.memory_space<vmem>>, vector<1x1x384xf32>
    %10 = vector.shape_cast %9 : vector<1x1x384xf32> to vector<1x384xf32>
    %11 = vector.broadcast %10 : vector<1x384xf32> to vector<16x384xf32>
    %12 = arith.addf %8, %11 : vector<16x384xf32>
    %13 = vector.extract_strided_slice %12 {offsets = [0, 0], sizes = [16, 128], strides = [1, 1]} : vector<16x384xf32> to vector<16x128xf32>
    %14 = vector.extract_strided_slice %12 {offsets = [0, 128], sizes = [16, 128], strides = [1, 1]} : vector<16x384xf32> to vector<16x128xf32>
    %15 = vector.extract_strided_slice %12 {offsets = [0, 256], sizes = [16, 128], strides = [1, 1]} : vector<16x384xf32> to vector<16x128xf32>
    %c0_9 = arith.constant 0 : index
    %c0_10 = arith.constant 0 : index
    %c0_11 = arith.constant 0 : index
    %16 = vector.load %arg5[%c0_9, %c0_10, %c0_11] : memref<1x128x128xbf16, #tpu.memory_space<vmem>>, vector<1x128x128xbf16>
    %17 = vector.shape_cast %16 : vector<1x128x128xbf16> to vector<128x128xbf16>
    %c0_12 = arith.constant 0 : index
    %c0_13 = arith.constant 0 : index
    %c0_14 = arith.constant 0 : index
    %18 = vector.load %arg6[%c0_12, %c0_13, %c0_14] : memref<1x1x128xf32, #tpu.memory_space<vmem>>, vector<1x1x128xf32>
    %19 = vector.shape_cast %18 : vector<1x1x128xf32> to vector<1x128xf32>
    %20 = vector.extract_strided_slice %13 {offsets = [0, 0], sizes = [16, 32], strides = [1, 1]} : vector<16x128xf32> to vector<16x32xf32>
    %21 = vector.extract_strided_slice %14 {offsets = [0, 0], sizes = [16, 32], strides = [1, 1]} : vector<16x128xf32> to vector<16x32xf32>
    %22 = arith.truncf %20 : vector<16x32xf32> to vector<16x32xbf16>
    %23 = arith.truncf %21 : vector<16x32xf32> to vector<16x32xbf16>
    %cst_15 = arith.constant dense<0.000000e+00> : vector<16x16xf32>
    %24 = tpu.matmul %22, %23, %cst_15 {dimension_numbers = #tpu.dot_dimension_numbers<[1], [1], [0], [0], [0, 0, 1, 0], [], []>} : vector<16x32xbf16>, vector<16x32xbf16>, vector<16x16xf32> -> vector<16x16xf32>
    %cst_16 = arith.constant 0.176776692 : f32
    %25 = vector.broadcast %cst_16 : f32 to vector<16x16xf32>
    %26 = arith.mulf %24, %25 : vector<16x16xf32>
    %cst_17 = arith.constant dense<0xFF800000> : vector<16xf32>
    %27 = vector.multi_reduction <maximumf>, %26, %cst_17 [1] : vector<16x16xf32> to vector<16xf32>
    %28 = vector.shape_cast %27 : vector<16xf32> to vector<16x1xf32>
    %29 = vector.broadcast %28 : vector<16x1xf32> to vector<16x16xf32>
    %30 = arith.subf %26, %29 : vector<16x16xf32>
    %31 = math.exp %30 : vector<16x16xf32>
    %cst_18 = arith.constant dense<0.000000e+00> : vector<16xf32>
    %32 = vector.multi_reduction <add>, %31, %cst_18 [1] : vector<16x16xf32> to vector<16xf32>
    %33 = vector.shape_cast %32 : vector<16xf32> to vector<16x1xf32>
    %34 = tpu.reciprocal %33 {approx = true} : vector<16x1xf32> -> vector<16x1xf32>
    %35 = vector.extract_strided_slice %15 {offsets = [0, 0], sizes = [16, 32], strides = [1, 1]} : vector<16x128xf32> to vector<16x32xf32>
    %36 = arith.truncf %31 : vector<16x16xf32> to vector<16x16xbf16>
    %37 = arith.truncf %35 : vector<16x32xf32> to vector<16x32xbf16>
    %cst_19 = arith.constant dense<0.000000e+00> : vector<16x32xf32>
    %38 = tpu.matmul %36, %37, %cst_19 {dimension_numbers = #tpu.dot_dimension_numbers<[1], [0], [0], [1], [0, 0, 1, 1], [], []>} : vector<16x16xbf16>, vector<16x32xbf16>, vector<16x32xf32> -> vector<16x32xf32>
    %39 = vector.broadcast %34 : vector<16x1xf32> to vector<16x32xf32>
    %40 = arith.mulf %38, %39 : vector<16x32xf32>
    %41 = vector.extract_strided_slice %13 {offsets = [0, 32], sizes = [16, 32], strides = [1, 1]} : vector<16x128xf32> to vector<16x32xf32>
    %42 = vector.extract_strided_slice %14 {offsets = [0, 32], sizes = [16, 32], strides = [1, 1]} : vector<16x128xf32> to vector<16x32xf32>
    %43 = arith.truncf %41 : vector<16x32xf32> to vector<16x32xbf16>
    %44 = arith.truncf %42 : vector<16x32xf32> to vector<16x32xbf16>
    %cst_20 = arith.constant dense<0.000000e+00> : vector<16x16xf32>
    %45 = tpu.matmul %43, %44, %cst_20 {dimension_numbers = #tpu.dot_dimension_numbers<[1], [1], [0], [0], [0, 0, 1, 0], [], []>} : vector<16x32xbf16>, vector<16x32xbf16>, vector<16x16xf32> -> vector<16x16xf32>
    %cst_21 = arith.constant 0.176776692 : f32
    %46 = vector.broadcast %cst_21 : f32 to vector<16x16xf32>
    %47 = arith.mulf %45, %46 : vector<16x16xf32>
    %cst_22 = arith.constant dense<0xFF800000> : vector<16xf32>
    %48 = vector.multi_reduction <maximumf>, %47, %cst_22 [1] : vector<16x16xf32> to vector<16xf32>
    %49 = vector.shape_cast %48 : vector<16xf32> to vector<16x1xf32>
    %50 = vector.broadcast %49 : vector<16x1xf32> to vector<16x16xf32>
    %51 = arith.subf %47, %50 : vector<16x16xf32>
    %52 = math.exp %51 : vector<16x16xf32>
    %cst_23 = arith.constant dense<0.000000e+00> : vector<16xf32>
    %53 = vector.multi_reduction <add>, %52, %cst_23 [1] : vector<16x16xf32> to vector<16xf32>
    %54 = vector.shape_cast %53 : vector<16xf32> to vector<16x1xf32>
    %55 = tpu.reciprocal %54 {approx = true} : vector<16x1xf32> -> vector<16x1xf32>
    %56 = vector.extract_strided_slice %15 {offsets = [0, 32], sizes = [16, 32], strides = [1, 1]} : vector<16x128xf32> to vector<16x32xf32>
    %57 = arith.truncf %52 : vector<16x16xf32> to vector<16x16xbf16>
    %58 = arith.truncf %56 : vector<16x32xf32> to vector<16x32xbf16>
    %cst_24 = arith.constant dense<0.000000e+00> : vector<16x32xf32>
    %59 = tpu.matmul %57, %58, %cst_24 {dimension_numbers = #tpu.dot_dimension_numbers<[1], [0], [0], [1], [0, 0, 1, 1], [], []>} : vector<16x16xbf16>, vector<16x32xbf16>, vector<16x32xf32> -> vector<16x32xf32>
    %60 = vector.broadcast %55 : vector<16x1xf32> to vector<16x32xf32>
    %61 = arith.mulf %59, %60 : vector<16x32xf32>
    %62 = vector.extract_strided_slice %13 {offsets = [0, 64], sizes = [16, 32], strides = [1, 1]} : vector<16x128xf32> to vector<16x32xf32>
    %63 = vector.extract_strided_slice %14 {offsets = [0, 64], sizes = [16, 32], strides = [1, 1]} : vector<16x128xf32> to vector<16x32xf32>
    %64 = arith.truncf %62 : vector<16x32xf32> to vector<16x32xbf16>
    %65 = arith.truncf %63 : vector<16x32xf32> to vector<16x32xbf16>
    %cst_25 = arith.constant dense<0.000000e+00> : vector<16x16xf32>
    %66 = tpu.matmul %64, %65, %cst_25 {dimension_numbers = #tpu.dot_dimension_numbers<[1], [1], [0], [0], [0, 0, 1, 0], [], []>} : vector<16x32xbf16>, vector<16x32xbf16>, vector<16x16xf32> -> vector<16x16xf32>
    %cst_26 = arith.constant 0.176776692 : f32
    %67 = vector.broadcast %cst_26 : f32 to vector<16x16xf32>
    %68 = arith.mulf %66, %67 : vector<16x16xf32>
    %cst_27 = arith.constant dense<0xFF800000> : vector<16xf32>
    %69 = vector.multi_reduction <maximumf>, %68, %cst_27 [1] : vector<16x16xf32> to vector<16xf32>
    %70 = vector.shape_cast %69 : vector<16xf32> to vector<16x1xf32>
    %71 = vector.broadcast %70 : vector<16x1xf32> to vector<16x16xf32>
    %72 = arith.subf %68, %71 : vector<16x16xf32>
    %73 = math.exp %72 : vector<16x16xf32>
    %cst_28 = arith.constant dense<0.000000e+00> : vector<16xf32>
    %74 = vector.multi_reduction <add>, %73, %cst_28 [1] : vector<16x16xf32> to vector<16xf32>
    %75 = vector.shape_cast %74 : vector<16xf32> to vector<16x1xf32>
    %76 = tpu.reciprocal %75 {approx = true} : vector<16x1xf32> -> vector<16x1xf32>
    %77 = vector.extract_strided_slice %15 {offsets = [0, 64], sizes = [16, 32], strides = [1, 1]} : vector<16x128xf32> to vector<16x32xf32>
    %78 = arith.truncf %73 : vector<16x16xf32> to vector<16x16xbf16>
    %79 = arith.truncf %77 : vector<16x32xf32> to vector<16x32xbf16>
    %cst_29 = arith.constant dense<0.000000e+00> : vector<16x32xf32>
    %80 = tpu.matmul %78, %79, %cst_29 {dimension_numbers = #tpu.dot_dimension_numbers<[1], [0], [0], [1], [0, 0, 1, 1], [], []>} : vector<16x16xbf16>, vector<16x32xbf16>, vector<16x32xf32> -> vector<16x32xf32>
    %81 = vector.broadcast %76 : vector<16x1xf32> to vector<16x32xf32>
    %82 = arith.mulf %80, %81 : vector<16x32xf32>
    %83 = vector.extract_strided_slice %13 {offsets = [0, 96], sizes = [16, 32], strides = [1, 1]} : vector<16x128xf32> to vector<16x32xf32>
    %84 = vector.extract_strided_slice %14 {offsets = [0, 96], sizes = [16, 32], strides = [1, 1]} : vector<16x128xf32> to vector<16x32xf32>
    %85 = arith.truncf %83 : vector<16x32xf32> to vector<16x32xbf16>
    %86 = arith.truncf %84 : vector<16x32xf32> to vector<16x32xbf16>
    %cst_30 = arith.constant dense<0.000000e+00> : vector<16x16xf32>
    %87 = tpu.matmul %85, %86, %cst_30 {dimension_numbers = #tpu.dot_dimension_numbers<[1], [1], [0], [0], [0, 0, 1, 0], [], []>} : vector<16x32xbf16>, vector<16x32xbf16>, vector<16x16xf32> -> vector<16x16xf32>
    %cst_31 = arith.constant 0.176776692 : f32
    %88 = vector.broadcast %cst_31 : f32 to vector<16x16xf32>
    %89 = arith.mulf %87, %88 : vector<16x16xf32>
    %cst_32 = arith.constant dense<0xFF800000> : vector<16xf32>
    %90 = vector.multi_reduction <maximumf>, %89, %cst_32 [1] : vector<16x16xf32> to vector<16xf32>
    %91 = vector.shape_cast %90 : vector<16xf32> to vector<16x1xf32>
    %92 = vector.broadcast %91 : vector<16x1xf32> to vector<16x16xf32>
    %93 = arith.subf %89, %92 : vector<16x16xf32>
    %94 = math.exp %93 : vector<16x16xf32>
    %cst_33 = arith.constant dense<0.000000e+00> : vector<16xf32>
    %95 = vector.multi_reduction <add>, %94, %cst_33 [1] : vector<16x16xf32> to vector<16xf32>
    %96 = vector.shape_cast %95 : vector<16xf32> to vector<16x1xf32>
    %97 = tpu.reciprocal %96 {approx = true} : vector<16x1xf32> -> vector<16x1xf32>
    %98 = vector.extract_strided_slice %15 {offsets = [0, 96], sizes = [16, 32], strides = [1, 1]} : vector<16x128xf32> to vector<16x32xf32>
    %99 = arith.truncf %94 : vector<16x16xf32> to vector<16x16xbf16>
    %100 = arith.truncf %98 : vector<16x32xf32> to vector<16x32xbf16>
    %cst_34 = arith.constant dense<0.000000e+00> : vector<16x32xf32>
    %101 = tpu.matmul %99, %100, %cst_34 {dimension_numbers = #tpu.dot_dimension_numbers<[1], [0], [0], [1], [0, 0, 1, 1], [], []>} : vector<16x16xbf16>, vector<16x32xbf16>, vector<16x32xf32> -> vector<16x32xf32>
    %102 = vector.broadcast %97 : vector<16x1xf32> to vector<16x32xf32>
    %103 = arith.mulf %101, %102 : vector<16x32xf32>
    %104 = tpu.concatenate %40, %61, %82, %103 in 1 : vector<16x32xf32>, vector<16x32xf32>, vector<16x32xf32>, vector<16x32xf32> -> vector<16x128xf32>
    %105 = arith.truncf %104 : vector<16x128xf32> to vector<16x128xbf16>
    %cst_35 = arith.constant dense<0.000000e+00> : vector<16x128xf32>
    %106 = tpu.matmul %105, %17, %cst_35 {dimension_numbers = #tpu.dot_dimension_numbers<[1], [0], [0], [1], [0, 0, 1, 1], [], []>} : vector<16x128xbf16>, vector<128x128xbf16>, vector<16x128xf32> -> vector<16x128xf32>
    %107 = vector.broadcast %19 : vector<1x128xf32> to vector<16x128xf32>
    %108 = arith.addf %106, %107 : vector<16x128xf32>
    %109 = arith.addf %4, %108 : vector<16x128xf32>
    %c0_36 = arith.constant 0 : index
    %c0_37 = arith.constant 0 : index
    %c0_38 = arith.constant 0 : index
    %110 = vector.load %arg7[%c0_36, %c0_37, %c0_38] : memref<1x1x128xf32, #tpu.memory_space<vmem>>, vector<1x1x128xf32>
    %111 = vector.shape_cast %110 : vector<1x1x128xf32> to vector<1x128xf32>
    %c0_39 = arith.constant 0 : index
    %c0_40 = arith.constant 0 : index
    %c0_41 = arith.constant 0 : index
    %112 = vector.load %arg8[%c0_39, %c0_40, %c0_41] : memref<1x1x128xf32, #tpu.memory_space<vmem>>, vector<1x1x128xf32>
    %113 = vector.shape_cast %112 : vector<1x1x128xf32> to vector<1x128xf32>
    %cst_42 = arith.constant dense<0.000000e+00> : vector<16xf32>
    %114 = vector.multi_reduction <add>, %109, %cst_42 [1] : vector<16x128xf32> to vector<16xf32>
    %115 = vector.shape_cast %114 : vector<16xf32> to vector<16x1xf32>
    %cst_43 = arith.constant 1.280000e+02 : f32
    %116 = vector.broadcast %cst_43 : f32 to vector<16x1xf32>
    %117 = arith.divf %115, %116 : vector<16x1xf32>
    %118 = vector.broadcast %117 : vector<16x1xf32> to vector<16x128xf32>
    %119 = arith.subf %109, %118 : vector<16x128xf32>
    %120 = arith.mulf %119, %119 : vector<16x128xf32>
    %cst_44 = arith.constant dense<0.000000e+00> : vector<16xf32>
    %121 = vector.multi_reduction <add>, %120, %cst_44 [1] : vector<16x128xf32> to vector<16xf32>
    %122 = vector.shape_cast %121 : vector<16xf32> to vector<16x1xf32>
    %cst_45 = arith.constant 1.280000e+02 : f32
    %123 = vector.broadcast %cst_45 : f32 to vector<16x1xf32>
    %124 = arith.divf %122, %123 : vector<16x1xf32>
    %125 = vector.broadcast %117 : vector<16x1xf32> to vector<16x128xf32>
    %126 = arith.subf %109, %125 : vector<16x128xf32>
    %cst_46 = arith.constant 9.99999974E-6 : f32
    %127 = vector.broadcast %cst_46 : f32 to vector<16x1xf32>
    %128 = arith.addf %124, %127 : vector<16x1xf32>
    %129 = math.rsqrt %128 : vector<16x1xf32>
    %130 = vector.broadcast %129 : vector<16x1xf32> to vector<16x128xf32>
    %131 = arith.mulf %126, %130 : vector<16x128xf32>
    %132 = vector.broadcast %111 : vector<1x128xf32> to vector<16x128xf32>
    %133 = arith.mulf %131, %132 : vector<16x128xf32>
    %134 = vector.broadcast %113 : vector<1x128xf32> to vector<16x128xf32>
    %135 = arith.addf %133, %134 : vector<16x128xf32>
    %c0_47 = arith.constant 0 : index
    %c0_48 = arith.constant 0 : index
    %c0_49 = arith.constant 0 : index
    %136 = vector.load %arg9[%c0_47, %c0_48, %c0_49] : memref<1x128x512xbf16, #tpu.memory_space<vmem>>, vector<1x128x512xbf16>
    %137 = vector.shape_cast %136 : vector<1x128x512xbf16> to vector<128x512xbf16>
    %138 = arith.truncf %135 : vector<16x128xf32> to vector<16x128xbf16>
    %cst_50 = arith.constant dense<0.000000e+00> : vector<16x512xf32>
    %139 = tpu.matmul %138, %137, %cst_50 {dimension_numbers = #tpu.dot_dimension_numbers<[1], [0], [0], [1], [0, 0, 1, 1], [], []>} : vector<16x128xbf16>, vector<128x512xbf16>, vector<16x512xf32> -> vector<16x512xf32>
    %c0_51 = arith.constant 0 : index
    %c0_52 = arith.constant 0 : index
    %c0_53 = arith.constant 0 : index
    %140 = vector.load %arg10[%c0_51, %c0_52, %c0_53] : memref<1x1x512xf32, #tpu.memory_space<vmem>>, vector<1x1x512xf32>
    %141 = vector.shape_cast %140 : vector<1x1x512xf32> to vector<1x512xf32>
    %142 = vector.broadcast %141 : vector<1x512xf32> to vector<16x512xf32>
    %143 = arith.addf %139, %142 : vector<16x512xf32>
    %cst_54 = arith.constant 0.000000e+00 : f32
    %144 = vector.broadcast %cst_54 : f32 to vector<16x512xf32>
    %145 = arith.maximumf %143, %144 : vector<16x512xf32>
    %c0_55 = arith.constant 0 : index
    %c0_56 = arith.constant 0 : index
    %c0_57 = arith.constant 0 : index
    %146 = vector.load %arg11[%c0_55, %c0_56, %c0_57] : memref<1x512x128xbf16, #tpu.memory_space<vmem>>, vector<1x512x128xbf16>
    %147 = vector.shape_cast %146 : vector<1x512x128xbf16> to vector<512x128xbf16>
    %148 = arith.truncf %145 : vector<16x512xf32> to vector<16x512xbf16>
    %cst_58 = arith.constant dense<0.000000e+00> : vector<16x128xf32>
    %149 = tpu.matmul %148, %147, %cst_58 {dimension_numbers = #tpu.dot_dimension_numbers<[1], [0], [0], [1], [0, 0, 1, 1], [], []>} : vector<16x512xbf16>, vector<512x128xbf16>, vector<16x128xf32> -> vector<16x128xf32>
    %c0_59 = arith.constant 0 : index
    %c0_60 = arith.constant 0 : index
    %c0_61 = arith.constant 0 : index
    %150 = vector.load %arg12[%c0_59, %c0_60, %c0_61] : memref<1x1x128xf32, #tpu.memory_space<vmem>>, vector<1x1x128xf32>
    %151 = vector.shape_cast %150 : vector<1x1x128xf32> to vector<1x128xf32>
    %152 = vector.broadcast %151 : vector<1x128xf32> to vector<16x128xf32>
    %153 = arith.addf %149, %152 : vector<16x128xf32>
    %154 = arith.addf %135, %153 : vector<16x128xf32>
    %c0_62 = arith.constant 0 : index
    %c0_63 = arith.constant 0 : index
    %c0_64 = arith.constant 0 : index
    %155 = vector.load %arg13[%c0_62, %c0_63, %c0_64] : memref<1x1x128xf32, #tpu.memory_space<vmem>>, vector<1x1x128xf32>
    %156 = vector.shape_cast %155 : vector<1x1x128xf32> to vector<1x128xf32>
    %c0_65 = arith.constant 0 : index
    %c0_66 = arith.constant 0 : index
    %c0_67 = arith.constant 0 : index
    %157 = vector.load %arg14[%c0_65, %c0_66, %c0_67] : memref<1x1x128xf32, #tpu.memory_space<vmem>>, vector<1x1x128xf32>
    %158 = vector.shape_cast %157 : vector<1x1x128xf32> to vector<1x128xf32>
    %cst_68 = arith.constant dense<0.000000e+00> : vector<16xf32>
    %159 = vector.multi_reduction <add>, %154, %cst_68 [1] : vector<16x128xf32> to vector<16xf32>
    %160 = vector.shape_cast %159 : vector<16xf32> to vector<16x1xf32>
    %cst_69 = arith.constant 1.280000e+02 : f32
    %161 = vector.broadcast %cst_69 : f32 to vector<16x1xf32>
    %162 = arith.divf %160, %161 : vector<16x1xf32>
    %163 = vector.broadcast %162 : vector<16x1xf32> to vector<16x128xf32>
    %164 = arith.subf %154, %163 : vector<16x128xf32>
    %165 = arith.mulf %164, %164 : vector<16x128xf32>
    %cst_70 = arith.constant dense<0.000000e+00> : vector<16xf32>
    %166 = vector.multi_reduction <add>, %165, %cst_70 [1] : vector<16x128xf32> to vector<16xf32>
    %167 = vector.shape_cast %166 : vector<16xf32> to vector<16x1xf32>
    %cst_71 = arith.constant 1.280000e+02 : f32
    %168 = vector.broadcast %cst_71 : f32 to vector<16x1xf32>
    %169 = arith.divf %167, %168 : vector<16x1xf32>
    %170 = vector.broadcast %162 : vector<16x1xf32> to vector<16x128xf32>
    %171 = arith.subf %154, %170 : vector<16x128xf32>
    %cst_72 = arith.constant 9.99999974E-6 : f32
    %172 = vector.broadcast %cst_72 : f32 to vector<16x1xf32>
    %173 = arith.addf %169, %172 : vector<16x1xf32>
    %174 = math.rsqrt %173 : vector<16x1xf32>
    %175 = vector.broadcast %174 : vector<16x1xf32> to vector<16x128xf32>
    %176 = arith.mulf %171, %175 : vector<16x128xf32>
    %177 = vector.broadcast %156 : vector<1x128xf32> to vector<16x128xf32>
    %178 = arith.mulf %176, %177 : vector<16x128xf32>
    %179 = vector.broadcast %158 : vector<1x128xf32> to vector<16x128xf32>
    %180 = arith.addf %178, %179 : vector<16x128xf32>
    %c0_73 = arith.constant 0 : index
    %c0_74 = arith.constant 0 : index
    %c0_75 = arith.constant 0 : index
    %181 = vector.load %arg15[%c0_73, %c0_74, %c0_75] : memref<1x16x128xf32, #tpu.memory_space<vmem>>, vector<1x16x128xf32>
    %182 = vector.shape_cast %181 : vector<1x16x128xf32> to vector<16x128xf32>
    %183 = vector.shape_cast %180 : vector<16x128xf32> to vector<1x16x128xf32>
    tpu.vector_store %arg15[%c0_73, %c0_74, %c0_75], %183 {strides = array<i32>} : memref<1x16x128xf32, #tpu.memory_space<vmem>>, vector<1x16x128xf32>,
    return
  }
  func.func @transform_0(%arg0: i32, %arg1: i32) -> (i32, i32, i32) {
    %c0_i32 = arith.constant 0 : i32
    %c0_i32_0 = arith.constant 0 : i32
    %c0_i32_1 = arith.constant 0 : i32
    return %arg0, %c0_i32, %c0_i32_0 : i32, i32, i32
  }
  func.func @transform_1(%arg0: i32, %arg1: i32) -> (i32, i32, i32) {
    %c0_i32 = arith.constant 0 : i32
    %c0_i32_0 = arith.constant 0 : i32
    %c0_i32_1 = arith.constant 0 : i32
    return %arg1, %c0_i32, %c0_i32_0 : i32, i32, i32
  }
  func.func @transform_2(%arg0: i32, %arg1: i32) -> (i32, i32, i32) {
    %c0_i32 = arith.constant 0 : i32
    %c0_i32_0 = arith.constant 0 : i32
    %c0_i32_1 = arith.constant 0 : i32
    return %arg1, %c0_i32, %c0_i32_0 : i32, i32, i32
  }
  func.func @transform_3(%arg0: i32, %arg1: i32) -> (i32, i32, i32) {
    %c0_i32 = arith.constant 0 : i32
    %c0_i32_0 = arith.constant 0 : i32
    %c0_i32_1 = arith.constant 0 : i32
    return %arg1, %c0_i32, %c0_i32_0 : i32, i32, i32
  }
  func.func @transform_4(%arg0: i32, %arg1: i32) -> (i32, i32, i32) {
    %c0_i32 = arith.constant 0 : i32
    %c0_i32_0 = arith.constant 0 : i32
    %c0_i32_1 = arith.constant 0 : i32
    return %arg1, %c0_i32, %c0_i32_0 : i32, i32, i32
  }
  func.func @transform_5(%arg0: i32, %arg1: i32) -> (i32, i32, i32) {
    %c0_i32 = arith.constant 0 : i32
    %c0_i32_0 = arith.constant 0 : i32
    %c0_i32_1 = arith.constant 0 : i32
    return %arg1, %c0_i32, %c0_i32_0 : i32, i32, i32
  }
  func.func @transform_6(%arg0: i32, %arg1: i32) -> (i32, i32, i32) {
    %c0_i32 = arith.constant 0 : i32
    %c0_i32_0 = arith.constant 0 : i32
    %c0_i32_1 = arith.constant 0 : i32
    return %arg1, %c0_i32, %c0_i32_0 : i32, i32, i32
  }
  func.func @transform_7(%arg0: i32, %arg1: i32) -> (i32, i32, i32) {
    %c0_i32 = arith.constant 0 : i32
    %c0_i32_0 = arith.constant 0 : i32
    %c0_i32_1 = arith.constant 0 : i32
    return %arg1, %c0_i32, %c0_i32_0 : i32, i32, i32
  }
  func.func @transform_8(%arg0: i32, %arg1: i32) -> (i32, i32, i32) {
    %c0_i32 = arith.constant 0 : i32
    %c0_i32_0 = arith.constant 0 : i32
    %c0_i32_1 = arith.constant 0 : i32
    return %arg1, %c0_i32, %c0_i32_0 : i32, i32, i32
  }
  func.func @transform_9(%arg0: i32, %arg1: i32) -> (i32, i32, i32) {
    %c0_i32 = arith.constant 0 : i32
    %c0_i32_0 = arith.constant 0 : i32
    %c0_i32_1 = arith.constant 0 : i32
    return %arg1, %c0_i32, %c0_i32_0 : i32, i32, i32
  }
  func.func @transform_10(%arg0: i32, %arg1: i32) -> (i32, i32, i32) {
    %c0_i32 = arith.constant 0 : i32
    %c0_i32_0 = arith.constant 0 : i32
    %c0_i32_1 = arith.constant 0 : i32
    return %arg1, %c0_i32, %c0_i32_0 : i32, i32, i32
  }
  func.func @transform_11(%arg0: i32, %arg1: i32) -> (i32, i32, i32) {
    %c0_i32 = arith.constant 0 : i32
    %c0_i32_0 = arith.constant 0 : i32
    %c0_i32_1 = arith.constant 0 : i32
    return %arg1, %c0_i32, %c0_i32_0 : i32, i32, i32
  }
  func.func @transform_12(%arg0: i32, %arg1: i32) -> (i32, i32, i32) {
    %c0_i32 = arith.constant 0 : i32
    %c0_i32_0 = arith.constant 0 : i32
    %c0_i32_1 = arith.constant 0 : i32
    return %arg1, %c0_i32, %c0_i32_0 : i32, i32, i32
  }
  func.func @transform_13(%arg0: i32, %arg1: i32) -> (i32, i32, i32) {
    %c0_i32 = arith.constant 0 : i32
    %c0_i32_0 = arith.constant 0 : i32
    %c0_i32_1 = arith.constant 0 : i32
    return %arg0, %c0_i32, %c0_i32_0 : i32, i32, i32
  }
}

module attributes {stable_mosaic.version = 11 : i64} {
  func.func @_decoder_stack_kernel(%arg0: i32, %arg1: i32, %arg2: memref<1x8x128xf32, #tpu.memory_space<vmem>>, %arg3: memref<1x16x128xf32, #tpu.memory_space<vmem>>, %arg4: memref<1x128x384xbf16, #tpu.memory_space<vmem>>, %arg5: memref<1x1x384xf32, #tpu.memory_space<vmem>>, %arg6: memref<1x128x128xbf16, #tpu.memory_space<vmem>>, %arg7: memref<1x1x128xf32, #tpu.memory_space<vmem>>, %arg8: memref<1x1x128xf32, #tpu.memory_space<vmem>>, %arg9: memref<1x1x128xf32, #tpu.memory_space<vmem>>, %arg10: memref<1x128x128xbf16, #tpu.memory_space<vmem>>, %arg11: memref<1x1x128xf32, #tpu.memory_space<vmem>>, %arg12: memref<1x128x256xbf16, #tpu.memory_space<vmem>>, %arg13: memref<1x1x256xf32, #tpu.memory_space<vmem>>, %arg14: memref<1x128x128xbf16, #tpu.memory_space<vmem>>, %arg15: memref<1x1x128xf32, #tpu.memory_space<vmem>>, %arg16: memref<1x1x128xf32, #tpu.memory_space<vmem>>, %arg17: memref<1x1x128xf32, #tpu.memory_space<vmem>>, %arg18: memref<1x128x512xbf16, #tpu.memory_space<vmem>>, %arg19: memref<1x1x512xf32, #tpu.memory_space<vmem>>, %arg20: memref<1x512x128xbf16, #tpu.memory_space<vmem>>, %arg21: memref<1x1x128xf32, #tpu.memory_space<vmem>>, %arg22: memref<1x1x128xf32, #tpu.memory_space<vmem>>, %arg23: memref<1x1x128xf32, #tpu.memory_space<vmem>>, %arg24: memref<1x8x128xf32, #tpu.memory_space<vmem>>) attributes {dimension_semantics = [#tpu.dimension_semantics<parallel>, #tpu.dimension_semantics<arbitrary>], iteration_bounds = array<i64: 2, 2>, scalar_prefetch = 0 : i64, scratch_operands = 0 : i64, tpu.core_type = #tpu.core_type<tc>, window_params = [{transform_indices = @transform_0, window_bounds = array<i64: 1, 8, 128>}, {transform_indices = @transform_1, window_bounds = array<i64: 1, 16, 128>}, {transform_indices = @transform_2, window_bounds = array<i64: 1, 128, 384>}, {transform_indices = @transform_3, window_bounds = array<i64: 1, 1, 384>}, {transform_indices = @transform_4, window_bounds = array<i64: 1, 128, 128>}, {transform_indices = @transform_5, window_bounds = array<i64: 1, 1, 128>}, {transform_indices = @transform_6, window_bounds = array<i64: 1, 1, 128>}, {transform_indices = @transform_7, window_bounds = array<i64: 1, 1, 128>}, {transform_indices = @transform_8, window_bounds = array<i64: 1, 128, 128>}, {transform_indices = @transform_9, window_bounds = array<i64: 1, 1, 128>}, {transform_indices = @transform_10, window_bounds = array<i64: 1, 128, 256>}, {transform_indices = @transform_11, window_bounds = array<i64: 1, 1, 256>}, {transform_indices = @transform_12, window_bounds = array<i64: 1, 128, 128>}, {transform_indices = @transform_13, window_bounds = array<i64: 1, 1, 128>}, {transform_indices = @transform_14, window_bounds = array<i64: 1, 1, 128>}, {transform_indices = @transform_15, window_bounds = array<i64: 1, 1, 128>}, {transform_indices = @transform_16, window_bounds = array<i64: 1, 128, 512>}, {transform_indices = @transform_17, window_bounds = array<i64: 1, 1, 512>}, {transform_indices = @transform_18, window_bounds = array<i64: 1, 512, 128>}, {transform_indices = @transform_19, window_bounds = array<i64: 1, 1, 128>}, {transform_indices = @transform_20, window_bounds = array<i64: 1, 1, 128>}, {transform_indices = @transform_21, window_bounds = array<i64: 1, 1, 128>}, {transform_indices = @transform_22, window_bounds = array<i64: 1, 8, 128>}]} {
    %c0_i32 = arith.constant 0 : i32
    %0 = arith.cmpi eq, %arg1, %c0_i32 : i32
    %1 = arith.extui %0 : i1 to i32
    %c0_i32_0 = arith.constant 0 : i32
    %2 = arith.cmpi ne, %1, %c0_i32_0 : i32
    scf.if %2 {
      %c0_135 = arith.constant 0 : index
      %c0_136 = arith.constant 0 : index
      %c0_137 = arith.constant 0 : index
      %335 = vector.load %arg2[%c0_135, %c0_136, %c0_137] : memref<1x8x128xf32, #tpu.memory_space<vmem>>, vector<1x8x128xf32>
      %336 = vector.shape_cast %335 : vector<1x8x128xf32> to vector<8x128xf32>
      %c0_138 = arith.constant 0 : index
      %c0_139 = arith.constant 0 : index
      %c0_140 = arith.constant 0 : index
      %337 = vector.load %arg24[%c0_138, %c0_139, %c0_140] : memref<1x8x128xf32, #tpu.memory_space<vmem>>, vector<1x8x128xf32>
      %338 = vector.shape_cast %337 : vector<1x8x128xf32> to vector<8x128xf32>
      %339 = vector.shape_cast %336 : vector<8x128xf32> to vector<1x8x128xf32>
      tpu.vector_store %arg24[%c0_138, %c0_139, %c0_140], %339 {strides = array<i32>} : memref<1x8x128xf32, #tpu.memory_space<vmem>>, vector<1x8x128xf32>,
    } else {
    }
    %c0 = arith.constant 0 : index
    %c0_1 = arith.constant 0 : index
    %c0_2 = arith.constant 0 : index
    %3 = vector.load %arg24[%c0, %c0_1, %c0_2] : memref<1x8x128xf32, #tpu.memory_space<vmem>>, vector<1x8x128xf32>
    %4 = vector.shape_cast %3 : vector<1x8x128xf32> to vector<8x128xf32>
    %c0_3 = arith.constant 0 : index
    %c0_4 = arith.constant 0 : index
    %c0_5 = arith.constant 0 : index
    %5 = vector.load %arg3[%c0_3, %c0_4, %c0_5] : memref<1x16x128xf32, #tpu.memory_space<vmem>>, vector<1x16x128xf32>
    %6 = vector.shape_cast %5 : vector<1x16x128xf32> to vector<16x128xf32>
    %c0_6 = arith.constant 0 : index
    %c0_7 = arith.constant 0 : index
    %c0_8 = arith.constant 0 : index
    %7 = vector.load %arg4[%c0_6, %c0_7, %c0_8] : memref<1x128x384xbf16, #tpu.memory_space<vmem>>, vector<1x128x384xbf16>
    %8 = vector.shape_cast %7 : vector<1x128x384xbf16> to vector<128x384xbf16>
    %9 = arith.truncf %4 : vector<8x128xf32> to vector<8x128xbf16>
    %cst = arith.constant dense<0.000000e+00> : vector<8x384xf32>
    %10 = tpu.matmul %9, %8, %cst {dimension_numbers = #tpu.dot_dimension_numbers<[1], [0], [0], [1], [0, 0, 1, 1], [], []>} : vector<8x128xbf16>, vector<128x384xbf16>, vector<8x384xf32> -> vector<8x384xf32>
    %c0_9 = arith.constant 0 : index
    %c0_10 = arith.constant 0 : index
    %c0_11 = arith.constant 0 : index
    %11 = vector.load %arg5[%c0_9, %c0_10, %c0_11] : memref<1x1x384xf32, #tpu.memory_space<vmem>>, vector<1x1x384xf32>
    %12 = vector.shape_cast %11 : vector<1x1x384xf32> to vector<1x384xf32>
    %13 = vector.broadcast %12 : vector<1x384xf32> to vector<8x384xf32>
    %14 = arith.addf %10, %13 : vector<8x384xf32>
    %15 = vector.extract_strided_slice %14 {offsets = [0, 0], sizes = [8, 128], strides = [1, 1]} : vector<8x384xf32> to vector<8x128xf32>
    %16 = vector.extract_strided_slice %14 {offsets = [0, 128], sizes = [8, 128], strides = [1, 1]} : vector<8x384xf32> to vector<8x128xf32>
    %17 = vector.extract_strided_slice %14 {offsets = [0, 256], sizes = [8, 128], strides = [1, 1]} : vector<8x384xf32> to vector<8x128xf32>
    %c0_12 = arith.constant 0 : index
    %c0_13 = arith.constant 0 : index
    %c0_14 = arith.constant 0 : index
    %18 = vector.load %arg6[%c0_12, %c0_13, %c0_14] : memref<1x128x128xbf16, #tpu.memory_space<vmem>>, vector<1x128x128xbf16>
    %19 = vector.shape_cast %18 : vector<1x128x128xbf16> to vector<128x128xbf16>
    %c0_15 = arith.constant 0 : index
    %c0_16 = arith.constant 0 : index
    %c0_17 = arith.constant 0 : index
    %20 = vector.load %arg7[%c0_15, %c0_16, %c0_17] : memref<1x1x128xf32, #tpu.memory_space<vmem>>, vector<1x1x128xf32>
    %21 = vector.shape_cast %20 : vector<1x1x128xf32> to vector<1x128xf32>
    %22 = tpu.iota {dimensions = array<i32: 0>} : vector<8x8xi32>
    %23 = tpu.iota {dimensions = array<i32: 1>} : vector<8x8xi32>
    %24 = arith.cmpi sge, %22, %23 : vector<8x8xi32>
    %25 = vector.extract_strided_slice %15 {offsets = [0, 0], sizes = [8, 32], strides = [1, 1]} : vector<8x128xf32> to vector<8x32xf32>
    %26 = vector.extract_strided_slice %16 {offsets = [0, 0], sizes = [8, 32], strides = [1, 1]} : vector<8x128xf32> to vector<8x32xf32>
    %27 = arith.truncf %25 : vector<8x32xf32> to vector<8x32xbf16>
    %28 = arith.truncf %26 : vector<8x32xf32> to vector<8x32xbf16>
    %cst_18 = arith.constant dense<0.000000e+00> : vector<8x8xf32>
    %29 = tpu.matmul %27, %28, %cst_18 {dimension_numbers = #tpu.dot_dimension_numbers<[1], [1], [0], [0], [0, 0, 1, 0], [], []>} : vector<8x32xbf16>, vector<8x32xbf16>, vector<8x8xf32> -> vector<8x8xf32>
    %cst_19 = arith.constant 0.176776692 : f32
    %30 = vector.broadcast %cst_19 : f32 to vector<8x8xf32>
    %31 = arith.mulf %29, %30 : vector<8x8xf32>
    %cst_20 = arith.constant -1.000000e+30 : f32
    %32 = vector.broadcast %cst_20 : f32 to vector<8x8xf32>
    %33 = arith.select %24, %31, %32 : vector<8x8xi1>, vector<8x8xf32>
    %cst_21 = arith.constant dense<0xFF800000> : vector<8xf32>
    %34 = vector.multi_reduction <maximumf>, %33, %cst_21 [1] : vector<8x8xf32> to vector<8xf32>
    %35 = vector.shape_cast %34 : vector<8xf32> to vector<8x1xf32>
    %36 = vector.broadcast %35 : vector<8x1xf32> to vector<8x8xf32>
    %37 = arith.subf %33, %36 : vector<8x8xf32>
    %38 = math.exp %37 : vector<8x8xf32>
    %cst_22 = arith.constant dense<0.000000e+00> : vector<8xf32>
    %39 = vector.multi_reduction <add>, %38, %cst_22 [1] : vector<8x8xf32> to vector<8xf32>
    %40 = vector.shape_cast %39 : vector<8xf32> to vector<8x1xf32>
    %41 = tpu.reciprocal %40 {approx = true} : vector<8x1xf32> -> vector<8x1xf32>
    %42 = vector.extract_strided_slice %17 {offsets = [0, 0], sizes = [8, 32], strides = [1, 1]} : vector<8x128xf32> to vector<8x32xf32>
    %43 = arith.truncf %38 : vector<8x8xf32> to vector<8x8xbf16>
    %44 = arith.truncf %42 : vector<8x32xf32> to vector<8x32xbf16>
    %cst_23 = arith.constant dense<0.000000e+00> : vector<8x32xf32>
    %45 = tpu.matmul %43, %44, %cst_23 {dimension_numbers = #tpu.dot_dimension_numbers<[1], [0], [0], [1], [0, 0, 1, 1], [], []>} : vector<8x8xbf16>, vector<8x32xbf16>, vector<8x32xf32> -> vector<8x32xf32>
    %46 = vector.broadcast %41 : vector<8x1xf32> to vector<8x32xf32>
    %47 = arith.mulf %45, %46 : vector<8x32xf32>
    %48 = vector.extract_strided_slice %15 {offsets = [0, 32], sizes = [8, 32], strides = [1, 1]} : vector<8x128xf32> to vector<8x32xf32>
    %49 = vector.extract_strided_slice %16 {offsets = [0, 32], sizes = [8, 32], strides = [1, 1]} : vector<8x128xf32> to vector<8x32xf32>
    %50 = arith.truncf %48 : vector<8x32xf32> to vector<8x32xbf16>
    %51 = arith.truncf %49 : vector<8x32xf32> to vector<8x32xbf16>
    %cst_24 = arith.constant dense<0.000000e+00> : vector<8x8xf32>
    %52 = tpu.matmul %50, %51, %cst_24 {dimension_numbers = #tpu.dot_dimension_numbers<[1], [1], [0], [0], [0, 0, 1, 0], [], []>} : vector<8x32xbf16>, vector<8x32xbf16>, vector<8x8xf32> -> vector<8x8xf32>
    %cst_25 = arith.constant 0.176776692 : f32
    %53 = vector.broadcast %cst_25 : f32 to vector<8x8xf32>
    %54 = arith.mulf %52, %53 : vector<8x8xf32>
    %cst_26 = arith.constant -1.000000e+30 : f32
    %55 = vector.broadcast %cst_26 : f32 to vector<8x8xf32>
    %56 = arith.select %24, %54, %55 : vector<8x8xi1>, vector<8x8xf32>
    %cst_27 = arith.constant dense<0xFF800000> : vector<8xf32>
    %57 = vector.multi_reduction <maximumf>, %56, %cst_27 [1] : vector<8x8xf32> to vector<8xf32>
    %58 = vector.shape_cast %57 : vector<8xf32> to vector<8x1xf32>
    %59 = vector.broadcast %58 : vector<8x1xf32> to vector<8x8xf32>
    %60 = arith.subf %56, %59 : vector<8x8xf32>
    %61 = math.exp %60 : vector<8x8xf32>
    %cst_28 = arith.constant dense<0.000000e+00> : vector<8xf32>
    %62 = vector.multi_reduction <add>, %61, %cst_28 [1] : vector<8x8xf32> to vector<8xf32>
    %63 = vector.shape_cast %62 : vector<8xf32> to vector<8x1xf32>
    %64 = tpu.reciprocal %63 {approx = true} : vector<8x1xf32> -> vector<8x1xf32>
    %65 = vector.extract_strided_slice %17 {offsets = [0, 32], sizes = [8, 32], strides = [1, 1]} : vector<8x128xf32> to vector<8x32xf32>
    %66 = arith.truncf %61 : vector<8x8xf32> to vector<8x8xbf16>
    %67 = arith.truncf %65 : vector<8x32xf32> to vector<8x32xbf16>
    %cst_29 = arith.constant dense<0.000000e+00> : vector<8x32xf32>
    %68 = tpu.matmul %66, %67, %cst_29 {dimension_numbers = #tpu.dot_dimension_numbers<[1], [0], [0], [1], [0, 0, 1, 1], [], []>} : vector<8x8xbf16>, vector<8x32xbf16>, vector<8x32xf32> -> vector<8x32xf32>
    %69 = vector.broadcast %64 : vector<8x1xf32> to vector<8x32xf32>
    %70 = arith.mulf %68, %69 : vector<8x32xf32>
    %71 = vector.extract_strided_slice %15 {offsets = [0, 64], sizes = [8, 32], strides = [1, 1]} : vector<8x128xf32> to vector<8x32xf32>
    %72 = vector.extract_strided_slice %16 {offsets = [0, 64], sizes = [8, 32], strides = [1, 1]} : vector<8x128xf32> to vector<8x32xf32>
    %73 = arith.truncf %71 : vector<8x32xf32> to vector<8x32xbf16>
    %74 = arith.truncf %72 : vector<8x32xf32> to vector<8x32xbf16>
    %cst_30 = arith.constant dense<0.000000e+00> : vector<8x8xf32>
    %75 = tpu.matmul %73, %74, %cst_30 {dimension_numbers = #tpu.dot_dimension_numbers<[1], [1], [0], [0], [0, 0, 1, 0], [], []>} : vector<8x32xbf16>, vector<8x32xbf16>, vector<8x8xf32> -> vector<8x8xf32>
    %cst_31 = arith.constant 0.176776692 : f32
    %76 = vector.broadcast %cst_31 : f32 to vector<8x8xf32>
    %77 = arith.mulf %75, %76 : vector<8x8xf32>
    %cst_32 = arith.constant -1.000000e+30 : f32
    %78 = vector.broadcast %cst_32 : f32 to vector<8x8xf32>
    %79 = arith.select %24, %77, %78 : vector<8x8xi1>, vector<8x8xf32>
    %cst_33 = arith.constant dense<0xFF800000> : vector<8xf32>
    %80 = vector.multi_reduction <maximumf>, %79, %cst_33 [1] : vector<8x8xf32> to vector<8xf32>
    %81 = vector.shape_cast %80 : vector<8xf32> to vector<8x1xf32>
    %82 = vector.broadcast %81 : vector<8x1xf32> to vector<8x8xf32>
    %83 = arith.subf %79, %82 : vector<8x8xf32>
    %84 = math.exp %83 : vector<8x8xf32>
    %cst_34 = arith.constant dense<0.000000e+00> : vector<8xf32>
    %85 = vector.multi_reduction <add>, %84, %cst_34 [1] : vector<8x8xf32> to vector<8xf32>
    %86 = vector.shape_cast %85 : vector<8xf32> to vector<8x1xf32>
    %87 = tpu.reciprocal %86 {approx = true} : vector<8x1xf32> -> vector<8x1xf32>
    %88 = vector.extract_strided_slice %17 {offsets = [0, 64], sizes = [8, 32], strides = [1, 1]} : vector<8x128xf32> to vector<8x32xf32>
    %89 = arith.truncf %84 : vector<8x8xf32> to vector<8x8xbf16>
    %90 = arith.truncf %88 : vector<8x32xf32> to vector<8x32xbf16>
    %cst_35 = arith.constant dense<0.000000e+00> : vector<8x32xf32>
    %91 = tpu.matmul %89, %90, %cst_35 {dimension_numbers = #tpu.dot_dimension_numbers<[1], [0], [0], [1], [0, 0, 1, 1], [], []>} : vector<8x8xbf16>, vector<8x32xbf16>, vector<8x32xf32> -> vector<8x32xf32>
    %92 = vector.broadcast %87 : vector<8x1xf32> to vector<8x32xf32>
    %93 = arith.mulf %91, %92 : vector<8x32xf32>
    %94 = vector.extract_strided_slice %15 {offsets = [0, 96], sizes = [8, 32], strides = [1, 1]} : vector<8x128xf32> to vector<8x32xf32>
    %95 = vector.extract_strided_slice %16 {offsets = [0, 96], sizes = [8, 32], strides = [1, 1]} : vector<8x128xf32> to vector<8x32xf32>
    %96 = arith.truncf %94 : vector<8x32xf32> to vector<8x32xbf16>
    %97 = arith.truncf %95 : vector<8x32xf32> to vector<8x32xbf16>
    %cst_36 = arith.constant dense<0.000000e+00> : vector<8x8xf32>
    %98 = tpu.matmul %96, %97, %cst_36 {dimension_numbers = #tpu.dot_dimension_numbers<[1], [1], [0], [0], [0, 0, 1, 0], [], []>} : vector<8x32xbf16>, vector<8x32xbf16>, vector<8x8xf32> -> vector<8x8xf32>
    %cst_37 = arith.constant 0.176776692 : f32
    %99 = vector.broadcast %cst_37 : f32 to vector<8x8xf32>
    %100 = arith.mulf %98, %99 : vector<8x8xf32>
    %cst_38 = arith.constant -1.000000e+30 : f32
    %101 = vector.broadcast %cst_38 : f32 to vector<8x8xf32>
    %102 = arith.select %24, %100, %101 : vector<8x8xi1>, vector<8x8xf32>
    %cst_39 = arith.constant dense<0xFF800000> : vector<8xf32>
    %103 = vector.multi_reduction <maximumf>, %102, %cst_39 [1] : vector<8x8xf32> to vector<8xf32>
    %104 = vector.shape_cast %103 : vector<8xf32> to vector<8x1xf32>
    %105 = vector.broadcast %104 : vector<8x1xf32> to vector<8x8xf32>
    %106 = arith.subf %102, %105 : vector<8x8xf32>
    %107 = math.exp %106 : vector<8x8xf32>
    %cst_40 = arith.constant dense<0.000000e+00> : vector<8xf32>
    %108 = vector.multi_reduction <add>, %107, %cst_40 [1] : vector<8x8xf32> to vector<8xf32>
    %109 = vector.shape_cast %108 : vector<8xf32> to vector<8x1xf32>
    %110 = tpu.reciprocal %109 {approx = true} : vector<8x1xf32> -> vector<8x1xf32>
    %111 = vector.extract_strided_slice %17 {offsets = [0, 96], sizes = [8, 32], strides = [1, 1]} : vector<8x128xf32> to vector<8x32xf32>
    %112 = arith.truncf %107 : vector<8x8xf32> to vector<8x8xbf16>
    %113 = arith.truncf %111 : vector<8x32xf32> to vector<8x32xbf16>
    %cst_41 = arith.constant dense<0.000000e+00> : vector<8x32xf32>
    %114 = tpu.matmul %112, %113, %cst_41 {dimension_numbers = #tpu.dot_dimension_numbers<[1], [0], [0], [1], [0, 0, 1, 1], [], []>} : vector<8x8xbf16>, vector<8x32xbf16>, vector<8x32xf32> -> vector<8x32xf32>
    %115 = vector.broadcast %110 : vector<8x1xf32> to vector<8x32xf32>
    %116 = arith.mulf %114, %115 : vector<8x32xf32>
    %117 = tpu.concatenate %47, %70, %93, %116 in 1 : vector<8x32xf32>, vector<8x32xf32>, vector<8x32xf32>, vector<8x32xf32> -> vector<8x128xf32>
    %118 = arith.truncf %117 : vector<8x128xf32> to vector<8x128xbf16>
    %cst_42 = arith.constant dense<0.000000e+00> : vector<8x128xf32>
    %119 = tpu.matmul %118, %19, %cst_42 {dimension_numbers = #tpu.dot_dimension_numbers<[1], [0], [0], [1], [0, 0, 1, 1], [], []>} : vector<8x128xbf16>, vector<128x128xbf16>, vector<8x128xf32> -> vector<8x128xf32>
    %120 = vector.broadcast %21 : vector<1x128xf32> to vector<8x128xf32>
    %121 = arith.addf %119, %120 : vector<8x128xf32>
    %122 = arith.addf %4, %121 : vector<8x128xf32>
    %c0_43 = arith.constant 0 : index
    %c0_44 = arith.constant 0 : index
    %c0_45 = arith.constant 0 : index
    %123 = vector.load %arg8[%c0_43, %c0_44, %c0_45] : memref<1x1x128xf32, #tpu.memory_space<vmem>>, vector<1x1x128xf32>
    %124 = vector.shape_cast %123 : vector<1x1x128xf32> to vector<1x128xf32>
    %c0_46 = arith.constant 0 : index
    %c0_47 = arith.constant 0 : index
    %c0_48 = arith.constant 0 : index
    %125 = vector.load %arg9[%c0_46, %c0_47, %c0_48] : memref<1x1x128xf32, #tpu.memory_space<vmem>>, vector<1x1x128xf32>
    %126 = vector.shape_cast %125 : vector<1x1x128xf32> to vector<1x128xf32>
    %cst_49 = arith.constant dense<0.000000e+00> : vector<8xf32>
    %127 = vector.multi_reduction <add>, %122, %cst_49 [1] : vector<8x128xf32> to vector<8xf32>
    %128 = vector.shape_cast %127 : vector<8xf32> to vector<8x1xf32>
    %cst_50 = arith.constant 1.280000e+02 : f32
    %129 = vector.broadcast %cst_50 : f32 to vector<8x1xf32>
    %130 = arith.divf %128, %129 : vector<8x1xf32>
    %131 = vector.broadcast %130 : vector<8x1xf32> to vector<8x128xf32>
    %132 = arith.subf %122, %131 : vector<8x128xf32>
    %133 = arith.mulf %132, %132 : vector<8x128xf32>
    %cst_51 = arith.constant dense<0.000000e+00> : vector<8xf32>
    %134 = vector.multi_reduction <add>, %133, %cst_51 [1] : vector<8x128xf32> to vector<8xf32>
    %135 = vector.shape_cast %134 : vector<8xf32> to vector<8x1xf32>
    %cst_52 = arith.constant 1.280000e+02 : f32
    %136 = vector.broadcast %cst_52 : f32 to vector<8x1xf32>
    %137 = arith.divf %135, %136 : vector<8x1xf32>
    %138 = vector.broadcast %130 : vector<8x1xf32> to vector<8x128xf32>
    %139 = arith.subf %122, %138 : vector<8x128xf32>
    %cst_53 = arith.constant 9.99999974E-6 : f32
    %140 = vector.broadcast %cst_53 : f32 to vector<8x1xf32>
    %141 = arith.addf %137, %140 : vector<8x1xf32>
    %142 = math.rsqrt %141 : vector<8x1xf32>
    %143 = vector.broadcast %142 : vector<8x1xf32> to vector<8x128xf32>
    %144 = arith.mulf %139, %143 : vector<8x128xf32>
    %145 = vector.broadcast %124 : vector<1x128xf32> to vector<8x128xf32>
    %146 = arith.mulf %144, %145 : vector<8x128xf32>
    %147 = vector.broadcast %126 : vector<1x128xf32> to vector<8x128xf32>
    %148 = arith.addf %146, %147 : vector<8x128xf32>
    %c0_54 = arith.constant 0 : index
    %c0_55 = arith.constant 0 : index
    %c0_56 = arith.constant 0 : index
    %149 = vector.load %arg10[%c0_54, %c0_55, %c0_56] : memref<1x128x128xbf16, #tpu.memory_space<vmem>>, vector<1x128x128xbf16>
    %150 = vector.shape_cast %149 : vector<1x128x128xbf16> to vector<128x128xbf16>
    %151 = arith.truncf %148 : vector<8x128xf32> to vector<8x128xbf16>
    %cst_57 = arith.constant dense<0.000000e+00> : vector<8x128xf32>
    %152 = tpu.matmul %151, %150, %cst_57 {dimension_numbers = #tpu.dot_dimension_numbers<[1], [0], [0], [1], [0, 0, 1, 1], [], []>} : vector<8x128xbf16>, vector<128x128xbf16>, vector<8x128xf32> -> vector<8x128xf32>
    %c0_58 = arith.constant 0 : index
    %c0_59 = arith.constant 0 : index
    %c0_60 = arith.constant 0 : index
    %153 = vector.load %arg11[%c0_58, %c0_59, %c0_60] : memref<1x1x128xf32, #tpu.memory_space<vmem>>, vector<1x1x128xf32>
    %154 = vector.shape_cast %153 : vector<1x1x128xf32> to vector<1x128xf32>
    %155 = vector.broadcast %154 : vector<1x128xf32> to vector<8x128xf32>
    %156 = arith.addf %152, %155 : vector<8x128xf32>
    %c0_61 = arith.constant 0 : index
    %c0_62 = arith.constant 0 : index
    %c0_63 = arith.constant 0 : index
    %157 = vector.load %arg12[%c0_61, %c0_62, %c0_63] : memref<1x128x256xbf16, #tpu.memory_space<vmem>>, vector<1x128x256xbf16>
    %158 = vector.shape_cast %157 : vector<1x128x256xbf16> to vector<128x256xbf16>
    %159 = arith.truncf %6 : vector<16x128xf32> to vector<16x128xbf16>
    %cst_64 = arith.constant dense<0.000000e+00> : vector<16x256xf32>
    %160 = tpu.matmul %159, %158, %cst_64 {dimension_numbers = #tpu.dot_dimension_numbers<[1], [0], [0], [1], [0, 0, 1, 1], [], []>} : vector<16x128xbf16>, vector<128x256xbf16>, vector<16x256xf32> -> vector<16x256xf32>
    %c0_65 = arith.constant 0 : index
    %c0_66 = arith.constant 0 : index
    %c0_67 = arith.constant 0 : index
    %161 = vector.load %arg13[%c0_65, %c0_66, %c0_67] : memref<1x1x256xf32, #tpu.memory_space<vmem>>, vector<1x1x256xf32>
    %162 = vector.shape_cast %161 : vector<1x1x256xf32> to vector<1x256xf32>
    %163 = vector.broadcast %162 : vector<1x256xf32> to vector<16x256xf32>
    %164 = arith.addf %160, %163 : vector<16x256xf32>
    %165 = vector.extract_strided_slice %164 {offsets = [0, 0], sizes = [16, 128], strides = [1, 1]} : vector<16x256xf32> to vector<16x128xf32>
    %166 = vector.extract_strided_slice %164 {offsets = [0, 128], sizes = [16, 128], strides = [1, 1]} : vector<16x256xf32> to vector<16x128xf32>
    %c0_68 = arith.constant 0 : index
    %c0_69 = arith.constant 0 : index
    %c0_70 = arith.constant 0 : index
    %167 = vector.load %arg14[%c0_68, %c0_69, %c0_70] : memref<1x128x128xbf16, #tpu.memory_space<vmem>>, vector<1x128x128xbf16>
    %168 = vector.shape_cast %167 : vector<1x128x128xbf16> to vector<128x128xbf16>
    %c0_71 = arith.constant 0 : index
    %c0_72 = arith.constant 0 : index
    %c0_73 = arith.constant 0 : index
    %169 = vector.load %arg15[%c0_71, %c0_72, %c0_73] : memref<1x1x128xf32, #tpu.memory_space<vmem>>, vector<1x1x128xf32>
    %170 = vector.shape_cast %169 : vector<1x1x128xf32> to vector<1x128xf32>
    %171 = vector.extract_strided_slice %156 {offsets = [0, 0], sizes = [8, 32], strides = [1, 1]} : vector<8x128xf32> to vector<8x32xf32>
    %172 = vector.extract_strided_slice %165 {offsets = [0, 0], sizes = [16, 32], strides = [1, 1]} : vector<16x128xf32> to vector<16x32xf32>
    %173 = arith.truncf %171 : vector<8x32xf32> to vector<8x32xbf16>
    %174 = arith.truncf %172 : vector<16x32xf32> to vector<16x32xbf16>
    %cst_74 = arith.constant dense<0.000000e+00> : vector<8x16xf32>
    %175 = tpu.matmul %173, %174, %cst_74 {dimension_numbers = #tpu.dot_dimension_numbers<[1], [1], [0], [0], [0, 0, 1, 0], [], []>} : vector<8x32xbf16>, vector<16x32xbf16>, vector<8x16xf32> -> vector<8x16xf32>
    %cst_75 = arith.constant 0.176776692 : f32
    %176 = vector.broadcast %cst_75 : f32 to vector<8x16xf32>
    %177 = arith.mulf %175, %176 : vector<8x16xf32>
    %cst_76 = arith.constant dense<0xFF800000> : vector<8xf32>
    %178 = vector.multi_reduction <maximumf>, %177, %cst_76 [1] : vector<8x16xf32> to vector<8xf32>
    %179 = vector.shape_cast %178 : vector<8xf32> to vector<8x1xf32>
    %180 = vector.broadcast %179 : vector<8x1xf32> to vector<8x16xf32>
    %181 = arith.subf %177, %180 : vector<8x16xf32>
    %182 = math.exp %181 : vector<8x16xf32>
    %cst_77 = arith.constant dense<0.000000e+00> : vector<8xf32>
    %183 = vector.multi_reduction <add>, %182, %cst_77 [1] : vector<8x16xf32> to vector<8xf32>
    %184 = vector.shape_cast %183 : vector<8xf32> to vector<8x1xf32>
    %185 = tpu.reciprocal %184 {approx = true} : vector<8x1xf32> -> vector<8x1xf32>
    %186 = vector.extract_strided_slice %166 {offsets = [0, 0], sizes = [16, 32], strides = [1, 1]} : vector<16x128xf32> to vector<16x32xf32>
    %187 = arith.truncf %182 : vector<8x16xf32> to vector<8x16xbf16>
    %188 = arith.truncf %186 : vector<16x32xf32> to vector<16x32xbf16>
    %cst_78 = arith.constant dense<0.000000e+00> : vector<8x32xf32>
    %189 = tpu.matmul %187, %188, %cst_78 {dimension_numbers = #tpu.dot_dimension_numbers<[1], [0], [0], [1], [0, 0, 1, 1], [], []>} : vector<8x16xbf16>, vector<16x32xbf16>, vector<8x32xf32> -> vector<8x32xf32>
    %190 = vector.broadcast %185 : vector<8x1xf32> to vector<8x32xf32>
    %191 = arith.mulf %189, %190 : vector<8x32xf32>
    %192 = vector.extract_strided_slice %156 {offsets = [0, 32], sizes = [8, 32], strides = [1, 1]} : vector<8x128xf32> to vector<8x32xf32>
    %193 = vector.extract_strided_slice %165 {offsets = [0, 32], sizes = [16, 32], strides = [1, 1]} : vector<16x128xf32> to vector<16x32xf32>
    %194 = arith.truncf %192 : vector<8x32xf32> to vector<8x32xbf16>
    %195 = arith.truncf %193 : vector<16x32xf32> to vector<16x32xbf16>
    %cst_79 = arith.constant dense<0.000000e+00> : vector<8x16xf32>
    %196 = tpu.matmul %194, %195, %cst_79 {dimension_numbers = #tpu.dot_dimension_numbers<[1], [1], [0], [0], [0, 0, 1, 0], [], []>} : vector<8x32xbf16>, vector<16x32xbf16>, vector<8x16xf32> -> vector<8x16xf32>
    %cst_80 = arith.constant 0.176776692 : f32
    %197 = vector.broadcast %cst_80 : f32 to vector<8x16xf32>
    %198 = arith.mulf %196, %197 : vector<8x16xf32>
    %cst_81 = arith.constant dense<0xFF800000> : vector<8xf32>
    %199 = vector.multi_reduction <maximumf>, %198, %cst_81 [1] : vector<8x16xf32> to vector<8xf32>
    %200 = vector.shape_cast %199 : vector<8xf32> to vector<8x1xf32>
    %201 = vector.broadcast %200 : vector<8x1xf32> to vector<8x16xf32>
    %202 = arith.subf %198, %201 : vector<8x16xf32>
    %203 = math.exp %202 : vector<8x16xf32>
    %cst_82 = arith.constant dense<0.000000e+00> : vector<8xf32>
    %204 = vector.multi_reduction <add>, %203, %cst_82 [1] : vector<8x16xf32> to vector<8xf32>
    %205 = vector.shape_cast %204 : vector<8xf32> to vector<8x1xf32>
    %206 = tpu.reciprocal %205 {approx = true} : vector<8x1xf32> -> vector<8x1xf32>
    %207 = vector.extract_strided_slice %166 {offsets = [0, 32], sizes = [16, 32], strides = [1, 1]} : vector<16x128xf32> to vector<16x32xf32>
    %208 = arith.truncf %203 : vector<8x16xf32> to vector<8x16xbf16>
    %209 = arith.truncf %207 : vector<16x32xf32> to vector<16x32xbf16>
    %cst_83 = arith.constant dense<0.000000e+00> : vector<8x32xf32>
    %210 = tpu.matmul %208, %209, %cst_83 {dimension_numbers = #tpu.dot_dimension_numbers<[1], [0], [0], [1], [0, 0, 1, 1], [], []>} : vector<8x16xbf16>, vector<16x32xbf16>, vector<8x32xf32> -> vector<8x32xf32>
    %211 = vector.broadcast %206 : vector<8x1xf32> to vector<8x32xf32>
    %212 = arith.mulf %210, %211 : vector<8x32xf32>
    %213 = vector.extract_strided_slice %156 {offsets = [0, 64], sizes = [8, 32], strides = [1, 1]} : vector<8x128xf32> to vector<8x32xf32>
    %214 = vector.extract_strided_slice %165 {offsets = [0, 64], sizes = [16, 32], strides = [1, 1]} : vector<16x128xf32> to vector<16x32xf32>
    %215 = arith.truncf %213 : vector<8x32xf32> to vector<8x32xbf16>
    %216 = arith.truncf %214 : vector<16x32xf32> to vector<16x32xbf16>
    %cst_84 = arith.constant dense<0.000000e+00> : vector<8x16xf32>
    %217 = tpu.matmul %215, %216, %cst_84 {dimension_numbers = #tpu.dot_dimension_numbers<[1], [1], [0], [0], [0, 0, 1, 0], [], []>} : vector<8x32xbf16>, vector<16x32xbf16>, vector<8x16xf32> -> vector<8x16xf32>
    %cst_85 = arith.constant 0.176776692 : f32
    %218 = vector.broadcast %cst_85 : f32 to vector<8x16xf32>
    %219 = arith.mulf %217, %218 : vector<8x16xf32>
    %cst_86 = arith.constant dense<0xFF800000> : vector<8xf32>
    %220 = vector.multi_reduction <maximumf>, %219, %cst_86 [1] : vector<8x16xf32> to vector<8xf32>
    %221 = vector.shape_cast %220 : vector<8xf32> to vector<8x1xf32>
    %222 = vector.broadcast %221 : vector<8x1xf32> to vector<8x16xf32>
    %223 = arith.subf %219, %222 : vector<8x16xf32>
    %224 = math.exp %223 : vector<8x16xf32>
    %cst_87 = arith.constant dense<0.000000e+00> : vector<8xf32>
    %225 = vector.multi_reduction <add>, %224, %cst_87 [1] : vector<8x16xf32> to vector<8xf32>
    %226 = vector.shape_cast %225 : vector<8xf32> to vector<8x1xf32>
    %227 = tpu.reciprocal %226 {approx = true} : vector<8x1xf32> -> vector<8x1xf32>
    %228 = vector.extract_strided_slice %166 {offsets = [0, 64], sizes = [16, 32], strides = [1, 1]} : vector<16x128xf32> to vector<16x32xf32>
    %229 = arith.truncf %224 : vector<8x16xf32> to vector<8x16xbf16>
    %230 = arith.truncf %228 : vector<16x32xf32> to vector<16x32xbf16>
    %cst_88 = arith.constant dense<0.000000e+00> : vector<8x32xf32>
    %231 = tpu.matmul %229, %230, %cst_88 {dimension_numbers = #tpu.dot_dimension_numbers<[1], [0], [0], [1], [0, 0, 1, 1], [], []>} : vector<8x16xbf16>, vector<16x32xbf16>, vector<8x32xf32> -> vector<8x32xf32>
    %232 = vector.broadcast %227 : vector<8x1xf32> to vector<8x32xf32>
    %233 = arith.mulf %231, %232 : vector<8x32xf32>
    %234 = vector.extract_strided_slice %156 {offsets = [0, 96], sizes = [8, 32], strides = [1, 1]} : vector<8x128xf32> to vector<8x32xf32>
    %235 = vector.extract_strided_slice %165 {offsets = [0, 96], sizes = [16, 32], strides = [1, 1]} : vector<16x128xf32> to vector<16x32xf32>
    %236 = arith.truncf %234 : vector<8x32xf32> to vector<8x32xbf16>
    %237 = arith.truncf %235 : vector<16x32xf32> to vector<16x32xbf16>
    %cst_89 = arith.constant dense<0.000000e+00> : vector<8x16xf32>
    %238 = tpu.matmul %236, %237, %cst_89 {dimension_numbers = #tpu.dot_dimension_numbers<[1], [1], [0], [0], [0, 0, 1, 0], [], []>} : vector<8x32xbf16>, vector<16x32xbf16>, vector<8x16xf32> -> vector<8x16xf32>
    %cst_90 = arith.constant 0.176776692 : f32
    %239 = vector.broadcast %cst_90 : f32 to vector<8x16xf32>
    %240 = arith.mulf %238, %239 : vector<8x16xf32>
    %cst_91 = arith.constant dense<0xFF800000> : vector<8xf32>
    %241 = vector.multi_reduction <maximumf>, %240, %cst_91 [1] : vector<8x16xf32> to vector<8xf32>
    %242 = vector.shape_cast %241 : vector<8xf32> to vector<8x1xf32>
    %243 = vector.broadcast %242 : vector<8x1xf32> to vector<8x16xf32>
    %244 = arith.subf %240, %243 : vector<8x16xf32>
    %245 = math.exp %244 : vector<8x16xf32>
    %cst_92 = arith.constant dense<0.000000e+00> : vector<8xf32>
    %246 = vector.multi_reduction <add>, %245, %cst_92 [1] : vector<8x16xf32> to vector<8xf32>
    %247 = vector.shape_cast %246 : vector<8xf32> to vector<8x1xf32>
    %248 = tpu.reciprocal %247 {approx = true} : vector<8x1xf32> -> vector<8x1xf32>
    %249 = vector.extract_strided_slice %166 {offsets = [0, 96], sizes = [16, 32], strides = [1, 1]} : vector<16x128xf32> to vector<16x32xf32>
    %250 = arith.truncf %245 : vector<8x16xf32> to vector<8x16xbf16>
    %251 = arith.truncf %249 : vector<16x32xf32> to vector<16x32xbf16>
    %cst_93 = arith.constant dense<0.000000e+00> : vector<8x32xf32>
    %252 = tpu.matmul %250, %251, %cst_93 {dimension_numbers = #tpu.dot_dimension_numbers<[1], [0], [0], [1], [0, 0, 1, 1], [], []>} : vector<8x16xbf16>, vector<16x32xbf16>, vector<8x32xf32> -> vector<8x32xf32>
    %253 = vector.broadcast %248 : vector<8x1xf32> to vector<8x32xf32>
    %254 = arith.mulf %252, %253 : vector<8x32xf32>
    %255 = tpu.concatenate %191, %212, %233, %254 in 1 : vector<8x32xf32>, vector<8x32xf32>, vector<8x32xf32>, vector<8x32xf32> -> vector<8x128xf32>
    %256 = arith.truncf %255 : vector<8x128xf32> to vector<8x128xbf16>
    %cst_94 = arith.constant dense<0.000000e+00> : vector<8x128xf32>
    %257 = tpu.matmul %256, %168, %cst_94 {dimension_numbers = #tpu.dot_dimension_numbers<[1], [0], [0], [1], [0, 0, 1, 1], [], []>} : vector<8x128xbf16>, vector<128x128xbf16>, vector<8x128xf32> -> vector<8x128xf32>
    %258 = vector.broadcast %170 : vector<1x128xf32> to vector<8x128xf32>
    %259 = arith.addf %257, %258 : vector<8x128xf32>
    %260 = arith.addf %148, %259 : vector<8x128xf32>
    %c0_95 = arith.constant 0 : index
    %c0_96 = arith.constant 0 : index
    %c0_97 = arith.constant 0 : index
    %261 = vector.load %arg16[%c0_95, %c0_96, %c0_97] : memref<1x1x128xf32, #tpu.memory_space<vmem>>, vector<1x1x128xf32>
    %262 = vector.shape_cast %261 : vector<1x1x128xf32> to vector<1x128xf32>
    %c0_98 = arith.constant 0 : index
    %c0_99 = arith.constant 0 : index
    %c0_100 = arith.constant 0 : index
    %263 = vector.load %arg17[%c0_98, %c0_99, %c0_100] : memref<1x1x128xf32, #tpu.memory_space<vmem>>, vector<1x1x128xf32>
    %264 = vector.shape_cast %263 : vector<1x1x128xf32> to vector<1x128xf32>
    %cst_101 = arith.constant dense<0.000000e+00> : vector<8xf32>
    %265 = vector.multi_reduction <add>, %260, %cst_101 [1] : vector<8x128xf32> to vector<8xf32>
    %266 = vector.shape_cast %265 : vector<8xf32> to vector<8x1xf32>
    %cst_102 = arith.constant 1.280000e+02 : f32
    %267 = vector.broadcast %cst_102 : f32 to vector<8x1xf32>
    %268 = arith.divf %266, %267 : vector<8x1xf32>
    %269 = vector.broadcast %268 : vector<8x1xf32> to vector<8x128xf32>
    %270 = arith.subf %260, %269 : vector<8x128xf32>
    %271 = arith.mulf %270, %270 : vector<8x128xf32>
    %cst_103 = arith.constant dense<0.000000e+00> : vector<8xf32>
    %272 = vector.multi_reduction <add>, %271, %cst_103 [1] : vector<8x128xf32> to vector<8xf32>
    %273 = vector.shape_cast %272 : vector<8xf32> to vector<8x1xf32>
    %cst_104 = arith.constant 1.280000e+02 : f32
    %274 = vector.broadcast %cst_104 : f32 to vector<8x1xf32>
    %275 = arith.divf %273, %274 : vector<8x1xf32>
    %276 = vector.broadcast %268 : vector<8x1xf32> to vector<8x128xf32>
    %277 = arith.subf %260, %276 : vector<8x128xf32>
    %cst_105 = arith.constant 9.99999974E-6 : f32
    %278 = vector.broadcast %cst_105 : f32 to vector<8x1xf32>
    %279 = arith.addf %275, %278 : vector<8x1xf32>
    %280 = math.rsqrt %279 : vector<8x1xf32>
    %281 = vector.broadcast %280 : vector<8x1xf32> to vector<8x128xf32>
    %282 = arith.mulf %277, %281 : vector<8x128xf32>
    %283 = vector.broadcast %262 : vector<1x128xf32> to vector<8x128xf32>
    %284 = arith.mulf %282, %283 : vector<8x128xf32>
    %285 = vector.broadcast %264 : vector<1x128xf32> to vector<8x128xf32>
    %286 = arith.addf %284, %285 : vector<8x128xf32>
    %c0_106 = arith.constant 0 : index
    %c0_107 = arith.constant 0 : index
    %c0_108 = arith.constant 0 : index
    %287 = vector.load %arg18[%c0_106, %c0_107, %c0_108] : memref<1x128x512xbf16, #tpu.memory_space<vmem>>, vector<1x128x512xbf16>
    %288 = vector.shape_cast %287 : vector<1x128x512xbf16> to vector<128x512xbf16>
    %289 = arith.truncf %286 : vector<8x128xf32> to vector<8x128xbf16>
    %cst_109 = arith.constant dense<0.000000e+00> : vector<8x512xf32>
    %290 = tpu.matmul %289, %288, %cst_109 {dimension_numbers = #tpu.dot_dimension_numbers<[1], [0], [0], [1], [0, 0, 1, 1], [], []>} : vector<8x128xbf16>, vector<128x512xbf16>, vector<8x512xf32> -> vector<8x512xf32>
    %c0_110 = arith.constant 0 : index
    %c0_111 = arith.constant 0 : index
    %c0_112 = arith.constant 0 : index
    %291 = vector.load %arg19[%c0_110, %c0_111, %c0_112] : memref<1x1x512xf32, #tpu.memory_space<vmem>>, vector<1x1x512xf32>
    %292 = vector.shape_cast %291 : vector<1x1x512xf32> to vector<1x512xf32>
    %293 = vector.broadcast %292 : vector<1x512xf32> to vector<8x512xf32>
    %294 = arith.addf %290, %293 : vector<8x512xf32>
    %cst_113 = arith.constant 0.000000e+00 : f32
    %295 = vector.broadcast %cst_113 : f32 to vector<8x512xf32>
    %296 = arith.maximumf %294, %295 : vector<8x512xf32>
    %c0_114 = arith.constant 0 : index
    %c0_115 = arith.constant 0 : index
    %c0_116 = arith.constant 0 : index
    %297 = vector.load %arg20[%c0_114, %c0_115, %c0_116] : memref<1x512x128xbf16, #tpu.memory_space<vmem>>, vector<1x512x128xbf16>
    %298 = vector.shape_cast %297 : vector<1x512x128xbf16> to vector<512x128xbf16>
    %299 = arith.truncf %296 : vector<8x512xf32> to vector<8x512xbf16>
    %cst_117 = arith.constant dense<0.000000e+00> : vector<8x128xf32>
    %300 = tpu.matmul %299, %298, %cst_117 {dimension_numbers = #tpu.dot_dimension_numbers<[1], [0], [0], [1], [0, 0, 1, 1], [], []>} : vector<8x512xbf16>, vector<512x128xbf16>, vector<8x128xf32> -> vector<8x128xf32>
    %c0_118 = arith.constant 0 : index
    %c0_119 = arith.constant 0 : index
    %c0_120 = arith.constant 0 : index
    %301 = vector.load %arg21[%c0_118, %c0_119, %c0_120] : memref<1x1x128xf32, #tpu.memory_space<vmem>>, vector<1x1x128xf32>
    %302 = vector.shape_cast %301 : vector<1x1x128xf32> to vector<1x128xf32>
    %303 = vector.broadcast %302 : vector<1x128xf32> to vector<8x128xf32>
    %304 = arith.addf %300, %303 : vector<8x128xf32>
    %305 = arith.addf %286, %304 : vector<8x128xf32>
    %c0_121 = arith.constant 0 : index
    %c0_122 = arith.constant 0 : index
    %c0_123 = arith.constant 0 : index
    %306 = vector.load %arg22[%c0_121, %c0_122, %c0_123] : memref<1x1x128xf32, #tpu.memory_space<vmem>>, vector<1x1x128xf32>
    %307 = vector.shape_cast %306 : vector<1x1x128xf32> to vector<1x128xf32>
    %c0_124 = arith.constant 0 : index
    %c0_125 = arith.constant 0 : index
    %c0_126 = arith.constant 0 : index
    %308 = vector.load %arg23[%c0_124, %c0_125, %c0_126] : memref<1x1x128xf32, #tpu.memory_space<vmem>>, vector<1x1x128xf32>
    %309 = vector.shape_cast %308 : vector<1x1x128xf32> to vector<1x128xf32>
    %cst_127 = arith.constant dense<0.000000e+00> : vector<8xf32>
    %310 = vector.multi_reduction <add>, %305, %cst_127 [1] : vector<8x128xf32> to vector<8xf32>
    %311 = vector.shape_cast %310 : vector<8xf32> to vector<8x1xf32>
    %cst_128 = arith.constant 1.280000e+02 : f32
    %312 = vector.broadcast %cst_128 : f32 to vector<8x1xf32>
    %313 = arith.divf %311, %312 : vector<8x1xf32>
    %314 = vector.broadcast %313 : vector<8x1xf32> to vector<8x128xf32>
    %315 = arith.subf %305, %314 : vector<8x128xf32>
    %316 = arith.mulf %315, %315 : vector<8x128xf32>
    %cst_129 = arith.constant dense<0.000000e+00> : vector<8xf32>
    %317 = vector.multi_reduction <add>, %316, %cst_129 [1] : vector<8x128xf32> to vector<8xf32>
    %318 = vector.shape_cast %317 : vector<8xf32> to vector<8x1xf32>
    %cst_130 = arith.constant 1.280000e+02 : f32
    %319 = vector.broadcast %cst_130 : f32 to vector<8x1xf32>
    %320 = arith.divf %318, %319 : vector<8x1xf32>
    %321 = vector.broadcast %313 : vector<8x1xf32> to vector<8x128xf32>
    %322 = arith.subf %305, %321 : vector<8x128xf32>
    %cst_131 = arith.constant 9.99999974E-6 : f32
    %323 = vector.broadcast %cst_131 : f32 to vector<8x1xf32>
    %324 = arith.addf %320, %323 : vector<8x1xf32>
    %325 = math.rsqrt %324 : vector<8x1xf32>
    %326 = vector.broadcast %325 : vector<8x1xf32> to vector<8x128xf32>
    %327 = arith.mulf %322, %326 : vector<8x128xf32>
    %328 = vector.broadcast %307 : vector<1x128xf32> to vector<8x128xf32>
    %329 = arith.mulf %327, %328 : vector<8x128xf32>
    %330 = vector.broadcast %309 : vector<1x128xf32> to vector<8x128xf32>
    %331 = arith.addf %329, %330 : vector<8x128xf32>
    %c0_132 = arith.constant 0 : index
    %c0_133 = arith.constant 0 : index
    %c0_134 = arith.constant 0 : index
    %332 = vector.load %arg24[%c0_132, %c0_133, %c0_134] : memref<1x8x128xf32, #tpu.memory_space<vmem>>, vector<1x8x128xf32>
    %333 = vector.shape_cast %332 : vector<1x8x128xf32> to vector<8x128xf32>
    %334 = vector.shape_cast %331 : vector<8x128xf32> to vector<1x8x128xf32>
    tpu.vector_store %arg24[%c0_132, %c0_133, %c0_134], %334 {strides = array<i32>} : memref<1x8x128xf32, #tpu.memory_space<vmem>>, vector<1x8x128xf32>,
    return
  }
  func.func @transform_0(%arg0: i32, %arg1: i32) -> (i32, i32, i32) {
    %c0_i32 = arith.constant 0 : i32
    %c0_i32_0 = arith.constant 0 : i32
    %c0_i32_1 = arith.constant 0 : i32
    return %arg0, %c0_i32, %c0_i32_0 : i32, i32, i32
  }
  func.func @transform_1(%arg0: i32, %arg1: i32) -> (i32, i32, i32) {
    %c0_i32 = arith.constant 0 : i32
    %c0_i32_0 = arith.constant 0 : i32
    %c0_i32_1 = arith.constant 0 : i32
    return %arg0, %c0_i32, %c0_i32_0 : i32, i32, i32
  }
  func.func @transform_2(%arg0: i32, %arg1: i32) -> (i32, i32, i32) {
    %c0_i32 = arith.constant 0 : i32
    %c0_i32_0 = arith.constant 0 : i32
    %c0_i32_1 = arith.constant 0 : i32
    return %arg1, %c0_i32, %c0_i32_0 : i32, i32, i32
  }
  func.func @transform_3(%arg0: i32, %arg1: i32) -> (i32, i32, i32) {
    %c0_i32 = arith.constant 0 : i32
    %c0_i32_0 = arith.constant 0 : i32
    %c0_i32_1 = arith.constant 0 : i32
    return %arg1, %c0_i32, %c0_i32_0 : i32, i32, i32
  }
  func.func @transform_4(%arg0: i32, %arg1: i32) -> (i32, i32, i32) {
    %c0_i32 = arith.constant 0 : i32
    %c0_i32_0 = arith.constant 0 : i32
    %c0_i32_1 = arith.constant 0 : i32
    return %arg1, %c0_i32, %c0_i32_0 : i32, i32, i32
  }
  func.func @transform_5(%arg0: i32, %arg1: i32) -> (i32, i32, i32) {
    %c0_i32 = arith.constant 0 : i32
    %c0_i32_0 = arith.constant 0 : i32
    %c0_i32_1 = arith.constant 0 : i32
    return %arg1, %c0_i32, %c0_i32_0 : i32, i32, i32
  }
  func.func @transform_6(%arg0: i32, %arg1: i32) -> (i32, i32, i32) {
    %c0_i32 = arith.constant 0 : i32
    %c0_i32_0 = arith.constant 0 : i32
    %c0_i32_1 = arith.constant 0 : i32
    return %arg1, %c0_i32, %c0_i32_0 : i32, i32, i32
  }
  func.func @transform_7(%arg0: i32, %arg1: i32) -> (i32, i32, i32) {
    %c0_i32 = arith.constant 0 : i32
    %c0_i32_0 = arith.constant 0 : i32
    %c0_i32_1 = arith.constant 0 : i32
    return %arg1, %c0_i32, %c0_i32_0 : i32, i32, i32
  }
  func.func @transform_8(%arg0: i32, %arg1: i32) -> (i32, i32, i32) {
    %c0_i32 = arith.constant 0 : i32
    %c0_i32_0 = arith.constant 0 : i32
    %c0_i32_1 = arith.constant 0 : i32
    return %arg1, %c0_i32, %c0_i32_0 : i32, i32, i32
  }
  func.func @transform_9(%arg0: i32, %arg1: i32) -> (i32, i32, i32) {
    %c0_i32 = arith.constant 0 : i32
    %c0_i32_0 = arith.constant 0 : i32
    %c0_i32_1 = arith.constant 0 : i32
    return %arg1, %c0_i32, %c0_i32_0 : i32, i32, i32
  }
  func.func @transform_10(%arg0: i32, %arg1: i32) -> (i32, i32, i32) {
    %c0_i32 = arith.constant 0 : i32
    %c0_i32_0 = arith.constant 0 : i32
    %c0_i32_1 = arith.constant 0 : i32
    return %arg1, %c0_i32, %c0_i32_0 : i32, i32, i32
  }
  func.func @transform_11(%arg0: i32, %arg1: i32) -> (i32, i32, i32) {
    %c0_i32 = arith.constant 0 : i32
    %c0_i32_0 = arith.constant 0 : i32
    %c0_i32_1 = arith.constant 0 : i32
    return %arg1, %c0_i32, %c0_i32_0 : i32, i32, i32
  }
  func.func @transform_12(%arg0: i32, %arg1: i32) -> (i32, i32, i32) {
    %c0_i32 = arith.constant 0 : i32
    %c0_i32_0 = arith.constant 0 : i32
    %c0_i32_1 = arith.constant 0 : i32
    return %arg1, %c0_i32, %c0_i32_0 : i32, i32, i32
  }
  func.func @transform_13(%arg0: i32, %arg1: i32) -> (i32, i32, i32) {
    %c0_i32 = arith.constant 0 : i32
    %c0_i32_0 = arith.constant 0 : i32
    %c0_i32_1 = arith.constant 0 : i32
    return %arg1, %c0_i32, %c0_i32_0 : i32, i32, i32
  }
  func.func @transform_14(%arg0: i32, %arg1: i32) -> (i32, i32, i32) {
    %c0_i32 = arith.constant 0 : i32
    %c0_i32_0 = arith.constant 0 : i32
    %c0_i32_1 = arith.constant 0 : i32
    return %arg1, %c0_i32, %c0_i32_0 : i32, i32, i32
  }
  func.func @transform_15(%arg0: i32, %arg1: i32) -> (i32, i32, i32) {
    %c0_i32 = arith.constant 0 : i32
    %c0_i32_0 = arith.constant 0 : i32
    %c0_i32_1 = arith.constant 0 : i32
    return %arg1, %c0_i32, %c0_i32_0 : i32, i32, i32
  }
  func.func @transform_16(%arg0: i32, %arg1: i32) -> (i32, i32, i32) {
    %c0_i32 = arith.constant 0 : i32
    %c0_i32_0 = arith.constant 0 : i32
    %c0_i32_1 = arith.constant 0 : i32
    return %arg1, %c0_i32, %c0_i32_0 : i32, i32, i32
  }
  func.func @transform_17(%arg0: i32, %arg1: i32) -> (i32, i32, i32) {
    %c0_i32 = arith.constant 0 : i32
    %c0_i32_0 = arith.constant 0 : i32
    %c0_i32_1 = arith.constant 0 : i32
    return %arg1, %c0_i32, %c0_i32_0 : i32, i32, i32
  }
  func.func @transform_18(%arg0: i32, %arg1: i32) -> (i32, i32, i32) {
    %c0_i32 = arith.constant 0 : i32
    %c0_i32_0 = arith.constant 0 : i32
    %c0_i32_1 = arith.constant 0 : i32
    return %arg1, %c0_i32, %c0_i32_0 : i32, i32, i32
  }
  func.func @transform_19(%arg0: i32, %arg1: i32) -> (i32, i32, i32) {
    %c0_i32 = arith.constant 0 : i32
    %c0_i32_0 = arith.constant 0 : i32
    %c0_i32_1 = arith.constant 0 : i32
    return %arg1, %c0_i32, %c0_i32_0 : i32, i32, i32
  }
  func.func @transform_20(%arg0: i32, %arg1: i32) -> (i32, i32, i32) {
    %c0_i32 = arith.constant 0 : i32
    %c0_i32_0 = arith.constant 0 : i32
    %c0_i32_1 = arith.constant 0 : i32
    return %arg1, %c0_i32, %c0_i32_0 : i32, i32, i32
  }
  func.func @transform_21(%arg0: i32, %arg1: i32) -> (i32, i32, i32) {
    %c0_i32 = arith.constant 0 : i32
    %c0_i32_0 = arith.constant 0 : i32
    %c0_i32_1 = arith.constant 0 : i32
    return %arg1, %c0_i32, %c0_i32_0 : i32, i32, i32
  }
  func.func @transform_22(%arg0: i32, %arg1: i32) -> (i32, i32, i32) {
    %c0_i32 = arith.constant 0 : i32
    %c0_i32_0 = arith.constant 0 : i32
    %c0_i32_1 = arith.constant 0 : i32
    return %arg0, %c0_i32, %c0_i32_0 : i32, i32, i32
  }
}

module attributes {stable_mosaic.version = 11 : i64} {
  func.func @_output_stack_kernel(%arg0: i32, %arg1: memref<1x8x128xf32, #tpu.memory_space<vmem>>, %arg2: memref<128x128xbf16, #tpu.memory_space<vmem>>, %arg3: memref<1x128xf32, #tpu.memory_space<vmem>>, %arg4: memref<128x64xbf16, #tpu.memory_space<vmem>>, %arg5: memref<1x64xf32, #tpu.memory_space<vmem>>, %arg6: memref<1x64xf32, #tpu.memory_space<vmem>>, %arg7: memref<1x64xf32, #tpu.memory_space<vmem>>, %arg8: memref<64x128xbf16, #tpu.memory_space<vmem>>, %arg9: memref<1x128xf32, #tpu.memory_space<vmem>>, %arg10: memref<1x8x128xf32, #tpu.memory_space<vmem>>) attributes {dimension_semantics = [#tpu.dimension_semantics<parallel>], iteration_bounds = array<i64: 2>, scalar_prefetch = 0 : i64, scratch_operands = 0 : i64, tpu.core_type = #tpu.core_type<tc>, window_params = [{transform_indices = @transform_0, window_bounds = array<i64: 1, 8, 128>}, {pipeline_mode = #tpu.pipeline_mode<synchronous>, transform_indices = @transform_1, window_bounds = array<i64: 128, 128>}, {pipeline_mode = #tpu.pipeline_mode<synchronous>, transform_indices = @transform_2, window_bounds = array<i64: 1, 128>}, {pipeline_mode = #tpu.pipeline_mode<synchronous>, transform_indices = @transform_3, window_bounds = array<i64: 128, 64>}, {pipeline_mode = #tpu.pipeline_mode<synchronous>, transform_indices = @transform_4, window_bounds = array<i64: 1, 64>}, {pipeline_mode = #tpu.pipeline_mode<synchronous>, transform_indices = @transform_5, window_bounds = array<i64: 1, 64>}, {pipeline_mode = #tpu.pipeline_mode<synchronous>, transform_indices = @transform_6, window_bounds = array<i64: 1, 64>}, {pipeline_mode = #tpu.pipeline_mode<synchronous>, transform_indices = @transform_7, window_bounds = array<i64: 64, 128>}, {pipeline_mode = #tpu.pipeline_mode<synchronous>, transform_indices = @transform_8, window_bounds = array<i64: 1, 128>}, {transform_indices = @transform_9, window_bounds = array<i64: 1, 8, 128>}]} {
    %c0 = arith.constant 0 : index
    %c0_0 = arith.constant 0 : index
    %c0_1 = arith.constant 0 : index
    %0 = vector.load %arg1[%c0, %c0_0, %c0_1] : memref<1x8x128xf32, #tpu.memory_space<vmem>>, vector<1x8x128xf32>
    %1 = vector.shape_cast %0 : vector<1x8x128xf32> to vector<8x128xf32>
    %c0_2 = arith.constant 0 : index
    %c0_3 = arith.constant 0 : index
    %2 = vector.load %arg2[%c0_2, %c0_3] : memref<128x128xbf16, #tpu.memory_space<vmem>>, vector<128x128xbf16>
    %3 = arith.truncf %1 : vector<8x128xf32> to vector<8x128xbf16>
    %cst = arith.constant dense<0.000000e+00> : vector<8x128xf32>
    %4 = tpu.matmul %3, %2, %cst {dimension_numbers = #tpu.dot_dimension_numbers<[1], [0], [0], [1], [0, 0, 1, 1], [], []>} : vector<8x128xbf16>, vector<128x128xbf16>, vector<8x128xf32> -> vector<8x128xf32>
    %c0_4 = arith.constant 0 : index
    %c0_5 = arith.constant 0 : index
    %5 = vector.load %arg3[%c0_4, %c0_5] : memref<1x128xf32, #tpu.memory_space<vmem>>, vector<1x128xf32>
    %6 = vector.broadcast %5 : vector<1x128xf32> to vector<8x128xf32>
    %7 = arith.addf %4, %6 : vector<8x128xf32>
    %c0_6 = arith.constant 0 : index
    %c0_7 = arith.constant 0 : index
    %8 = vector.load %arg4[%c0_6, %c0_7] : memref<128x64xbf16, #tpu.memory_space<vmem>>, vector<128x64xbf16>
    %9 = arith.truncf %7 : vector<8x128xf32> to vector<8x128xbf16>
    %cst_8 = arith.constant dense<0.000000e+00> : vector<8x64xf32>
    %10 = tpu.matmul %9, %8, %cst_8 {dimension_numbers = #tpu.dot_dimension_numbers<[1], [0], [0], [1], [0, 0, 1, 1], [], []>} : vector<8x128xbf16>, vector<128x64xbf16>, vector<8x64xf32> -> vector<8x64xf32>
    %c0_9 = arith.constant 0 : index
    %c0_10 = arith.constant 0 : index
    %11 = vector.load %arg5[%c0_9, %c0_10] : memref<1x64xf32, #tpu.memory_space<vmem>>, vector<1x64xf32>
    %12 = vector.broadcast %11 : vector<1x64xf32> to vector<8x64xf32>
    %13 = arith.addf %10, %12 : vector<8x64xf32>
    %c0_11 = arith.constant 0 : index
    %c0_12 = arith.constant 0 : index
    %14 = vector.load %arg6[%c0_11, %c0_12] : memref<1x64xf32, #tpu.memory_space<vmem>>, vector<1x64xf32>
    %c0_13 = arith.constant 0 : index
    %c0_14 = arith.constant 0 : index
    %15 = vector.load %arg7[%c0_13, %c0_14] : memref<1x64xf32, #tpu.memory_space<vmem>>, vector<1x64xf32>
    %cst_15 = arith.constant dense<0.000000e+00> : vector<8xf32>
    %16 = vector.multi_reduction <add>, %13, %cst_15 [1] : vector<8x64xf32> to vector<8xf32>
    %17 = vector.shape_cast %16 : vector<8xf32> to vector<8x1xf32>
    %cst_16 = arith.constant 6.400000e+01 : f32
    %18 = vector.broadcast %cst_16 : f32 to vector<8x1xf32>
    %19 = arith.divf %17, %18 : vector<8x1xf32>
    %20 = vector.broadcast %19 : vector<8x1xf32> to vector<8x64xf32>
    %21 = arith.subf %13, %20 : vector<8x64xf32>
    %22 = arith.mulf %21, %21 : vector<8x64xf32>
    %cst_17 = arith.constant dense<0.000000e+00> : vector<8xf32>
    %23 = vector.multi_reduction <add>, %22, %cst_17 [1] : vector<8x64xf32> to vector<8xf32>
    %24 = vector.shape_cast %23 : vector<8xf32> to vector<8x1xf32>
    %cst_18 = arith.constant 6.400000e+01 : f32
    %25 = vector.broadcast %cst_18 : f32 to vector<8x1xf32>
    %26 = arith.divf %24, %25 : vector<8x1xf32>
    %27 = vector.broadcast %19 : vector<8x1xf32> to vector<8x64xf32>
    %28 = arith.subf %13, %27 : vector<8x64xf32>
    %cst_19 = arith.constant 9.99999974E-6 : f32
    %29 = vector.broadcast %cst_19 : f32 to vector<8x1xf32>
    %30 = arith.addf %26, %29 : vector<8x1xf32>
    %31 = math.rsqrt %30 : vector<8x1xf32>
    %32 = vector.broadcast %31 : vector<8x1xf32> to vector<8x64xf32>
    %33 = arith.mulf %28, %32 : vector<8x64xf32>
    %34 = vector.broadcast %14 : vector<1x64xf32> to vector<8x64xf32>
    %35 = arith.mulf %33, %34 : vector<8x64xf32>
    %36 = vector.broadcast %15 : vector<1x64xf32> to vector<8x64xf32>
    %37 = arith.addf %35, %36 : vector<8x64xf32>
    %cst_20 = arith.constant 0.000000e+00 : f32
    %38 = vector.broadcast %cst_20 : f32 to vector<8x64xf32>
    %39 = arith.maximumf %37, %38 : vector<8x64xf32>
    %c0_21 = arith.constant 0 : index
    %c0_22 = arith.constant 0 : index
    %40 = vector.load %arg8[%c0_21, %c0_22] : memref<64x128xbf16, #tpu.memory_space<vmem>>, vector<64x128xbf16>
    %41 = arith.truncf %39 : vector<8x64xf32> to vector<8x64xbf16>
    %cst_23 = arith.constant dense<0.000000e+00> : vector<8x128xf32>
    %42 = tpu.matmul %41, %40, %cst_23 {dimension_numbers = #tpu.dot_dimension_numbers<[1], [0], [0], [1], [0, 0, 1, 1], [], []>} : vector<8x64xbf16>, vector<64x128xbf16>, vector<8x128xf32> -> vector<8x128xf32>
    %c0_24 = arith.constant 0 : index
    %c0_25 = arith.constant 0 : index
    %43 = vector.load %arg9[%c0_24, %c0_25] : memref<1x128xf32, #tpu.memory_space<vmem>>, vector<1x128xf32>
    %44 = vector.broadcast %43 : vector<1x128xf32> to vector<8x128xf32>
    %45 = arith.addf %42, %44 : vector<8x128xf32>
    %c0_26 = arith.constant 0 : index
    %c0_27 = arith.constant 0 : index
    %c0_28 = arith.constant 0 : index
    %46 = vector.load %arg10[%c0_26, %c0_27, %c0_28] : memref<1x8x128xf32, #tpu.memory_space<vmem>>, vector<1x8x128xf32>
    %47 = vector.shape_cast %46 : vector<1x8x128xf32> to vector<8x128xf32>
    %48 = vector.shape_cast %45 : vector<8x128xf32> to vector<1x8x128xf32>
    tpu.vector_store %arg10[%c0_26, %c0_27, %c0_28], %48 {strides = array<i32>} : memref<1x8x128xf32, #tpu.memory_space<vmem>>, vector<1x8x128xf32>,
    return
  }
  func.func @transform_0(%arg0: i32) -> (i32, i32, i32) {
    %c0_i32 = arith.constant 0 : i32
    %c0_i32_0 = arith.constant 0 : i32
    %c0_i32_1 = arith.constant 0 : i32
    return %arg0, %c0_i32, %c0_i32_0 : i32, i32, i32
  }
  func.func @transform_1(%arg0: i32) -> (i32, i32) {
    %c0_i32 = arith.constant 0 : i32
    %c0_i32_0 = arith.constant 0 : i32
    %c0_i32_1 = arith.constant 0 : i32
    return %c0_i32, %c0_i32_0 : i32, i32
  }
  func.func @transform_2(%arg0: i32) -> (i32, i32) {
    %c0_i32 = arith.constant 0 : i32
    %c0_i32_0 = arith.constant 0 : i32
    %c0_i32_1 = arith.constant 0 : i32
    return %c0_i32, %c0_i32_0 : i32, i32
  }
  func.func @transform_3(%arg0: i32) -> (i32, i32) {
    %c0_i32 = arith.constant 0 : i32
    %c0_i32_0 = arith.constant 0 : i32
    %c0_i32_1 = arith.constant 0 : i32
    return %c0_i32, %c0_i32_0 : i32, i32
  }
  func.func @transform_4(%arg0: i32) -> (i32, i32) {
    %c0_i32 = arith.constant 0 : i32
    %c0_i32_0 = arith.constant 0 : i32
    %c0_i32_1 = arith.constant 0 : i32
    return %c0_i32, %c0_i32_0 : i32, i32
  }
  func.func @transform_5(%arg0: i32) -> (i32, i32) {
    %c0_i32 = arith.constant 0 : i32
    %c0_i32_0 = arith.constant 0 : i32
    %c0_i32_1 = arith.constant 0 : i32
    return %c0_i32, %c0_i32_0 : i32, i32
  }
  func.func @transform_6(%arg0: i32) -> (i32, i32) {
    %c0_i32 = arith.constant 0 : i32
    %c0_i32_0 = arith.constant 0 : i32
    %c0_i32_1 = arith.constant 0 : i32
    return %c0_i32, %c0_i32_0 : i32, i32
  }
  func.func @transform_7(%arg0: i32) -> (i32, i32) {
    %c0_i32 = arith.constant 0 : i32
    %c0_i32_0 = arith.constant 0 : i32
    %c0_i32_1 = arith.constant 0 : i32
    return %c0_i32, %c0_i32_0 : i32, i32
  }
  func.func @transform_8(%arg0: i32) -> (i32, i32) {
    %c0_i32 = arith.constant 0 : i32
    %c0_i32_0 = arith.constant 0 : i32
    %c0_i32_1 = arith.constant 0 : i32
    return %c0_i32, %c0_i32_0 : i32, i32
  }
  func.func @transform_9(%arg0: i32) -> (i32, i32, i32) {
    %c0_i32 = arith.constant 0 : i32
    %c0_i32_0 = arith.constant 0 : i32
    %c0_i32_1 = arith.constant 0 : i32
    return %arg0, %c0_i32, %c0_i32_0 : i32, i32, i32
  }
}

</mosaic_0001>

<llo_original>
// kernel: beatmap_transformer_forward.4
$region0: #{beatmap_transformer_forward.4}
  #allocation0 [shape = 'u32[]', space=smem, size = 0x4, offset = 0x4, fixed_abs, tag = 'smem constant byte address 0x4 - core index']
  #allocation1 [shape = 'u32[144,128]{1,0:T(1,128)}', space=vmem, size = 0x12000, scoped, tag = 'internal scratch']
  %s0 = inlined_call_operand.hbm [shape: f32[2,16,128], index: 0, kind: input, shape index: {}]
  %s1 = inlined_call_operand.vmem [shape: bf16[128,128], index: 1, kind: input, shape index: {}]
  %s2 = inlined_call_operand.vmem [shape: f32[1,128], index: 2, kind: input, shape index: {}]
  %s3 = inlined_call_operand.vmem [shape: f32[1,128], index: 3, kind: input, shape index: {}]
  %s4 = inlined_call_operand.vmem [shape: f32[1,128], index: 4, kind: input, shape index: {}]
  %s5 = inlined_call_operand.vmem [shape: f32[16,128], index: 5, kind: input, shape index: {}]
  %s6 = inlined_call_operand.vmem [shape: f32[2,16,128], index: 6, kind: output, shape index: {}]
  %s7 = sld [smem:[#allocation0]]
  $region61: #{beatmap_transformer_forward.4} parent=0
    _
  %s9 = ssub.s32 1, %s7
  %s10 = scalar_select 0, %s9, %s7
  $region1: #{beatmap_transformer_forward.4} parent=0
    #allocation2 [shape = 'u8[16384]{0}', space=vmem, size = 0x4000, scoped, tag = 'input window, operand 0']
    #allocation3 [shape = 's32[2]{0}', space=sflag, size = 0x8, scoped, tag = 'scoped memory for beatmap_transformer_forward.4']
    %11 = vsyncpa [#allocation3], 0
    %s12 = scalar_lea.sflag [#allocation3], 1
    %13 = vsyncpa %s12, 0
    loop: start=0, step=1, limit=4
    $region2: #{beatmap_transformer_forward.4} parent=1 // loop_pre_header
      _
    $region3: #{beatmap_transformer_forward.4} parent=1 // loop_header
      %s15 = sphi 0, %s19
      %p16 = scmp.ge.s32.totalorder %s15, 4
      %s25 = sphi 0, %s27
      %s28 = sphi 0, %s25
      %s29 = sphi 0, %s28
      %s45 = sphi 0, %s29
      %s49 = sphi 0, %s49
      %s51 = sphi 0, %s49
      %s52 = sphi 0, %s51
      %s66 = sphi 0, %s52
      %s70 = sphi 0, %s70
      %s72 = sphi 0, %s70
      %s73 = sphi 0, %s72
      %s87 = sphi 0, %s73
      %s91 = sphi 0, %s91
      %s93 = sphi 0, %s91
      %s94 = sphi 0, %s93
      %s108 = sphi 0, %s94
      %s112 = sphi 0, %s112
      %s114 = sphi 0, %s112
      %s115 = sphi 0, %s114
      %s129 = sphi 0, %s115
      %s133 = sphi 0, %s133
      %s135 = sphi 0, %s133
      %s136 = sphi 0, %s135
      %s150 = sphi 0, %s136
      %s156 = sphi 0, %s158
      %s159 = sphi 0, %s156
      %s160 = sphi 0, %s159
      %s176 = sphi 0, %s160
    $region4: #{beatmap_transformer_forward.4} parent=1 // loop_header_branch
      %18 = sbr.rel (%p16) target = $region8
    $region5: #{beatmap_transformer_forward.4} parent=1 // loop_body
      %s20 = ssub.s32 %s15, 1
      %s21 = ssub.s32 %s15, 2
      %s22 = sadd.s32 %s15, 1
      %s23 = ssub.s32 %s15, %s22
      %p24 = scmp.eq.s32.totalorder %s23, 0
      %s26 = sadd.s32 %s25, 1
      %s27 = scalar_select %p24, %s25, %s26
      %p30 = pneg %p24
      %p31 = scmp.eq.s32.totalorder %s15, 1
      %p32 = por %p30, %p31
      %p33 = scmp.ne.s32.totalorder %s25, %s28
      %p34 = scmp.eq.s32.totalorder %s15, 0
      %p35 = por %p33, %p34
      %p36 = scmp.ne.s32.totalorder %s25, %s28
      %p37 = scmp.eq.s32.totalorder %s20, 1
      %p38 = por %p36, %p37
      %p39 = scmp.ne.s32.totalorder %s28, %s29
      %p40 = scmp.eq.s32.totalorder %s20, 0
      %p41 = por %p39, %p40
      %p42 = scmp.ne.s32.totalorder %s28, %s29
      %p43 = scmp.eq.s32.totalorder %s21, 1
      %p44 = por %p42, %p43
      %p46 = scmp.ne.s32.totalorder %s29, %s45
      %p47 = scmp.eq.s32.totalorder %s21, 0
      %p48 = por %p46, %p47
      %s50 = sadd.s32 %s49, 1
      %p53 = scmp.eq.s32.totalorder %s15, 1
      %p54 = scmp.ne.s32.totalorder %s49, %s51
      %p55 = scmp.eq.s32.totalorder %s15, 0
      %p56 = por %p54, %p55
      %p57 = scmp.ne.s32.totalorder %s49, %s51
      %p58 = scmp.eq.s32.totalorder %s20, 1
      %p59 = por %p57, %p58
      %p60 = scmp.ne.s32.totalorder %s51, %s52
      %p61 = scmp.eq.s32.totalorder %s20, 0
      %p62 = por %p60, %p61
      %p63 = scmp.ne.s32.totalorder %s51, %s52
      %p64 = scmp.eq.s32.totalorder %s21, 1
      %p65 = por %p63, %p64
      %p67 = scmp.ne.s32.totalorder %s52, %s66
      %p68 = scmp.eq.s32.totalorder %s21, 0
      %p69 = por %p67, %p68
      %s71 = sadd.s32 %s70, 1
      %p74 = scmp.eq.s32.totalorder %s15, 1
      %p75 = scmp.ne.s32.totalorder %s70, %s72
      %p76 = scmp.eq.s32.totalorder %s15, 0
      %p77 = por %p75, %p76
      %p78 = scmp.ne.s32.totalorder %s70, %s72
      %p79 = scmp.eq.s32.totalorder %s20, 1
      %p80 = por %p78, %p79
      %p81 = scmp.ne.s32.totalorder %s72, %s73
      %p82 = scmp.eq.s32.totalorder %s20, 0
      %p83 = por %p81, %p82
      %p84 = scmp.ne.s32.totalorder %s72, %s73
      %p85 = scmp.eq.s32.totalorder %s21, 1
      %p86 = por %p84, %p85
      %p88 = scmp.ne.s32.totalorder %s73, %s87
      %p89 = scmp.eq.s32.totalorder %s21, 0
      %p90 = por %p88, %p89
      %s92 = sadd.s32 %s91, 1
      %p95 = scmp.eq.s32.totalorder %s15, 1
      %p96 = scmp.ne.s32.totalorder %s91, %s93
      %p97 = scmp.eq.s32.totalorder %s15, 0
      %p98 = por %p96, %p97
      %p99 = scmp.ne.s32.totalorder %s91, %s93
      %p100 = scmp.eq.s32.totalorder %s20, 1
      %p101 = por %p99, %p100
      %p102 = scmp.ne.s32.totalorder %s93, %s94
      %p103 = scmp.eq.s32.totalorder %s20, 0
      %p104 = por %p102, %p103
      %p105 = scmp.ne.s32.totalorder %s93, %s94
      %p106 = scmp.eq.s32.totalorder %s21, 1
      %p107 = por %p105, %p106
      %p109 = scmp.ne.s32.totalorder %s94, %s108
      %p110 = scmp.eq.s32.totalorder %s21, 0
      %p111 = por %p109, %p110
      %s113 = sadd.s32 %s112, 1
      %p116 = scmp.eq.s32.totalorder %s15, 1
      %p117 = scmp.ne.s32.totalorder %s112, %s114
      %p118 = scmp.eq.s32.totalorder %s15, 0
      %p119 = por %p117, %p118
      %p120 = scmp.ne.s32.totalorder %s112, %s114
      %p121 = scmp.eq.s32.totalorder %s20, 1
      %p122 = por %p120, %p121
      %p123 = scmp.ne.s32.totalorder %s114, %s115
      %p124 = scmp.eq.s32.totalorder %s20, 0
      %p125 = por %p123, %p124
      %p126 = scmp.ne.s32.totalorder %s114, %s115
      %p127 = scmp.eq.s32.totalorder %s21, 1
      %p128 = por %p126, %p127
      %p130 = scmp.ne.s32.totalorder %s115, %s129
      %p131 = scmp.eq.s32.totalorder %s21, 0
      %p132 = por %p130, %p131
      %s134 = sadd.s32 %s133, 1
      %p137 = scmp.eq.s32.totalorder %s15, 1
      %p138 = scmp.ne.s32.totalorder %s133, %s135
      %p139 = scmp.eq.s32.totalorder %s15, 0
      %p140 = por %p138, %p139
      %p141 = scmp.ne.s32.totalorder %s133, %s135
      %p142 = scmp.eq.s32.totalorder %s20, 1
      %p143 = por %p141, %p142
      %p144 = scmp.ne.s32.totalorder %s135, %s136
      %p145 = scmp.eq.s32.totalorder %s20, 0
      %p146 = por %p144, %p145
      %p147 = scmp.ne.s32.totalorder %s135, %s136
      %p148 = scmp.eq.s32.totalorder %s21, 1
      %p149 = por %p147, %p148
      %p151 = scmp.ne.s32.totalorder %s136, %s150
      %p152 = scmp.eq.s32.totalorder %s21, 0
      %p153 = por %p151, %p152
      %s154 = ssub.s32 %s15, %s22
      %p155 = scmp.eq.s32.totalorder %s154, 0
      %s157 = sadd.s32 %s156, 1
      %s158 = scalar_select %p155, %s156, %s157
      %p161 = pneg %p155
      %p162 = scmp.eq.s32.totalorder %s15, 1
      %p163 = por %p161, %p162
      %p164 = scmp.ne.s32.totalorder %s156, %s159
      %p165 = scmp.eq.s32.totalorder %s15, 0
      %p166 = por %p164, %p165
      %p167 = scmp.ne.s32.totalorder %s156, %s159
      %p168 = scmp.eq.s32.totalorder %s20, 1
      %p169 = por %p167, %p168
      %p170 = scmp.ne.s32.totalorder %s159, %s160
      %p171 = scmp.eq.s32.totalorder %s20, 0
      %p172 = por %p170, %p171
      %p173 = scmp.ne.s32.totalorder %s159, %s160
      %p174 = scmp.eq.s32.totalorder %s21, 1
      %p175 = por %p173, %p174
      %p177 = scmp.ne.s32.totalorder %s160, %s176
      %p178 = scmp.eq.s32.totalorder %s21, 0
      %p179 = por %p177, %p178
      %p180 = scmp.le.s32.totalorder 1, %s15
      %p181 = scmp.lt.s32.totalorder %s15, 3
      %p182 = pnand %p180, %p181
      %p183 = pneg %p182
      // Predicated region
      $region9: #{beatmap_transformer_forward.4} parent=5 // pred_check
        _
      $region10: #{beatmap_transformer_forward.4} parent=5 // pred_check_branch
        %185 = sbr.rel (%p182) target = $region12
      $region11: #{beatmap_transformer_forward.4} parent=5 // pred_region
        %s186 = ssub.s32 %s15, 1
        // Predicated region
        $region13: #{beatmap_transformer_forward.4} parent=11 // pred_check
          %p187 = pneg %p62
        $region14: #{beatmap_transformer_forward.4} parent=11 // pred_check_branch
          %189 = sbr.rel (%p187) target = $region16
        $region15: #{beatmap_transformer_forward.4} parent=11 // pred_region
          _
        $region16: #{beatmap_transformer_forward.4} parent=11 // pred_fallthru
          _
        // Predicated region
        $region17: #{beatmap_transformer_forward.4} parent=11 // pred_check
          %p190 = pneg %p83
        $region18: #{beatmap_transformer_forward.4} parent=11 // pred_check_branch
          %192 = sbr.rel (%p190) target = $region20
        $region19: #{beatmap_transformer_forward.4} parent=11 // pred_region
          _
        $region20: #{beatmap_transformer_forward.4} parent=11 // pred_fallthru
          _
        // Predicated region
        $region21: #{beatmap_transformer_forward.4} parent=11 // pred_check
          %p193 = pneg %p104
        $region22: #{beatmap_transformer_forward.4} parent=11 // pred_check_branch
          %195 = sbr.rel (%p193) target = $region24
        $region23: #{beatmap_transformer_forward.4} parent=11 // pred_region
          _
        $region24: #{beatmap_transformer_forward.4} parent=11 // pred_fallthru
          _
        // Predicated region
        $region25: #{beatmap_transformer_forward.4} parent=11 // pred_check
          %p196 = pneg %p125
        $region26: #{beatmap_transformer_forward.4} parent=11 // pred_check_branch
          %198 = sbr.rel (%p196) target = $region28
        $region27: #{beatmap_transformer_forward.4} parent=11 // pred_region
          _
        $region28: #{beatmap_transformer_forward.4} parent=11 // pred_fallthru
          _
        // Predicated region
        $region29: #{beatmap_transformer_forward.4} parent=11 // pred_check
          %p199 = pneg %p146
        $region30: #{beatmap_transformer_forward.4} parent=11 // pred_check_branch
          %201 = sbr.rel (%p199) target = $region32
        $region31: #{beatmap_transformer_forward.4} parent=11 // pred_region
          _
        $region32: #{beatmap_transformer_forward.4} parent=11 // pred_fallthru
          _
      $region12: #{beatmap_transformer_forward.4} parent=5 // pred_fallthru
        _
      %p202 = scmp.lt.s32.totalorder %s15, 2
      // Predicated region
      $region33: #{beatmap_transformer_forward.4} parent=5 // pred_check
        %p203 = pneg %p202
      $region34: #{beatmap_transformer_forward.4} parent=5 // pred_check_branch
        %205 = sbr.rel (%p203) target = $region36
      $region35: #{beatmap_transformer_forward.4} parent=5 // pred_region
        // Predicated region
        $region37: #{beatmap_transformer_forward.4} parent=35 // pred_check
          %p206 = pneg %p35
        $region38: #{beatmap_transformer_forward.4} parent=35 // pred_check_branch
          %208 = sbr.rel (%p206) target = $region40
        $region39: #{beatmap_transformer_forward.4} parent=35 // pred_region
          %s209 = sand.u32 %s25, 1
          %s210 = scalar_lea.sflag [#allocation3], %s209
          %s211 = sand.u32 %s25, 1
          %s212 = smul.addr %s211, 16
          %s213 = scalar_lea.vmem [#allocation2], %s212
          %s215 = ssub.s32 256, 256
          %216 = vsyncadd %s210, %s215
          %s217 = smul.addr %s15, 2
          %s218 = smul.addr %s217, 128
          %s219 = scalar_lea.hbm %s0, %s218
          %s220 = sshll.u32 %s213, 4
          %s221 = int_to_ptr.vmem [resolvable:$true] %s220
          %226 = dma.hbm_to_vmem [thread:$0]  %s219, 256, %s221, %s210, 128, 128, 8
        $region40: #{beatmap_transformer_forward.4} parent=35 // pred_fallthru
          _
      $region36: #{beatmap_transformer_forward.4} parent=5 // pred_fallthru
        _
      %p227 = scmp.le.s32.totalorder 1, %s15
      %p228 = scmp.lt.s32.totalorder %s15, 3
      %p229 = pnand %p227, %p228
      %p230 = pneg %p229
      // Predicated region
      $region41: #{beatmap_transformer_forward.4} parent=5 // pred_check
        _
      $region42: #{beatmap_transformer_forward.4} parent=5 // pred_check_branch
        %232 = sbr.rel (%p229) target = $region44
      $region43: #{beatmap_transformer_forward.4} parent=5 // pred_region
        %s233 = ssub.s32 %s15, 1
        %s234 = sand.u32 %s28, 1
        %s235 = scalar_lea.sflag [#allocation3], %s234
        %s236 = sand.u32 %s28, 1
        %s237 = smul.addr %s236, 16
        %s238 = scalar_lea.vmem [#allocation2], %s237
        // Predicated region
        $region45: #{beatmap_transformer_forward.4} parent=43 // pred_check
          %p239 = pneg %p41
        $region46: #{beatmap_transformer_forward.4} parent=43 // pred_check_branch
          %241 = sbr.rel (%p239) target = $region48
        $region47: #{beatmap_transformer_forward.4} parent=43 // pred_region
          %242 = dma.done %s235, 256
        $region48: #{beatmap_transformer_forward.4} parent=43 // pred_fallthru
          _
        %s243 = sand.u32 %s28, 1
        %s244 = scalar_lea.sflag [#allocation3], %s243
        %s245 = sand.u32 %s28, 1
        %s246 = smul.addr %s245, 16
        %s247 = scalar_lea.vmem [#allocation2], %s246
        %p248 = pneg %p41
        %p249 = pneg %p38
        %p250 = pneg %p62
        %p251 = pneg %p59
        %p252 = pneg %p83
        %p253 = pneg %p80
        %p254 = pneg %p104
        %p255 = pneg %p101
        %p256 = pneg %p125
        %p257 = pneg %p122
        %p258 = pneg %p146
        %p259 = pneg %p143
        %p260 = pneg %p172
        %p261 = pneg %p169
        %p262 = scmp.lt.s32.totalorder %s20, 1
        %s263 = scalar_select %p262, %s20, 1
        %s264 = smul.addr %s263, 2
        %s265 = smul.addr %s264, 8
        %s266 = scalar_lea.vmem %s6, %s265
        %p267 = scmp.lt.s32.totalorder %s20, 1
        %s268 = scalar_select %p267, %s20, 1
        %s269 = smul.addr %s268, 2
        %s270 = smul.addr %s269, 8
        %s271 = scalar_lea.vmem %s6, %s270
        %v273 = vld [vmem:[%s238] sm:$0xff]
        %v274 = vld [vmem:[%s238 + $0x8] sm:$0xff]
        %v275 = vld [vmem:[%s1] sm:$0xf]
        %v276 = vld [vmem:[%s1 + $0x4] sm:$0xf]
        %v277 = vld [vmem:[%s1 + $0x8] sm:$0xf]
        %v278 = vld [vmem:[%s1 + $0xc] sm:$0xf]
        %v279 = vld [vmem:[%s1 + $0x10] sm:$0xf]
        %v280 = vld [vmem:[%s1 + $0x14] sm:$0xf]
        %v281 = vld [vmem:[%s1 + $0x18] sm:$0xf]
        %v282 = vld [vmem:[%s1 + $0x1c] sm:$0xf]
        %v283 = vld [vmem:[%s1 + $0x20] sm:$0xf]
        %v284 = vld [vmem:[%s1 + $0x24] sm:$0xf]
        %v285 = vld [vmem:[%s1 + $0x28] sm:$0xf]
        %v286 = vld [vmem:[%s1 + $0x2c] sm:$0xf]
        %v287 = vld [vmem:[%s1 + $0x30] sm:$0xf]
        %v288 = vld [vmem:[%s1 + $0x34] sm:$0xf]
        %v289 = vld [vmem:[%s1 + $0x38] sm:$0xf]
        %v290 = vld [vmem:[%s1 + $0x3c] sm:$0xf]
        %v291 = vpack.c.bf16 %v274, %v273
        %v292 = vld [vmem:[%s2] sm:$0x1]
        %v294 = vlaneseq
        %v295 = vshrl.u32 %v294, 7
        %v296 = vsub.s32 0, %v295
        %v297 = vrot.slane %v292, %v296
        %v315 = vunpack.c.l.b16 %v275
        %v316 = vunpack.c.l.b16 %v276
        %v317 = vunpack.c.l.b16 %v277
        %v318 = vunpack.c.l.b16 %v278
        %v319 = vunpack.c.l.b16 %v279
        %v320 = vunpack.c.l.b16 %v280
        %v321 = vunpack.c.l.b16 %v281
        %v322 = vunpack.c.l.b16 %v282
        %v323 = vunpack.c.l.b16 %v283
        %v324 = vunpack.c.l.b16 %v284
        %v325 = vunpack.c.l.b16 %v285
        %v326 = vunpack.c.l.b16 %v286
        %v327 = vunpack.c.l.b16 %v287
        %v328 = vunpack.c.l.b16 %v288
        %v329 = vunpack.c.l.b16 %v289
        %v330 = vunpack.c.l.b16 %v290
        %v331 = vpack.c.b16 %v316, %v315
        %v332 = vpack.c.b16 %v318, %v317
        %v333 = vpack.c.b16 %v320, %v319
        %v334 = vpack.c.b16 %v322, %v321
        %v335 = vpack.c.b16 %v324, %v323
        %v336 = vpack.c.b16 %v326, %v325
        %v337 = vpack.c.b16 %v328, %v327
        %v338 = vpack.c.b16 %v330, %v329
        %347 = vmatprep.subr.bf16.mxu0 0
        %348 = vmatpush1.bf16.msra.mxu0 %v338
        %349 = vmatprep.subr.bf16.mxu0 0
        %350 = vmatpush1.bf16.msra.mxu0 %v337
        %351 = vmatprep.subr.bf16.mxu0 0
        %352 = vmatpush1.bf16.msra.mxu0 %v336
        %353 = vmatprep.subr.bf16.mxu0 0
        %354 = vmatpush1.bf16.msra.mxu0 %v335
        %355 = vmatprep.subr.bf16.mxu0 0
        %356 = vmatpush1.bf16.msra.mxu0 %v334
        %357 = vmatprep.subr.bf16.mxu0 0
        %358 = vmatpush1.bf16.msra.mxu0 %v333
        %359 = vmatprep.subr.bf16.mxu0 0
        %360 = vmatpush1.bf16.msra.mxu0 %v332
        %361 = vmatprep.subr.bf16.mxu0 0
        %362 = vmatpush1.bf16.msra.mxu0 %v331
        %363 = vmatprep.subr.bf16.mxu0 0
        %364 = vmatpush2.bf16.msra.mxu0 0
        %365 = vmatprep.subr.bf16.mxu0 0
        %366 = vmatpush2.bf16.msra.mxu0 0
        %367 = vmatprep.subr.bf16.mxu0 0
        %368 = vmatpush2.bf16.msra.mxu0 0
        %369 = vmatprep.subr.bf16.mxu0 0
        %370 = vmatpush2.bf16.msra.mxu0 0
        %371 = vmatprep.subr.bf16.mxu0 0
        %372 = vmatpush2.bf16.msra.mxu0 0
        %373 = vmatprep.subr.bf16.mxu0 0
        %374 = vmatpush2.bf16.msra.mxu0 0
        %375 = vmatprep.subr.bf16.mxu0 0
        %376 = vmatpush2.bf16.msra.mxu0 0
        %377 = vmatprep.subr.bf16.mxu0 0
        %378 = vmatpush2.bf16.msra.mxu0 0
        %379 = vmatprep.mubr.bf16.mxu0 0
        %380 = vmatmul.mubr.bf16.gmra.mxu0 %v291
        %v381 = vpop.f32.mrf.mxu0
        %v382 = vadd.f32 %v297, %v381
        %v383 = vpop.f32.mrf.mxu0
        %v384 = vpop.f32.mrf.mxu0
        %v385 = vadd.f32 %v297, %v384
        %v386 = vpop.f32.mrf.mxu0
        %387 = vdwg.mxu0
        %v388 = vld [vmem:[%s3] sm:$0x1]
        %v389 = vld [vmem:[%s4] sm:$0x1]
        %390 = vadd.xlane.f32.xlu0 %v382
        %v391 = vpop.xlane.xlu0 %390
        %392 = vadd.xlane.f32.xlu0 %v385
        %v393 = vpop.xlane.xlu0 %392
        %v394 = vrcp.pop 128.0
        %v395 = vmul.f32 %v391, %v394
        %v396 = vmul.f32 %v393, %v394
        %v397 = vsub.f32 %v382, %v395
        %v398 = vsub.f32 %v385, %v396
        %v399 = vmul.f32 %v397, %v397
        %v400 = vmul.f32 %v398, %v398
        %401 = vadd.xlane.f32.xlu0 %v399
        %v402 = vpop.xlane.xlu0 %401
        %403 = vadd.xlane.f32.xlu0 %v400
        %v404 = vpop.xlane.xlu0 %403
        %v405 = vmul.f32 %v402, %v394
        %v406 = vmul.f32 %v404, %v394
        %v407 = vadd.f32 %v405, 1e-05
        %v408 = vadd.f32 %v406, 1e-05
        %v409 = vrsqrt.pop %v407
        %v410 = vrsqrt.pop %v408
        %v411 = vmul.f32 %v397, %v409
        %v412 = vmul.f32 %v398, %v410
        %v414 = vlaneseq
        %v415 = vshrl.u32 %v414, 7
        %v416 = vsub.s32 0, %v415
        %v417 = vrot.slane %v388, %v416
        %v419 = vmul.f32 %v411, %v417
        %v420 = vmul.f32 %v412, %v417
        %v422 = vlaneseq
        %v423 = vshrl.u32 %v422, 7
        %v424 = vsub.s32 0, %v423
        %v425 = vrot.slane %v389, %v424
        %v427 = vadd.f32 %v419, %v425
        %v428 = vadd.f32 %v420, %v425
        %v429 = vmax.f32 %v427, 0.0
        %v430 = vmax.f32 %v428, 0.0
        %v431 = vld [vmem:[%s5] sm:$0xff]
        %v432 = vld [vmem:[%s5 + $0x8] sm:$0xff]
        %v433 = vadd.f32 %v429, %v431
        %v434 = vadd.f32 %v430, %v432
        %435 = vst [vmem:[%s271] sm:$0xff] %v433
        %436 = vst [vmem:[%s271 + $0x8] sm:$0xff] %v434
        %p437 = scmp.lt.s32.totalorder %s20, 1
        %s438 = scalar_select %p437, %s20, 1
        %s439 = smul.addr %s438, 2
        %s440 = smul.addr %s439, 8
        %s441 = scalar_lea.vmem %s6, %s440
        // Predicated region
        $region49: #{beatmap_transformer_forward.4} parent=43 // pred_check
          %p442 = pneg %p169
        $region50: #{beatmap_transformer_forward.4} parent=43 // pred_check_branch
          %444 = sbr.rel (%p442) target = $region52
        $region51: #{beatmap_transformer_forward.4} parent=43 // pred_region
          _
        $region52: #{beatmap_transformer_forward.4} parent=43 // pred_fallthru
          _
      $region44: #{beatmap_transformer_forward.4} parent=5 // pred_fallthru
        _
      %p445 = scmp.le.s32.totalorder 2, %s15
      // Predicated region
      $region53: #{beatmap_transformer_forward.4} parent=5 // pred_check
        %p446 = pneg %p445
      $region54: #{beatmap_transformer_forward.4} parent=5 // pred_check_branch
        %448 = sbr.rel (%p446) target = $region56
      $region55: #{beatmap_transformer_forward.4} parent=5 // pred_region
        %s449 = ssub.s32 %s15, 2
        // Predicated region
        $region57: #{beatmap_transformer_forward.4} parent=55 // pred_check
          %p450 = pneg %p175
        $region58: #{beatmap_transformer_forward.4} parent=55 // pred_check_branch
          %452 = sbr.rel (%p450) target = $region60
        $region59: #{beatmap_transformer_forward.4} parent=55 // pred_region
          %p453 = scmp.lt.s32.totalorder %s21, 1
          %s454 = scalar_select %p453, %s21, 1
          %s455 = smul.addr %s454, 2
          %s456 = smul.addr %s455, 8
          %s457 = scalar_lea.vmem %s6, %s456
        $region60: #{beatmap_transformer_forward.4} parent=55 // pred_fallthru
          _
      $region56: #{beatmap_transformer_forward.4} parent=5 // pred_fallthru
        _
    $region6: #{beatmap_transformer_forward.4} parent=1 // loop_footer
      %s19 = sadd.s32 1, %s15
    $region7: #{beatmap_transformer_forward.4} parent=1 // loop_footer_branch
      %14 = sbr.rel target = $region3
    $region8: #{beatmap_transformer_forward.4} parent=1 // loop_exit
      _
    %458 = vsyncpa [#allocation3], 1
    %s459 = scalar_lea.sflag [#allocation3], 1
    %460 = vsyncpa %s459, 1

// kernel: beatmap_transformer_forward.7
$region0: #{beatmap_transformer_forward.7}
  #allocation0 [shape = 'u32[]', space=smem, size = 0x4, offset = 0x4, fixed_abs, tag = 'smem constant byte address 0x4 - core index']
  #allocation1 [shape = 'u32[144,128]{1,0:T(1,128)}', space=vmem, size = 0x12000, scoped, tag = 'internal scratch']
  %s0 = inlined_call_operand.vmem [shape: f32[2,8,128], index: 0, kind: input, shape index: {}]
  %s1 = inlined_call_operand.vmem [shape: bf16[128,128], index: 1, kind: input, shape index: {}]
  %s2 = inlined_call_operand.vmem [shape: f32[1,128], index: 2, kind: input, shape index: {}]
  %s3 = inlined_call_operand.vmem [shape: bf16[128,64], index: 3, kind: input, shape index: {}]
  %s4 = inlined_call_operand.vmem [shape: f32[1,64], index: 4, kind: input, shape index: {}]
  %s5 = inlined_call_operand.vmem [shape: f32[1,64], index: 5, kind: input, shape index: {}]
  %s6 = inlined_call_operand.vmem [shape: f32[1,64], index: 6, kind: input, shape index: {}]
  %s7 = inlined_call_operand.vmem [shape: bf16[64,128], index: 7, kind: input, shape index: {}]
  %s8 = inlined_call_operand.vmem [shape: f32[1,128], index: 8, kind: input, shape index: {}]
  %s9 = inlined_call_operand.vmem [shape: f32[2,8,128], index: 9, kind: output, shape index: {}]
  %s10 = sld [smem:[#allocation0]]
  $region69: #{beatmap_transformer_forward.7} parent=0
    _
  %s12 = ssub.s32 1, %s10
  %s13 = scalar_select 0, %s12, %s10
  loop: start=0, step=1, limit=4
  $region2: #{beatmap_transformer_forward.7} parent=0 // loop_pre_header
    _
  $region3: #{beatmap_transformer_forward.7} parent=0 // loop_header
    %s15 = sphi 0, %s19
    %p16 = scmp.ge.s32.totalorder %s15, 4
    %s25 = sphi 0, %s27
    %s28 = sphi 0, %s25
    %s29 = sphi 0, %s28
    %s45 = sphi 0, %s29
    %s49 = sphi 0, %s49
    %s51 = sphi 0, %s49
    %s52 = sphi 0, %s51
    %s66 = sphi 0, %s52
    %s70 = sphi 0, %s70
    %s72 = sphi 0, %s70
    %s73 = sphi 0, %s72
    %s87 = sphi 0, %s73
    %s91 = sphi 0, %s91
    %s93 = sphi 0, %s91
    %s94 = sphi 0, %s93
    %s108 = sphi 0, %s94
    %s112 = sphi 0, %s112
    %s114 = sphi 0, %s112
    %s115 = sphi 0, %s114
    %s129 = sphi 0, %s115
    %s133 = sphi 0, %s133
    %s135 = sphi 0, %s133
    %s136 = sphi 0, %s135
    %s150 = sphi 0, %s136
    %s154 = sphi 0, %s154
    %s156 = sphi 0, %s154
    %s157 = sphi 0, %s156
    %s171 = sphi 0, %s157
    %s175 = sphi 0, %s175
    %s177 = sphi 0, %s175
    %s178 = sphi 0, %s177
    %s192 = sphi 0, %s178
    %s196 = sphi 0, %s196
    %s198 = sphi 0, %s196
    %s199 = sphi 0, %s198
    %s213 = sphi 0, %s199
    %s219 = sphi 0, %s221
    %s222 = sphi 0, %s219
    %s223 = sphi 0, %s222
    %s239 = sphi 0, %s223
  $region4: #{beatmap_transformer_forward.7} parent=0 // loop_header_branch
    %18 = sbr.rel (%p16) target = $region8
  $region5: #{beatmap_transformer_forward.7} parent=0 // loop_body
    %s20 = ssub.s32 %s15, 1
    %s21 = ssub.s32 %s15, 2
    %s22 = sadd.s32 %s15, 1
    %s23 = ssub.s32 %s15, %s22
    %p24 = scmp.eq.s32.totalorder %s23, 0
    %s26 = sadd.s32 %s25, 1
    %s27 = scalar_select %p24, %s25, %s26
    %p30 = pneg %p24
    %p31 = scmp.eq.s32.totalorder %s15, 1
    %p32 = por %p30, %p31
    %p33 = scmp.ne.s32.totalorder %s25, %s28
    %p34 = scmp.eq.s32.totalorder %s15, 0
    %p35 = por %p33, %p34
    %p36 = scmp.ne.s32.totalorder %s25, %s28
    %p37 = scmp.eq.s32.totalorder %s20, 1
    %p38 = por %p36, %p37
    %p39 = scmp.ne.s32.totalorder %s28, %s29
    %p40 = scmp.eq.s32.totalorder %s20, 0
    %p41 = por %p39, %p40
    %p42 = scmp.ne.s32.totalorder %s28, %s29
    %p43 = scmp.eq.s32.totalorder %s21, 1
    %p44 = por %p42, %p43
    %p46 = scmp.ne.s32.totalorder %s29, %s45
    %p47 = scmp.eq.s32.totalorder %s21, 0
    %p48 = por %p46, %p47
    %s50 = sadd.s32 %s49, 1
    %p53 = scmp.eq.s32.totalorder %s15, 1
    %p54 = scmp.ne.s32.totalorder %s49, %s51
    %p55 = scmp.eq.s32.totalorder %s15, 0
    %p56 = por %p54, %p55
    %p57 = scmp.ne.s32.totalorder %s49, %s51
    %p58 = scmp.eq.s32.totalorder %s20, 1
    %p59 = por %p57, %p58
    %p60 = scmp.ne.s32.totalorder %s51, %s52
    %p61 = scmp.eq.s32.totalorder %s20, 0
    %p62 = por %p60, %p61
    %p63 = scmp.ne.s32.totalorder %s51, %s52
    %p64 = scmp.eq.s32.totalorder %s21, 1
    %p65 = por %p63, %p64
    %p67 = scmp.ne.s32.totalorder %s52, %s66
    %p68 = scmp.eq.s32.totalorder %s21, 0
    %p69 = por %p67, %p68
    %s71 = sadd.s32 %s70, 1
    %p74 = scmp.eq.s32.totalorder %s15, 1
    %p75 = scmp.ne.s32.totalorder %s70, %s72
    %p76 = scmp.eq.s32.totalorder %s15, 0
    %p77 = por %p75, %p76
    %p78 = scmp.ne.s32.totalorder %s70, %s72
    %p79 = scmp.eq.s32.totalorder %s20, 1
    %p80 = por %p78, %p79
    %p81 = scmp.ne.s32.totalorder %s72, %s73
    %p82 = scmp.eq.s32.totalorder %s20, 0
    %p83 = por %p81, %p82
    %p84 = scmp.ne.s32.totalorder %s72, %s73
    %p85 = scmp.eq.s32.totalorder %s21, 1
    %p86 = por %p84, %p85
    %p88 = scmp.ne.s32.totalorder %s73, %s87
    %p89 = scmp.eq.s32.totalorder %s21, 0
    %p90 = por %p88, %p89
    %s92 = sadd.s32 %s91, 1
    %p95 = scmp.eq.s32.totalorder %s15, 1
    %p96 = scmp.ne.s32.totalorder %s91, %s93
    %p97 = scmp.eq.s32.totalorder %s15, 0
    %p98 = por %p96, %p97
    %p99 = scmp.ne.s32.totalorder %s91, %s93
    %p100 = scmp.eq.s32.totalorder %s20, 1
    %p101 = por %p99, %p100
    %p102 = scmp.ne.s32.totalorder %s93, %s94
    %p103 = scmp.eq.s32.totalorder %s20, 0
    %p104 = por %p102, %p103
    %p105 = scmp.ne.s32.totalorder %s93, %s94
    %p106 = scmp.eq.s32.totalorder %s21, 1
    %p107 = por %p105, %p106
    %p109 = scmp.ne.s32.totalorder %s94, %s108
    %p110 = scmp.eq.s32.totalorder %s21, 0
    %p111 = por %p109, %p110
    %s113 = sadd.s32 %s112, 1
    %p116 = scmp.eq.s32.totalorder %s15, 1
    %p117 = scmp.ne.s32.totalorder %s112, %s114
    %p118 = scmp.eq.s32.totalorder %s15, 0
    %p119 = por %p117, %p118
    %p120 = scmp.ne.s32.totalorder %s112, %s114
    %p121 = scmp.eq.s32.totalorder %s20, 1
    %p122 = por %p120, %p121
    %p123 = scmp.ne.s32.totalorder %s114, %s115
    %p124 = scmp.eq.s32.totalorder %s20, 0
    %p125 = por %p123, %p124
    %p126 = scmp.ne.s32.totalorder %s114, %s115
    %p127 = scmp.eq.s32.totalorder %s21, 1
    %p128 = por %p126, %p127
    %p130 = scmp.ne.s32.totalorder %s115, %s129
    %p131 = scmp.eq.s32.totalorder %s21, 0
    %p132 = por %p130, %p131
    %s134 = sadd.s32 %s133, 1
    %p137 = scmp.eq.s32.totalorder %s15, 1
    %p138 = scmp.ne.s32.totalorder %s133, %s135
    %p139 = scmp.eq.s32.totalorder %s15, 0
    %p140 = por %p138, %p139
    %p141 = scmp.ne.s32.totalorder %s133, %s135
    %p142 = scmp.eq.s32.totalorder %s20, 1
    %p143 = por %p141, %p142
    %p144 = scmp.ne.s32.totalorder %s135, %s136
    %p145 = scmp.eq.s32.totalorder %s20, 0
    %p146 = por %p144, %p145
    %p147 = scmp.ne.s32.totalorder %s135, %s136
    %p148 = scmp.eq.s32.totalorder %s21, 1
    %p149 = por %p147, %p148
    %p151 = scmp.ne.s32.totalorder %s136, %s150
    %p152 = scmp.eq.s32.totalorder %s21, 0
    %p153 = por %p151, %p152
    %s155 = sadd.s32 %s154, 1
    %p158 = scmp.eq.s32.totalorder %s15, 1
    %p159 = scmp.ne.s32.totalorder %s154, %s156
    %p160 = scmp.eq.s32.totalorder %s15, 0
    %p161 = por %p159, %p160
    %p162 = scmp.ne.s32.totalorder %s154, %s156
    %p163 = scmp.eq.s32.totalorder %s20, 1
    %p164 = por %p162, %p163
    %p165 = scmp.ne.s32.totalorder %s156, %s157
    %p166 = scmp.eq.s32.totalorder %s20, 0
    %p167 = por %p165, %p166
    %p168 = scmp.ne.s32.totalorder %s156, %s157
    %p169 = scmp.eq.s32.totalorder %s21, 1
    %p170 = por %p168, %p169
    %p172 = scmp.ne.s32.totalorder %s157, %s171
    %p173 = scmp.eq.s32.totalorder %s21, 0
    %p174 = por %p172, %p173
    %s176 = sadd.s32 %s175, 1
    %p179 = scmp.eq.s32.totalorder %s15, 1
    %p180 = scmp.ne.s32.totalorder %s175, %s177
    %p181 = scmp.eq.s32.totalorder %s15, 0
    %p182 = por %p180, %p181
    %p183 = scmp.ne.s32.totalorder %s175, %s177
    %p184 = scmp.eq.s32.totalorder %s20, 1
    %p185 = por %p183, %p184
    %p186 = scmp.ne.s32.totalorder %s177, %s178
    %p187 = scmp.eq.s32.totalorder %s20, 0
    %p188 = por %p186, %p187
    %p189 = scmp.ne.s32.totalorder %s177, %s178
    %p190 = scmp.eq.s32.totalorder %s21, 1
    %p191 = por %p189, %p190
    %p193 = scmp.ne.s32.totalorder %s178, %s192
    %p194 = scmp.eq.s32.totalorder %s21, 0
    %p195 = por %p193, %p194
    %s197 = sadd.s32 %s196, 1
    %p200 = scmp.eq.s32.totalorder %s15, 1
    %p201 = scmp.ne.s32.totalorder %s196, %s198
    %p202 = scmp.eq.s32.totalorder %s15, 0
    %p203 = por %p201, %p202
    %p204 = scmp.ne.s32.totalorder %s196, %s198
    %p205 = scmp.eq.s32.totalorder %s20, 1
    %p206 = por %p204, %p205
    %p207 = scmp.ne.s32.totalorder %s198, %s199
    %p208 = scmp.eq.s32.totalorder %s20, 0
    %p209 = por %p207, %p208
    %p210 = scmp.ne.s32.totalorder %s198, %s199
    %p211 = scmp.eq.s32.totalorder %s21, 1
    %p212 = por %p210, %p211
    %p214 = scmp.ne.s32.totalorder %s199, %s213
    %p215 = scmp.eq.s32.totalorder %s21, 0
    %p216 = por %p214, %p215
    %s217 = ssub.s32 %s15, %s22
    %p218 = scmp.eq.s32.totalorder %s217, 0
    %s220 = sadd.s32 %s219, 1
    %s221 = scalar_select %p218, %s219, %s220
    %p224 = pneg %p218
    %p225 = scmp.eq.s32.totalorder %s15, 1
    %p226 = por %p224, %p225
    %p227 = scmp.ne.s32.totalorder %s219, %s222
    %p228 = scmp.eq.s32.totalorder %s15, 0
    %p229 = por %p227, %p228
    %p230 = scmp.ne.s32.totalorder %s219, %s222
    %p231 = scmp.eq.s32.totalorder %s20, 1
    %p232 = por %p230, %p231
    %p233 = scmp.ne.s32.totalorder %s222, %s223
    %p234 = scmp.eq.s32.totalorder %s20, 0
    %p235 = por %p233, %p234
    %p236 = scmp.ne.s32.totalorder %s222, %s223
    %p237 = scmp.eq.s32.totalorder %s21, 1
    %p238 = por %p236, %p237
    %p240 = scmp.ne.s32.totalorder %s223, %s239
    %p241 = scmp.eq.s32.totalorder %s21, 0
    %p242 = por %p240, %p241
    %p243 = scmp.le.s32.totalorder 1, %s15
    %p244 = scmp.lt.s32.totalorder %s15, 3
    %p245 = pnand %p243, %p244
    %p246 = pneg %p245
    // Predicated region
    $region9: #{beatmap_transformer_forward.7} parent=5 // pred_check
      _
    $region10: #{beatmap_transformer_forward.7} parent=5 // pred_check_branch
      %248 = sbr.rel (%p245) target = $region12
    $region11: #{beatmap_transformer_forward.7} parent=5 // pred_region
      %s249 = ssub.s32 %s15, 1
      // Predicated region
      $region13: #{beatmap_transformer_forward.7} parent=11 // pred_check
        %p250 = pneg %p62
      $region14: #{beatmap_transformer_forward.7} parent=11 // pred_check_branch
        %252 = sbr.rel (%p250) target = $region16
      $region15: #{beatmap_transformer_forward.7} parent=11 // pred_region
        _
      $region16: #{beatmap_transformer_forward.7} parent=11 // pred_fallthru
        _
      // Predicated region
      $region17: #{beatmap_transformer_forward.7} parent=11 // pred_check
        %p253 = pneg %p83
      $region18: #{beatmap_transformer_forward.7} parent=11 // pred_check_branch
        %255 = sbr.rel (%p253) target = $region20
      $region19: #{beatmap_transformer_forward.7} parent=11 // pred_region
        _
      $region20: #{beatmap_transformer_forward.7} parent=11 // pred_fallthru
        _
      // Predicated region
      $region21: #{beatmap_transformer_forward.7} parent=11 // pred_check
        %p256 = pneg %p104
      $region22: #{beatmap_transformer_forward.7} parent=11 // pred_check_branch
        %258 = sbr.rel (%p256) target = $region24
      $region23: #{beatmap_transformer_forward.7} parent=11 // pred_region
        _
      $region24: #{beatmap_transformer_forward.7} parent=11 // pred_fallthru
        _
      // Predicated region
      $region25: #{beatmap_transformer_forward.7} parent=11 // pred_check
        %p259 = pneg %p125
      $region26: #{beatmap_transformer_forward.7} parent=11 // pred_check_branch
        %261 = sbr.rel (%p259) target = $region28
      $region27: #{beatmap_transformer_forward.7} parent=11 // pred_region
        _
      $region28: #{beatmap_transformer_forward.7} parent=11 // pred_fallthru
        _
      // Predicated region
      $region29: #{beatmap_transformer_forward.7} parent=11 // pred_check
        %p262 = pneg %p146
      $region30: #{beatmap_transformer_forward.7} parent=11 // pred_check_branch
        %264 = sbr.rel (%p262) target = $region32
      $region31: #{beatmap_transformer_forward.7} parent=11 // pred_region
        _
      $region32: #{beatmap_transformer_forward.7} parent=11 // pred_fallthru
        _
      // Predicated region
      $region33: #{beatmap_transformer_forward.7} parent=11 // pred_check
        %p265 = pneg %p167
      $region34: #{beatmap_transformer_forward.7} parent=11 // pred_check_branch
        %267 = sbr.rel (%p265) target = $region36
      $region35: #{beatmap_transformer_forward.7} parent=11 // pred_region
        _
      $region36: #{beatmap_transformer_forward.7} parent=11 // pred_fallthru
        _
      // Predicated region
      $region37: #{beatmap_transformer_forward.7} parent=11 // pred_check
        %p268 = pneg %p188
      $region38: #{beatmap_transformer_forward.7} parent=11 // pred_check_branch
        %270 = sbr.rel (%p268) target = $region40
      $region39: #{beatmap_transformer_forward.7} parent=11 // pred_region
        _
      $region40: #{beatmap_transformer_forward.7} parent=11 // pred_fallthru
        _
      // Predicated region
      $region41: #{beatmap_transformer_forward.7} parent=11 // pred_check
        %p271 = pneg %p209
      $region42: #{beatmap_transformer_forward.7} parent=11 // pred_check_branch
        %273 = sbr.rel (%p271) target = $region44
      $region43: #{beatmap_transformer_forward.7} parent=11 // pred_region
        _
      $region44: #{beatmap_transformer_forward.7} parent=11 // pred_fallthru
        _
    $region12: #{beatmap_transformer_forward.7} parent=5 // pred_fallthru
      _
    %p274 = scmp.lt.s32.totalorder %s15, 2
    // Predicated region
    $region45: #{beatmap_transformer_forward.7} parent=5 // pred_check
      %p275 = pneg %p274
    $region46: #{beatmap_transformer_forward.7} parent=5 // pred_check_branch
      %277 = sbr.rel (%p275) target = $region48
    $region47: #{beatmap_transformer_forward.7} parent=5 // pred_region
      // Predicated region
      $region49: #{beatmap_transformer_forward.7} parent=47 // pred_check
        %p278 = pneg %p35
      $region50: #{beatmap_transformer_forward.7} parent=47 // pred_check_branch
        %280 = sbr.rel (%p278) target = $region52
      $region51: #{beatmap_transformer_forward.7} parent=47 // pred_region
        %p281 = scmp.lt.s32.totalorder %s15, 1
        %s282 = scalar_select %p281, %s15, 1
        %s283 = smul.addr %s282, 8
        %s284 = scalar_lea.vmem %s0, %s283
      $region52: #{beatmap_transformer_forward.7} parent=47 // pred_fallthru
        _
    $region48: #{beatmap_transformer_forward.7} parent=5 // pred_fallthru
      _
    %p285 = scmp.le.s32.totalorder 1, %s15
    %p286 = scmp.lt.s32.totalorder %s15, 3
    %p287 = pnand %p285, %p286
    %p288 = pneg %p287
    // Predicated region
    $region53: #{beatmap_transformer_forward.7} parent=5 // pred_check
      _
    $region54: #{beatmap_transformer_forward.7} parent=5 // pred_check_branch
      %290 = sbr.rel (%p287) target = $region56
    $region55: #{beatmap_transformer_forward.7} parent=5 // pred_region
      %s291 = ssub.s32 %s15, 1
      %p292 = scmp.lt.s32.totalorder %s20, 1
      %s293 = scalar_select %p292, %s20, 1
      %s294 = smul.addr %s293, 8
      %s295 = scalar_lea.vmem %s0, %s294
      %p296 = pneg %p41
      %p297 = pneg %p38
      %p298 = pneg %p62
      %p299 = pneg %p59
      %p300 = pneg %p83
      %p301 = pneg %p80
      %p302 = pneg %p104
      %p303 = pneg %p101
      %p304 = pneg %p125
      %p305 = pneg %p122
      %p306 = pneg %p146
      %p307 = pneg %p143
      %p308 = pneg %p167
      %p309 = pneg %p164
      %p310 = pneg %p188
      %p311 = pneg %p185
      %p312 = pneg %p209
      %p313 = pneg %p206
      %p314 = pneg %p235
      %p315 = pneg %p232
      %p316 = scmp.lt.s32.totalorder %s20, 1
      %s317 = scalar_select %p316, %s20, 1
      %s318 = smul.addr %s317, 8
      %s319 = scalar_lea.vmem %s9, %s318
      %p320 = scmp.lt.s32.totalorder %s20, 1
      %s321 = scalar_select %p320, %s20, 1
      %s322 = smul.addr %s321, 8
      %s323 = scalar_lea.vmem %s0, %s322
      %p324 = scmp.lt.s32.totalorder %s20, 1
      %s325 = scalar_select %p324, %s20, 1
      %s326 = smul.addr %s325, 8
      %s327 = scalar_lea.vmem %s9, %s326
      %v329 = vld [vmem:[%s323] sm:$0xff]
      %v330 = vld [vmem:[%s1] sm:$0xf]
      %v331 = vld [vmem:[%s1 + $0x4] sm:$0xf]
      %v332 = vld [vmem:[%s1 + $0x8] sm:$0xf]
      %v333 = vld [vmem:[%s1 + $0xc] sm:$0xf]
      %v334 = vld [vmem:[%s1 + $0x10] sm:$0xf]
      %v335 = vld [vmem:[%s1 + $0x14] sm:$0xf]
      %v336 = vld [vmem:[%s1 + $0x18] sm:$0xf]
      %v337 = vld [vmem:[%s1 + $0x1c] sm:$0xf]
      %v338 = vld [vmem:[%s1 + $0x20] sm:$0xf]
      %v339 = vld [vmem:[%s1 + $0x24] sm:$0xf]
      %v340 = vld [vmem:[%s1 + $0x28] sm:$0xf]
      %v341 = vld [vmem:[%s1 + $0x2c] sm:$0xf]
      %v342 = vld [vmem:[%s1 + $0x30] sm:$0xf]
      %v343 = vld [vmem:[%s1 + $0x34] sm:$0xf]
      %v344 = vld [vmem:[%s1 + $0x38] sm:$0xf]
      %v345 = vld [vmem:[%s1 + $0x3c] sm:$0xf]
      %v346 = vpack.c.bf16 %v329, %v329
      %v347 = vld [vmem:[%s2] sm:$0x1]
      %v349 = vlaneseq
      %v350 = vshrl.u32 %v349, 7
      %v351 = vsub.s32 0, %v350
      %v352 = vrot.slane %v347, %v351
      %v370 = vunpack.c.l.b16 %v330
      %v371 = vunpack.c.l.b16 %v331
      %v372 = vunpack.c.l.b16 %v332
      %v373 = vunpack.c.l.b16 %v333
      %v374 = vunpack.c.l.b16 %v334
      %v375 = vunpack.c.l.b16 %v335
      %v376 = vunpack.c.l.b16 %v336
      %v377 = vunpack.c.l.b16 %v337
      %v378 = vunpack.c.l.b16 %v338
      %v379 = vunpack.c.l.b16 %v339
      %v380 = vunpack.c.l.b16 %v340
      %v381 = vunpack.c.l.b16 %v341
      %v382 = vunpack.c.l.b16 %v342
      %v383 = vunpack.c.l.b16 %v343
      %v384 = vunpack.c.l.b16 %v344
      %v385 = vunpack.c.l.b16 %v345
      %v386 = vpack.c.b16 %v371, %v370
      %v387 = vpack.c.b16 %v373, %v372
      %v388 = vpack.c.b16 %v375, %v374
      %v389 = vpack.c.b16 %v377, %v376
      %v390 = vpack.c.b16 %v379, %v378
      %v391 = vpack.c.b16 %v381, %v380
      %v392 = vpack.c.b16 %v383, %v382
      %v393 = vpack.c.b16 %v385, %v384
      %402 = vmatprep.subr.bf16.mxu0 0
      %403 = vmatpush1.bf16.msra.mxu0 %v393
      %404 = vmatprep.subr.bf16.mxu0 0
      %405 = vmatpush1.bf16.msra.mxu0 %v392
      %406 = vmatprep.subr.bf16.mxu0 0
      %407 = vmatpush1.bf16.msra.mxu0 %v391
      %408 = vmatprep.subr.bf16.mxu0 0
      %409 = vmatpush1.bf16.msra.mxu0 %v390
      %410 = vmatprep.subr.bf16.mxu0 0
      %411 = vmatpush1.bf16.msra.mxu0 %v389
      %412 = vmatprep.subr.bf16.mxu0 0
      %413 = vmatpush1.bf16.msra.mxu0 %v388
      %414 = vmatprep.subr.bf16.mxu0 0
      %415 = vmatpush1.bf16.msra.mxu0 %v387
      %416 = vmatprep.subr.bf16.mxu0 0
      %417 = vmatpush1.bf16.msra.mxu0 %v386
      %418 = vmatprep.subr.bf16.mxu0 0
      %419 = vmatpush2.bf16.msra.mxu0 0
      %420 = vmatprep.subr.bf16.mxu0 0
      %421 = vmatpush2.bf16.msra.mxu0 0
      %422 = vmatprep.subr.bf16.mxu0 0
      %423 = vmatpush2.bf16.msra.mxu0 0
      %424 = vmatprep.subr.bf16.mxu0 0
      %425 = vmatpush2.bf16.msra.mxu0 0
      %426 = vmatprep.subr.bf16.mxu0 0
      %427 = vmatpush2.bf16.msra.mxu0 0
      %428 = vmatprep.subr.bf16.mxu0 0
      %429 = vmatpush2.bf16.msra.mxu0 0
      %430 = vmatprep.subr.bf16.mxu0 0
      %431 = vmatpush2.bf16.msra.mxu0 0
      %432 = vmatprep.subr.bf16.mxu0 0
      %433 = vmatpush2.bf16.msra.mxu0 0
      %434 = vmatprep.mubr.bf16.mxu0 0
      %435 = vmatmul.mubr.bf16.gmra.mxu0 %v346
      %v436 = vpop.f32.mrf.mxu0
      %v437 = vadd.f32 %v352, %v436
      %v438 = vpop.f32.mrf.mxu0
      %v439 = vpop.f32.mrf.mxu0
      %v440 = vpop.f32.mrf.mxu0
      %441 = vdwg.mxu0
      %v442 = vld [vmem:[%s3] sm:$0xf]
      %v443 = vld [vmem:[%s3 + $0x4] sm:$0xf]
      %v444 = vld [vmem:[%s3 + $0x8] sm:$0xf]
      %v445 = vld [vmem:[%s3 + $0xc] sm:$0xf]
      %v446 = vld [vmem:[%s3 + $0x10] sm:$0xf]
      %v447 = vld [vmem:[%s3 + $0x14] sm:$0xf]
      %v448 = vld [vmem:[%s3 + $0x18] sm:$0xf]
      %v449 = vld [vmem:[%s3 + $0x1c] sm:$0xf]
      %v450 = vld [vmem:[%s3 + $0x20] sm:$0xf]
      %v451 = vld [vmem:[%s3 + $0x24] sm:$0xf]
      %v452 = vld [vmem:[%s3 + $0x28] sm:$0xf]
      %v453 = vld [vmem:[%s3 + $0x2c] sm:$0xf]
      %v454 = vld [vmem:[%s3 + $0x30] sm:$0xf]
      %v455 = vld [vmem:[%s3 + $0x34] sm:$0xf]
      %v456 = vld [vmem:[%s3 + $0x38] sm:$0xf]
      %v457 = vld [vmem:[%s3 + $0x3c] sm:$0xf]
      %v458 = vpack.c.bf16 %v437, %v437
      %v459 = vld [vmem:[%s4] sm:$0x1]
      %v461 = vlaneseq
      %v462 = vshrl.u32 %v461, 7
      %v463 = vsub.s32 0, %v462
      %v464 = vrot.slane %v459, %v463
      %v482 = vunpack.c.l.b16 %v442
      %v483 = vunpack.c.l.b16 %v443
      %v484 = vunpack.c.l.b16 %v444
      %v485 = vunpack.c.l.b16 %v445
      %v486 = vunpack.c.l.b16 %v446
      %v487 = vunpack.c.l.b16 %v447
      %v488 = vunpack.c.l.b16 %v448
      %v489 = vunpack.c.l.b16 %v449
      %v490 = vunpack.c.l.b16 %v450
      %v491 = vunpack.c.l.b16 %v451
      %v492 = vunpack.c.l.b16 %v452
      %v493 = vunpack.c.l.b16 %v453
      %v494 = vunpack.c.l.b16 %v454
      %v495 = vunpack.c.l.b16 %v455
      %v496 = vunpack.c.l.b16 %v456
      %v497 = vunpack.c.l.b16 %v457
      %v498 = vpack.c.b16 %v483, %v482
      %v499 = vpack.c.b16 %v485, %v484
      %v500 = vpack.c.b16 %v487, %v486
      %v501 = vpack.c.b16 %v489, %v488
      %v502 = vpack.c.b16 %v491, %v490
      %v503 = vpack.c.b16 %v493, %v492
      %v504 = vpack.c.b16 %v495, %v494
      %v505 = vpack.c.b16 %v497, %v496
      %514 = vmatprep.subr.bf16.mxu0 0
      %515 = vmatpush1.bf16.msra.mxu0 %v505
      %516 = vmatprep.subr.bf16.mxu0 0
      %517 = vmatpush1.bf16.msra.mxu0 %v504
      %518 = vmatprep.subr.bf16.mxu0 0
      %519 = vmatpush1.bf16.msra.mxu0 %v503
      %520 = vmatprep.subr.bf16.mxu0 0
      %521 = vmatpush1.bf16.msra.mxu0 %v502
      %522 = vmatprep.subr.bf16.mxu0 0
      %523 = vmatpush1.bf16.msra.mxu0 %v501
      %524 = vmatprep.subr.bf16.mxu0 0
      %525 = vmatpush1.bf16.msra.mxu0 %v500
      %526 = vmatprep.subr.bf16.mxu0 0
      %527 = vmatpush1.bf16.msra.mxu0 %v499
      %528 = vmatprep.subr.bf16.mxu0 0
      %529 = vmatpush1.bf16.msra.mxu0 %v498
      %530 = vmatprep.subr.bf16.mxu0 0
      %531 = vmatpush2.bf16.msra.mxu0 0
      %532 = vmatprep.subr.bf16.mxu0 0
      %533 = vmatpush2.bf16.msra.mxu0 0
      %534 = vmatprep.subr.bf16.mxu0 0
      %535 = vmatpush2.bf16.msra.mxu0 0
      %536 = vmatprep.subr.bf16.mxu0 0
      %537 = vmatpush2.bf16.msra.mxu0 0
      %538 = vmatprep.subr.bf16.mxu0 0
      %539 = vmatpush2.bf16.msra.mxu0 0
      %540 = vmatprep.subr.bf16.mxu0 0
      %541 = vmatpush2.bf16.msra.mxu0 0
      %542 = vmatprep.subr.bf16.mxu0 0
      %543 = vmatpush2.bf16.msra.mxu0 0
      %544 = vmatprep.subr.bf16.mxu0 0
      %545 = vmatpush2.bf16.msra.mxu0 0
      %546 = vmatprep.mubr.bf16.mxu0 0
      %547 = vmatmul.mubr.bf16.gmra.mxu0 %v458
      %v548 = vpop.f32.mrf.mxu0
      %v549 = vadd.f32 %v464, %v548
      %v550 = vpop.f32.mrf.mxu0
      %v551 = vpop.f32.mrf.mxu0
      %v552 = vpop.f32.mrf.mxu0
      %553 = vdwg.mxu0
      %v554 = vld [vmem:[%s5] sm:$0x1]
      %v555 = vld [vmem:[%s6] sm:$0x1]
      %vm556 = vcmask 523264
      %v557 = vsel %vm556, %v549, 0.0
      %558 = vadd.xlane.f32.xlu0 %v557
      %v559 = vpop.xlane.xlu0 %558
      %v560 = vrcp.pop 64.0
      %v561 = vmul.f32 %v559, %v560
      %v562 = vsub.f32 %v549, %v561
      %v563 = vmul.f32 %v562, %v562
      %v564 = vsel %vm556, %v563, 0.0
      %565 = vadd.xlane.f32.xlu0 %v564
      %v566 = vpop.xlane.xlu0 %565
      %v567 = vmul.f32 %v566, %v560
      %v568 = vadd.f32 %v567, 1e-05
      %v569 = vrsqrt.pop %v568
      %v570 = vmul.f32 %v562, %v569
      %v572 = vlaneseq
      %v573 = vshrl.u32 %v572, 7
      %v574 = vsub.s32 0, %v573
      %v575 = vrot.slane %v554, %v574
      %v577 = vmul.f32 %v570, %v575
      %v579 = vlaneseq
      %v580 = vshrl.u32 %v579, 7
      %v581 = vsub.s32 0, %v580
      %v582 = vrot.slane %v555, %v581
      %v584 = vadd.f32 %v577, %v582
      %v585 = vmax.f32 %v584, 0.0
      %v586 = vld [vmem:[%s7] sm:$0xf]
      %v587 = vld [vmem:[%s7 + $0x4] sm:$0xf]
      %v588 = vld [vmem:[%s7 + $0x8] sm:$0xf]
      %v589 = vld [vmem:[%s7 + $0xc] sm:$0xf]
      %v590 = vld [vmem:[%s7 + $0x10] sm:$0xf]
      %v591 = vld [vmem:[%s7 + $0x14] sm:$0xf]
      %v592 = vld [vmem:[%s7 + $0x18] sm:$0xf]
      %v593 = vld [vmem:[%s7 + $0x1c] sm:$0xf]
      %v594 = vpack.c.bf16 %v585, %v585
      %v595 = vld [vmem:[%s8] sm:$0x1]
      %v597 = vlaneseq
      %v598 = vshrl.u32 %v597, 7
      %v599 = vsub.s32 0, %v598
      %v600 = vrot.slane %v595, %v599
      %v610 = vunpack.c.l.b16 %v586
      %v611 = vunpack.c.l.b16 %v587
      %v612 = vunpack.c.l.b16 %v588
      %v613 = vunpack.c.l.b16 %v589
      %v614 = vunpack.c.l.b16 %v590
      %v615 = vunpack.c.l.b16 %v591
      %v616 = vunpack.c.l.b16 %v592
      %v617 = vunpack.c.l.b16 %v593
      %v618 = vpack.c.b16 %v611, %v610
      %v619 = vpack.c.b16 %v613, %v612
      %v620 = vpack.c.b16 %v615, %v614
      %v621 = vpack.c.b16 %v617, %v616
      %v627 = vsel %vm556, %v594, 0
      %629 = vmatprep.subr.bf16.mxu0 0
      %630 = vmatpush1.bf16.msra.mxu0 0
      %631 = vmatprep.subr.bf16.mxu0 0
      %632 = vmatpush1.bf16.msra.mxu0 0
      %633 = vmatprep.subr.bf16.mxu0 0
      %634 = vmatpush1.bf16.msra.mxu0 0
      %635 = vmatprep.subr.bf16.mxu0 0
      %636 = vmatpush1.bf16.msra.mxu0 0
      %637 = vmatprep.subr.bf16.mxu0 0
      %638 = vmatpush1.bf16.msra.mxu0 %v621
      %639 = vmatprep.subr.bf16.mxu0 0
      %640 = vmatpush1.bf16.msra.mxu0 %v620
      %641 = vmatprep.subr.bf16.mxu0 0
      %642 = vmatpush1.bf16.msra.mxu0 %v619
      %643 = vmatprep.subr.bf16.mxu0 0
      %644 = vmatpush1.bf16.msra.mxu0 %v618
      %645 = vmatprep.subr.bf16.mxu0 0
      %646 = vmatpush2.bf16.msra.mxu0 0
      %647 = vmatprep.subr.bf16.mxu0 0
      %648 = vmatpush2.bf16.msra.mxu0 0
      %649 = vmatprep.subr.bf16.mxu0 0
      %650 = vmatpush2.bf16.msra.mxu0 0
      %651 = vmatprep.subr.bf16.mxu0 0
      %652 = vmatpush2.bf16.msra.mxu0 0
      %653 = vmatprep.subr.bf16.mxu0 0
      %654 = vmatpush2.bf16.msra.mxu0 0
      %655 = vmatprep.subr.bf16.mxu0 0
      %656 = vmatpush2.bf16.msra.mxu0 0
      %657 = vmatprep.subr.bf16.mxu0 0
      %658 = vmatpush2.bf16.msra.mxu0 0
      %659 = vmatprep.subr.bf16.mxu0 0
      %660 = vmatpush2.bf16.msra.mxu0 0
      %661 = vmatprep.mubr.bf16.mxu0 0
      %662 = vmatmul.mubr.bf16.gmra.mxu0 %v627
      %v663 = vpop.f32.mrf.mxu0
      %v664 = vadd.f32 %v600, %v663
      %v665 = vpop.f32.mrf.mxu0
      %v666 = vpop.f32.mrf.mxu0
      %v667 = vpop.f32.mrf.mxu0
      %668 = vdwg.mxu0
      %669 = vst [vmem:[%s327] sm:$0xff] %v664
      %p670 = scmp.lt.s32.totalorder %s20, 1
      %s671 = scalar_select %p670, %s20, 1
      %s672 = smul.addr %s671, 8
      %s673 = scalar_lea.vmem %s9, %s672
      // Predicated region
      $region57: #{beatmap_transformer_forward.7} parent=55 // pred_check
        %p674 = pneg %p232
      $region58: #{beatmap_transformer_forward.7} parent=55 // pred_check_branch
        %676 = sbr.rel (%p674) target = $region60
      $region59: #{beatmap_transformer_forward.7} parent=55 // pred_region
        _
      $region60: #{beatmap_transformer_forward.7} parent=55 // pred_fallthru
        _
    $region56: #{beatmap_transformer_forward.7} parent=5 // pred_fallthru
      _
    %p677 = scmp.le.s32.totalorder 2, %s15
    // Predicated region
    $region61: #{beatmap_transformer_forward.7} parent=5 // pred_check
      %p678 = pneg %p677
    $region62: #{beatmap_transformer_forward.7} parent=5 // pred_check_branch
      %680 = sbr.rel (%p678) target = $region64
    $region63: #{beatmap_transformer_forward.7} parent=5 // pred_region
      %s681 = ssub.s32 %s15, 2
      // Predicated region
      $region65: #{beatmap_transformer_forward.7} parent=63 // pred_check
        %p682 = pneg %p238
      $region66: #{beatmap_transformer_forward.7} parent=63 // pred_check_branch
        %684 = sbr.rel (%p682) target = $region68
      $region67: #{beatmap_transformer_forward.7} parent=63 // pred_region
        %p685 = scmp.lt.s32.totalorder %s21, 1
        %s686 = scalar_select %p685, %s21, 1
        %s687 = smul.addr %s686, 8
        %s688 = scalar_lea.vmem %s9, %s687
      $region68: #{beatmap_transformer_forward.7} parent=63 // pred_fallthru
        _
    $region64: #{beatmap_transformer_forward.7} parent=5 // pred_fallthru
      _
  $region6: #{beatmap_transformer_forward.7} parent=0 // loop_footer
    %s19 = sadd.s32 1, %s15
  $region7: #{beatmap_transformer_forward.7} parent=0 // loop_footer_branch
    %14 = sbr.rel target = $region3
  $region8: #{beatmap_transformer_forward.7} parent=0 // loop_exit
    _

// kernel: beatmap_transformer_forward.5
$region0: #{beatmap_transformer_forward.5}
  #allocation0 [shape = 'u32[]', space=smem, size = 0x4, offset = 0x4, fixed_abs, tag = 'smem constant byte address 0x4 - core index']
  #allocation1 [shape = 'u32[144,128]{1,0:T(1,128)}', space=vmem, size = 0x12000, scoped, tag = 'internal scratch']
  %s0 = inlined_call_operand.vmem [shape: f32[2,16,128], index: 0, kind: input, shape index: {}]
  %s1 = inlined_call_operand.vmem [shape: bf16[2,128,384], index: 1, kind: input, shape index: {}]
  %s2 = inlined_call_operand.vmem [shape: f32[2,1,384], index: 2, kind: input, shape index: {}]
  %s3 = inlined_call_operand.hbm [shape: bf16[2,128,128], index: 3, kind: input, shape index: {}]
  %s4 = inlined_call_operand.hbm [shape: f32[2,1,128], index: 4, kind: input, shape index: {}]
  %s5 = inlined_call_operand.hbm [shape: f32[2,1,128], index: 5, kind: input, shape index: {}]
  %s6 = inlined_call_operand.hbm [shape: f32[2,1,128], index: 6, kind: input, shape index: {}]
  %s7 = inlined_call_operand.vmem [shape: bf16[2,128,512], index: 7, kind: input, shape index: {}]
  %s8 = inlined_call_operand.vmem [shape: f32[2,1,512], index: 8, kind: input, shape index: {}]
  %s9 = inlined_call_operand.hbm [shape: bf16[2,512,128], index: 9, kind: input, shape index: {}]
  %s10 = inlined_call_operand.hbm [shape: f32[2,1,128], index: 10, kind: input, shape index: {}]
  %s11 = inlined_call_operand.hbm [shape: f32[2,1,128], index: 11, kind: input, shape index: {}]
  %s12 = inlined_call_operand.hbm [shape: f32[2,1,128], index: 12, kind: input, shape index: {}]
  %s13 = inlined_call_operand.vmem [shape: f32[2,16,128], index: 13, kind: output, shape index: {}]
  %s14 = sld [smem:[#allocation0]]
  $region121: #{beatmap_transformer_forward.5} parent=0
    _
  %s16 = ssub.s32 1, %s14
  %s17 = scalar_select 0, %s16, %s14
  $region1: #{beatmap_transformer_forward.5} parent=0
    #allocation2 [shape = 'u8[65536]{0}', space=vmem, size = 0x10000, scoped, tag = 'input window, operand 3']
    #allocation3 [shape = 's32[2]{0}', space=sflag, size = 0x8, scoped, tag = 'scoped memory for beatmap_transformer_forward.5']
    #allocation4 [shape = 'u8[1024]{0}', space=vmem, size = 0x400, scoped, tag = 'input window, operand 4']
    #allocation5 [shape = 's32[2]{0}', space=sflag, size = 0x8, scoped, tag = 'scoped memory for beatmap_transformer_forward.5']
    #allocation6 [shape = 'u8[1024]{0}', space=vmem, size = 0x400, scoped, tag = 'input window, operand 5']
    #allocation7 [shape = 'u8[1024]{0}', space=vmem, size = 0x400, scoped, tag = 'input window, operand 6']
    #allocation8 [shape = 's32[2]{0}', space=sflag, size = 0x8, scoped, tag = 'scoped memory for beatmap_transformer_forward.5']
    #allocation9 [shape = 'u8[262144]{0}', space=vmem, size = 0x40000, scoped, tag = 'input window, operand 9']
    #allocation10 [shape = 'u8[1024]{0}', space=vmem, size = 0x400, scoped, tag = 'input window, operand 10']
    #allocation11 [shape = 's32[2]{0}', space=sflag, size = 0x8, scoped, tag = 'scoped memory for beatmap_transformer_forward.5']
    #allocation12 [shape = 'u8[1024]{0}', space=vmem, size = 0x400, scoped, tag = 'input window, operand 11']
    #allocation13 [shape = 'u8[1024]{0}', space=vmem, size = 0x400, scoped, tag = 'input window, operand 12']
    #allocation14 [shape = 's32[2]{0}', space=sflag, size = 0x8, scoped, tag = 'scoped memory for beatmap_transformer_forward.5']
    %18 = vsyncpa [#allocation3], 0
    %s19 = scalar_lea.sflag [#allocation3], 1
    %20 = vsyncpa %s19, 0
    %21 = vsyncpa [#allocation5], 0
    %s22 = scalar_lea.sflag [#allocation5], 1
    %23 = vsyncpa %s22, 0
    %24 = vsyncpa [#allocation8], 0
    %s25 = scalar_lea.sflag [#allocation8], 1
    %26 = vsyncpa %s25, 0
    %27 = vsyncpa [#allocation11], 0
    %s28 = scalar_lea.sflag [#allocation11], 1
    %29 = vsyncpa %s28, 0
    %30 = vsyncpa [#allocation14], 0
    %s31 = scalar_lea.sflag [#allocation14], 1
    %32 = vsyncpa %s31, 0
    loop: start=0, step=1, limit=6
    $region2: #{beatmap_transformer_forward.5} parent=1 // loop_pre_header
      _
    $region3: #{beatmap_transformer_forward.5} parent=1 // loop_header
      %s34 = sphi 0, %s38
      %p35 = scmp.ge.s32.totalorder %s34, 6
      %s41 = sphi 0, %s53
      %s42 = sphi 0, %s49
      %s43 = sphi 0, %s41
      %s44 = sphi 0, %s42
      %s45 = sphi 0, %s43
      %s46 = sphi 0, %s44
      %s56 = sphi 0, %s58
      %s59 = sphi 0, %s56
      %s60 = sphi 0, %s59
      %s76 = sphi 0, %s60
      %s82 = sphi 0, %s84
      %s85 = sphi 0, %s82
      %s86 = sphi 0, %s85
      %s102 = sphi 0, %s86
      %s108 = sphi 0, %s110
      %s111 = sphi 0, %s108
      %s112 = sphi 0, %s111
      %s128 = sphi 0, %s112
      %s134 = sphi 0, %s136
      %s137 = sphi 0, %s134
      %s138 = sphi 0, %s137
      %s154 = sphi 0, %s138
      %s160 = sphi 0, %s162
      %s163 = sphi 0, %s160
      %s164 = sphi 0, %s163
      %s180 = sphi 0, %s164
      %s186 = sphi 0, %s188
      %s189 = sphi 0, %s186
      %s190 = sphi 0, %s189
      %s206 = sphi 0, %s190
      %s212 = sphi 0, %s214
      %s215 = sphi 0, %s212
      %s216 = sphi 0, %s215
      %s232 = sphi 0, %s216
      %s238 = sphi 0, %s240
      %s241 = sphi 0, %s238
      %s242 = sphi 0, %s241
      %s258 = sphi 0, %s242
      %s264 = sphi 0, %s266
      %s267 = sphi 0, %s264
      %s268 = sphi 0, %s267
      %s284 = sphi 0, %s268
      %s290 = sphi 0, %s292
      %s293 = sphi 0, %s290
      %s294 = sphi 0, %s293
      %s310 = sphi 0, %s294
      %s316 = sphi 0, %s318
      %s319 = sphi 0, %s316
      %s320 = sphi 0, %s319
      %s336 = sphi 0, %s320
      %s342 = sphi 0, %s344
      %s345 = sphi 0, %s342
      %s346 = sphi 0, %s345
      %s362 = sphi 0, %s346
      %s368 = sphi 0, %s370
      %s371 = sphi 0, %s368
      %s372 = sphi 0, %s371
      %s388 = sphi 0, %s372
      %s394 = sphi 0, %s396
      %s397 = sphi 0, %s394
      %s398 = sphi 0, %s397
      %s414 = sphi 0, %s398
    $region4: #{beatmap_transformer_forward.5} parent=1 // loop_header_branch
      %37 = sbr.rel (%p35) target = $region8
    $region5: #{beatmap_transformer_forward.5} parent=1 // loop_body
      %s39 = ssub.s32 %s34, 1
      %s40 = ssub.s32 %s34, 2
      %s47 = sadd.s32 1, %s42
      %p48 = scmp.ge.s32.totalorder %s47, 2
      %s49 = scalar_select %p48, 0, %s47
      %s50 = sadd.s32 1, %s41
      %s51 = scalar_select %p48, %s50, %s41
      %p52 = scmp.ge.s32.totalorder %s51, 2
      %s53 = scalar_select %p52, 0, %s51
      %s54 = ssub.s32 %s41, %s53
      %p55 = scmp.eq.s32.totalorder %s54, 0
      %s57 = sadd.s32 %s56, 1
      %s58 = scalar_select %p55, %s56, %s57
      %p61 = pneg %p55
      %p62 = scmp.eq.s32.totalorder %s34, 3
      %p63 = por %p61, %p62
      %p64 = scmp.ne.s32.totalorder %s56, %s59
      %p65 = scmp.eq.s32.totalorder %s34, 0
      %p66 = por %p64, %p65
      %p67 = scmp.ne.s32.totalorder %s56, %s59
      %p68 = scmp.eq.s32.totalorder %s39, 3
      %p69 = por %p67, %p68
      %p70 = scmp.ne.s32.totalorder %s59, %s60
      %p71 = scmp.eq.s32.totalorder %s39, 0
      %p72 = por %p70, %p71
      %p73 = scmp.ne.s32.totalorder %s59, %s60
      %p74 = scmp.eq.s32.totalorder %s40, 3
      %p75 = por %p73, %p74
      %p77 = scmp.ne.s32.totalorder %s60, %s76
      %p78 = scmp.eq.s32.totalorder %s40, 0
      %p79 = por %p77, %p78
      %s80 = ssub.s32 %s42, %s49
      %p81 = scmp.eq.s32.totalorder %s80, 0
      %s83 = sadd.s32 %s82, 1
      %s84 = scalar_select %p81, %s82, %s83
      %p87 = pneg %p81
      %p88 = scmp.eq.s32.totalorder %s34, 3
      %p89 = por %p87, %p88
      %p90 = scmp.ne.s32.totalorder %s82, %s85
      %p91 = scmp.eq.s32.totalorder %s34, 0
      %p92 = por %p90, %p91
      %p93 = scmp.ne.s32.totalorder %s82, %s85
      %p94 = scmp.eq.s32.totalorder %s39, 3
      %p95 = por %p93, %p94
      %p96 = scmp.ne.s32.totalorder %s85, %s86
      %p97 = scmp.eq.s32.totalorder %s39, 0
      %p98 = por %p96, %p97
      %p99 = scmp.ne.s32.totalorder %s85, %s86
      %p100 = scmp.eq.s32.totalorder %s40, 3
      %p101 = por %p99, %p100
      %p103 = scmp.ne.s32.totalorder %s86, %s102
      %p104 = scmp.eq.s32.totalorder %s40, 0
      %p105 = por %p103, %p104
      %s106 = ssub.s32 %s42, %s49
      %p107 = scmp.eq.s32.totalorder %s106, 0
      %s109 = sadd.s32 %s108, 1
      %s110 = scalar_select %p107, %s108, %s109
      %p113 = pneg %p107
      %p114 = scmp.eq.s32.totalorder %s34, 3
      %p115 = por %p113, %p114
      %p116 = scmp.ne.s32.totalorder %s108, %s111
      %p117 = scmp.eq.s32.totalorder %s34, 0
      %p118 = por %p116, %p117
      %p119 = scmp.ne.s32.totalorder %s108, %s111
      %p120 = scmp.eq.s32.totalorder %s39, 3
      %p121 = por %p119, %p120
      %p122 = scmp.ne.s32.totalorder %s111, %s112
      %p123 = scmp.eq.s32.totalorder %s39, 0
      %p124 = por %p122, %p123
      %p125 = scmp.ne.s32.totalorder %s111, %s112
      %p126 = scmp.eq.s32.totalorder %s40, 3
      %p127 = por %p125, %p126
      %p129 = scmp.ne.s32.totalorder %s112, %s128
      %p130 = scmp.eq.s32.totalorder %s40, 0
      %p131 = por %p129, %p130
      %s132 = ssub.s32 %s42, %s49
      %p133 = scmp.eq.s32.totalorder %s132, 0
      %s135 = sadd.s32 %s134, 1
      %s136 = scalar_select %p133, %s134, %s135
      %p139 = pneg %p133
      %p140 = scmp.eq.s32.totalorder %s34, 3
      %p141 = por %p139, %p140
      %p142 = scmp.ne.s32.totalorder %s134, %s137
      %p143 = scmp.eq.s32.totalorder %s34, 0
      %p144 = por %p142, %p143
      %p145 = scmp.ne.s32.totalorder %s134, %s137
      %p146 = scmp.eq.s32.totalorder %s39, 3
      %p147 = por %p145, %p146
      %p148 = scmp.ne.s32.totalorder %s137, %s138
      %p149 = scmp.eq.s32.totalorder %s39, 0
      %p150 = por %p148, %p149
      %p151 = scmp.ne.s32.totalorder %s137, %s138
      %p152 = scmp.eq.s32.totalorder %s40, 3
      %p153 = por %p151, %p152
      %p155 = scmp.ne.s32.totalorder %s138, %s154
      %p156 = scmp.eq.s32.totalorder %s40, 0
      %p157 = por %p155, %p156
      %s158 = ssub.s32 %s42, %s49
      %p159 = scmp.eq.s32.totalorder %s158, 0
      %s161 = sadd.s32 %s160, 1
      %s162 = scalar_select %p159, %s160, %s161
      %p165 = pneg %p159
      %p166 = scmp.eq.s32.totalorder %s34, 3
      %p167 = por %p165, %p166
      %p168 = scmp.ne.s32.totalorder %s160, %s163
      %p169 = scmp.eq.s32.totalorder %s34, 0
      %p170 = por %p168, %p169
      %p171 = scmp.ne.s32.totalorder %s160, %s163
      %p172 = scmp.eq.s32.totalorder %s39, 3
      %p173 = por %p171, %p172
      %p174 = scmp.ne.s32.totalorder %s163, %s164
      %p175 = scmp.eq.s32.totalorder %s39, 0
      %p176 = por %p174, %p175
      %p177 = scmp.ne.s32.totalorder %s163, %s164
      %p178 = scmp.eq.s32.totalorder %s40, 3
      %p179 = por %p177, %p178
      %p181 = scmp.ne.s32.totalorder %s164, %s180
      %p182 = scmp.eq.s32.totalorder %s40, 0
      %p183 = por %p181, %p182
      %s184 = ssub.s32 %s42, %s49
      %p185 = scmp.eq.s32.totalorder %s184, 0
      %s187 = sadd.s32 %s186, 1
      %s188 = scalar_select %p185, %s186, %s187
      %p191 = pneg %p185
      %p192 = scmp.eq.s32.totalorder %s34, 3
      %p193 = por %p191, %p192
      %p194 = scmp.ne.s32.totalorder %s186, %s189
      %p195 = scmp.eq.s32.totalorder %s34, 0
      %p196 = por %p194, %p195
      %p197 = scmp.ne.s32.totalorder %s186, %s189
      %p198 = scmp.eq.s32.totalorder %s39, 3
      %p199 = por %p197, %p198
      %p200 = scmp.ne.s32.totalorder %s189, %s190
      %p201 = scmp.eq.s32.totalorder %s39, 0
      %p202 = por %p200, %p201
      %p203 = scmp.ne.s32.totalorder %s189, %s190
      %p204 = scmp.eq.s32.totalorder %s40, 3
      %p205 = por %p203, %p204
      %p207 = scmp.ne.s32.totalorder %s190, %s206
      %p208 = scmp.eq.s32.totalorder %s40, 0
      %p209 = por %p207, %p208
      %s210 = ssub.s32 %s42, %s49
      %p211 = scmp.eq.s32.totalorder %s210, 0
      %s213 = sadd.s32 %s212, 1
      %s214 = scalar_select %p211, %s212, %s213
      %p217 = pneg %p211
      %p218 = scmp.eq.s32.totalorder %s34, 3
      %p219 = por %p217, %p218
      %p220 = scmp.ne.s32.totalorder %s212, %s215
      %p221 = scmp.eq.s32.totalorder %s34, 0
      %p222 = por %p220, %p221
      %p223 = scmp.ne.s32.totalorder %s212, %s215
      %p224 = scmp.eq.s32.totalorder %s39, 3
      %p225 = por %p223, %p224
      %p226 = scmp.ne.s32.totalorder %s215, %s216
      %p227 = scmp.eq.s32.totalorder %s39, 0
      %p228 = por %p226, %p227
      %p229 = scmp.ne.s32.totalorder %s215, %s216
      %p230 = scmp.eq.s32.totalorder %s40, 3
      %p231 = por %p229, %p230
      %p233 = scmp.ne.s32.totalorder %s216, %s232
      %p234 = scmp.eq.s32.totalorder %s40, 0
      %p235 = por %p233, %p234
      %s236 = ssub.s32 %s42, %s49
      %p237 = scmp.eq.s32.totalorder %s236, 0
      %s239 = sadd.s32 %s238, 1
      %s240 = scalar_select %p237, %s238, %s239
      %p243 = pneg %p237
      %p244 = scmp.eq.s32.totalorder %s34, 3
      %p245 = por %p243, %p244
      %p246 = scmp.ne.s32.totalorder %s238, %s241
      %p247 = scmp.eq.s32.totalorder %s34, 0
      %p248 = por %p246, %p247
      %p249 = scmp.ne.s32.totalorder %s238, %s241
      %p250 = scmp.eq.s32.totalorder %s39, 3
      %p251 = por %p249, %p250
      %p252 = scmp.ne.s32.totalorder %s241, %s242
      %p253 = scmp.eq.s32.totalorder %s39, 0
      %p254 = por %p252, %p253
      %p255 = scmp.ne.s32.totalorder %s241, %s242
      %p256 = scmp.eq.s32.totalorder %s40, 3
      %p257 = por %p255, %p256
      %p259 = scmp.ne.s32.totalorder %s242, %s258
      %p260 = scmp.eq.s32.totalorder %s40, 0
      %p261 = por %p259, %p260
      %s262 = ssub.s32 %s42, %s49
      %p263 = scmp.eq.s32.totalorder %s262, 0
      %s265 = sadd.s32 %s264, 1
      %s266 = scalar_select %p263, %s264, %s265
      %p269 = pneg %p263
      %p270 = scmp.eq.s32.totalorder %s34, 3
      %p271 = por %p269, %p270
      %p272 = scmp.ne.s32.totalorder %s264, %s267
      %p273 = scmp.eq.s32.totalorder %s34, 0
      %p274 = por %p272, %p273
      %p275 = scmp.ne.s32.totalorder %s264, %s267
      %p276 = scmp.eq.s32.totalorder %s39, 3
      %p277 = por %p275, %p276
      %p278 = scmp.ne.s32.totalorder %s267, %s268
      %p279 = scmp.eq.s32.totalorder %s39, 0
      %p280 = por %p278, %p279
      %p281 = scmp.ne.s32.totalorder %s267, %s268
      %p282 = scmp.eq.s32.totalorder %s40, 3
      %p283 = por %p281, %p282
      %p285 = scmp.ne.s32.totalorder %s268, %s284
      %p286 = scmp.eq.s32.totalorder %s40, 0
      %p287 = por %p285, %p286
      %s288 = ssub.s32 %s42, %s49
      %p289 = scmp.eq.s32.totalorder %s288, 0
      %s291 = sadd.s32 %s290, 1
      %s292 = scalar_select %p289, %s290, %s291
      %p295 = pneg %p289
      %p296 = scmp.eq.s32.totalorder %s34, 3
      %p297 = por %p295, %p296
      %p298 = scmp.ne.s32.totalorder %s290, %s293
      %p299 = scmp.eq.s32.totalorder %s34, 0
      %p300 = por %p298, %p299
      %p301 = scmp.ne.s32.totalorder %s290, %s293
      %p302 = scmp.eq.s32.totalorder %s39, 3
      %p303 = por %p301, %p302
      %p304 = scmp.ne.s32.totalorder %s293, %s294
      %p305 = scmp.eq.s32.totalorder %s39, 0
      %p306 = por %p304, %p305
      %p307 = scmp.ne.s32.totalorder %s293, %s294
      %p308 = scmp.eq.s32.totalorder %s40, 3
      %p309 = por %p307, %p308
      %p311 = scmp.ne.s32.totalorder %s294, %s310
      %p312 = scmp.eq.s32.totalorder %s40, 0
      %p313 = por %p311, %p312
      %s314 = ssub.s32 %s42, %s49
      %p315 = scmp.eq.s32.totalorder %s314, 0
      %s317 = sadd.s32 %s316, 1
      %s318 = scalar_select %p315, %s316, %s317
      %p321 = pneg %p315
      %p322 = scmp.eq.s32.totalorder %s34, 3
      %p323 = por %p321, %p322
      %p324 = scmp.ne.s32.totalorder %s316, %s319
      %p325 = scmp.eq.s32.totalorder %s34, 0
      %p326 = por %p324, %p325
      %p327 = scmp.ne.s32.totalorder %s316, %s319
      %p328 = scmp.eq.s32.totalorder %s39, 3
      %p329 = por %p327, %p328
      %p330 = scmp.ne.s32.totalorder %s319, %s320
      %p331 = scmp.eq.s32.totalorder %s39, 0
      %p332 = por %p330, %p331
      %p333 = scmp.ne.s32.totalorder %s319, %s320
      %p334 = scmp.eq.s32.totalorder %s40, 3
      %p335 = por %p333, %p334
      %p337 = scmp.ne.s32.totalorder %s320, %s336
      %p338 = scmp.eq.s32.totalorder %s40, 0
      %p339 = por %p337, %p338
      %s340 = ssub.s32 %s42, %s49
      %p341 = scmp.eq.s32.totalorder %s340, 0
      %s343 = sadd.s32 %s342, 1
      %s344 = scalar_select %p341, %s342, %s343
      %p347 = pneg %p341
      %p348 = scmp.eq.s32.totalorder %s34, 3
      %p349 = por %p347, %p348
      %p350 = scmp.ne.s32.totalorder %s342, %s345
      %p351 = scmp.eq.s32.totalorder %s34, 0
      %p352 = por %p350, %p351
      %p353 = scmp.ne.s32.totalorder %s342, %s345
      %p354 = scmp.eq.s32.totalorder %s39, 3
      %p355 = por %p353, %p354
      %p356 = scmp.ne.s32.totalorder %s345, %s346
      %p357 = scmp.eq.s32.totalorder %s39, 0
      %p358 = por %p356, %p357
      %p359 = scmp.ne.s32.totalorder %s345, %s346
      %p360 = scmp.eq.s32.totalorder %s40, 3
      %p361 = por %p359, %p360
      %p363 = scmp.ne.s32.totalorder %s346, %s362
      %p364 = scmp.eq.s32.totalorder %s40, 0
      %p365 = por %p363, %p364
      %s366 = ssub.s32 %s42, %s49
      %p367 = scmp.eq.s32.totalorder %s366, 0
      %s369 = sadd.s32 %s368, 1
      %s370 = scalar_select %p367, %s368, %s369
      %p373 = pneg %p367
      %p374 = scmp.eq.s32.totalorder %s34, 3
      %p375 = por %p373, %p374
      %p376 = scmp.ne.s32.totalorder %s368, %s371
      %p377 = scmp.eq.s32.totalorder %s34, 0
      %p378 = por %p376, %p377
      %p379 = scmp.ne.s32.totalorder %s368, %s371
      %p380 = scmp.eq.s32.totalorder %s39, 3
      %p381 = por %p379, %p380
      %p382 = scmp.ne.s32.totalorder %s371, %s372
      %p383 = scmp.eq.s32.totalorder %s39, 0
      %p384 = por %p382, %p383
      %p385 = scmp.ne.s32.totalorder %s371, %s372
      %p386 = scmp.eq.s32.totalorder %s40, 3
      %p387 = por %p385, %p386
      %p389 = scmp.ne.s32.totalorder %s372, %s388
      %p390 = scmp.eq.s32.totalorder %s40, 0
      %p391 = por %p389, %p390
      %s392 = ssub.s32 %s41, %s53
      %p393 = scmp.eq.s32.totalorder %s392, 0
      %s395 = sadd.s32 %s394, 1
      %s396 = scalar_select %p393, %s394, %s395
      %p399 = pneg %p393
      %p400 = scmp.eq.s32.totalorder %s34, 3
      %p401 = por %p399, %p400
      %p402 = scmp.ne.s32.totalorder %s394, %s397
      %p403 = scmp.eq.s32.totalorder %s34, 0
      %p404 = por %p402, %p403
      %p405 = scmp.ne.s32.totalorder %s394, %s397
      %p406 = scmp.eq.s32.totalorder %s39, 3
      %p407 = por %p405, %p406
      %p408 = scmp.ne.s32.totalorder %s397, %s398
      %p409 = scmp.eq.s32.totalorder %s39, 0
      %p410 = por %p408, %p409
      %p411 = scmp.ne.s32.totalorder %s397, %s398
      %p412 = scmp.eq.s32.totalorder %s40, 3
      %p413 = por %p411, %p412
      %p415 = scmp.ne.s32.totalorder %s398, %s414
      %p416 = scmp.eq.s32.totalorder %s40, 0
      %p417 = por %p415, %p416
      %p418 = scmp.le.s32.totalorder 1, %s34
      %p419 = scmp.lt.s32.totalorder %s34, 5
      %p420 = pnand %p418, %p419
      %p421 = pneg %p420
      // Predicated region
      $region9: #{beatmap_transformer_forward.5} parent=5 // pred_check
        _
      $region10: #{beatmap_transformer_forward.5} parent=5 // pred_check_branch
        %423 = sbr.rel (%p420) target = $region12
      $region11: #{beatmap_transformer_forward.5} parent=5 // pred_region
        %s424 = ssub.s32 %s34, 1
      $region12: #{beatmap_transformer_forward.5} parent=5 // pred_fallthru
        _
      %p425 = scmp.lt.s32.totalorder %s34, 4
      // Predicated region
      $region13: #{beatmap_transformer_forward.5} parent=5 // pred_check
        %p426 = pneg %p425
      $region14: #{beatmap_transformer_forward.5} parent=5 // pred_check_branch
        %428 = sbr.rel (%p426) target = $region16
      $region15: #{beatmap_transformer_forward.5} parent=5 // pred_region
        // Predicated region
        $region17: #{beatmap_transformer_forward.5} parent=15 // pred_check
          %p429 = pneg %p66
        $region18: #{beatmap_transformer_forward.5} parent=15 // pred_check_branch
          %431 = sbr.rel (%p429) target = $region20
        $region19: #{beatmap_transformer_forward.5} parent=15 // pred_region
          %p432 = scmp.lt.s32.totalorder %s41, 1
          %s433 = scalar_select %p432, %s41, 1
          %s434 = smul.addr %s433, 2
          %s435 = smul.addr %s434, 8
          %s436 = scalar_lea.vmem %s0, %s435
        $region20: #{beatmap_transformer_forward.5} parent=15 // pred_fallthru
          _
        // Predicated region
        $region21: #{beatmap_transformer_forward.5} parent=15 // pred_check
          %p437 = pneg %p92
        $region22: #{beatmap_transformer_forward.5} parent=15 // pred_check_branch
          %439 = sbr.rel (%p437) target = $region24
        $region23: #{beatmap_transformer_forward.5} parent=15 // pred_region
          %p440 = scmp.lt.s32.totalorder %s42, 1
          %s441 = scalar_select %p440, %s42, 1
          %s442 = smul.addr %s441, 48
          %s443 = smul.addr %s442, 4
          %s444 = scalar_lea.vmem %s1, %s443
        $region24: #{beatmap_transformer_forward.5} parent=15 // pred_fallthru
          _
        // Predicated region
        $region25: #{beatmap_transformer_forward.5} parent=15 // pred_check
          %p445 = pneg %p118
        $region26: #{beatmap_transformer_forward.5} parent=15 // pred_check_branch
          %447 = sbr.rel (%p445) target = $region28
        $region27: #{beatmap_transformer_forward.5} parent=15 // pred_region
          %p448 = scmp.lt.s32.totalorder %s42, 1
          %s449 = scalar_select %p448, %s42, 1
          %s450 = smul.addr %s449, 3
          %s451 = scalar_lea.vmem %s2, %s450
        $region28: #{beatmap_transformer_forward.5} parent=15 // pred_fallthru
          _
        // Predicated region
        $region29: #{beatmap_transformer_forward.5} parent=15 // pred_check
          %p452 = pneg %p144
        $region30: #{beatmap_transformer_forward.5} parent=15 // pred_check_branch
          %454 = sbr.rel (%p452) target = $region32
        $region31: #{beatmap_transformer_forward.5} parent=15 // pred_region
          %s455 = sand.u32 %s134, 1
          %s456 = scalar_lea.sflag [#allocation3], %s455
          %s457 = sand.u32 %s134, 1
          %s458 = smul.addr %s457, 64
          %s459 = scalar_lea.vmem [#allocation2], %s458
          %s461 = ssub.s32 1024, 1024
          %462 = vsyncadd %s456, %s461
          %s463 = smul.addr %s42, 16
          %s464 = smul.addr %s463, 64
          %s465 = scalar_lea.hbm %s3, %s464
          %s466 = sshll.u32 %s459, 4
          %s467 = int_to_ptr.vmem [resolvable:$true] %s466
          %472 = dma.hbm_to_vmem [thread:$0]  %s465, 1024, %s467, %s456, 64, 64, 4
        $region32: #{beatmap_transformer_forward.5} parent=15 // pred_fallthru
          _
        // Predicated region
        $region33: #{beatmap_transformer_forward.5} parent=15 // pred_check
          %p473 = pneg %p170
        $region34: #{beatmap_transformer_forward.5} parent=15 // pred_check_branch
          %475 = sbr.rel (%p473) target = $region36
        $region35: #{beatmap_transformer_forward.5} parent=15 // pred_region
          %s476 = sand.u32 %s34, 1
          %s477 = scalar_lea.sflag [#allocation5], %s476
          %s478 = sand.u32 %s160, 1
          %s479 = scalar_lea.vmem [#allocation4], %s478
          %s481 = ssub.s32 16, 16
          %482 = vsyncadd %s477, %s481
          %s483 = smul.addr %s42, 16
          %s484 = scalar_lea.hbm %s4, %s483
          %s486 = sshll.u32 %s479, 4
          %s487 = int_to_ptr.vmem [resolvable:$true] %s486
          %489 = dma.hbm_to_vmem [thread:$0]  %s484, 16, %s487, %s477
        $region36: #{beatmap_transformer_forward.5} parent=15 // pred_fallthru
          _
        // Predicated region
        $region37: #{beatmap_transformer_forward.5} parent=15 // pred_check
          %p490 = pneg %p196
        $region38: #{beatmap_transformer_forward.5} parent=15 // pred_check_branch
          %492 = sbr.rel (%p490) target = $region40
        $region39: #{beatmap_transformer_forward.5} parent=15 // pred_region
          %s493 = sand.u32 %s34, 1
          %s494 = scalar_lea.sflag [#allocation5], %s493
          %s495 = sand.u32 %s186, 1
          %s496 = scalar_lea.vmem [#allocation6], %s495
          %s498 = ssub.s32 16, 16
          %499 = vsyncadd %s494, %s498
          %s500 = smul.addr %s42, 16
          %s501 = scalar_lea.hbm %s5, %s500
          %s503 = sshll.u32 %s496, 4
          %s504 = int_to_ptr.vmem [resolvable:$true] %s503
          %506 = dma.hbm_to_vmem [thread:$0]  %s501, 16, %s504, %s494
        $region40: #{beatmap_transformer_forward.5} parent=15 // pred_fallthru
          _
        // Predicated region
        $region41: #{beatmap_transformer_forward.5} parent=15 // pred_check
          %p507 = pneg %p222
        $region42: #{beatmap_transformer_forward.5} parent=15 // pred_check_branch
          %509 = sbr.rel (%p507) target = $region44
        $region43: #{beatmap_transformer_forward.5} parent=15 // pred_region
          %s510 = sand.u32 %s34, 1
          %s511 = scalar_lea.sflag [#allocation8], %s510
          %s512 = sand.u32 %s212, 1
          %s513 = scalar_lea.vmem [#allocation7], %s512
          %s515 = ssub.s32 16, 16
          %516 = vsyncadd %s511, %s515
          %s517 = smul.addr %s42, 16
          %s518 = scalar_lea.hbm %s6, %s517
          %s520 = sshll.u32 %s513, 4
          %s521 = int_to_ptr.vmem [resolvable:$true] %s520
          %523 = dma.hbm_to_vmem [thread:$0]  %s518, 16, %s521, %s511
        $region44: #{beatmap_transformer_forward.5} parent=15 // pred_fallthru
          _
        // Predicated region
        $region45: #{beatmap_transformer_forward.5} parent=15 // pred_check
          %p524 = pneg %p248
        $region46: #{beatmap_transformer_forward.5} parent=15 // pred_check_branch
          %526 = sbr.rel (%p524) target = $region48
        $region47: #{beatmap_transformer_forward.5} parent=15 // pred_region
          %p527 = scmp.lt.s32.totalorder %s42, 1
          %s528 = scalar_select %p527, %s42, 1
          %s529 = smul.addr %s528, 64
          %s530 = smul.addr %s529, 4
          %s531 = scalar_lea.vmem %s7, %s530
        $region48: #{beatmap_transformer_forward.5} parent=15 // pred_fallthru
          _
        // Predicated region
        $region49: #{beatmap_transformer_forward.5} parent=15 // pred_check
          %p532 = pneg %p274
        $region50: #{beatmap_transformer_forward.5} parent=15 // pred_check_branch
          %534 = sbr.rel (%p532) target = $region52
        $region51: #{beatmap_transformer_forward.5} parent=15 // pred_region
          %p535 = scmp.lt.s32.totalorder %s42, 1
          %s536 = scalar_select %p535, %s42, 1
          %s537 = smul.addr %s536, 4
          %s538 = scalar_lea.vmem %s8, %s537
        $region52: #{beatmap_transformer_forward.5} parent=15 // pred_fallthru
          _
        // Predicated region
        $region53: #{beatmap_transformer_forward.5} parent=15 // pred_check
          %p539 = pneg %p300
        $region54: #{beatmap_transformer_forward.5} parent=15 // pred_check_branch
          %541 = sbr.rel (%p539) target = $region56
        $region55: #{beatmap_transformer_forward.5} parent=15 // pred_region
          %s542 = sand.u32 %s34, 1
          %s543 = scalar_lea.sflag [#allocation8], %s542
          %s544 = sand.u32 %s290, 1
          %s545 = smul.addr %s544, 256
          %s546 = scalar_lea.vmem [#allocation9], %s545
          %s548 = ssub.s32 4096, 4096
          %549 = vsyncadd %s543, %s548
          %s550 = smul.addr %s42, 64
          %s551 = smul.addr %s550, 64
          %s552 = scalar_lea.hbm %s9, %s551
          %s553 = sshll.u32 %s546, 4
          %s554 = int_to_ptr.vmem [resolvable:$true] %s553
          %559 = dma.hbm_to_vmem [thread:$0]  %s552, 4096, %s554, %s543, 64, 64, 4
        $region56: #{beatmap_transformer_forward.5} parent=15 // pred_fallthru
          _
        // Predicated region
        $region57: #{beatmap_transformer_forward.5} parent=15 // pred_check
          %p560 = pneg %p326
        $region58: #{beatmap_transformer_forward.5} parent=15 // pred_check_branch
          %562 = sbr.rel (%p560) target = $region60
        $region59: #{beatmap_transformer_forward.5} parent=15 // pred_region
          %s563 = sand.u32 %s34, 1
          %s564 = scalar_lea.sflag [#allocation11], %s563
          %s565 = sand.u32 %s316, 1
          %s566 = scalar_lea.vmem [#allocation10], %s565
          %s568 = ssub.s32 16, 16
          %569 = vsyncadd %s564, %s568
          %s570 = smul.addr %s42, 16
          %s571 = scalar_lea.hbm %s10, %s570
          %s573 = sshll.u32 %s566, 4
          %s574 = int_to_ptr.vmem [resolvable:$true] %s573
          %576 = dma.hbm_to_vmem [thread:$0]  %s571, 16, %s574, %s564
        $region60: #{beatmap_transformer_forward.5} parent=15 // pred_fallthru
          _
        // Predicated region
        $region61: #{beatmap_transformer_forward.5} parent=15 // pred_check
          %p577 = pneg %p352
        $region62: #{beatmap_transformer_forward.5} parent=15 // pred_check_branch
          %579 = sbr.rel (%p577) target = $region64
        $region63: #{beatmap_transformer_forward.5} parent=15 // pred_region
          %s580 = sand.u32 %s34, 1
          %s581 = scalar_lea.sflag [#allocation11], %s580
          %s582 = sand.u32 %s342, 1
          %s583 = scalar_lea.vmem [#allocation12], %s582
          %s585 = ssub.s32 16, 16
          %586 = vsyncadd %s581, %s585
          %s587 = smul.addr %s42, 16
          %s588 = scalar_lea.hbm %s11, %s587
          %s590 = sshll.u32 %s583, 4
          %s591 = int_to_ptr.vmem [resolvable:$true] %s590
          %593 = dma.hbm_to_vmem [thread:$0]  %s588, 16, %s591, %s581
        $region64: #{beatmap_transformer_forward.5} parent=15 // pred_fallthru
          _
        // Predicated region
        $region65: #{beatmap_transformer_forward.5} parent=15 // pred_check
          %p594 = pneg %p378
        $region66: #{beatmap_transformer_forward.5} parent=15 // pred_check_branch
          %596 = sbr.rel (%p594) target = $region68
        $region67: #{beatmap_transformer_forward.5} parent=15 // pred_region
          %s597 = sand.u32 %s368, 1
          %s598 = scalar_lea.sflag [#allocation14], %s597
          %s599 = sand.u32 %s368, 1
          %s600 = scalar_lea.vmem [#allocation13], %s599
          %s602 = ssub.s32 16, 16
          %603 = vsyncadd %s598, %s602
          %s604 = smul.addr %s42, 16
          %s605 = scalar_lea.hbm %s12, %s604
          %s607 = sshll.u32 %s600, 4
          %s608 = int_to_ptr.vmem [resolvable:$true] %s607
          %610 = dma.hbm_to_vmem [thread:$0]  %s605, 16, %s608, %s598
        $region68: #{beatmap_transformer_forward.5} parent=15 // pred_fallthru
          _
      $region16: #{beatmap_transformer_forward.5} parent=5 // pred_fallthru
        _
      %p611 = scmp.le.s32.totalorder 1, %s34
      %p612 = scmp.lt.s32.totalorder %s34, 5
      %p613 = pnand %p611, %p612
      %p614 = pneg %p613
      // Predicated region
      $region69: #{beatmap_transformer_forward.5} parent=5 // pred_check
        _
      $region70: #{beatmap_transformer_forward.5} parent=5 // pred_check_branch
        %616 = sbr.rel (%p613) target = $region72
      $region71: #{beatmap_transformer_forward.5} parent=5 // pred_region
        %s617 = ssub.s32 %s34, 1
        %s618 = sand.u32 %s137, 1
        %s619 = scalar_lea.sflag [#allocation3], %s618
        %s620 = sand.u32 %s137, 1
        %s621 = smul.addr %s620, 64
        %s622 = scalar_lea.vmem [#allocation2], %s621
        // Predicated region
        $region73: #{beatmap_transformer_forward.5} parent=71 // pred_check
          %p623 = pneg %p150
        $region74: #{beatmap_transformer_forward.5} parent=71 // pred_check_branch
          %625 = sbr.rel (%p623) target = $region76
        $region75: #{beatmap_transformer_forward.5} parent=71 // pred_region
          %626 = dma.done %s619, 1024
        $region76: #{beatmap_transformer_forward.5} parent=71 // pred_fallthru
          _
        %s627 = sand.u32 %s39, 1
        %s628 = scalar_lea.sflag [#allocation5], %s627
        %s629 = sand.u32 %s163, 1
        %s630 = scalar_lea.vmem [#allocation4], %s629
        // Predicated region
        $region77: #{beatmap_transformer_forward.5} parent=71 // pred_check
          %p631 = pneg %p176
        $region78: #{beatmap_transformer_forward.5} parent=71 // pred_check_branch
          %633 = sbr.rel (%p631) target = $region80
        $region79: #{beatmap_transformer_forward.5} parent=71 // pred_region
          %634 = dma.done %s628, 16
        $region80: #{beatmap_transformer_forward.5} parent=71 // pred_fallthru
          _
        %s635 = sand.u32 %s39, 1
        %s636 = scalar_lea.sflag [#allocation5], %s635
        %s637 = sand.u32 %s189, 1
        %s638 = scalar_lea.vmem [#allocation6], %s637
        // Predicated region
        $region81: #{beatmap_transformer_forward.5} parent=71 // pred_check
          %p639 = pneg %p202
        $region82: #{beatmap_transformer_forward.5} parent=71 // pred_check_branch
          %641 = sbr.rel (%p639) target = $region84
        $region83: #{beatmap_transformer_forward.5} parent=71 // pred_region
          %642 = dma.done %s636, 16
        $region84: #{beatmap_transformer_forward.5} parent=71 // pred_fallthru
          _
        %s643 = sand.u32 %s39, 1
        %s644 = scalar_lea.sflag [#allocation8], %s643
        %s645 = sand.u32 %s215, 1
        %s646 = scalar_lea.vmem [#allocation7], %s645
        // Predicated region
        $region85: #{beatmap_transformer_forward.5} parent=71 // pred_check
          %p647 = pneg %p228
        $region86: #{beatmap_transformer_forward.5} parent=71 // pred_check_branch
          %649 = sbr.rel (%p647) target = $region88
        $region87: #{beatmap_transformer_forward.5} parent=71 // pred_region
          %650 = dma.done %s644, 16
        $region88: #{beatmap_transformer_forward.5} parent=71 // pred_fallthru
          _
        %s651 = sand.u32 %s39, 1
        %s652 = scalar_lea.sflag [#allocation8], %s651
        %s653 = sand.u32 %s293, 1
        %s654 = smul.addr %s653, 256
        %s655 = scalar_lea.vmem [#allocation9], %s654
        // Predicated region
        $region89: #{beatmap_transformer_forward.5} parent=71 // pred_check
          %p656 = pneg %p306
        $region90: #{beatmap_transformer_forward.5} parent=71 // pred_check_branch
          %658 = sbr.rel (%p656) target = $region92
        $region91: #{beatmap_transformer_forward.5} parent=71 // pred_region
          %659 = dma.done %s652, 4096
        $region92: #{beatmap_transformer_forward.5} parent=71 // pred_fallthru
          _
        %s660 = sand.u32 %s39, 1
        %s661 = scalar_lea.sflag [#allocation11], %s660
        %s662 = sand.u32 %s319, 1
        %s663 = scalar_lea.vmem [#allocation10], %s662
        // Predicated region
        $region93: #{beatmap_transformer_forward.5} parent=71 // pred_check
          %p664 = pneg %p332
        $region94: #{beatmap_transformer_forward.5} parent=71 // pred_check_branch
          %666 = sbr.rel (%p664) target = $region96
        $region95: #{beatmap_transformer_forward.5} parent=71 // pred_region
          %667 = dma.done %s661, 16
        $region96: #{beatmap_transformer_forward.5} parent=71 // pred_fallthru
          _
        %s668 = sand.u32 %s39, 1
        %s669 = scalar_lea.sflag [#allocation11], %s668
        %s670 = sand.u32 %s345, 1
        %s671 = scalar_lea.vmem [#allocation12], %s670
        // Predicated region
        $region97: #{beatmap_transformer_forward.5} parent=71 // pred_check
          %p672 = pneg %p358
        $region98: #{beatmap_transformer_forward.5} parent=71 // pred_check_branch
          %674 = sbr.rel (%p672) target = $region100
        $region99: #{beatmap_transformer_forward.5} parent=71 // pred_region
          %675 = dma.done %s669, 16
        $region100: #{beatmap_transformer_forward.5} parent=71 // pred_fallthru
          _
        %s676 = sand.u32 %s371, 1
        %s677 = scalar_lea.sflag [#allocation14], %s676
        %s678 = sand.u32 %s371, 1
        %s679 = scalar_lea.vmem [#allocation13], %s678
        // Predicated region
        $region101: #{beatmap_transformer_forward.5} parent=71 // pred_check
          %p680 = pneg %p384
        $region102: #{beatmap_transformer_forward.5} parent=71 // pred_check_branch
          %682 = sbr.rel (%p680) target = $region104
        $region103: #{beatmap_transformer_forward.5} parent=71 // pred_region
          %683 = dma.done %s677, 16
        $region104: #{beatmap_transformer_forward.5} parent=71 // pred_fallthru
          _
        %p684 = scmp.lt.s32.totalorder %s43, 1
        %s685 = scalar_select %p684, %s43, 1
        %s686 = smul.addr %s685, 2
        %s687 = smul.addr %s686, 8
        %s688 = scalar_lea.vmem %s0, %s687
        %p689 = pneg %p72
        %p690 = pneg %p69
        %p691 = scmp.lt.s32.totalorder %s44, 1
        %s692 = scalar_select %p691, %s44, 1
        %s693 = smul.addr %s692, 48
        %s694 = smul.addr %s693, 4
        %s695 = scalar_lea.vmem %s1, %s694
        %p696 = pneg %p98
        %p697 = pneg %p95
        %p698 = scmp.lt.s32.totalorder %s44, 1
        %s699 = scalar_select %p698, %s44, 1
        %s700 = smul.addr %s699, 3
        %s701 = scalar_lea.vmem %s2, %s700
        %p702 = pneg %p124
        %p703 = pneg %p121
        %s704 = sand.u32 %s137, 1
        %s705 = scalar_lea.sflag [#allocation3], %s704
        %s706 = sand.u32 %s137, 1
        %s707 = smul.addr %s706, 64
        %s708 = scalar_lea.vmem [#allocation2], %s707
        %p709 = pneg %p150
        %p710 = pneg %p147
        %s711 = sand.u32 %s39, 1
        %s712 = scalar_lea.sflag [#allocation5], %s711
        %s713 = sand.u32 %s163, 1
        %s714 = scalar_lea.vmem [#allocation4], %s713
        %p715 = pneg %p176
        %p716 = pneg %p173
        %s717 = sand.u32 %s39, 1
        %s718 = scalar_lea.sflag [#allocation5], %s717
        %s719 = sand.u32 %s189, 1
        %s720 = scalar_lea.vmem [#allocation6], %s719
        %p721 = pneg %p202
        %p722 = pneg %p199
        %s723 = sand.u32 %s39, 1
        %s724 = scalar_lea.sflag [#allocation8], %s723
        %s725 = sand.u32 %s215, 1
        %s726 = scalar_lea.vmem [#allocation7], %s725
        %p727 = pneg %p228
        %p728 = pneg %p225
        %p729 = scmp.lt.s32.totalorder %s44, 1
        %s730 = scalar_select %p729, %s44, 1
        %s731 = smul.addr %s730, 64
        %s732 = smul.addr %s731, 4
        %s733 = scalar_lea.vmem %s7, %s732
        %p734 = pneg %p254
        %p735 = pneg %p251
        %p736 = scmp.lt.s32.totalorder %s44, 1
        %s737 = scalar_select %p736, %s44, 1
        %s738 = smul.addr %s737, 4
        %s739 = scalar_lea.vmem %s8, %s738
        %p740 = pneg %p280
        %p741 = pneg %p277
        %s742 = sand.u32 %s39, 1
        %s743 = scalar_lea.sflag [#allocation8], %s742
        %s744 = sand.u32 %s293, 1
        %s745 = smul.addr %s744, 256
        %s746 = scalar_lea.vmem [#allocation9], %s745
        %p747 = pneg %p306
        %p748 = pneg %p303
        %s749 = sand.u32 %s39, 1
        %s750 = scalar_lea.sflag [#allocation11], %s749
        %s751 = sand.u32 %s319, 1
        %s752 = scalar_lea.vmem [#allocation10], %s751
        %p753 = pneg %p332
        %p754 = pneg %p329
        %s755 = sand.u32 %s39, 1
        %s756 = scalar_lea.sflag [#allocation11], %s755
        %s757 = sand.u32 %s345, 1
        %s758 = scalar_lea.vmem [#allocation12], %s757
        %p759 = pneg %p358
        %p760 = pneg %p355
        %s761 = sand.u32 %s371, 1
        %s762 = scalar_lea.sflag [#allocation14], %s761
        %s763 = sand.u32 %s371, 1
        %s764 = scalar_lea.vmem [#allocation13], %s763
        %p765 = pneg %p384
        %p766 = pneg %p381
        %p767 = pneg %p410
        %p768 = pneg %p407
        %p769 = scmp.lt.s32.totalorder %s43, 1
        %s770 = scalar_select %p769, %s43, 1
        %s771 = smul.addr %s770, 2
        %s772 = smul.addr %s771, 8
        %s773 = scalar_lea.vmem %s13, %s772
        %p774 = scmp.lt.s32.totalorder %s43, 1
        %s775 = scalar_select %p774, %s43, 1
        %s776 = smul.addr %s775, 2
        %s777 = smul.addr %s776, 8
        %s778 = scalar_lea.vmem %s0, %s777
        %p779 = scmp.lt.s32.totalorder %s44, 1
        %s780 = scalar_select %p779, %s44, 1
        %s781 = smul.addr %s780, 48
        %s782 = smul.addr %s781, 4
        %s783 = scalar_lea.vmem %s1, %s782
        %p784 = scmp.lt.s32.totalorder %s44, 1
        %s785 = scalar_select %p784, %s44, 1
        %s786 = smul.addr %s785, 3
        %s787 = scalar_lea.vmem %s2, %s786
        %p788 = scmp.lt.s32.totalorder %s44, 1
        %s789 = scalar_select %p788, %s44, 1
        %s790 = smul.addr %s789, 64
        %s791 = smul.addr %s790, 4
        %s792 = scalar_lea.vmem %s7, %s791
        %p793 = scmp.lt.s32.totalorder %s44, 1
        %s794 = scalar_select %p793, %s44, 1
        %s795 = smul.addr %s794, 4
        %s796 = scalar_lea.vmem %s8, %s795
        %p797 = scmp.lt.s32.totalorder %s43, 1
        %s798 = scalar_select %p797, %s43, 1
        %s799 = smul.addr %s798, 2
        %s800 = smul.addr %s799, 8
        %s801 = scalar_lea.vmem %s13, %s800
        %p803 = scmp.eq.s32.totalorder %s44, 0
        // Predicated region
        $region105: #{beatmap_transformer_forward.5} parent=71 // pred_check
          %p804 = pneg %p803
        $region106: #{beatmap_transformer_forward.5} parent=71 // pred_check_branch
          %806 = sbr.rel (%p804) target = $region108
        $region107: #{beatmap_transformer_forward.5} parent=71 // pred_region
          %v807 = vld [vmem:[%s778] sm:$0xff]
          %v808 = vld [vmem:[%s778 + $0x8] sm:$0xff]
          %809 = vst [vmem:[%s801] sm:$0xff] %v807
          %810 = vst [vmem:[%s801 + $0x8] sm:$0xff] %v808
        $region108: #{beatmap_transformer_forward.5} parent=71 // pred_fallthru
          _
        %v811 = vld [vmem:[%s801] sm:$0xff]
        %v812 = vld [vmem:[%s801 + $0x8] sm:$0xff]
        %v813 = vld [vmem:[%s783] sm:$0xff]
        %v814 = vld [vmem:[%s783 + $0x8] sm:$0xf]
        %v815 = vld [vmem:[%s783 + $0xc] sm:$0xff]
        %v816 = vld [vmem:[%s783 + $0x14] sm:$0xf]
        %v817 = vld [vmem:[%s783 + $0x18] sm:$0xff]
        %v818 = vld [vmem:[%s783 + $0x20] sm:$0xf]
        %v819 = vld [vmem:[%s783 + $0x24] sm:$0xff]
        %v820 = vld [vmem:[%s783 + $0x2c] sm:$0xf]
        %v821 = vld [vmem:[%s783 + $0x30] sm:$0xff]
        %v822 = vld [vmem:[%s783 + $0x38] sm:$0xf]
        %v823 = vld [vmem:[%s783 + $0x3c] sm:$0xff]
        %v824 = vld [vmem:[%s783 + $0x44] sm:$0xf]
        %v825 = vld [vmem:[%s783 + $0x48] sm:$0xff]
        %v826 = vld [vmem:[%s783 + $0x50] sm:$0xf]
        %v827 = vld [vmem:[%s783 + $0x54] sm:$0xff]
        %v828 = vld [vmem:[%s783 + $0x5c] sm:$0xf]
        %v829 = vld [vmem:[%s783 + $0x60] sm:$0xff]
        %v830 = vld [vmem:[%s783 + $0x68] sm:$0xf]
        %v831 = vld [vmem:[%s783 + $0x6c] sm:$0xff]
        %v832 = vld [vmem:[%s783 + $0x74] sm:$0xf]
        %v833 = vld [vmem:[%s783 + $0x78] sm:$0xff]
        %v834 = vld [vmem:[%s783 + $0x80] sm:$0xf]
        %v835 = vld [vmem:[%s783 + $0x84] sm:$0xff]
        %v836 = vld [vmem:[%s783 + $0x8c] sm:$0xf]
        %v837 = vld [vmem:[%s783 + $0x90] sm:$0xff]
        %v838 = vld [vmem:[%s783 + $0x98] sm:$0xf]
        %v839 = vld [vmem:[%s783 + $0x9c] sm:$0xff]
        %v840 = vld [vmem:[%s783 + $0xa4] sm:$0xf]
        %v841 = vld [vmem:[%s783 + $0xa8] sm:$0xff]
        %v842 = vld [vmem:[%s783 + $0xb0] sm:$0xf]
        %v843 = vld [vmem:[%s783 + $0xb4] sm:$0xff]
        %v844 = vld [vmem:[%s783 + $0xbc] sm:$0xf]
        %v845 = vpack.c.bf16 %v812, %v811
        %v846 = vld [vmem:[%s787] sm:$0x7]
        %v848 = vlaneseq
        %v849 = vshrl.u32 %v848, 7
        %v850 = vsub.s32 0, %v849
        %v851 = vrot.slane %v846, %v850
        %v852 = vlaneseq
        %v853 = vshrl.u32 %v852, 7
        %v854 = vsub.s32 1, %v853
        %v855 = vrot.slane %v846, %v854
        %v856 = vlaneseq
        %v857 = vshrl.u32 %v856, 7
        %v858 = vsub.s32 2, %v857
        %v859 = vrot.slane %v846, %v858
        %v895 = vunpack.c.l.b16 %v813
        %v896 = vunpack.c.h.b16 %v813
        %v897 = vunpack.c.l.b16 %v814
        %v898 = vunpack.c.l.b16 %v815
        %v899 = vunpack.c.h.b16 %v815
        %v900 = vunpack.c.l.b16 %v816
        %v901 = vunpack.c.l.b16 %v817
        %v902 = vunpack.c.h.b16 %v817
        %v903 = vunpack.c.l.b16 %v818
        %v904 = vunpack.c.l.b16 %v819
        %v905 = vunpack.c.h.b16 %v819
        %v906 = vunpack.c.l.b16 %v820
        %v907 = vunpack.c.l.b16 %v821
        %v908 = vunpack.c.h.b16 %v821
        %v909 = vunpack.c.l.b16 %v822
        %v910 = vunpack.c.l.b16 %v823
        %v911 = vunpack.c.h.b16 %v823
        %v912 = vunpack.c.l.b16 %v824
        %v913 = vunpack.c.l.b16 %v825
        %v914 = vunpack.c.h.b16 %v825
        %v915 = vunpack.c.l.b16 %v826
        %v916 = vunpack.c.l.b16 %v827
        %v917 = vunpack.c.h.b16 %v827
        %v918 = vunpack.c.l.b16 %v828
        %v919 = vunpack.c.l.b16 %v829
        %v920 = vunpack.c.h.b16 %v829
        %v921 = vunpack.c.l.b16 %v830
        %v922 = vunpack.c.l.b16 %v831
        %v923 = vunpack.c.h.b16 %v831
        %v924 = vunpack.c.l.b16 %v832
        %v925 = vunpack.c.l.b16 %v833
        %v926 = vunpack.c.h.b16 %v833
        %v927 = vunpack.c.l.b16 %v834
        %v928 = vunpack.c.l.b16 %v835
        %v929 = vunpack.c.h.b16 %v835
        %v930 = vunpack.c.l.b16 %v836
        %v931 = vunpack.c.l.b16 %v837
        %v932 = vunpack.c.h.b16 %v837
        %v933 = vunpack.c.l.b16 %v838
        %v934 = vunpack.c.l.b16 %v839
        %v935 = vunpack.c.h.b16 %v839
        %v936 = vunpack.c.l.b16 %v840
        %v937 = vunpack.c.l.b16 %v841
        %v938 = vunpack.c.h.b16 %v841
        %v939 = vunpack.c.l.b16 %v842
        %v940 = vunpack.c.l.b16 %v843
        %v941 = vunpack.c.h.b16 %v843
        %v942 = vunpack.c.l.b16 %v844
        %v943 = vpack.c.b16 %v898, %v895
        %v944 = vpack.c.b16 %v899, %v896
        %v945 = vpack.c.b16 %v900, %v897
        %v946 = vpack.c.b16 %v904, %v901
        %v947 = vpack.c.b16 %v905, %v902
        %v948 = vpack.c.b16 %v906, %v903
        %v949 = vpack.c.b16 %v910, %v907
        %v950 = vpack.c.b16 %v911, %v908
        %v951 = vpack.c.b16 %v912, %v909
        %v952 = vpack.c.b16 %v916, %v913
        %v953 = vpack.c.b16 %v917, %v914
        %v954 = vpack.c.b16 %v918, %v915
        %v955 = vpack.c.b16 %v922, %v919
        %v956 = vpack.c.b16 %v923, %v920
        %v957 = vpack.c.b16 %v924, %v921
        %v958 = vpack.c.b16 %v928, %v925
        %v959 = vpack.c.b16 %v929, %v926
        %v960 = vpack.c.b16 %v930, %v927
        %v961 = vpack.c.b16 %v934, %v931
        %v962 = vpack.c.b16 %v935, %v932
        %v963 = vpack.c.b16 %v936, %v933
        %v964 = vpack.c.b16 %v940, %v937
        %v965 = vpack.c.b16 %v941, %v938
        %v966 = vpack.c.b16 %v942, %v939
        %991 = vmatprep.subr.bf16.mxu0 %v965
        %992 = vmatpush1.bf16.msra.mxu0 %v964
        %993 = vmatprep.subr.bf16.mxu0 %v962
        %994 = vmatpush1.bf16.msra.mxu0 %v961
        %995 = vmatprep.subr.bf16.mxu0 %v959
        %996 = vmatpush1.bf16.msra.mxu0 %v958
        %997 = vmatprep.subr.bf16.mxu0 %v956
        %998 = vmatpush1.bf16.msra.mxu0 %v955
        %999 = vmatprep.subr.bf16.mxu0 %v953
        %1000 = vmatpush1.bf16.msra.mxu0 %v952
        %1001 = vmatprep.subr.bf16.mxu0 %v950
        %1002 = vmatpush1.bf16.msra.mxu0 %v949
        %1003 = vmatprep.subr.bf16.mxu0 %v947
        %1004 = vmatpush1.bf16.msra.mxu0 %v946
        %1005 = vmatprep.subr.bf16.mxu0 %v944
        %1006 = vmatpush1.bf16.msra.mxu0 %v943
        %1007 = vmatprep.subr.bf16.mxu0 0
        %1008 = vmatpush2.bf16.msra.mxu0 0
        %1009 = vmatprep.subr.bf16.mxu0 0
        %1010 = vmatpush2.bf16.msra.mxu0 0
        %1011 = vmatprep.subr.bf16.mxu0 0
        %1012 = vmatpush2.bf16.msra.mxu0 0
        %1013 = vmatprep.subr.bf16.mxu0 0
        %1014 = vmatpush2.bf16.msra.mxu0 0
        %1015 = vmatprep.subr.bf16.mxu0 0
        %1016 = vmatpush2.bf16.msra.mxu0 0
        %1017 = vmatprep.subr.bf16.mxu0 0
        %1018 = vmatpush2.bf16.msra.mxu0 0
        %1019 = vmatprep.subr.bf16.mxu0 0
        %1020 = vmatpush2.bf16.msra.mxu0 0
        %1021 = vmatprep.subr.bf16.mxu0 0
        %1022 = vmatpush2.bf16.msra.mxu0 0
        %1023 = vmatprep.mubr.bf16.mxu0 0
        %1024 = vmatmul.mubr.bf16.gmra.mxu0 %v845
        %v1025 = vpop.f32.mrf.mxu0
        %v1026 = vadd.f32 %v851, %v1025
        %v1027 = vpop.f32.mrf.mxu0
        %v1028 = vadd.f32 %v855, %v1027
        %v1029 = vpop.f32.mrf.mxu0
        %v1030 = vadd.f32 %v851, %v1029
        %v1031 = vpop.f32.mrf.mxu0
        %v1032 = vadd.f32 %v855, %v1031
        %1033 = vdwg.mxu0
        %1034 = vmatprep.subr.bf16.mxu0 0
        %1035 = vmatpush1.bf16.msra.mxu0 %v966
        %1036 = vmatprep.subr.bf16.mxu0 0
        %1037 = vmatpush1.bf16.msra.mxu0 %v963
        %1038 = vmatprep.subr.bf16.mxu0 0
        %1039 = vmatpush1.bf16.msra.mxu0 %v960
        %1040 = vmatprep.subr.bf16.mxu0 0
        %1041 = vmatpush1.bf16.msra.mxu0 %v957
        %1042 = vmatprep.subr.bf16.mxu0 0
        %1043 = vmatpush1.bf16.msra.mxu0 %v954
        %1044 = vmatprep.subr.bf16.mxu0 0
        %1045 = vmatpush1.bf16.msra.mxu0 %v951
        %1046 = vmatprep.subr.bf16.mxu0 0
        %1047 = vmatpush1.bf16.msra.mxu0 %v948
        %1048 = vmatprep.subr.bf16.mxu0 0
        %1049 = vmatpush1.bf16.msra.mxu0 %v945
        %1050 = vmatprep.subr.bf16.mxu0 0
        %1051 = vmatpush2.bf16.msra.mxu0 0
        %1052 = vmatprep.subr.bf16.mxu0 0
        %1053 = vmatpush2.bf16.msra.mxu0 0
        %1054 = vmatprep.subr.bf16.mxu0 0
        %1055 = vmatpush2.bf16.msra.mxu0 0
        %1056 = vmatprep.subr.bf16.mxu0 0
        %1057 = vmatpush2.bf16.msra.mxu0 0
        %1058 = vmatprep.subr.bf16.mxu0 0
        %1059 = vmatpush2.bf16.msra.mxu0 0
        %1060 = vmatprep.subr.bf16.mxu0 0
        %1061 = vmatpush2.bf16.msra.mxu0 0
        %1062 = vmatprep.subr.bf16.mxu0 0
        %1063 = vmatpush2.bf16.msra.mxu0 0
        %1064 = vmatprep.subr.bf16.mxu0 0
        %1065 = vmatpush2.bf16.msra.mxu0 0
        %1066 = vmatprep.mubr.bf16.mxu0 0
        %1067 = vmatmul.mubr.bf16.gmra.mxu0 %v845
        %v1068 = vpop.f32.mrf.mxu0
        %v1069 = vadd.f32 %v859, %v1068
        %v1070 = vpop.f32.mrf.mxu0
        %v1071 = vpop.f32.mrf.mxu0
        %v1072 = vadd.f32 %v859, %v1071
        %v1073 = vpop.f32.mrf.mxu0
        %1074 = vdwg.mxu0
        %v1075 = vld [vmem:[%s622] sm:$0xf]
        %v1076 = vld [vmem:[%s622 + $0x4] sm:$0xf]
        %v1077 = vld [vmem:[%s622 + $0x8] sm:$0xf]
        %v1078 = vld [vmem:[%s622 + $0xc] sm:$0xf]
        %v1079 = vld [vmem:[%s622 + $0x10] sm:$0xf]
        %v1080 = vld [vmem:[%s622 + $0x14] sm:$0xf]
        %v1081 = vld [vmem:[%s622 + $0x18] sm:$0xf]
        %v1082 = vld [vmem:[%s622 + $0x1c] sm:$0xf]
        %v1083 = vld [vmem:[%s622 + $0x20] sm:$0xf]
        %v1084 = vld [vmem:[%s622 + $0x24] sm:$0xf]
        %v1085 = vld [vmem:[%s622 + $0x28] sm:$0xf]
        %v1086 = vld [vmem:[%s622 + $0x2c] sm:$0xf]
        %v1087 = vld [vmem:[%s622 + $0x30] sm:$0xf]
        %v1088 = vld [vmem:[%s622 + $0x34] sm:$0xf]
        %v1089 = vld [vmem:[%s622 + $0x38] sm:$0xf]
        %v1090 = vld [vmem:[%s622 + $0x3c] sm:$0xf]
        %v1091 = vld [vmem:[%s630] sm:$0x1]
        %v1092 = vpack.c.bf16 %v1030, %v1026
        %v1093 = vpack.c.bf16 %v1032, %v1028
        %vm1094 = vcmask 261120
        %v1096 = vsel %vm1094, %v1092, 0
        %v1099 = vsel %vm1094, %v1093, 0
        %1101 = vmatprep.subr.bf16.mxu0 0
        %1102 = vmatpush1.bf16.xpose.msra.mxu0 0
        %1103 = vmatprep.subr.bf16.mxu0 0
        %1104 = vmatpush1.bf16.xpose.msra.mxu0 0
        %1105 = vmatprep.subr.bf16.mxu0 0
        %1106 = vmatpush1.bf16.xpose.msra.mxu0 0
        %1107 = vmatprep.subr.bf16.mxu0 0
        %1108 = vmatpush1.bf16.xpose.msra.mxu0 0
        %1109 = vmatprep.subr.bf16.mxu0 0
        %1110 = vmatpush1.bf16.xpose.msra.mxu0 0
        %1111 = vmatprep.subr.bf16.mxu0 0
        %1112 = vmatpush1.bf16.xpose.msra.mxu0 0
        %1113 = vmatprep.subr.bf16.mxu0 0
        %1114 = vmatpush1.bf16.xpose.msra.mxu0 0
        %1115 = vmatprep.subr.bf16.mxu0 0
        %1116 = vmatpush1.bf16.xpose.msra.mxu0 %v1099
        %1117 = vmatprep.subr.bf16.mxu0 0
        %1118 = vmatpush2.bf16.xpose.msra.mxu0 0
        %1119 = vmatprep.subr.bf16.mxu0 0
        %1120 = vmatpush2.bf16.xpose.msra.mxu0 0
        %1121 = vmatprep.subr.bf16.mxu0 0
        %1122 = vmatpush2.bf16.xpose.msra.mxu0 0
        %1123 = vmatprep.subr.bf16.mxu0 0
        %1124 = vmatpush2.bf16.xpose.msra.mxu0 0
        %1125 = vmatprep.subr.bf16.mxu0 0
        %1126 = vmatpush2.bf16.xpose.msra.mxu0 0
        %1127 = vmatprep.subr.bf16.mxu0 0
        %1128 = vmatpush2.bf16.xpose.msra.mxu0 0
        %1129 = vmatprep.subr.bf16.mxu0 0
        %1130 = vmatpush2.bf16.xpose.msra.mxu0 0
        %1131 = vmatprep.subr.bf16.mxu0 0
        %1132 = vmatpush2.bf16.xpose.msra.mxu0 0
        %1133 = vmatprep.mubr.bf16.mxu0 0
        %1134 = vmatmul.mubr.bf16.gmra.mxu0 %v1096
        %v1135 = vpop.f32.mrf.mxu0
        %v1136 = vadd.f32 0.0, %v1135
        %v1137 = vpop.f32.mrf.mxu0
        %v1138 = vpop.f32.mrf.mxu0
        %v1139 = vadd.f32 0.0, %v1138
        %v1140 = vpop.f32.mrf.mxu0
        %1141 = vdwg.mxu0
        %v1142 = vmul.f32 %v1136, 0.17677669
        %v1143 = vmul.f32 %v1139, 0.17677669
        %vm1144 = vcmask 130048
        %v1145 = vsel %vm1144, %v1142, -inf
        %1146 = vmax.xlane.f32.xlu0 %v1145
        %v1147 = vpop.xlane.xlu0 %1146
        %v1148 = vsel %vm1144, %v1143, -inf
        %1149 = vmax.xlane.f32.xlu0 %v1148
        %v1150 = vpop.xlane.xlu0 %1149
        %v1151 = vsub.f32 %v1142, %v1147
        %v1152 = vsub.f32 %v1143, %v1150
        %v1153 = vmul.f32 %v1151, 1.442695
        %v1154 = vpow.pop %v1153
        %v1155 = vmul.f32 %v1152, 1.442695
        %v1156 = vpow.pop %v1155
        %v1157 = vsel %vm1144, %v1154, 0.0
        %1158 = vadd.xlane.f32.xlu0 %v1157
        %v1159 = vpop.xlane.xlu0 %1158
        %v1160 = vsel %vm1144, %v1156, 0.0
        %1161 = vadd.xlane.f32.xlu0 %v1160
        %v1162 = vpop.xlane.xlu0 %1161
        %v1163 = vrcp.pop %v1159
        %v1164 = vrcp.pop %v1162
        %v1165 = vpack.c.bf16 %v1156, %v1154
        %v1166 = vpack.c.bf16 %v1072, %v1069
        %v1168 = vsel %vm1144, %v1165, 0
        %1170 = vmatprep.subr.bf16.mxu0 0
        %1171 = vmatpush1.bf16.msra.mxu0 0
        %1172 = vmatprep.subr.bf16.mxu0 0
        %1173 = vmatpush1.bf16.msra.mxu0 0
        %1174 = vmatprep.subr.bf16.mxu0 0
        %1175 = vmatpush1.bf16.msra.mxu0 0
        %1176 = vmatprep.subr.bf16.mxu0 0
        %1177 = vmatpush1.bf16.msra.mxu0 0
        %1178 = vmatprep.subr.bf16.mxu0 0
        %1179 = vmatpush1.bf16.msra.mxu0 0
        %1180 = vmatprep.subr.bf16.mxu0 0
        %1181 = vmatpush1.bf16.msra.mxu0 0
        %1182 = vmatprep.subr.bf16.mxu0 0
        %1183 = vmatpush1.bf16.msra.mxu0 0
        %1184 = vmatprep.subr.bf16.mxu0 0
        %1185 = vmatpush1.bf16.msra.mxu0 %v1166
        %1186 = vmatprep.subr.bf16.mxu0 0
        %1187 = vmatpush2.bf16.msra.mxu0 0
        %1188 = vmatprep.subr.bf16.mxu0 0
        %1189 = vmatpush2.bf16.msra.mxu0 0
        %1190 = vmatprep.subr.bf16.mxu0 0
        %1191 = vmatpush2.bf16.msra.mxu0 0
        %1192 = vmatprep.subr.bf16.mxu0 0
        %1193 = vmatpush2.bf16.msra.mxu0 0
        %1194 = vmatprep.subr.bf16.mxu0 0
        %1195 = vmatpush2.bf16.msra.mxu0 0
        %1196 = vmatprep.subr.bf16.mxu0 0
        %1197 = vmatpush2.bf16.msra.mxu0 0
        %1198 = vmatprep.subr.bf16.mxu0 0
        %1199 = vmatpush2.bf16.msra.mxu0 0
        %1200 = vmatprep.subr.bf16.mxu0 0
        %1201 = vmatpush2.bf16.msra.mxu0 0
        %1202 = vmatprep.mubr.bf16.mxu0 0
        %1203 = vmatmul.mubr.bf16.gmra.mxu0 %v1168
        %v1204 = vpop.f32.mrf.mxu0
        %v1205 = vadd.f32 0.0, %v1204
        %v1206 = vpop.f32.mrf.mxu0
        %v1207 = vpop.f32.mrf.mxu0
        %v1208 = vadd.f32 0.0, %v1207
        %v1209 = vpop.f32.mrf.mxu0
        %1210 = vdwg.mxu0
        %v1211 = vmul.f32 %v1205, %v1163
        %v1212 = vmul.f32 %v1208, %v1164
        %1214 = vrot.lane.b32.xlu0 %v1092, 96
        %v1215 = vpop.permute.xlu0 %1214
        %1217 = vrot.lane.b32.xlu0 %v1093, 96
        %v1218 = vpop.permute.xlu0 %1217
        %v1220 = vsel %vm1094, %v1215, 0
        %v1223 = vsel %vm1094, %v1218, 0
        %1225 = vmatprep.subr.bf16.mxu0 0
        %1226 = vmatpush1.bf16.xpose.msra.mxu0 0
        %1227 = vmatprep.subr.bf16.mxu0 0
        %1228 = vmatpush1.bf16.xpose.msra.mxu0 0
        %1229 = vmatprep.subr.bf16.mxu0 0
        %1230 = vmatpush1.bf16.xpose.msra.mxu0 0
        %1231 = vmatprep.subr.bf16.mxu0 0
        %1232 = vmatpush1.bf16.xpose.msra.mxu0 0
        %1233 = vmatprep.subr.bf16.mxu0 0
        %1234 = vmatpush1.bf16.xpose.msra.mxu0 0
        %1235 = vmatprep.subr.bf16.mxu0 0
        %1236 = vmatpush1.bf16.xpose.msra.mxu0 0
        %1237 = vmatprep.subr.bf16.mxu0 0
        %1238 = vmatpush1.bf16.xpose.msra.mxu0 0
        %1239 = vmatprep.subr.bf16.mxu0 0
        %1240 = vmatpush1.bf16.xpose.msra.mxu0 %v1223
        %1241 = vmatprep.subr.bf16.mxu0 0
        %1242 = vmatpush2.bf16.xpose.msra.mxu0 0
        %1243 = vmatprep.subr.bf16.mxu0 0
        %1244 = vmatpush2.bf16.xpose.msra.mxu0 0
        %1245 = vmatprep.subr.bf16.mxu0 0
        %1246 = vmatpush2.bf16.xpose.msra.mxu0 0
        %1247 = vmatprep.subr.bf16.mxu0 0
        %1248 = vmatpush2.bf16.xpose.msra.mxu0 0
        %1249 = vmatprep.subr.bf16.mxu0 0
        %1250 = vmatpush2.bf16.xpose.msra.mxu0 0
        %1251 = vmatprep.subr.bf16.mxu0 0
        %1252 = vmatpush2.bf16.xpose.msra.mxu0 0
        %1253 = vmatprep.subr.bf16.mxu0 0
        %1254 = vmatpush2.bf16.xpose.msra.mxu0 0
        %1255 = vmatprep.subr.bf16.mxu0 0
        %1256 = vmatpush2.bf16.xpose.msra.mxu0 0
        %1257 = vmatprep.mubr.bf16.mxu0 0
        %1258 = vmatmul.mubr.bf16.gmra.mxu0 %v1220
        %v1259 = vpop.f32.mrf.mxu0
        %v1260 = vadd.f32 0.0, %v1259
        %v1261 = vpop.f32.mrf.mxu0
        %v1262 = vpop.f32.mrf.mxu0
        %v1263 = vadd.f32 0.0, %v1262
        %v1264 = vpop.f32.mrf.mxu0
        %1265 = vdwg.mxu0
        %v1266 = vmul.f32 %v1260, 0.17677669
        %v1267 = vmul.f32 %v1263, 0.17677669
        %v1268 = vsel %vm1144, %v1266, -inf
        %1269 = vmax.xlane.f32.xlu0 %v1268
        %v1270 = vpop.xlane.xlu0 %1269
        %v1271 = vsel %vm1144, %v1267, -inf
        %1272 = vmax.xlane.f32.xlu0 %v1271
        %v1273 = vpop.xlane.xlu0 %1272
        %v1274 = vsub.f32 %v1266, %v1270
        %v1275 = vsub.f32 %v1267, %v1273
        %v1276 = vmul.f32 %v1274, 1.442695
        %v1277 = vpow.pop %v1276
        %v1278 = vmul.f32 %v1275, 1.442695
        %v1279 = vpow.pop %v1278
        %v1280 = vsel %vm1144, %v1277, 0.0
        %1281 = vadd.xlane.f32.xlu0 %v1280
        %v1282 = vpop.xlane.xlu0 %1281
        %v1283 = vsel %vm1144, %v1279, 0.0
        %1284 = vadd.xlane.f32.xlu0 %v1283
        %v1285 = vpop.xlane.xlu0 %1284
        %v1286 = vrcp.pop %v1282
        %v1287 = vrcp.pop %v1285
        %v1288 = vpack.c.bf16 %v1279, %v1277
        %1290 = vrot.lane.b32.xlu0 %v1166, 96
        %v1291 = vpop.permute.xlu0 %1290
        %v1294 = vsel %vm1144, %v1288, 0
        %1296 = vmatprep.subr.bf16.mxu0 0
        %1297 = vmatpush1.bf16.msra.mxu0 0
        %1298 = vmatprep.subr.bf16.mxu0 0
        %1299 = vmatpush1.bf16.msra.mxu0 0
        %1300 = vmatprep.subr.bf16.mxu0 0
        %1301 = vmatpush1.bf16.msra.mxu0 0
        %1302 = vmatprep.subr.bf16.mxu0 0
        %1303 = vmatpush1.bf16.msra.mxu0 0
        %1304 = vmatprep.subr.bf16.mxu0 0
        %1305 = vmatpush1.bf16.msra.mxu0 0
        %1306 = vmatprep.subr.bf16.mxu0 0
        %1307 = vmatpush1.bf16.msra.mxu0 0
        %1308 = vmatprep.subr.bf16.mxu0 0
        %1309 = vmatpush1.bf16.msra.mxu0 0
        %1310 = vmatprep.subr.bf16.mxu0 0
        %1311 = vmatpush1.bf16.msra.mxu0 %v1291
        %1312 = vmatprep.subr.bf16.mxu0 0
        %1313 = vmatpush2.bf16.msra.mxu0 0
        %1314 = vmatprep.subr.bf16.mxu0 0
        %1315 = vmatpush2.bf16.msra.mxu0 0
        %1316 = vmatprep.subr.bf16.mxu0 0
        %1317 = vmatpush2.bf16.msra.mxu0 0
        %1318 = vmatprep.subr.bf16.mxu0 0
        %1319 = vmatpush2.bf16.msra.mxu0 0
        %1320 = vmatprep.subr.bf16.mxu0 0
        %1321 = vmatpush2.bf16.msra.mxu0 0
        %1322 = vmatprep.subr.bf16.mxu0 0
        %1323 = vmatpush2.bf16.msra.mxu0 0
        %1324 = vmatprep.subr.bf16.mxu0 0
        %1325 = vmatpush2.bf16.msra.mxu0 0
        %1326 = vmatprep.subr.bf16.mxu0 0
        %1327 = vmatpush2.bf16.msra.mxu0 0
        %1328 = vmatprep.mubr.bf16.mxu0 0
        %1329 = vmatmul.mubr.bf16.gmra.mxu0 %v1294
        %v1330 = vpop.f32.mrf.mxu0
        %v1331 = vadd.f32 0.0, %v1330
        %v1332 = vpop.f32.mrf.mxu0
        %v1333 = vpop.f32.mrf.mxu0
        %v1334 = vadd.f32 0.0, %v1333
        %v1335 = vpop.f32.mrf.mxu0
        %1336 = vdwg.mxu0
        %v1337 = vmul.f32 %v1331, %v1286
        %v1338 = vmul.f32 %v1334, %v1287
        %1339 = vrot.lane.b32.xlu0 %v1092, 64
        %v1340 = vpop.permute.xlu0 %1339
        %1341 = vrot.lane.b32.xlu0 %v1093, 64
        %v1342 = vpop.permute.xlu0 %1341
        %v1344 = vsel %vm1094, %v1340, 0
        %v1347 = vsel %vm1094, %v1342, 0
        %1349 = vmatprep.subr.bf16.mxu0 0
        %1350 = vmatpush1.bf16.xpose.msra.mxu0 0
        %1351 = vmatprep.subr.bf16.mxu0 0
        %1352 = vmatpush1.bf16.xpose.msra.mxu0 0
        %1353 = vmatprep.subr.bf16.mxu0 0
        %1354 = vmatpush1.bf16.xpose.msra.mxu0 0
        %1355 = vmatprep.subr.bf16.mxu0 0
        %1356 = vmatpush1.bf16.xpose.msra.mxu0 0
        %1357 = vmatprep.subr.bf16.mxu0 0
        %1358 = vmatpush1.bf16.xpose.msra.mxu0 0
        %1359 = vmatprep.subr.bf16.mxu0 0
        %1360 = vmatpush1.bf16.xpose.msra.mxu0 0
        %1361 = vmatprep.subr.bf16.mxu0 0
        %1362 = vmatpush1.bf16.xpose.msra.mxu0 0
        %1363 = vmatprep.subr.bf16.mxu0 0
        %1364 = vmatpush1.bf16.xpose.msra.mxu0 %v1347
        %1365 = vmatprep.subr.bf16.mxu0 0
        %1366 = vmatpush2.bf16.xpose.msra.mxu0 0
        %1367 = vmatprep.subr.bf16.mxu0 0
        %1368 = vmatpush2.bf16.xpose.msra.mxu0 0
        %1369 = vmatprep.subr.bf16.mxu0 0
        %1370 = vmatpush2.bf16.xpose.msra.mxu0 0
        %1371 = vmatprep.subr.bf16.mxu0 0
        %1372 = vmatpush2.bf16.xpose.msra.mxu0 0
        %1373 = vmatprep.subr.bf16.mxu0 0
        %1374 = vmatpush2.bf16.xpose.msra.mxu0 0
        %1375 = vmatprep.subr.bf16.mxu0 0
        %1376 = vmatpush2.bf16.xpose.msra.mxu0 0
        %1377 = vmatprep.subr.bf16.mxu0 0
        %1378 = vmatpush2.bf16.xpose.msra.mxu0 0
        %1379 = vmatprep.subr.bf16.mxu0 0
        %1380 = vmatpush2.bf16.xpose.msra.mxu0 0
        %1381 = vmatprep.mubr.bf16.mxu0 0
        %1382 = vmatmul.mubr.bf16.gmra.mxu0 %v1344
        %v1383 = vpop.f32.mrf.mxu0
        %v1384 = vadd.f32 0.0, %v1383
        %v1385 = vpop.f32.mrf.mxu0
        %v1386 = vpop.f32.mrf.mxu0
        %v1387 = vadd.f32 0.0, %v1386
        %v1388 = vpop.f32.mrf.mxu0
        %1389 = vdwg.mxu0
        %v1390 = vmul.f32 %v1384, 0.17677669
        %v1391 = vmul.f32 %v1387, 0.17677669
        %v1392 = vsel %vm1144, %v1390, -inf
        %1393 = vmax.xlane.f32.xlu0 %v1392
        %v1394 = vpop.xlane.xlu0 %1393
        %v1395 = vsel %vm1144, %v1391, -inf
        %1396 = vmax.xlane.f32.xlu0 %v1395
        %v1397 = vpop.xlane.xlu0 %1396
        %v1398 = vsub.f32 %v1390, %v1394
        %v1399 = vsub.f32 %v1391, %v1397
        %v1400 = vmul.f32 %v1398, 1.442695
        %v1401 = vpow.pop %v1400
        %v1402 = vmul.f32 %v1399, 1.442695
        %v1403 = vpow.pop %v1402
        %v1404 = vsel %vm1144, %v1401, 0.0
        %1405 = vadd.xlane.f32.xlu0 %v1404
        %v1406 = vpop.xlane.xlu0 %1405
        %v1407 = vsel %vm1144, %v1403, 0.0
        %1408 = vadd.xlane.f32.xlu0 %v1407
        %v1409 = vpop.xlane.xlu0 %1408
        %v1410 = vrcp.pop %v1406
        %v1411 = vrcp.pop %v1409
        %v1412 = vpack.c.bf16 %v1403, %v1401
        %1413 = vrot.lane.b32.xlu0 %v1166, 64
        %v1414 = vpop.permute.xlu0 %1413
        %v1417 = vsel %vm1144, %v1412, 0
        %1419 = vmatprep.subr.bf16.mxu0 0
        %1420 = vmatpush1.bf16.msra.mxu0 0
        %1421 = vmatprep.subr.bf16.mxu0 0
        %1422 = vmatpush1.bf16.msra.mxu0 0
        %1423 = vmatprep.subr.bf16.mxu0 0
        %1424 = vmatpush1.bf16.msra.mxu0 0
        %1425 = vmatprep.subr.bf16.mxu0 0
        %1426 = vmatpush1.bf16.msra.mxu0 0
        %1427 = vmatprep.subr.bf16.mxu0 0
        %1428 = vmatpush1.bf16.msra.mxu0 0
        %1429 = vmatprep.subr.bf16.mxu0 0
        %1430 = vmatpush1.bf16.msra.mxu0 0
        %1431 = vmatprep.subr.bf16.mxu0 0
        %1432 = vmatpush1.bf16.msra.mxu0 0
        %1433 = vmatprep.subr.bf16.mxu0 0
        %1434 = vmatpush1.bf16.msra.mxu0 %v1414
        %1435 = vmatprep.subr.bf16.mxu0 0
        %1436 = vmatpush2.bf16.msra.mxu0 0
        %1437 = vmatprep.subr.bf16.mxu0 0
        %1438 = vmatpush2.bf16.msra.mxu0 0
        %1439 = vmatprep.subr.bf16.mxu0 0
        %1440 = vmatpush2.bf16.msra.mxu0 0
        %1441 = vmatprep.subr.bf16.mxu0 0
        %1442 = vmatpush2.bf16.msra.mxu0 0
        %1443 = vmatprep.subr.bf16.mxu0 0
        %1444 = vmatpush2.bf16.msra.mxu0 0
        %1445 = vmatprep.subr.bf16.mxu0 0
        %1446 = vmatpush2.bf16.msra.mxu0 0
        %1447 = vmatprep.subr.bf16.mxu0 0
        %1448 = vmatpush2.bf16.msra.mxu0 0
        %1449 = vmatprep.subr.bf16.mxu0 0
        %1450 = vmatpush2.bf16.msra.mxu0 0
        %1451 = vmatprep.mubr.bf16.mxu0 0
        %1452 = vmatmul.mubr.bf16.gmra.mxu0 %v1417
        %v1453 = vpop.f32.mrf.mxu0
        %v1454 = vadd.f32 0.0, %v1453
        %v1455 = vpop.f32.mrf.mxu0
        %v1456 = vpop.f32.mrf.mxu0
        %v1457 = vadd.f32 0.0, %v1456
        %v1458 = vpop.f32.mrf.mxu0
        %1459 = vdwg.mxu0
        %v1460 = vmul.f32 %v1454, %v1410
        %v1461 = vmul.f32 %v1457, %v1411
        %1462 = vrot.lane.b32.xlu0 %v1092, 32
        %v1463 = vpop.permute.xlu0 %1462
        %1464 = vrot.lane.b32.xlu0 %v1093, 32
        %v1465 = vpop.permute.xlu0 %1464
        %v1467 = vsel %vm1094, %v1463, 0
        %v1470 = vsel %vm1094, %v1465, 0
        %1472 = vmatprep.subr.bf16.mxu0 0
        %1473 = vmatpush1.bf16.xpose.msra.mxu0 0
        %1474 = vmatprep.subr.bf16.mxu0 0
        %1475 = vmatpush1.bf16.xpose.msra.mxu0 0
        %1476 = vmatprep.subr.bf16.mxu0 0
        %1477 = vmatpush1.bf16.xpose.msra.mxu0 0
        %1478 = vmatprep.subr.bf16.mxu0 0
        %1479 = vmatpush1.bf16.xpose.msra.mxu0 0
        %1480 = vmatprep.subr.bf16.mxu0 0
        %1481 = vmatpush1.bf16.xpose.msra.mxu0 0
        %1482 = vmatprep.subr.bf16.mxu0 0
        %1483 = vmatpush1.bf16.xpose.msra.mxu0 0
        %1484 = vmatprep.subr.bf16.mxu0 0
        %1485 = vmatpush1.bf16.xpose.msra.mxu0 0
        %1486 = vmatprep.subr.bf16.mxu0 0
        %1487 = vmatpush1.bf16.xpose.msra.mxu0 %v1470
        %1488 = vmatprep.subr.bf16.mxu0 0
        %1489 = vmatpush2.bf16.xpose.msra.mxu0 0
        %1490 = vmatprep.subr.bf16.mxu0 0
        %1491 = vmatpush2.bf16.xpose.msra.mxu0 0
        %1492 = vmatprep.subr.bf16.mxu0 0
        %1493 = vmatpush2.bf16.xpose.msra.mxu0 0
        %1494 = vmatprep.subr.bf16.mxu0 0
        %1495 = vmatpush2.bf16.xpose.msra.mxu0 0
        %1496 = vmatprep.subr.bf16.mxu0 0
        %1497 = vmatpush2.bf16.xpose.msra.mxu0 0
        %1498 = vmatprep.subr.bf16.mxu0 0
        %1499 = vmatpush2.bf16.xpose.msra.mxu0 0
        %1500 = vmatprep.subr.bf16.mxu0 0
        %1501 = vmatpush2.bf16.xpose.msra.mxu0 0
        %1502 = vmatprep.subr.bf16.mxu0 0
        %1503 = vmatpush2.bf16.xpose.msra.mxu0 0
        %1504 = vmatprep.mubr.bf16.mxu0 0
        %1505 = vmatmul.mubr.bf16.gmra.mxu0 %v1467
        %v1506 = vpop.f32.mrf.mxu0
        %v1507 = vadd.f32 0.0, %v1506
        %v1508 = vpop.f32.mrf.mxu0
        %v1509 = vpop.f32.mrf.mxu0
        %v1510 = vadd.f32 0.0, %v1509
        %v1511 = vpop.f32.mrf.mxu0
        %1512 = vdwg.mxu0
        %v1513 = vmul.f32 %v1507, 0.17677669
        %v1514 = vmul.f32 %v1510, 0.17677669
        %v1515 = vsel %vm1144, %v1513, -inf
        %1516 = vmax.xlane.f32.xlu0 %v1515
        %v1517 = vpop.xlane.xlu0 %1516
        %v1518 = vsel %vm1144, %v1514, -inf
        %1519 = vmax.xlane.f32.xlu0 %v1518
        %v1520 = vpop.xlane.xlu0 %1519
        %v1521 = vsub.f32 %v1513, %v1517
        %v1522 = vsub.f32 %v1514, %v1520
        %v1523 = vmul.f32 %v1521, 1.442695
        %v1524 = vpow.pop %v1523
        %v1525 = vmul.f32 %v1522, 1.442695
        %v1526 = vpow.pop %v1525
        %v1527 = vsel %vm1144, %v1524, 0.0
        %1528 = vadd.xlane.f32.xlu0 %v1527
        %v1529 = vpop.xlane.xlu0 %1528
        %v1530 = vsel %vm1144, %v1526, 0.0
        %1531 = vadd.xlane.f32.xlu0 %v1530
        %v1532 = vpop.xlane.xlu0 %1531
        %v1533 = vrcp.pop %v1529
        %v1534 = vrcp.pop %v1532
        %v1535 = vpack.c.bf16 %v1526, %v1524
        %1536 = vrot.lane.b32.xlu0 %v1166, 32
        %v1537 = vpop.permute.xlu0 %1536
        %v1540 = vsel %vm1144, %v1535, 0
        %1542 = vmatprep.subr.bf16.mxu0 0
        %1543 = vmatpush1.bf16.msra.mxu0 0
        %1544 = vmatprep.subr.bf16.mxu0 0
        %1545 = vmatpush1.bf16.msra.mxu0 0
        %1546 = vmatprep.subr.bf16.mxu0 0
        %1547 = vmatpush1.bf16.msra.mxu0 0
        %1548 = vmatprep.subr.bf16.mxu0 0
        %1549 = vmatpush1.bf16.msra.mxu0 0
        %1550 = vmatprep.subr.bf16.mxu0 0
        %1551 = vmatpush1.bf16.msra.mxu0 0
        %1552 = vmatprep.subr.bf16.mxu0 0
        %1553 = vmatpush1.bf16.msra.mxu0 0
        %1554 = vmatprep.subr.bf16.mxu0 0
        %1555 = vmatpush1.bf16.msra.mxu0 0
        %1556 = vmatprep.subr.bf16.mxu0 0
        %1557 = vmatpush1.bf16.msra.mxu0 %v1537
        %1558 = vmatprep.subr.bf16.mxu0 0
        %1559 = vmatpush2.bf16.msra.mxu0 0
        %1560 = vmatprep.subr.bf16.mxu0 0
        %1561 = vmatpush2.bf16.msra.mxu0 0
        %1562 = vmatprep.subr.bf16.mxu0 0
        %1563 = vmatpush2.bf16.msra.mxu0 0
        %1564 = vmatprep.subr.bf16.mxu0 0
        %1565 = vmatpush2.bf16.msra.mxu0 0
        %1566 = vmatprep.subr.bf16.mxu0 0
        %1567 = vmatpush2.bf16.msra.mxu0 0
        %1568 = vmatprep.subr.bf16.mxu0 0
        %1569 = vmatpush2.bf16.msra.mxu0 0
        %1570 = vmatprep.subr.bf16.mxu0 0
        %1571 = vmatpush2.bf16.msra.mxu0 0
        %1572 = vmatprep.subr.bf16.mxu0 0
        %1573 = vmatpush2.bf16.msra.mxu0 0
        %1574 = vmatprep.mubr.bf16.mxu0 0
        %1575 = vmatmul.mubr.bf16.gmra.mxu0 %v1540
        %v1576 = vpop.f32.mrf.mxu0
        %v1577 = vadd.f32 0.0, %v1576
        %v1578 = vpop.f32.mrf.mxu0
        %v1579 = vpop.f32.mrf.mxu0
        %v1580 = vadd.f32 0.0, %v1579
        %v1581 = vpop.f32.mrf.mxu0
        %1582 = vdwg.mxu0
        %v1583 = vmul.f32 %v1577, %v1533
        %v1584 = vmul.f32 %v1580, %v1534
        %1587 = vrot.lane.b32.xlu0 %v1337, 32
        %v1588 = vpop.permute.xlu0 %1587
        %1589 = vrot.lane.b32.xlu0 %v1338, 32
        %v1590 = vpop.permute.xlu0 %1589
        %1595 = vrot.lane.b32.xlu0 %v1460, 64
        %v1596 = vpop.permute.xlu0 %1595
        %1597 = vrot.lane.b32.xlu0 %v1461, 64
        %v1598 = vpop.permute.xlu0 %1597
        %1603 = vrot.lane.b32.xlu0 %v1583, 96
        %v1604 = vpop.permute.xlu0 %1603
        %1605 = vrot.lane.b32.xlu0 %v1584, 96
        %v1606 = vpop.permute.xlu0 %1605
        %v1609 = vsel %vm1094, %v1211, %v1588
        %v1610 = vsel %vm1094, %v1212, %v1590
        %vm1611 = vcmask 523264
        %v1612 = vsel %vm1611, %v1609, %v1596
        %v1613 = vsel %vm1611, %v1610, %v1598
        %vm1614 = vcmask 785408
        %v1615 = vsel %vm1614, %v1612, %v1604
        %v1616 = vsel %vm1614, %v1613, %v1606
        %v1617 = vpack.c.bf16 %v1616, %v1615
        %v1619 = vlaneseq
        %v1620 = vshrl.u32 %v1619, 7
        %v1621 = vsub.s32 0, %v1620
        %v1622 = vrot.slane %v1091, %v1621
        %v1640 = vunpack.c.l.b16 %v1075
        %v1641 = vunpack.c.l.b16 %v1076
        %v1642 = vunpack.c.l.b16 %v1077
        %v1643 = vunpack.c.l.b16 %v1078
        %v1644 = vunpack.c.l.b16 %v1079
        %v1645 = vunpack.c.l.b16 %v1080
        %v1646 = vunpack.c.l.b16 %v1081
        %v1647 = vunpack.c.l.b16 %v1082
        %v1648 = vunpack.c.l.b16 %v1083
        %v1649 = vunpack.c.l.b16 %v1084
        %v1650 = vunpack.c.l.b16 %v1085
        %v1651 = vunpack.c.l.b16 %v1086
        %v1652 = vunpack.c.l.b16 %v1087
        %v1653 = vunpack.c.l.b16 %v1088
        %v1654 = vunpack.c.l.b16 %v1089
        %v1655 = vunpack.c.l.b16 %v1090
        %v1656 = vpack.c.b16 %v1641, %v1640
        %v1657 = vpack.c.b16 %v1643, %v1642
        %v1658 = vpack.c.b16 %v1645, %v1644
        %v1659 = vpack.c.b16 %v1647, %v1646
        %v1660 = vpack.c.b16 %v1649, %v1648
        %v1661 = vpack.c.b16 %v1651, %v1650
        %v1662 = vpack.c.b16 %v1653, %v1652
        %v1663 = vpack.c.b16 %v1655, %v1654
        %1672 = vmatprep.subr.bf16.mxu0 0
        %1673 = vmatpush1.bf16.msra.mxu0 %v1663
        %1674 = vmatprep.subr.bf16.mxu0 0
        %1675 = vmatpush1.bf16.msra.mxu0 %v1662
        %1676 = vmatprep.subr.bf16.mxu0 0
        %1677 = vmatpush1.bf16.msra.mxu0 %v1661
        %1678 = vmatprep.subr.bf16.mxu0 0
        %1679 = vmatpush1.bf16.msra.mxu0 %v1660
        %1680 = vmatprep.subr.bf16.mxu0 0
        %1681 = vmatpush1.bf16.msra.mxu0 %v1659
        %1682 = vmatprep.subr.bf16.mxu0 0
        %1683 = vmatpush1.bf16.msra.mxu0 %v1658
        %1684 = vmatprep.subr.bf16.mxu0 0
        %1685 = vmatpush1.bf16.msra.mxu0 %v1657
        %1686 = vmatprep.subr.bf16.mxu0 0
        %1687 = vmatpush1.bf16.msra.mxu0 %v1656
        %1688 = vmatprep.subr.bf16.mxu0 0
        %1689 = vmatpush2.bf16.msra.mxu0 0
        %1690 = vmatprep.subr.bf16.mxu0 0
        %1691 = vmatpush2.bf16.msra.mxu0 0
        %1692 = vmatprep.subr.bf16.mxu0 0
        %1693 = vmatpush2.bf16.msra.mxu0 0
        %1694 = vmatprep.subr.bf16.mxu0 0
        %1695 = vmatpush2.bf16.msra.mxu0 0
        %1696 = vmatprep.subr.bf16.mxu0 0
        %1697 = vmatpush2.bf16.msra.mxu0 0
        %1698 = vmatprep.subr.bf16.mxu0 0
        %1699 = vmatpush2.bf16.msra.mxu0 0
        %1700 = vmatprep.subr.bf16.mxu0 0
        %1701 = vmatpush2.bf16.msra.mxu0 0
        %1702 = vmatprep.subr.bf16.mxu0 0
        %1703 = vmatpush2.bf16.msra.mxu0 0
        %1704 = vmatprep.mubr.bf16.mxu0 0
        %1705 = vmatmul.mubr.bf16.gmra.mxu0 %v1617
        %v1706 = vpop.f32.mrf.mxu0
        %v1707 = vadd.f32 %v1622, %v1706
        %v1708 = vpop.f32.mrf.mxu0
        %v1709 = vpop.f32.mrf.mxu0
        %v1710 = vadd.f32 %v1622, %v1709
        %v1711 = vpop.f32.mrf.mxu0
        %1712 = vdwg.mxu0
        %v1713 = vadd.f32 %v811, %v1707
        %v1714 = vadd.f32 %v812, %v1710
        %v1715 = vld [vmem:[%s638] sm:$0x1]
        %v1716 = vld [vmem:[%s646] sm:$0x1]
        %1717 = vadd.xlane.f32.xlu0 %v1713
        %v1718 = vpop.xlane.xlu0 %1717
        %1719 = vadd.xlane.f32.xlu0 %v1714
        %v1720 = vpop.xlane.xlu0 %1719
        %v1721 = vrcp.pop 128.0
        %v1722 = vmul.f32 %v1718, %v1721
        %v1723 = vmul.f32 %v1720, %v1721
        %v1724 = vsub.f32 %v1713, %v1722
        %v1725 = vsub.f32 %v1714, %v1723
        %v1726 = vmul.f32 %v1724, %v1724
        %v1727 = vmul.f32 %v1725, %v1725
        %1728 = vadd.xlane.f32.xlu0 %v1726
        %v1729 = vpop.xlane.xlu0 %1728
        %1730 = vadd.xlane.f32.xlu0 %v1727
        %v1731 = vpop.xlane.xlu0 %1730
        %v1732 = vmul.f32 %v1729, %v1721
        %v1733 = vmul.f32 %v1731, %v1721
        %v1734 = vadd.f32 %v1732, 1e-05
        %v1735 = vadd.f32 %v1733, 1e-05
        %v1736 = vrsqrt.pop %v1734
        %v1737 = vrsqrt.pop %v1735
        %v1738 = vmul.f32 %v1724, %v1736
        %v1739 = vmul.f32 %v1725, %v1737
        %v1741 = vlaneseq
        %v1742 = vshrl.u32 %v1741, 7
        %v1743 = vsub.s32 0, %v1742
        %v1744 = vrot.slane %v1715, %v1743
        %v1746 = vmul.f32 %v1738, %v1744
        %v1747 = vmul.f32 %v1739, %v1744
        %v1749 = vlaneseq
        %v1750 = vshrl.u32 %v1749, 7
        %v1751 = vsub.s32 0, %v1750
        %v1752 = vrot.slane %v1716, %v1751
        %v1754 = vadd.f32 %v1746, %v1752
        %v1755 = vadd.f32 %v1747, %v1752
        %v1756 = vld [vmem:[%s792] sm:$0xff]
        %v1757 = vld [vmem:[%s792 + $0x8] sm:$0xff]
        %v1758 = vld [vmem:[%s792 + $0x10] sm:$0xff]
        %v1759 = vld [vmem:[%s792 + $0x18] sm:$0xff]
        %v1760 = vld [vmem:[%s792 + $0x20] sm:$0xff]
        %v1761 = vld [vmem:[%s792 + $0x28] sm:$0xff]
        %v1762 = vld [vmem:[%s792 + $0x30] sm:$0xff]
        %v1763 = vld [vmem:[%s792 + $0x38] sm:$0xff]
        %v1764 = vld [vmem:[%s792 + $0x40] sm:$0xff]
        %v1765 = vld [vmem:[%s792 + $0x48] sm:$0xff]
        %v1766 = vld [vmem:[%s792 + $0x50] sm:$0xff]
        %v1767 = vld [vmem:[%s792 + $0x58] sm:$0xff]
        %v1768 = vld [vmem:[%s792 + $0x60] sm:$0xff]
        %v1769 = vld [vmem:[%s792 + $0x68] sm:$0xff]
        %v1770 = vld [vmem:[%s792 + $0x70] sm:$0xff]
        %v1771 = vld [vmem:[%s792 + $0x78] sm:$0xff]
        %v1772 = vld [vmem:[%s792 + $0x80] sm:$0xff]
        %v1773 = vld [vmem:[%s792 + $0x88] sm:$0xff]
        %v1774 = vld [vmem:[%s792 + $0x90] sm:$0xff]
        %v1775 = vld [vmem:[%s792 + $0x98] sm:$0xff]
        %v1776 = vld [vmem:[%s792 + $0xa0] sm:$0xff]
        %v1777 = vld [vmem:[%s792 + $0xa8] sm:$0xff]
        %v1778 = vld [vmem:[%s792 + $0xb0] sm:$0xff]
        %v1779 = vld [vmem:[%s792 + $0xb8] sm:$0xff]
        %v1780 = vld [vmem:[%s792 + $0xc0] sm:$0xff]
        %v1781 = vld [vmem:[%s792 + $0xc8] sm:$0xff]
        %v1782 = vld [vmem:[%s792 + $0xd0] sm:$0xff]
        %v1783 = vld [vmem:[%s792 + $0xd8] sm:$0xff]
        %v1784 = vld [vmem:[%s792 + $0xe0] sm:$0xff]
        %v1785 = vld [vmem:[%s792 + $0xe8] sm:$0xff]
        %v1786 = vld [vmem:[%s792 + $0xf0] sm:$0xff]
        %v1787 = vld [vmem:[%s792 + $0xf8] sm:$0xff]
        %v1788 = vpack.c.bf16 %v1755, %v1754
        %v1789 = vld [vmem:[%s796] sm:$0xf]
        %v1791 = vlaneseq
        %v1792 = vshrl.u32 %v1791, 7
        %v1793 = vsub.s32 0, %v1792
        %v1794 = vrot.slane %v1789, %v1793
        %v1795 = vlaneseq
        %v1796 = vshrl.u32 %v1795, 7
        %v1797 = vsub.s32 1, %v1796
        %v1798 = vrot.slane %v1789, %v1797
        %v1799 = vlaneseq
        %v1800 = vshrl.u32 %v1799, 7
        %v1801 = vsub.s32 2, %v1800
        %v1802 = vrot.slane %v1789, %v1801
        %v1803 = vlaneseq
        %v1804 = vshrl.u32 %v1803, 7
        %v1805 = vsub.s32 3, %v1804
        %v1806 = vrot.slane %v1789, %v1805
        %v1843 = vunpack.c.l.b16 %v1756
        %v1844 = vunpack.c.h.b16 %v1756
        %v1845 = vunpack.c.l.b16 %v1757
        %v1846 = vunpack.c.h.b16 %v1757
        %v1847 = vunpack.c.l.b16 %v1758
        %v1848 = vunpack.c.h.b16 %v1758
        %v1849 = vunpack.c.l.b16 %v1759
        %v1850 = vunpack.c.h.b16 %v1759
        %v1851 = vunpack.c.l.b16 %v1760
        %v1852 = vunpack.c.h.b16 %v1760
        %v1853 = vunpack.c.l.b16 %v1761
        %v1854 = vunpack.c.h.b16 %v1761
        %v1855 = vunpack.c.l.b16 %v1762
        %v1856 = vunpack.c.h.b16 %v1762
        %v1857 = vunpack.c.l.b16 %v1763
        %v1858 = vunpack.c.h.b16 %v1763
        %v1859 = vunpack.c.l.b16 %v1764
        %v1860 = vunpack.c.h.b16 %v1764
        %v1861 = vunpack.c.l.b16 %v1765
        %v1862 = vunpack.c.h.b16 %v1765
        %v1863 = vunpack.c.l.b16 %v1766
        %v1864 = vunpack.c.h.b16 %v1766
        %v1865 = vunpack.c.l.b16 %v1767
        %v1866 = vunpack.c.h.b16 %v1767
        %v1867 = vunpack.c.l.b16 %v1768
        %v1868 = vunpack.c.h.b16 %v1768
        %v1869 = vunpack.c.l.b16 %v1769
        %v1870 = vunpack.c.h.b16 %v1769
        %v1871 = vunpack.c.l.b16 %v1770
        %v1872 = vunpack.c.h.b16 %v1770
        %v1873 = vunpack.c.l.b16 %v1771
        %v1874 = vunpack.c.h.b16 %v1771
        %v1875 = vunpack.c.l.b16 %v1772
        %v1876 = vunpack.c.h.b16 %v1772
        %v1877 = vunpack.c.l.b16 %v1773
        %v1878 = vunpack.c.h.b16 %v1773
        %v1879 = vunpack.c.l.b16 %v1774
        %v1880 = vunpack.c.h.b16 %v1774
        %v1881 = vunpack.c.l.b16 %v1775
        %v1882 = vunpack.c.h.b16 %v1775
        %v1883 = vunpack.c.l.b16 %v1776
        %v1884 = vunpack.c.h.b16 %v1776
        %v1885 = vunpack.c.l.b16 %v1777
        %v1886 = vunpack.c.h.b16 %v1777
        %v1887 = vunpack.c.l.b16 %v1778
        %v1888 = vunpack.c.h.b16 %v1778
        %v1889 = vunpack.c.l.b16 %v1779
        %v1890 = vunpack.c.h.b16 %v1779
        %v1891 = vunpack.c.l.b16 %v1780
        %v1892 = vunpack.c.h.b16 %v1780
        %v1893 = vunpack.c.l.b16 %v1781
        %v1894 = vunpack.c.h.b16 %v1781
        %v1895 = vunpack.c.l.b16 %v1782
        %v1896 = vunpack.c.h.b16 %v1782
        %v1897 = vunpack.c.l.b16 %v1783
        %v1898 = vunpack.c.h.b16 %v1783
        %v1899 = vunpack.c.l.b16 %v1784
        %v1900 = vunpack.c.h.b16 %v1784
        %v1901 = vunpack.c.l.b16 %v1785
        %v1902 = vunpack.c.h.b16 %v1785
        %v1903 = vunpack.c.l.b16 %v1786
        %v1904 = vunpack.c.h.b16 %v1786
        %v1905 = vunpack.c.l.b16 %v1787
        %v1906 = vunpack.c.h.b16 %v1787
        %v1907 = vpack.c.b16 %v1847, %v1843
        %v1908 = vpack.c.b16 %v1848, %v1844
        %v1909 = vpack.c.b16 %v1849, %v1845
        %v1910 = vpack.c.b16 %v1850, %v1846
        %v1911 = vpack.c.b16 %v1855, %v1851
        %v1912 = vpack.c.b16 %v1856, %v1852
        %v1913 = vpack.c.b16 %v1857, %v1853
        %v1914 = vpack.c.b16 %v1858, %v1854
        %v1915 = vpack.c.b16 %v1863, %v1859
        %v1916 = vpack.c.b16 %v1864, %v1860
        %v1917 = vpack.c.b16 %v1865, %v1861
        %v1918 = vpack.c.b16 %v1866, %v1862
        %v1919 = vpack.c.b16 %v1871, %v1867
        %v1920 = vpack.c.b16 %v1872, %v1868
        %v1921 = vpack.c.b16 %v1873, %v1869
        %v1922 = vpack.c.b16 %v1874, %v1870
        %v1923 = vpack.c.b16 %v1879, %v1875
        %v1924 = vpack.c.b16 %v1880, %v1876
        %v1925 = vpack.c.b16 %v1881, %v1877
        %v1926 = vpack.c.b16 %v1882, %v1878
        %v1927 = vpack.c.b16 %v1887, %v1883
        %v1928 = vpack.c.b16 %v1888, %v1884
        %v1929 = vpack.c.b16 %v1889, %v1885
        %v1930 = vpack.c.b16 %v1890, %v1886
        %v1931 = vpack.c.b16 %v1895, %v1891
        %v1932 = vpack.c.b16 %v1896, %v1892
        %v1933 = vpack.c.b16 %v1897, %v1893
        %v1934 = vpack.c.b16 %v1898, %v1894
        %v1935 = vpack.c.b16 %v1903, %v1899
        %v1936 = vpack.c.b16 %v1904, %v1900
        %v1937 = vpack.c.b16 %v1905, %v1901
        %v1938 = vpack.c.b16 %v1906, %v1902
        %1971 = vmatprep.subr.bf16.mxu0 %v1936
        %1972 = vmatpush1.bf16.msra.mxu0 %v1935
        %1973 = vmatprep.subr.bf16.mxu0 %v1932
        %1974 = vmatpush1.bf16.msra.mxu0 %v1931
        %1975 = vmatprep.subr.bf16.mxu0 %v1928
        %1976 = vmatpush1.bf16.msra.mxu0 %v1927
        %1977 = vmatprep.subr.bf16.mxu0 %v1924
        %1978 = vmatpush1.bf16.msra.mxu0 %v1923
        %1979 = vmatprep.subr.bf16.mxu0 %v1920
        %1980 = vmatpush1.bf16.msra.mxu0 %v1919
        %1981 = vmatprep.subr.bf16.mxu0 %v1916
        %1982 = vmatpush1.bf16.msra.mxu0 %v1915
        %1983 = vmatprep.subr.bf16.mxu0 %v1912
        %1984 = vmatpush1.bf16.msra.mxu0 %v1911
        %1985 = vmatprep.subr.bf16.mxu0 %v1908
        %1986 = vmatpush1.bf16.msra.mxu0 %v1907
        %1987 = vmatprep.subr.bf16.mxu0 0
        %1988 = vmatpush2.bf16.msra.mxu0 0
        %1989 = vmatprep.subr.bf16.mxu0 0
        %1990 = vmatpush2.bf16.msra.mxu0 0
        %1991 = vmatprep.subr.bf16.mxu0 0
        %1992 = vmatpush2.bf16.msra.mxu0 0
        %1993 = vmatprep.subr.bf16.mxu0 0
        %1994 = vmatpush2.bf16.msra.mxu0 0
        %1995 = vmatprep.subr.bf16.mxu0 0
        %1996 = vmatpush2.bf16.msra.mxu0 0
        %1997 = vmatprep.subr.bf16.mxu0 0
        %1998 = vmatpush2.bf16.msra.mxu0 0
        %1999 = vmatprep.subr.bf16.mxu0 0
        %2000 = vmatpush2.bf16.msra.mxu0 0
        %2001 = vmatprep.subr.bf16.mxu0 0
        %2002 = vmatpush2.bf16.msra.mxu0 0
        %2003 = vmatprep.mubr.bf16.mxu0 0
        %2004 = vmatmul.mubr.bf16.gmra.mxu0 %v1788
        %v2005 = vpop.f32.mrf.mxu0
        %v2006 = vadd.f32 %v1794, %v2005
        %v2007 = vpop.f32.mrf.mxu0
        %v2008 = vadd.f32 %v1798, %v2007
        %v2009 = vpop.f32.mrf.mxu0
        %v2010 = vadd.f32 %v1794, %v2009
        %v2011 = vpop.f32.mrf.mxu0
        %v2012 = vadd.f32 %v1798, %v2011
        %2013 = vdwg.mxu0
        %2014 = vmatprep.subr.bf16.mxu0 %v1938
        %2015 = vmatpush1.bf16.msra.mxu0 %v1937
        %2016 = vmatprep.subr.bf16.mxu0 %v1934
        %2017 = vmatpush1.bf16.msra.mxu0 %v1933
        %2018 = vmatprep.subr.bf16.mxu0 %v1930
        %2019 = vmatpush1.bf16.msra.mxu0 %v1929
        %2020 = vmatprep.subr.bf16.mxu0 %v1926
        %2021 = vmatpush1.bf16.msra.mxu0 %v1925
        %2022 = vmatprep.subr.bf16.mxu0 %v1922
        %2023 = vmatpush1.bf16.msra.mxu0 %v1921
        %2024 = vmatprep.subr.bf16.mxu0 %v1918
        %2025 = vmatpush1.bf16.msra.mxu0 %v1917
        %2026 = vmatprep.subr.bf16.mxu0 %v1914
        %2027 = vmatpush1.bf16.msra.mxu0 %v1913
        %2028 = vmatprep.subr.bf16.mxu0 %v1910
        %2029 = vmatpush1.bf16.msra.mxu0 %v1909
        %2030 = vmatprep.subr.bf16.mxu0 0
        %2031 = vmatpush2.bf16.msra.mxu0 0
        %2032 = vmatprep.subr.bf16.mxu0 0
        %2033 = vmatpush2.bf16.msra.mxu0 0
        %2034 = vmatprep.subr.bf16.mxu0 0
        %2035 = vmatpush2.bf16.msra.mxu0 0
        %2036 = vmatprep.subr.bf16.mxu0 0
        %2037 = vmatpush2.bf16.msra.mxu0 0
        %2038 = vmatprep.subr.bf16.mxu0 0
        %2039 = vmatpush2.bf16.msra.mxu0 0
        %2040 = vmatprep.subr.bf16.mxu0 0
        %2041 = vmatpush2.bf16.msra.mxu0 0
        %2042 = vmatprep.subr.bf16.mxu0 0
        %2043 = vmatpush2.bf16.msra.mxu0 0
        %2044 = vmatprep.subr.bf16.mxu0 0
        %2045 = vmatpush2.bf16.msra.mxu0 0
        %2046 = vmatprep.mubr.bf16.mxu0 0
        %2047 = vmatmul.mubr.bf16.gmra.mxu0 %v1788
        %v2048 = vpop.f32.mrf.mxu0
        %v2049 = vadd.f32 %v1802, %v2048
        %v2050 = vpop.f32.mrf.mxu0
        %v2051 = vadd.f32 %v1806, %v2050
        %v2052 = vpop.f32.mrf.mxu0
        %v2053 = vadd.f32 %v1802, %v2052
        %v2054 = vpop.f32.mrf.mxu0
        %v2055 = vadd.f32 %v1806, %v2054
        %2056 = vdwg.mxu0
        %v2057 = vmax.f32 %v2006, 0.0
        %v2058 = vmax.f32 %v2008, 0.0
        %v2059 = vmax.f32 %v2049, 0.0
        %v2060 = vmax.f32 %v2051, 0.0
        %v2061 = vmax.f32 %v2010, 0.0
        %v2062 = vmax.f32 %v2012, 0.0
        %v2063 = vmax.f32 %v2053, 0.0
        %v2064 = vmax.f32 %v2055, 0.0
        %v2065 = vld [vmem:[%s655] sm:$0xf]
        %v2066 = vld [vmem:[%s655 + $0x4] sm:$0xf]
        %v2067 = vld [vmem:[%s655 + $0x8] sm:$0xf]
        %v2068 = vld [vmem:[%s655 + $0xc] sm:$0xf]
        %v2069 = vld [vmem:[%s655 + $0x10] sm:$0xf]
        %v2070 = vld [vmem:[%s655 + $0x14] sm:$0xf]
        %v2071 = vld [vmem:[%s655 + $0x18] sm:$0xf]
        %v2072 = vld [vmem:[%s655 + $0x1c] sm:$0xf]
        %v2073 = vld [vmem:[%s655 + $0x20] sm:$0xf]
        %v2074 = vld [vmem:[%s655 + $0x24] sm:$0xf]
        %v2075 = vld [vmem:[%s655 + $0x28] sm:$0xf]
        %v2076 = vld [vmem:[%s655 + $0x2c] sm:$0xf]
        %v2077 = vld [vmem:[%s655 + $0x30] sm:$0xf]
        %v2078 = vld [vmem:[%s655 + $0x34] sm:$0xf]
        %v2079 = vld [vmem:[%s655 + $0x38] sm:$0xf]
        %v2080 = vld [vmem:[%s655 + $0x3c] sm:$0xf]
        %v2081 = vld [vmem:[%s655 + $0x40] sm:$0xf]
        %v2082 = vld [vmem:[%s655 + $0x44] sm:$0xf]
        %v2083 = vld [vmem:[%s655 + $0x48] sm:$0xf]
        %v2084 = vld [vmem:[%s655 + $0x4c] sm:$0xf]
        %v2085 = vld [vmem:[%s655 + $0x50] sm:$0xf]
        %v2086 = vld [vmem:[%s655 + $0x54] sm:$0xf]
        %v2087 = vld [vmem:[%s655 + $0x58] sm:$0xf]
        %v2088 = vld [vmem:[%s655 + $0x5c] sm:$0xf]
        %v2089 = vld [vmem:[%s655 + $0x60] sm:$0xf]
        %v2090 = vld [vmem:[%s655 + $0x64] sm:$0xf]
        %v2091 = vld [vmem:[%s655 + $0x68] sm:$0xf]
        %v2092 = vld [vmem:[%s655 + $0x6c] sm:$0xf]
        %v2093 = vld [vmem:[%s655 + $0x70] sm:$0xf]
        %v2094 = vld [vmem:[%s655 + $0x74] sm:$0xf]
        %v2095 = vld [vmem:[%s655 + $0x78] sm:$0xf]
        %v2096 = vld [vmem:[%s655 + $0x7c] sm:$0xf]
        %v2097 = vld [vmem:[%s655 + $0x80] sm:$0xf]
        %v2098 = vld [vmem:[%s655 + $0x84] sm:$0xf]
        %v2099 = vld [vmem:[%s655 + $0x88] sm:$0xf]
        %v2100 = vld [vmem:[%s655 + $0x8c] sm:$0xf]
        %v2101 = vld [vmem:[%s655 + $0x90] sm:$0xf]
        %v2102 = vld [vmem:[%s655 + $0x94] sm:$0xf]
        %v2103 = vld [vmem:[%s655 + $0x98] sm:$0xf]
        %v2104 = vld [vmem:[%s655 + $0x9c] sm:$0xf]
        %v2105 = vld [vmem:[%s655 + $0xa0] sm:$0xf]
        %v2106 = vld [vmem:[%s655 + $0xa4] sm:$0xf]
        %v2107 = vld [vmem:[%s655 + $0xa8] sm:$0xf]
        %v2108 = vld [vmem:[%s655 + $0xac] sm:$0xf]
        %v2109 = vld [vmem:[%s655 + $0xb0] sm:$0xf]
        %v2110 = vld [vmem:[%s655 + $0xb4] sm:$0xf]
        %v2111 = vld [vmem:[%s655 + $0xb8] sm:$0xf]
        %v2112 = vld [vmem:[%s655 + $0xbc] sm:$0xf]
        %v2113 = vld [vmem:[%s655 + $0xc0] sm:$0xf]
        %v2114 = vld [vmem:[%s655 + $0xc4] sm:$0xf]
        %v2115 = vld [vmem:[%s655 + $0xc8] sm:$0xf]
        %v2116 = vld [vmem:[%s655 + $0xcc] sm:$0xf]
        %v2117 = vld [vmem:[%s655 + $0xd0] sm:$0xf]
        %v2118 = vld [vmem:[%s655 + $0xd4] sm:$0xf]
        %v2119 = vld [vmem:[%s655 + $0xd8] sm:$0xf]
        %v2120 = vld [vmem:[%s655 + $0xdc] sm:$0xf]
        %v2121 = vld [vmem:[%s655 + $0xe0] sm:$0xf]
        %v2122 = vld [vmem:[%s655 + $0xe4] sm:$0xf]
        %v2123 = vld [vmem:[%s655 + $0xe8] sm:$0xf]
        %v2124 = vld [vmem:[%s655 + $0xec] sm:$0xf]
        %v2125 = vld [vmem:[%s655 + $0xf0] sm:$0xf]
        %v2126 = vld [vmem:[%s655 + $0xf4] sm:$0xf]
        %v2127 = vld [vmem:[%s655 + $0xf8] sm:$0xf]
        %v2128 = vld [vmem:[%s655 + $0xfc] sm:$0xf]
        %v2129 = vpack.c.bf16 %v2061, %v2057
        %v2130 = vpack.c.bf16 %v2062, %v2058
        %v2131 = vpack.c.bf16 %v2063, %v2059
        %v2132 = vpack.c.bf16 %v2064, %v2060
        %v2133 = vld [vmem:[%s663] sm:$0x1]
        %v2135 = vlaneseq
        %v2136 = vshrl.u32 %v2135, 7
        %v2137 = vsub.s32 0, %v2136
        %v2138 = vrot.slane %v2133, %v2137
        %v2204 = vunpack.c.l.b16 %v2065
        %v2205 = vunpack.c.l.b16 %v2066
        %v2206 = vunpack.c.l.b16 %v2067
        %v2207 = vunpack.c.l.b16 %v2068
        %v2208 = vunpack.c.l.b16 %v2069
        %v2209 = vunpack.c.l.b16 %v2070
        %v2210 = vunpack.c.l.b16 %v2071
        %v2211 = vunpack.c.l.b16 %v2072
        %v2212 = vunpack.c.l.b16 %v2073
        %v2213 = vunpack.c.l.b16 %v2074
        %v2214 = vunpack.c.l.b16 %v2075
        %v2215 = vunpack.c.l.b16 %v2076
        %v2216 = vunpack.c.l.b16 %v2077
        %v2217 = vunpack.c.l.b16 %v2078
        %v2218 = vunpack.c.l.b16 %v2079
        %v2219 = vunpack.c.l.b16 %v2080
        %v2220 = vunpack.c.l.b16 %v2081
        %v2221 = vunpack.c.l.b16 %v2082
        %v2222 = vunpack.c.l.b16 %v2083
        %v2223 = vunpack.c.l.b16 %v2084
        %v2224 = vunpack.c.l.b16 %v2085
        %v2225 = vunpack.c.l.b16 %v2086
        %v2226 = vunpack.c.l.b16 %v2087
        %v2227 = vunpack.c.l.b16 %v2088
        %v2228 = vunpack.c.l.b16 %v2089
        %v2229 = vunpack.c.l.b16 %v2090
        %v2230 = vunpack.c.l.b16 %v2091
        %v2231 = vunpack.c.l.b16 %v2092
        %v2232 = vunpack.c.l.b16 %v2093
        %v2233 = vunpack.c.l.b16 %v2094
        %v2234 = vunpack.c.l.b16 %v2095
        %v2235 = vunpack.c.l.b16 %v2096
        %v2236 = vunpack.c.l.b16 %v2097
        %v2237 = vunpack.c.l.b16 %v2098
        %v2238 = vunpack.c.l.b16 %v2099
        %v2239 = vunpack.c.l.b16 %v2100
        %v2240 = vunpack.c.l.b16 %v2101
        %v2241 = vunpack.c.l.b16 %v2102
        %v2242 = vunpack.c.l.b16 %v2103
        %v2243 = vunpack.c.l.b16 %v2104
        %v2244 = vunpack.c.l.b16 %v2105
        %v2245 = vunpack.c.l.b16 %v2106
        %v2246 = vunpack.c.l.b16 %v2107
        %v2247 = vunpack.c.l.b16 %v2108
        %v2248 = vunpack.c.l.b16 %v2109
        %v2249 = vunpack.c.l.b16 %v2110
        %v2250 = vunpack.c.l.b16 %v2111
        %v2251 = vunpack.c.l.b16 %v2112
        %v2252 = vunpack.c.l.b16 %v2113
        %v2253 = vunpack.c.l.b16 %v2114
        %v2254 = vunpack.c.l.b16 %v2115
        %v2255 = vunpack.c.l.b16 %v2116
        %v2256 = vunpack.c.l.b16 %v2117
        %v2257 = vunpack.c.l.b16 %v2118
        %v2258 = vunpack.c.l.b16 %v2119
        %v2259 = vunpack.c.l.b16 %v2120
        %v2260 = vunpack.c.l.b16 %v2121
        %v2261 = vunpack.c.l.b16 %v2122
        %v2262 = vunpack.c.l.b16 %v2123
        %v2263 = vunpack.c.l.b16 %v2124
        %v2264 = vunpack.c.l.b16 %v2125
        %v2265 = vunpack.c.l.b16 %v2126
        %v2266 = vunpack.c.l.b16 %v2127
        %v2267 = vunpack.c.l.b16 %v2128
        %v2268 = vpack.c.b16 %v2205, %v2204
        %v2269 = vpack.c.b16 %v2207, %v2206
        %v2270 = vpack.c.b16 %v2209, %v2208
        %v2271 = vpack.c.b16 %v2211, %v2210
        %v2272 = vpack.c.b16 %v2213, %v2212
        %v2273 = vpack.c.b16 %v2215, %v2214
        %v2274 = vpack.c.b16 %v2217, %v2216
        %v2275 = vpack.c.b16 %v2219, %v2218
        %v2276 = vpack.c.b16 %v2221, %v2220
        %v2277 = vpack.c.b16 %v2223, %v2222
        %v2278 = vpack.c.b16 %v2225, %v2224
        %v2279 = vpack.c.b16 %v2227, %v2226
        %v2280 = vpack.c.b16 %v2229, %v2228
        %v2281 = vpack.c.b16 %v2231, %v2230
        %v2282 = vpack.c.b16 %v2233, %v2232
        %v2283 = vpack.c.b16 %v2235, %v2234
        %v2284 = vpack.c.b16 %v2237, %v2236
        %v2285 = vpack.c.b16 %v2239, %v2238
        %v2286 = vpack.c.b16 %v2241, %v2240
        %v2287 = vpack.c.b16 %v2243, %v2242
        %v2288 = vpack.c.b16 %v2245, %v2244
        %v2289 = vpack.c.b16 %v2247, %v2246
        %v2290 = vpack.c.b16 %v2249, %v2248
        %v2291 = vpack.c.b16 %v2251, %v2250
        %v2292 = vpack.c.b16 %v2253, %v2252
        %v2293 = vpack.c.b16 %v2255, %v2254
        %v2294 = vpack.c.b16 %v2257, %v2256
        %v2295 = vpack.c.b16 %v2259, %v2258
        %v2296 = vpack.c.b16 %v2261, %v2260
        %v2297 = vpack.c.b16 %v2263, %v2262
        %v2298 = vpack.c.b16 %v2265, %v2264
        %v2299 = vpack.c.b16 %v2267, %v2266
        %2332 = vmatprep.subr.bf16.mxu0 0
        %2333 = vmatpush1.bf16.msra.mxu0 %v2275
        %2334 = vmatprep.subr.bf16.mxu0 0
        %2335 = vmatpush1.bf16.msra.mxu0 %v2274
        %2336 = vmatprep.subr.bf16.mxu0 0
        %2337 = vmatpush1.bf16.msra.mxu0 %v2273
        %2338 = vmatprep.subr.bf16.mxu0 0
        %2339 = vmatpush1.bf16.msra.mxu0 %v2272
        %2340 = vmatprep.subr.bf16.mxu0 0
        %2341 = vmatpush1.bf16.msra.mxu0 %v2271
        %2342 = vmatprep.subr.bf16.mxu0 0
        %2343 = vmatpush1.bf16.msra.mxu0 %v2270
        %2344 = vmatprep.subr.bf16.mxu0 0
        %2345 = vmatpush1.bf16.msra.mxu0 %v2269
        %2346 = vmatprep.subr.bf16.mxu0 0
        %2347 = vmatpush1.bf16.msra.mxu0 %v2268
        %2348 = vmatprep.subr.bf16.mxu0 0
        %2349 = vmatpush2.bf16.msra.mxu0 %v2283
        %2350 = vmatprep.subr.bf16.mxu0 0
        %2351 = vmatpush2.bf16.msra.mxu0 %v2282
        %2352 = vmatprep.subr.bf16.mxu0 0
        %2353 = vmatpush2.bf16.msra.mxu0 %v2281
        %2354 = vmatprep.subr.bf16.mxu0 0
        %2355 = vmatpush2.bf16.msra.mxu0 %v2280
        %2356 = vmatprep.subr.bf16.mxu0 0
        %2357 = vmatpush2.bf16.msra.mxu0 %v2279
        %2358 = vmatprep.subr.bf16.mxu0 0
        %2359 = vmatpush2.bf16.msra.mxu0 %v2278
        %2360 = vmatprep.subr.bf16.mxu0 0
        %2361 = vmatpush2.bf16.msra.mxu0 %v2277
        %2362 = vmatprep.subr.bf16.mxu0 0
        %2363 = vmatpush2.bf16.msra.mxu0 %v2276
        %2364 = vmatprep.mubr.bf16.mxu0 %v2130
        %2365 = vmatmul.mubr.bf16.gmra.mxu0 %v2129
        %v2366 = vpop.f32.mrf.mxu0
        %v2367 = vadd.f32 %v2138, %v2366
        %v2368 = vpop.f32.mrf.mxu0
        %v2369 = vpop.f32.mrf.mxu0
        %v2370 = vadd.f32 %v2138, %v2369
        %v2371 = vpop.f32.mrf.mxu0
        %2372 = vdwg.mxu0
        %2373 = vmatprep.subr.bf16.mxu0 0
        %2374 = vmatpush1.bf16.msra.mxu0 %v2291
        %2375 = vmatprep.subr.bf16.mxu0 0
        %2376 = vmatpush1.bf16.msra.mxu0 %v2290
        %2377 = vmatprep.subr.bf16.mxu0 0
        %2378 = vmatpush1.bf16.msra.mxu0 %v2289
        %2379 = vmatprep.subr.bf16.mxu0 0
        %2380 = vmatpush1.bf16.msra.mxu0 %v2288
        %2381 = vmatprep.subr.bf16.mxu0 0
        %2382 = vmatpush1.bf16.msra.mxu0 %v2287
        %2383 = vmatprep.subr.bf16.mxu0 0
        %2384 = vmatpush1.bf16.msra.mxu0 %v2286
        %2385 = vmatprep.subr.bf16.mxu0 0
        %2386 = vmatpush1.bf16.msra.mxu0 %v2285
        %2387 = vmatprep.subr.bf16.mxu0 0
        %2388 = vmatpush1.bf16.msra.mxu0 %v2284
        %2389 = vmatprep.subr.bf16.mxu0 0
        %2390 = vmatpush2.bf16.msra.mxu0 %v2299
        %2391 = vmatprep.subr.bf16.mxu0 0
        %2392 = vmatpush2.bf16.msra.mxu0 %v2298
        %2393 = vmatprep.subr.bf16.mxu0 0
        %2394 = vmatpush2.bf16.msra.mxu0 %v2297
        %2395 = vmatprep.subr.bf16.mxu0 0
        %2396 = vmatpush2.bf16.msra.mxu0 %v2296
        %2397 = vmatprep.subr.bf16.mxu0 0
        %2398 = vmatpush2.bf16.msra.mxu0 %v2295
        %2399 = vmatprep.subr.bf16.mxu0 0
        %2400 = vmatpush2.bf16.msra.mxu0 %v2294
        %2401 = vmatprep.subr.bf16.mxu0 0
        %2402 = vmatpush2.bf16.msra.mxu0 %v2293
        %2403 = vmatprep.subr.bf16.mxu0 0
        %2404 = vmatpush2.bf16.msra.mxu0 %v2292
        %2405 = vmatprep.mubr.bf16.mxu0 %v2132
        %2406 = vmatmul.mubr.bf16.gmra.mxu0 %v2131
        %v2407 = vpop.f32.mrf.mxu0
        %v2408 = vadd.f32 %v2367, %v2407
        %v2409 = vpop.f32.mrf.mxu0
        %v2410 = vpop.f32.mrf.mxu0
        %v2411 = vadd.f32 %v2370, %v2410
        %v2412 = vpop.f32.mrf.mxu0
        %2413 = vdwg.mxu0
        %v2414 = vadd.f32 %v1754, %v2408
        %v2415 = vadd.f32 %v1755, %v2411
        %v2416 = vld [vmem:[%s671] sm:$0x1]
        %v2417 = vld [vmem:[%s679] sm:$0x1]
        %2418 = vadd.xlane.f32.xlu0 %v2414
        %v2419 = vpop.xlane.xlu0 %2418
        %2420 = vadd.xlane.f32.xlu0 %v2415
        %v2421 = vpop.xlane.xlu0 %2420
        %v2422 = vmul.f32 %v2419, %v1721
        %v2423 = vmul.f32 %v2421, %v1721
        %v2424 = vsub.f32 %v2414, %v2422
        %v2425 = vsub.f32 %v2415, %v2423
        %v2426 = vmul.f32 %v2424, %v2424
        %v2427 = vmul.f32 %v2425, %v2425
        %2428 = vadd.xlane.f32.xlu0 %v2426
        %v2429 = vpop.xlane.xlu0 %2428
        %2430 = vadd.xlane.f32.xlu0 %v2427
        %v2431 = vpop.xlane.xlu0 %2430
        %v2432 = vmul.f32 %v2429, %v1721
        %v2433 = vmul.f32 %v2431, %v1721
        %v2434 = vadd.f32 %v2432, 1e-05
        %v2435 = vadd.f32 %v2433, 1e-05
        %v2436 = vrsqrt.pop %v2434
        %v2437 = vrsqrt.pop %v2435
        %v2438 = vmul.f32 %v2424, %v2436
        %v2439 = vmul.f32 %v2425, %v2437
        %v2441 = vlaneseq
        %v2442 = vshrl.u32 %v2441, 7
        %v2443 = vsub.s32 0, %v2442
        %v2444 = vrot.slane %v2416, %v2443
        %v2446 = vmul.f32 %v2438, %v2444
        %v2447 = vmul.f32 %v2439, %v2444
        %v2449 = vlaneseq
        %v2450 = vshrl.u32 %v2449, 7
        %v2451 = vsub.s32 0, %v2450
        %v2452 = vrot.slane %v2417, %v2451
        %v2454 = vadd.f32 %v2446, %v2452
        %v2455 = vadd.f32 %v2447, %v2452
        %2456 = vst [vmem:[%s801] sm:$0xff] %v2454
        %2457 = vst [vmem:[%s801 + $0x8] sm:$0xff] %v2455
        %p2458 = scmp.lt.s32.totalorder %s43, 1
        %s2459 = scalar_select %p2458, %s43, 1
        %s2460 = smul.addr %s2459, 2
        %s2461 = smul.addr %s2460, 8
        %s2462 = scalar_lea.vmem %s13, %s2461
        // Predicated region
        $region109: #{beatmap_transformer_forward.5} parent=71 // pred_check
          %p2463 = pneg %p407
        $region110: #{beatmap_transformer_forward.5} parent=71 // pred_check_branch
          %2465 = sbr.rel (%p2463) target = $region112
        $region111: #{beatmap_transformer_forward.5} parent=71 // pred_region
          _
        $region112: #{beatmap_transformer_forward.5} parent=71 // pred_fallthru
          _
      $region72: #{beatmap_transformer_forward.5} parent=5 // pred_fallthru
        _
      %p2466 = scmp.le.s32.totalorder 2, %s34
      // Predicated region
      $region113: #{beatmap_transformer_forward.5} parent=5 // pred_check
        %p2467 = pneg %p2466
      $region114: #{beatmap_transformer_forward.5} parent=5 // pred_check_branch
        %2469 = sbr.rel (%p2467) target = $region116
      $region115: #{beatmap_transformer_forward.5} parent=5 // pred_region
        %s2470 = ssub.s32 %s34, 2
        // Predicated region
        $region117: #{beatmap_transformer_forward.5} parent=115 // pred_check
          %p2471 = pneg %p413
        $region118: #{beatmap_transformer_forward.5} parent=115 // pred_check_branch
          %2473 = sbr.rel (%p2471) target = $region120
        $region119: #{beatmap_transformer_forward.5} parent=115 // pred_region
          %p2474 = scmp.lt.s32.totalorder %s45, 1
          %s2475 = scalar_select %p2474, %s45, 1
          %s2476 = smul.addr %s2475, 2
          %s2477 = smul.addr %s2476, 8
          %s2478 = scalar_lea.vmem %s13, %s2477
        $region120: #{beatmap_transformer_forward.5} parent=115 // pred_fallthru
          _
      $region116: #{beatmap_transformer_forward.5} parent=5 // pred_fallthru
        _
    $region6: #{beatmap_transformer_forward.5} parent=1 // loop_footer
      %s38 = sadd.s32 1, %s34
    $region7: #{beatmap_transformer_forward.5} parent=1 // loop_footer_branch
      %33 = sbr.rel target = $region3
    $region8: #{beatmap_transformer_forward.5} parent=1 // loop_exit
      _
    %2479 = vsyncpa [#allocation3], 1
    %s2480 = scalar_lea.sflag [#allocation3], 1
    %2481 = vsyncpa %s2480, 1
    %2482 = vsyncpa [#allocation5], 1
    %s2483 = scalar_lea.sflag [#allocation5], 1
    %2484 = vsyncpa %s2483, 1
    %2485 = vsyncpa [#allocation8], 1
    %s2486 = scalar_lea.sflag [#allocation8], 1
    %2487 = vsyncpa %s2486, 1
    %2488 = vsyncpa [#allocation11], 1
    %s2489 = scalar_lea.sflag [#allocation11], 1
    %2490 = vsyncpa %s2489, 1
    %2491 = vsyncpa [#allocation14], 1
    %s2492 = scalar_lea.sflag [#allocation14], 1
    %2493 = vsyncpa %s2492, 1

// kernel: beatmap_transformer_forward.6
$region0: #{beatmap_transformer_forward.6}
  #allocation0 [shape = 'u32[]', space=smem, size = 0x4, offset = 0x4, fixed_abs, tag = 'smem constant byte address 0x4 - core index']
  #allocation1 [shape = 'u32[144,128]{1,0:T(1,128)}', space=vmem, size = 0x12000, scoped, tag = 'internal scratch']
  %s0 = inlined_call_operand.vmem [shape: f32[2,8,128], index: 0, kind: input, shape index: {}]
  %s1 = inlined_call_operand.vmem [shape: f32[2,16,128], index: 1, kind: input, shape index: {}]
  %s2 = inlined_call_operand.vmem [shape: bf16[2,128,384], index: 2, kind: input, shape index: {}]
  %s3 = inlined_call_operand.vmem [shape: f32[2,1,384], index: 3, kind: input, shape index: {}]
  %s4 = inlined_call_operand.vmem [shape: bf16[2,128,128], index: 4, kind: input, shape index: {}]
  %s5 = inlined_call_operand.vmem [shape: f32[2,1,128], index: 5, kind: input, shape index: {}]
  %s6 = inlined_call_operand.vmem [shape: f32[2,1,128], index: 6, kind: input, shape index: {}]
  %s7 = inlined_call_operand.vmem [shape: f32[2,1,128], index: 7, kind: input, shape index: {}]
  %s8 = inlined_call_operand.hbm [shape: bf16[2,128,128], index: 8, kind: input, shape index: {}]
  %s9 = inlined_call_operand.vmem [shape: f32[2,1,128], index: 9, kind: input, shape index: {}]
  %s10 = inlined_call_operand.hbm [shape: bf16[2,128,256], index: 10, kind: input, shape index: {}]
  %s11 = inlined_call_operand.vmem [shape: f32[2,1,256], index: 11, kind: input, shape index: {}]
  %s12 = inlined_call_operand.hbm [shape: bf16[2,128,128], index: 12, kind: input, shape index: {}]
  %s13 = inlined_call_operand.vmem [shape: f32[2,1,128], index: 13, kind: input, shape index: {}]
  %s14 = inlined_call_operand.vmem [shape: f32[2,1,128], index: 14, kind: input, shape index: {}]
  %s15 = inlined_call_operand.vmem [shape: f32[2,1,128], index: 15, kind: input, shape index: {}]
  %s16 = inlined_call_operand.vmem [shape: bf16[2,128,512], index: 16, kind: input, shape index: {}]
  %s17 = inlined_call_operand.vmem [shape: f32[2,1,512], index: 17, kind: input, shape index: {}]
  %s18 = inlined_call_operand.vmem [shape: bf16[2,512,128], index: 18, kind: input, shape index: {}]
  %s19 = inlined_call_operand.vmem [shape: f32[2,1,128], index: 19, kind: input, shape index: {}]
  %s20 = inlined_call_operand.vmem [shape: f32[2,1,128], index: 20, kind: input, shape index: {}]
  %s21 = inlined_call_operand.vmem [shape: f32[2,1,128], index: 21, kind: input, shape index: {}]
  %s22 = inlined_call_operand.vmem [shape: f32[2,8,128], index: 22, kind: output, shape index: {}]
  %s23 = sld [smem:[#allocation0]]
  $region137: #{beatmap_transformer_forward.6} parent=0
    _
  %s25 = ssub.s32 1, %s23
  %s26 = scalar_select 0, %s25, %s23
  $region1: #{beatmap_transformer_forward.6} parent=0
    #allocation2 [shape = 'u8[65536]{0}', space=vmem, size = 0x10000, scoped, tag = 'input window, operand 8']
    #allocation3 [shape = 's32[2]{0}', space=sflag, size = 0x8, scoped, tag = 'scoped memory for beatmap_transformer_forward.6']
    #allocation4 [shape = 'u8[131072]{0}', space=vmem, size = 0x20000, scoped, tag = 'input window, operand 10']
    #allocation5 [shape = 's32[2]{0}', space=sflag, size = 0x8, scoped, tag = 'scoped memory for beatmap_transformer_forward.6']
    #allocation6 [shape = 'u8[65536]{0}', space=vmem, size = 0x10000, scoped, tag = 'input window, operand 12']
    %27 = vsyncpa [#allocation3], 0
    %s28 = scalar_lea.sflag [#allocation3], 1
    %29 = vsyncpa %s28, 0
    %30 = vsyncpa [#allocation5], 0
    %s31 = scalar_lea.sflag [#allocation5], 1
    %32 = vsyncpa %s31, 0
    loop: start=0, step=1, limit=6
    $region2: #{beatmap_transformer_forward.6} parent=1 // loop_pre_header
      _
    $region3: #{beatmap_transformer_forward.6} parent=1 // loop_header
      %s34 = sphi 0, %s38
      %p35 = scmp.ge.s32.totalorder %s34, 6
      %s41 = sphi 0, %s53
      %s42 = sphi 0, %s49
      %s43 = sphi 0, %s41
      %s44 = sphi 0, %s42
      %s45 = sphi 0, %s43
      %s46 = sphi 0, %s44
      %s56 = sphi 0, %s58
      %s59 = sphi 0, %s56
      %s60 = sphi 0, %s59
      %s76 = sphi 0, %s60
      %s82 = sphi 0, %s84
      %s85 = sphi 0, %s82
      %s86 = sphi 0, %s85
      %s102 = sphi 0, %s86
      %s108 = sphi 0, %s110
      %s111 = sphi 0, %s108
      %s112 = sphi 0, %s111
      %s128 = sphi 0, %s112
      %s134 = sphi 0, %s136
      %s137 = sphi 0, %s134
      %s138 = sphi 0, %s137
      %s154 = sphi 0, %s138
      %s160 = sphi 0, %s162
      %s163 = sphi 0, %s160
      %s164 = sphi 0, %s163
      %s180 = sphi 0, %s164
      %s186 = sphi 0, %s188
      %s189 = sphi 0, %s186
      %s190 = sphi 0, %s189
      %s206 = sphi 0, %s190
      %s212 = sphi 0, %s214
      %s215 = sphi 0, %s212
      %s216 = sphi 0, %s215
      %s232 = sphi 0, %s216
      %s238 = sphi 0, %s240
      %s241 = sphi 0, %s238
      %s242 = sphi 0, %s241
      %s258 = sphi 0, %s242
      %s264 = sphi 0, %s266
      %s267 = sphi 0, %s264
      %s268 = sphi 0, %s267
      %s284 = sphi 0, %s268
      %s290 = sphi 0, %s292
      %s293 = sphi 0, %s290
      %s294 = sphi 0, %s293
      %s310 = sphi 0, %s294
      %s316 = sphi 0, %s318
      %s319 = sphi 0, %s316
      %s320 = sphi 0, %s319
      %s336 = sphi 0, %s320
      %s342 = sphi 0, %s344
      %s345 = sphi 0, %s342
      %s346 = sphi 0, %s345
      %s362 = sphi 0, %s346
      %s368 = sphi 0, %s370
      %s371 = sphi 0, %s368
      %s372 = sphi 0, %s371
      %s388 = sphi 0, %s372
      %s394 = sphi 0, %s396
      %s397 = sphi 0, %s394
      %s398 = sphi 0, %s397
      %s414 = sphi 0, %s398
      %s420 = sphi 0, %s422
      %s423 = sphi 0, %s420
      %s424 = sphi 0, %s423
      %s440 = sphi 0, %s424
      %s446 = sphi 0, %s448
      %s449 = sphi 0, %s446
      %s450 = sphi 0, %s449
      %s466 = sphi 0, %s450
      %s472 = sphi 0, %s474
      %s475 = sphi 0, %s472
      %s476 = sphi 0, %s475
      %s492 = sphi 0, %s476
      %s498 = sphi 0, %s500
      %s501 = sphi 0, %s498
      %s502 = sphi 0, %s501
      %s518 = sphi 0, %s502
      %s524 = sphi 0, %s526
      %s527 = sphi 0, %s524
      %s528 = sphi 0, %s527
      %s544 = sphi 0, %s528
      %s550 = sphi 0, %s552
      %s553 = sphi 0, %s550
      %s554 = sphi 0, %s553
      %s570 = sphi 0, %s554
      %s576 = sphi 0, %s578
      %s579 = sphi 0, %s576
      %s580 = sphi 0, %s579
      %s596 = sphi 0, %s580
      %s602 = sphi 0, %s604
      %s605 = sphi 0, %s602
      %s606 = sphi 0, %s605
      %s622 = sphi 0, %s606
      %s628 = sphi 0, %s630
      %s631 = sphi 0, %s628
      %s632 = sphi 0, %s631
      %s648 = sphi 0, %s632
    $region4: #{beatmap_transformer_forward.6} parent=1 // loop_header_branch
      %37 = sbr.rel (%p35) target = $region8
    $region5: #{beatmap_transformer_forward.6} parent=1 // loop_body
      %s39 = ssub.s32 %s34, 1
      %s40 = ssub.s32 %s34, 2
      %s47 = sadd.s32 1, %s42
      %p48 = scmp.ge.s32.totalorder %s47, 2
      %s49 = scalar_select %p48, 0, %s47
      %s50 = sadd.s32 1, %s41
      %s51 = scalar_select %p48, %s50, %s41
      %p52 = scmp.ge.s32.totalorder %s51, 2
      %s53 = scalar_select %p52, 0, %s51
      %s54 = ssub.s32 %s41, %s53
      %p55 = scmp.eq.s32.totalorder %s54, 0
      %s57 = sadd.s32 %s56, 1
      %s58 = scalar_select %p55, %s56, %s57
      %p61 = pneg %p55
      %p62 = scmp.eq.s32.totalorder %s34, 3
      %p63 = por %p61, %p62
      %p64 = scmp.ne.s32.totalorder %s56, %s59
      %p65 = scmp.eq.s32.totalorder %s34, 0
      %p66 = por %p64, %p65
      %p67 = scmp.ne.s32.totalorder %s56, %s59
      %p68 = scmp.eq.s32.totalorder %s39, 3
      %p69 = por %p67, %p68
      %p70 = scmp.ne.s32.totalorder %s59, %s60
      %p71 = scmp.eq.s32.totalorder %s39, 0
      %p72 = por %p70, %p71
      %p73 = scmp.ne.s32.totalorder %s59, %s60
      %p74 = scmp.eq.s32.totalorder %s40, 3
      %p75 = por %p73, %p74
      %p77 = scmp.ne.s32.totalorder %s60, %s76
      %p78 = scmp.eq.s32.totalorder %s40, 0
      %p79 = por %p77, %p78
      %s80 = ssub.s32 %s41, %s53
      %p81 = scmp.eq.s32.totalorder %s80, 0
      %s83 = sadd.s32 %s82, 1
      %s84 = scalar_select %p81, %s82, %s83
      %p87 = pneg %p81
      %p88 = scmp.eq.s32.totalorder %s34, 3
      %p89 = por %p87, %p88
      %p90 = scmp.ne.s32.totalorder %s82, %s85
      %p91 = scmp.eq.s32.totalorder %s34, 0
      %p92 = por %p90, %p91
      %p93 = scmp.ne.s32.totalorder %s82, %s85
      %p94 = scmp.eq.s32.totalorder %s39, 3
      %p95 = por %p93, %p94
      %p96 = scmp.ne.s32.totalorder %s85, %s86
      %p97 = scmp.eq.s32.totalorder %s39, 0
      %p98 = por %p96, %p97
      %p99 = scmp.ne.s32.totalorder %s85, %s86
      %p100 = scmp.eq.s32.totalorder %s40, 3
      %p101 = por %p99, %p100
      %p103 = scmp.ne.s32.totalorder %s86, %s102
      %p104 = scmp.eq.s32.totalorder %s40, 0
      %p105 = por %p103, %p104
      %s106 = ssub.s32 %s42, %s49
      %p107 = scmp.eq.s32.totalorder %s106, 0
      %s109 = sadd.s32 %s108, 1
      %s110 = scalar_select %p107, %s108, %s109
      %p113 = pneg %p107
      %p114 = scmp.eq.s32.totalorder %s34, 3
      %p115 = por %p113, %p114
      %p116 = scmp.ne.s32.totalorder %s108, %s111
      %p117 = scmp.eq.s32.totalorder %s34, 0
      %p118 = por %p116, %p117
      %p119 = scmp.ne.s32.totalorder %s108, %s111
      %p120 = scmp.eq.s32.totalorder %s39, 3
      %p121 = por %p119, %p120
      %p122 = scmp.ne.s32.totalorder %s111, %s112
      %p123 = scmp.eq.s32.totalorder %s39, 0
      %p124 = por %p122, %p123
      %p125 = scmp.ne.s32.totalorder %s111, %s112
      %p126 = scmp.eq.s32.totalorder %s40, 3
      %p127 = por %p125, %p126
      %p129 = scmp.ne.s32.totalorder %s112, %s128
      %p130 = scmp.eq.s32.totalorder %s40, 0
      %p131 = por %p129, %p130
      %s132 = ssub.s32 %s42, %s49
      %p133 = scmp.eq.s32.totalorder %s132, 0
      %s135 = sadd.s32 %s134, 1
      %s136 = scalar_select %p133, %s134, %s135
      %p139 = pneg %p133
      %p140 = scmp.eq.s32.totalorder %s34, 3
      %p141 = por %p139, %p140
      %p142 = scmp.ne.s32.totalorder %s134, %s137
      %p143 = scmp.eq.s32.totalorder %s34, 0
      %p144 = por %p142, %p143
      %p145 = scmp.ne.s32.totalorder %s134, %s137
      %p146 = scmp.eq.s32.totalorder %s39, 3
      %p147 = por %p145, %p146
      %p148 = scmp.ne.s32.totalorder %s137, %s138
      %p149 = scmp.eq.s32.totalorder %s39, 0
      %p150 = por %p148, %p149
      %p151 = scmp.ne.s32.totalorder %s137, %s138
      %p152 = scmp.eq.s32.totalorder %s40, 3
      %p153 = por %p151, %p152
      %p155 = scmp.ne.s32.totalorder %s138, %s154
      %p156 = scmp.eq.s32.totalorder %s40, 0
      %p157 = por %p155, %p156
      %s158 = ssub.s32 %s42, %s49
      %p159 = scmp.eq.s32.totalorder %s158, 0
      %s161 = sadd.s32 %s160, 1
      %s162 = scalar_select %p159, %s160, %s161
      %p165 = pneg %p159
      %p166 = scmp.eq.s32.totalorder %s34, 3
      %p167 = por %p165, %p166
      %p168 = scmp.ne.s32.totalorder %s160, %s163
      %p169 = scmp.eq.s32.totalorder %s34, 0
      %p170 = por %p168, %p169
      %p171 = scmp.ne.s32.totalorder %s160, %s163
      %p172 = scmp.eq.s32.totalorder %s39, 3
      %p173 = por %p171, %p172
      %p174 = scmp.ne.s32.totalorder %s163, %s164
      %p175 = scmp.eq.s32.totalorder %s39, 0
      %p176 = por %p174, %p175
      %p177 = scmp.ne.s32.totalorder %s163, %s164
      %p178 = scmp.eq.s32.totalorder %s40, 3
      %p179 = por %p177, %p178
      %p181 = scmp.ne.s32.totalorder %s164, %s180
      %p182 = scmp.eq.s32.totalorder %s40, 0
      %p183 = por %p181, %p182
      %s184 = ssub.s32 %s42, %s49
      %p185 = scmp.eq.s32.totalorder %s184, 0
      %s187 = sadd.s32 %s186, 1
      %s188 = scalar_select %p185, %s186, %s187
      %p191 = pneg %p185
      %p192 = scmp.eq.s32.totalorder %s34, 3
      %p193 = por %p191, %p192
      %p194 = scmp.ne.s32.totalorder %s186, %s189
      %p195 = scmp.eq.s32.totalorder %s34, 0
      %p196 = por %p194, %p195
      %p197 = scmp.ne.s32.totalorder %s186, %s189
      %p198 = scmp.eq.s32.totalorder %s39, 3
      %p199 = por %p197, %p198
      %p200 = scmp.ne.s32.totalorder %s189, %s190
      %p201 = scmp.eq.s32.totalorder %s39, 0
      %p202 = por %p200, %p201
      %p203 = scmp.ne.s32.totalorder %s189, %s190
      %p204 = scmp.eq.s32.totalorder %s40, 3
      %p205 = por %p203, %p204
      %p207 = scmp.ne.s32.totalorder %s190, %s206
      %p208 = scmp.eq.s32.totalorder %s40, 0
      %p209 = por %p207, %p208
      %s210 = ssub.s32 %s42, %s49
      %p211 = scmp.eq.s32.totalorder %s210, 0
      %s213 = sadd.s32 %s212, 1
      %s214 = scalar_select %p211, %s212, %s213
      %p217 = pneg %p211
      %p218 = scmp.eq.s32.totalorder %s34, 3
      %p219 = por %p217, %p218
      %p220 = scmp.ne.s32.totalorder %s212, %s215
      %p221 = scmp.eq.s32.totalorder %s34, 0
      %p222 = por %p220, %p221
      %p223 = scmp.ne.s32.totalorder %s212, %s215
      %p224 = scmp.eq.s32.totalorder %s39, 3
      %p225 = por %p223, %p224
      %p226 = scmp.ne.s32.totalorder %s215, %s216
      %p227 = scmp.eq.s32.totalorder %s39, 0
      %p228 = por %p226, %p227
      %p229 = scmp.ne.s32.totalorder %s215, %s216
      %p230 = scmp.eq.s32.totalorder %s40, 3
      %p231 = por %p229, %p230
      %p233 = scmp.ne.s32.totalorder %s216, %s232
      %p234 = scmp.eq.s32.totalorder %s40, 0
      %p235 = por %p233, %p234
      %s236 = ssub.s32 %s42, %s49
      %p237 = scmp.eq.s32.totalorder %s236, 0
      %s239 = sadd.s32 %s238, 1
      %s240 = scalar_select %p237, %s238, %s239
      %p243 = pneg %p237
      %p244 = scmp.eq.s32.totalorder %s34, 3
      %p245 = por %p243, %p244
      %p246 = scmp.ne.s32.totalorder %s238, %s241
      %p247 = scmp.eq.s32.totalorder %s34, 0
      %p248 = por %p246, %p247
      %p249 = scmp.ne.s32.totalorder %s238, %s241
      %p250 = scmp.eq.s32.totalorder %s39, 3
      %p251 = por %p249, %p250
      %p252 = scmp.ne.s32.totalorder %s241, %s242
      %p253 = scmp.eq.s32.totalorder %s39, 0
      %p254 = por %p252, %p253
      %p255 = scmp.ne.s32.totalorder %s241, %s242
      %p256 = scmp.eq.s32.totalorder %s40, 3
      %p257 = por %p255, %p256
      %p259 = scmp.ne.s32.totalorder %s242, %s258
      %p260 = scmp.eq.s32.totalorder %s40, 0
      %p261 = por %p259, %p260
      %s262 = ssub.s32 %s42, %s49
      %p263 = scmp.eq.s32.totalorder %s262, 0
      %s265 = sadd.s32 %s264, 1
      %s266 = scalar_select %p263, %s264, %s265
      %p269 = pneg %p263
      %p270 = scmp.eq.s32.totalorder %s34, 3
      %p271 = por %p269, %p270
      %p272 = scmp.ne.s32.totalorder %s264, %s267
      %p273 = scmp.eq.s32.totalorder %s34, 0
      %p274 = por %p272, %p273
      %p275 = scmp.ne.s32.totalorder %s264, %s267
      %p276 = scmp.eq.s32.totalorder %s39, 3
      %p277 = por %p275, %p276
      %p278 = scmp.ne.s32.totalorder %s267, %s268
      %p279 = scmp.eq.s32.totalorder %s39, 0
      %p280 = por %p278, %p279
      %p281 = scmp.ne.s32.totalorder %s267, %s268
      %p282 = scmp.eq.s32.totalorder %s40, 3
      %p283 = por %p281, %p282
      %p285 = scmp.ne.s32.totalorder %s268, %s284
      %p286 = scmp.eq.s32.totalorder %s40, 0
      %p287 = por %p285, %p286
      %s288 = ssub.s32 %s42, %s49
      %p289 = scmp.eq.s32.totalorder %s288, 0
      %s291 = sadd.s32 %s290, 1
      %s292 = scalar_select %p289, %s290, %s291
      %p295 = pneg %p289
      %p296 = scmp.eq.s32.totalorder %s34, 3
      %p297 = por %p295, %p296
      %p298 = scmp.ne.s32.totalorder %s290, %s293
      %p299 = scmp.eq.s32.totalorder %s34, 0
      %p300 = por %p298, %p299
      %p301 = scmp.ne.s32.totalorder %s290, %s293
      %p302 = scmp.eq.s32.totalorder %s39, 3
      %p303 = por %p301, %p302
      %p304 = scmp.ne.s32.totalorder %s293, %s294
      %p305 = scmp.eq.s32.totalorder %s39, 0
      %p306 = por %p304, %p305
      %p307 = scmp.ne.s32.totalorder %s293, %s294
      %p308 = scmp.eq.s32.totalorder %s40, 3
      %p309 = por %p307, %p308
      %p311 = scmp.ne.s32.totalorder %s294, %s310
      %p312 = scmp.eq.s32.totalorder %s40, 0
      %p313 = por %p311, %p312
      %s314 = ssub.s32 %s42, %s49
      %p315 = scmp.eq.s32.totalorder %s314, 0
      %s317 = sadd.s32 %s316, 1
      %s318 = scalar_select %p315, %s316, %s317
      %p321 = pneg %p315
      %p322 = scmp.eq.s32.totalorder %s34, 3
      %p323 = por %p321, %p322
      %p324 = scmp.ne.s32.totalorder %s316, %s319
      %p325 = scmp.eq.s32.totalorder %s34, 0
      %p326 = por %p324, %p325
      %p327 = scmp.ne.s32.totalorder %s316, %s319
      %p328 = scmp.eq.s32.totalorder %s39, 3
      %p329 = por %p327, %p328
      %p330 = scmp.ne.s32.totalorder %s319, %s320
      %p331 = scmp.eq.s32.totalorder %s39, 0
      %p332 = por %p330, %p331
      %p333 = scmp.ne.s32.totalorder %s319, %s320
      %p334 = scmp.eq.s32.totalorder %s40, 3
      %p335 = por %p333, %p334
      %p337 = scmp.ne.s32.totalorder %s320, %s336
      %p338 = scmp.eq.s32.totalorder %s40, 0
      %p339 = por %p337, %p338
      %s340 = ssub.s32 %s42, %s49
      %p341 = scmp.eq.s32.totalorder %s340, 0
      %s343 = sadd.s32 %s342, 1
      %s344 = scalar_select %p341, %s342, %s343
      %p347 = pneg %p341
      %p348 = scmp.eq.s32.totalorder %s34, 3
      %p349 = por %p347, %p348
      %p350 = scmp.ne.s32.totalorder %s342, %s345
      %p351 = scmp.eq.s32.totalorder %s34, 0
      %p352 = por %p350, %p351
      %p353 = scmp.ne.s32.totalorder %s342, %s345
      %p354 = scmp.eq.s32.totalorder %s39, 3
      %p355 = por %p353, %p354
      %p356 = scmp.ne.s32.totalorder %s345, %s346
      %p357 = scmp.eq.s32.totalorder %s39, 0
      %p358 = por %p356, %p357
      %p359 = scmp.ne.s32.totalorder %s345, %s346
      %p360 = scmp.eq.s32.totalorder %s40, 3
      %p361 = por %p359, %p360
      %p363 = scmp.ne.s32.totalorder %s346, %s362
      %p364 = scmp.eq.s32.totalorder %s40, 0
      %p365 = por %p363, %p364
      %s366 = ssub.s32 %s42, %s49
      %p367 = scmp.eq.s32.totalorder %s366, 0
      %s369 = sadd.s32 %s368, 1
      %s370 = scalar_select %p367, %s368, %s369
      %p373 = pneg %p367
      %p374 = scmp.eq.s32.totalorder %s34, 3
      %p375 = por %p373, %p374
      %p376 = scmp.ne.s32.totalorder %s368, %s371
      %p377 = scmp.eq.s32.totalorder %s34, 0
      %p378 = por %p376, %p377
      %p379 = scmp.ne.s32.totalorder %s368, %s371
      %p380 = scmp.eq.s32.totalorder %s39, 3
      %p381 = por %p379, %p380
      %p382 = scmp.ne.s32.totalorder %s371, %s372
      %p383 = scmp.eq.s32.totalorder %s39, 0
      %p384 = por %p382, %p383
      %p385 = scmp.ne.s32.totalorder %s371, %s372
      %p386 = scmp.eq.s32.totalorder %s40, 3
      %p387 = por %p385, %p386
      %p389 = scmp.ne.s32.totalorder %s372, %s388
      %p390 = scmp.eq.s32.totalorder %s40, 0
      %p391 = por %p389, %p390
      %s392 = ssub.s32 %s42, %s49
      %p393 = scmp.eq.s32.totalorder %s392, 0
      %s395 = sadd.s32 %s394, 1
      %s396 = scalar_select %p393, %s394, %s395
      %p399 = pneg %p393
      %p400 = scmp.eq.s32.totalorder %s34, 3
      %p401 = por %p399, %p400
      %p402 = scmp.ne.s32.totalorder %s394, %s397
      %p403 = scmp.eq.s32.totalorder %s34, 0
      %p404 = por %p402, %p403
      %p405 = scmp.ne.s32.totalorder %s394, %s397
      %p406 = scmp.eq.s32.totalorder %s39, 3
      %p407 = por %p405, %p406
      %p408 = scmp.ne.s32.totalorder %s397, %s398
      %p409 = scmp.eq.s32.totalorder %s39, 0
      %p410 = por %p408, %p409
      %p411 = scmp.ne.s32.totalorder %s397, %s398
      %p412 = scmp.eq.s32.totalorder %s40, 3
      %p413 = por %p411, %p412
      %p415 = scmp.ne.s32.totalorder %s398, %s414
      %p416 = scmp.eq.s32.totalorder %s40, 0
      %p417 = por %p415, %p416
      %s418 = ssub.s32 %s42, %s49
      %p419 = scmp.eq.s32.totalorder %s418, 0
      %s421 = sadd.s32 %s420, 1
      %s422 = scalar_select %p419, %s420, %s421
      %p425 = pneg %p419
      %p426 = scmp.eq.s32.totalorder %s34, 3
      %p427 = por %p425, %p426
      %p428 = scmp.ne.s32.totalorder %s420, %s423
      %p429 = scmp.eq.s32.totalorder %s34, 0
      %p430 = por %p428, %p429
      %p431 = scmp.ne.s32.totalorder %s420, %s423
      %p432 = scmp.eq.s32.totalorder %s39, 3
      %p433 = por %p431, %p432
      %p434 = scmp.ne.s32.totalorder %s423, %s424
      %p435 = scmp.eq.s32.totalorder %s39, 0
      %p436 = por %p434, %p435
      %p437 = scmp.ne.s32.totalorder %s423, %s424
      %p438 = scmp.eq.s32.totalorder %s40, 3
      %p439 = por %p437, %p438
      %p441 = scmp.ne.s32.totalorder %s424, %s440
      %p442 = scmp.eq.s32.totalorder %s40, 0
      %p443 = por %p441, %p442
      %s444 = ssub.s32 %s42, %s49
      %p445 = scmp.eq.s32.totalorder %s444, 0
      %s447 = sadd.s32 %s446, 1
      %s448 = scalar_select %p445, %s446, %s447
      %p451 = pneg %p445
      %p452 = scmp.eq.s32.totalorder %s34, 3
      %p453 = por %p451, %p452
      %p454 = scmp.ne.s32.totalorder %s446, %s449
      %p455 = scmp.eq.s32.totalorder %s34, 0
      %p456 = por %p454, %p455
      %p457 = scmp.ne.s32.totalorder %s446, %s449
      %p458 = scmp.eq.s32.totalorder %s39, 3
      %p459 = por %p457, %p458
      %p460 = scmp.ne.s32.totalorder %s449, %s450
      %p461 = scmp.eq.s32.totalorder %s39, 0
      %p462 = por %p460, %p461
      %p463 = scmp.ne.s32.totalorder %s449, %s450
      %p464 = scmp.eq.s32.totalorder %s40, 3
      %p465 = por %p463, %p464
      %p467 = scmp.ne.s32.totalorder %s450, %s466
      %p468 = scmp.eq.s32.totalorder %s40, 0
      %p469 = por %p467, %p468
      %s470 = ssub.s32 %s42, %s49
      %p471 = scmp.eq.s32.totalorder %s470, 0
      %s473 = sadd.s32 %s472, 1
      %s474 = scalar_select %p471, %s472, %s473
      %p477 = pneg %p471
      %p478 = scmp.eq.s32.totalorder %s34, 3
      %p479 = por %p477, %p478
      %p480 = scmp.ne.s32.totalorder %s472, %s475
      %p481 = scmp.eq.s32.totalorder %s34, 0
      %p482 = por %p480, %p481
      %p483 = scmp.ne.s32.totalorder %s472, %s475
      %p484 = scmp.eq.s32.totalorder %s39, 3
      %p485 = por %p483, %p484
      %p486 = scmp.ne.s32.totalorder %s475, %s476
      %p487 = scmp.eq.s32.totalorder %s39, 0
      %p488 = por %p486, %p487
      %p489 = scmp.ne.s32.totalorder %s475, %s476
      %p490 = scmp.eq.s32.totalorder %s40, 3
      %p491 = por %p489, %p490
      %p493 = scmp.ne.s32.totalorder %s476, %s492
      %p494 = scmp.eq.s32.totalorder %s40, 0
      %p495 = por %p493, %p494
      %s496 = ssub.s32 %s42, %s49
      %p497 = scmp.eq.s32.totalorder %s496, 0
      %s499 = sadd.s32 %s498, 1
      %s500 = scalar_select %p497, %s498, %s499
      %p503 = pneg %p497
      %p504 = scmp.eq.s32.totalorder %s34, 3
      %p505 = por %p503, %p504
      %p506 = scmp.ne.s32.totalorder %s498, %s501
      %p507 = scmp.eq.s32.totalorder %s34, 0
      %p508 = por %p506, %p507
      %p509 = scmp.ne.s32.totalorder %s498, %s501
      %p510 = scmp.eq.s32.totalorder %s39, 3
      %p511 = por %p509, %p510
      %p512 = scmp.ne.s32.totalorder %s501, %s502
      %p513 = scmp.eq.s32.totalorder %s39, 0
      %p514 = por %p512, %p513
      %p515 = scmp.ne.s32.totalorder %s501, %s502
      %p516 = scmp.eq.s32.totalorder %s40, 3
      %p517 = por %p515, %p516
      %p519 = scmp.ne.s32.totalorder %s502, %s518
      %p520 = scmp.eq.s32.totalorder %s40, 0
      %p521 = por %p519, %p520
      %s522 = ssub.s32 %s42, %s49
      %p523 = scmp.eq.s32.totalorder %s522, 0
      %s525 = sadd.s32 %s524, 1
      %s526 = scalar_select %p523, %s524, %s525
      %p529 = pneg %p523
      %p530 = scmp.eq.s32.totalorder %s34, 3
      %p531 = por %p529, %p530
      %p532 = scmp.ne.s32.totalorder %s524, %s527
      %p533 = scmp.eq.s32.totalorder %s34, 0
      %p534 = por %p532, %p533
      %p535 = scmp.ne.s32.totalorder %s524, %s527
      %p536 = scmp.eq.s32.totalorder %s39, 3
      %p537 = por %p535, %p536
      %p538 = scmp.ne.s32.totalorder %s527, %s528
      %p539 = scmp.eq.s32.totalorder %s39, 0
      %p540 = por %p538, %p539
      %p541 = scmp.ne.s32.totalorder %s527, %s528
      %p542 = scmp.eq.s32.totalorder %s40, 3
      %p543 = por %p541, %p542
      %p545 = scmp.ne.s32.totalorder %s528, %s544
      %p546 = scmp.eq.s32.totalorder %s40, 0
      %p547 = por %p545, %p546
      %s548 = ssub.s32 %s42, %s49
      %p549 = scmp.eq.s32.totalorder %s548, 0
      %s551 = sadd.s32 %s550, 1
      %s552 = scalar_select %p549, %s550, %s551
      %p555 = pneg %p549
      %p556 = scmp.eq.s32.totalorder %s34, 3
      %p557 = por %p555, %p556
      %p558 = scmp.ne.s32.totalorder %s550, %s553
      %p559 = scmp.eq.s32.totalorder %s34, 0
      %p560 = por %p558, %p559
      %p561 = scmp.ne.s32.totalorder %s550, %s553
      %p562 = scmp.eq.s32.totalorder %s39, 3
      %p563 = por %p561, %p562
      %p564 = scmp.ne.s32.totalorder %s553, %s554
      %p565 = scmp.eq.s32.totalorder %s39, 0
      %p566 = por %p564, %p565
      %p567 = scmp.ne.s32.totalorder %s553, %s554
      %p568 = scmp.eq.s32.totalorder %s40, 3
      %p569 = por %p567, %p568
      %p571 = scmp.ne.s32.totalorder %s554, %s570
      %p572 = scmp.eq.s32.totalorder %s40, 0
      %p573 = por %p571, %p572
      %s574 = ssub.s32 %s42, %s49
      %p575 = scmp.eq.s32.totalorder %s574, 0
      %s577 = sadd.s32 %s576, 1
      %s578 = scalar_select %p575, %s576, %s577
      %p581 = pneg %p575
      %p582 = scmp.eq.s32.totalorder %s34, 3
      %p583 = por %p581, %p582
      %p584 = scmp.ne.s32.totalorder %s576, %s579
      %p585 = scmp.eq.s32.totalorder %s34, 0
      %p586 = por %p584, %p585
      %p587 = scmp.ne.s32.totalorder %s576, %s579
      %p588 = scmp.eq.s32.totalorder %s39, 3
      %p589 = por %p587, %p588
      %p590 = scmp.ne.s32.totalorder %s579, %s580
      %p591 = scmp.eq.s32.totalorder %s39, 0
      %p592 = por %p590, %p591
      %p593 = scmp.ne.s32.totalorder %s579, %s580
      %p594 = scmp.eq.s32.totalorder %s40, 3
      %p595 = por %p593, %p594
      %p597 = scmp.ne.s32.totalorder %s580, %s596
      %p598 = scmp.eq.s32.totalorder %s40, 0
      %p599 = por %p597, %p598
      %s600 = ssub.s32 %s42, %s49
      %p601 = scmp.eq.s32.totalorder %s600, 0
      %s603 = sadd.s32 %s602, 1
      %s604 = scalar_select %p601, %s602, %s603
      %p607 = pneg %p601
      %p608 = scmp.eq.s32.totalorder %s34, 3
      %p609 = por %p607, %p608
      %p610 = scmp.ne.s32.totalorder %s602, %s605
      %p611 = scmp.eq.s32.totalorder %s34, 0
      %p612 = por %p610, %p611
      %p613 = scmp.ne.s32.totalorder %s602, %s605
      %p614 = scmp.eq.s32.totalorder %s39, 3
      %p615 = por %p613, %p614
      %p616 = scmp.ne.s32.totalorder %s605, %s606
      %p617 = scmp.eq.s32.totalorder %s39, 0
      %p618 = por %p616, %p617
      %p619 = scmp.ne.s32.totalorder %s605, %s606
      %p620 = scmp.eq.s32.totalorder %s40, 3
      %p621 = por %p619, %p620
      %p623 = scmp.ne.s32.totalorder %s606, %s622
      %p624 = scmp.eq.s32.totalorder %s40, 0
      %p625 = por %p623, %p624
      %s626 = ssub.s32 %s41, %s53
      %p627 = scmp.eq.s32.totalorder %s626, 0
      %s629 = sadd.s32 %s628, 1
      %s630 = scalar_select %p627, %s628, %s629
      %p633 = pneg %p627
      %p634 = scmp.eq.s32.totalorder %s34, 3
      %p635 = por %p633, %p634
      %p636 = scmp.ne.s32.totalorder %s628, %s631
      %p637 = scmp.eq.s32.totalorder %s34, 0
      %p638 = por %p636, %p637
      %p639 = scmp.ne.s32.totalorder %s628, %s631
      %p640 = scmp.eq.s32.totalorder %s39, 3
      %p641 = por %p639, %p640
      %p642 = scmp.ne.s32.totalorder %s631, %s632
      %p643 = scmp.eq.s32.totalorder %s39, 0
      %p644 = por %p642, %p643
      %p645 = scmp.ne.s32.totalorder %s631, %s632
      %p646 = scmp.eq.s32.totalorder %s40, 3
      %p647 = por %p645, %p646
      %p649 = scmp.ne.s32.totalorder %s632, %s648
      %p650 = scmp.eq.s32.totalorder %s40, 0
      %p651 = por %p649, %p650
      %p652 = scmp.le.s32.totalorder 1, %s34
      %p653 = scmp.lt.s32.totalorder %s34, 5
      %p654 = pnand %p652, %p653
      %p655 = pneg %p654
      // Predicated region
      $region9: #{beatmap_transformer_forward.6} parent=5 // pred_check
        _
      $region10: #{beatmap_transformer_forward.6} parent=5 // pred_check_branch
        %657 = sbr.rel (%p654) target = $region12
      $region11: #{beatmap_transformer_forward.6} parent=5 // pred_region
        %s658 = ssub.s32 %s34, 1
      $region12: #{beatmap_transformer_forward.6} parent=5 // pred_fallthru
        _
      %p659 = scmp.lt.s32.totalorder %s34, 4
      // Predicated region
      $region13: #{beatmap_transformer_forward.6} parent=5 // pred_check
        %p660 = pneg %p659
      $region14: #{beatmap_transformer_forward.6} parent=5 // pred_check_branch
        %662 = sbr.rel (%p660) target = $region16
      $region15: #{beatmap_transformer_forward.6} parent=5 // pred_region
        // Predicated region
        $region17: #{beatmap_transformer_forward.6} parent=15 // pred_check
          %p663 = pneg %p66
        $region18: #{beatmap_transformer_forward.6} parent=15 // pred_check_branch
          %665 = sbr.rel (%p663) target = $region20
        $region19: #{beatmap_transformer_forward.6} parent=15 // pred_region
          %p666 = scmp.lt.s32.totalorder %s41, 1
          %s667 = scalar_select %p666, %s41, 1
          %s668 = smul.addr %s667, 8
          %s669 = scalar_lea.vmem %s0, %s668
        $region20: #{beatmap_transformer_forward.6} parent=15 // pred_fallthru
          _
        // Predicated region
        $region21: #{beatmap_transformer_forward.6} parent=15 // pred_check
          %p670 = pneg %p92
        $region22: #{beatmap_transformer_forward.6} parent=15 // pred_check_branch
          %672 = sbr.rel (%p670) target = $region24
        $region23: #{beatmap_transformer_forward.6} parent=15 // pred_region
          %p673 = scmp.lt.s32.totalorder %s41, 1
          %s674 = scalar_select %p673, %s41, 1
          %s675 = smul.addr %s674, 2
          %s676 = smul.addr %s675, 8
          %s677 = scalar_lea.vmem %s1, %s676
        $region24: #{beatmap_transformer_forward.6} parent=15 // pred_fallthru
          _
        // Predicated region
        $region25: #{beatmap_transformer_forward.6} parent=15 // pred_check
          %p678 = pneg %p118
        $region26: #{beatmap_transformer_forward.6} parent=15 // pred_check_branch
          %680 = sbr.rel (%p678) target = $region28
        $region27: #{beatmap_transformer_forward.6} parent=15 // pred_region
          %p681 = scmp.lt.s32.totalorder %s42, 1
          %s682 = scalar_select %p681, %s42, 1
          %s683 = smul.addr %s682, 48
          %s684 = smul.addr %s683, 4
          %s685 = scalar_lea.vmem %s2, %s684
        $region28: #{beatmap_transformer_forward.6} parent=15 // pred_fallthru
          _
        // Predicated region
        $region29: #{beatmap_transformer_forward.6} parent=15 // pred_check
          %p686 = pneg %p144
        $region30: #{beatmap_transformer_forward.6} parent=15 // pred_check_branch
          %688 = sbr.rel (%p686) target = $region32
        $region31: #{beatmap_transformer_forward.6} parent=15 // pred_region
          %p689 = scmp.lt.s32.totalorder %s42, 1
          %s690 = scalar_select %p689, %s42, 1
          %s691 = smul.addr %s690, 3
          %s692 = scalar_lea.vmem %s3, %s691
        $region32: #{beatmap_transformer_forward.6} parent=15 // pred_fallthru
          _
        // Predicated region
        $region33: #{beatmap_transformer_forward.6} parent=15 // pred_check
          %p693 = pneg %p170
        $region34: #{beatmap_transformer_forward.6} parent=15 // pred_check_branch
          %695 = sbr.rel (%p693) target = $region36
        $region35: #{beatmap_transformer_forward.6} parent=15 // pred_region
          %p696 = scmp.lt.s32.totalorder %s42, 1
          %s697 = scalar_select %p696, %s42, 1
          %s698 = smul.addr %s697, 16
          %s699 = smul.addr %s698, 4
          %s700 = scalar_lea.vmem %s4, %s699
        $region36: #{beatmap_transformer_forward.6} parent=15 // pred_fallthru
          _
        // Predicated region
        $region37: #{beatmap_transformer_forward.6} parent=15 // pred_check
          %p701 = pneg %p196
        $region38: #{beatmap_transformer_forward.6} parent=15 // pred_check_branch
          %703 = sbr.rel (%p701) target = $region40
        $region39: #{beatmap_transformer_forward.6} parent=15 // pred_region
          %p704 = scmp.lt.s32.totalorder %s42, 1
          %s705 = scalar_select %p704, %s42, 1
          %s706 = scalar_lea.vmem %s5, %s705
        $region40: #{beatmap_transformer_forward.6} parent=15 // pred_fallthru
          _
        // Predicated region
        $region41: #{beatmap_transformer_forward.6} parent=15 // pred_check
          %p707 = pneg %p222
        $region42: #{beatmap_transformer_forward.6} parent=15 // pred_check_branch
          %709 = sbr.rel (%p707) target = $region44
        $region43: #{beatmap_transformer_forward.6} parent=15 // pred_region
          %p710 = scmp.lt.s32.totalorder %s42, 1
          %s711 = scalar_select %p710, %s42, 1
          %s712 = scalar_lea.vmem %s6, %s711
        $region44: #{beatmap_transformer_forward.6} parent=15 // pred_fallthru
          _
        // Predicated region
        $region45: #{beatmap_transformer_forward.6} parent=15 // pred_check
          %p713 = pneg %p248
        $region46: #{beatmap_transformer_forward.6} parent=15 // pred_check_branch
          %715 = sbr.rel (%p713) target = $region48
        $region47: #{beatmap_transformer_forward.6} parent=15 // pred_region
          %p716 = scmp.lt.s32.totalorder %s42, 1
          %s717 = scalar_select %p716, %s42, 1
          %s718 = scalar_lea.vmem %s7, %s717
        $region48: #{beatmap_transformer_forward.6} parent=15 // pred_fallthru
          _
        // Predicated region
        $region49: #{beatmap_transformer_forward.6} parent=15 // pred_check
          %p719 = pneg %p274
        $region50: #{beatmap_transformer_forward.6} parent=15 // pred_check_branch
          %721 = sbr.rel (%p719) target = $region52
        $region51: #{beatmap_transformer_forward.6} parent=15 // pred_region
          %s722 = sand.u32 %s264, 1
          %s723 = scalar_lea.sflag [#allocation3], %s722
          %s724 = sand.u32 %s264, 1
          %s725 = smul.addr %s724, 64
          %s726 = scalar_lea.vmem [#allocation2], %s725
          %s728 = ssub.s32 1024, 1024
          %729 = vsyncadd %s723, %s728
          %s730 = smul.addr %s42, 16
          %s731 = smul.addr %s730, 64
          %s732 = scalar_lea.hbm %s8, %s731
          %s733 = sshll.u32 %s726, 4
          %s734 = int_to_ptr.vmem [resolvable:$true] %s733
          %739 = dma.hbm_to_vmem [thread:$0]  %s732, 1024, %s734, %s723, 64, 64, 4
        $region52: #{beatmap_transformer_forward.6} parent=15 // pred_fallthru
          _
        // Predicated region
        $region53: #{beatmap_transformer_forward.6} parent=15 // pred_check
          %p740 = pneg %p300
        $region54: #{beatmap_transformer_forward.6} parent=15 // pred_check_branch
          %742 = sbr.rel (%p740) target = $region56
        $region55: #{beatmap_transformer_forward.6} parent=15 // pred_region
          %p743 = scmp.lt.s32.totalorder %s42, 1
          %s744 = scalar_select %p743, %s42, 1
          %s745 = scalar_lea.vmem %s9, %s744
        $region56: #{beatmap_transformer_forward.6} parent=15 // pred_fallthru
          _
        // Predicated region
        $region57: #{beatmap_transformer_forward.6} parent=15 // pred_check
          %p746 = pneg %p326
        $region58: #{beatmap_transformer_forward.6} parent=15 // pred_check_branch
          %748 = sbr.rel (%p746) target = $region60
        $region59: #{beatmap_transformer_forward.6} parent=15 // pred_region
          %s749 = sand.u32 %s34, 1
          %s750 = scalar_lea.sflag [#allocation5], %s749
          %s751 = sand.u32 %s316, 1
          %s752 = smul.addr %s751, 128
          %s753 = scalar_lea.vmem [#allocation4], %s752
          %s755 = ssub.s32 2048, 2048
          %756 = vsyncadd %s750, %s755
          %s757 = smul.addr %s42, 32
          %s758 = smul.addr %s757, 64
          %s759 = scalar_lea.hbm %s10, %s758
          %s760 = sshll.u32 %s753, 4
          %s761 = int_to_ptr.vmem [resolvable:$true] %s760
          %766 = dma.hbm_to_vmem [thread:$0]  %s759, 2048, %s761, %s750, 128, 128, 8
        $region60: #{beatmap_transformer_forward.6} parent=15 // pred_fallthru
          _
        // Predicated region
        $region61: #{beatmap_transformer_forward.6} parent=15 // pred_check
          %p767 = pneg %p352
        $region62: #{beatmap_transformer_forward.6} parent=15 // pred_check_branch
          %769 = sbr.rel (%p767) target = $region64
        $region63: #{beatmap_transformer_forward.6} parent=15 // pred_region
          %p770 = scmp.lt.s32.totalorder %s42, 1
          %s771 = scalar_select %p770, %s42, 1
          %s772 = smul.addr %s771, 2
          %s773 = scalar_lea.vmem %s11, %s772
        $region64: #{beatmap_transformer_forward.6} parent=15 // pred_fallthru
          _
        // Predicated region
        $region65: #{beatmap_transformer_forward.6} parent=15 // pred_check
          %p774 = pneg %p378
        $region66: #{beatmap_transformer_forward.6} parent=15 // pred_check_branch
          %776 = sbr.rel (%p774) target = $region68
        $region67: #{beatmap_transformer_forward.6} parent=15 // pred_region
          %s777 = sand.u32 %s34, 1
          %s778 = scalar_lea.sflag [#allocation5], %s777
          %s779 = sand.u32 %s368, 1
          %s780 = smul.addr %s779, 64
          %s781 = scalar_lea.vmem [#allocation6], %s780
          %s783 = ssub.s32 1024, 1024
          %784 = vsyncadd %s778, %s783
          %s785 = smul.addr %s42, 16
          %s786 = smul.addr %s785, 64
          %s787 = scalar_lea.hbm %s12, %s786
          %s788 = sshll.u32 %s781, 4
          %s789 = int_to_ptr.vmem [resolvable:$true] %s788
          %794 = dma.hbm_to_vmem [thread:$0]  %s787, 1024, %s789, %s778, 64, 64, 4
        $region68: #{beatmap_transformer_forward.6} parent=15 // pred_fallthru
          _
        // Predicated region
        $region69: #{beatmap_transformer_forward.6} parent=15 // pred_check
          %p795 = pneg %p404
        $region70: #{beatmap_transformer_forward.6} parent=15 // pred_check_branch
          %797 = sbr.rel (%p795) target = $region72
        $region71: #{beatmap_transformer_forward.6} parent=15 // pred_region
          %p798 = scmp.lt.s32.totalorder %s42, 1
          %s799 = scalar_select %p798, %s42, 1
          %s800 = scalar_lea.vmem %s13, %s799
        $region72: #{beatmap_transformer_forward.6} parent=15 // pred_fallthru
          _
        // Predicated region
        $region73: #{beatmap_transformer_forward.6} parent=15 // pred_check
          %p801 = pneg %p430
        $region74: #{beatmap_transformer_forward.6} parent=15 // pred_check_branch
          %803 = sbr.rel (%p801) target = $region76
        $region75: #{beatmap_transformer_forward.6} parent=15 // pred_region
          %p804 = scmp.lt.s32.totalorder %s42, 1
          %s805 = scalar_select %p804, %s42, 1
          %s806 = scalar_lea.vmem %s14, %s805
        $region76: #{beatmap_transformer_forward.6} parent=15 // pred_fallthru
          _
        // Predicated region
        $region77: #{beatmap_transformer_forward.6} parent=15 // pred_check
          %p807 = pneg %p456
        $region78: #{beatmap_transformer_forward.6} parent=15 // pred_check_branch
          %809 = sbr.rel (%p807) target = $region80
        $region79: #{beatmap_transformer_forward.6} parent=15 // pred_region
          %p810 = scmp.lt.s32.totalorder %s42, 1
          %s811 = scalar_select %p810, %s42, 1
          %s812 = scalar_lea.vmem %s15, %s811
        $region80: #{beatmap_transformer_forward.6} parent=15 // pred_fallthru
          _
        // Predicated region
        $region81: #{beatmap_transformer_forward.6} parent=15 // pred_check
          %p813 = pneg %p482
        $region82: #{beatmap_transformer_forward.6} parent=15 // pred_check_branch
          %815 = sbr.rel (%p813) target = $region84
        $region83: #{beatmap_transformer_forward.6} parent=15 // pred_region
          %p816 = scmp.lt.s32.totalorder %s42, 1
          %s817 = scalar_select %p816, %s42, 1
          %s818 = smul.addr %s817, 64
          %s819 = smul.addr %s818, 4
          %s820 = scalar_lea.vmem %s16, %s819
        $region84: #{beatmap_transformer_forward.6} parent=15 // pred_fallthru
          _
        // Predicated region
        $region85: #{beatmap_transformer_forward.6} parent=15 // pred_check
          %p821 = pneg %p508
        $region86: #{beatmap_transformer_forward.6} parent=15 // pred_check_branch
          %823 = sbr.rel (%p821) target = $region88
        $region87: #{beatmap_transformer_forward.6} parent=15 // pred_region
          %p824 = scmp.lt.s32.totalorder %s42, 1
          %s825 = scalar_select %p824, %s42, 1
          %s826 = smul.addr %s825, 4
          %s827 = scalar_lea.vmem %s17, %s826
        $region88: #{beatmap_transformer_forward.6} parent=15 // pred_fallthru
          _
        // Predicated region
        $region89: #{beatmap_transformer_forward.6} parent=15 // pred_check
          %p828 = pneg %p534
        $region90: #{beatmap_transformer_forward.6} parent=15 // pred_check_branch
          %830 = sbr.rel (%p828) target = $region92
        $region91: #{beatmap_transformer_forward.6} parent=15 // pred_region
          %p831 = scmp.lt.s32.totalorder %s42, 1
          %s832 = scalar_select %p831, %s42, 1
          %s833 = smul.addr %s832, 64
          %s834 = smul.addr %s833, 4
          %s835 = scalar_lea.vmem %s18, %s834
        $region92: #{beatmap_transformer_forward.6} parent=15 // pred_fallthru
          _
        // Predicated region
        $region93: #{beatmap_transformer_forward.6} parent=15 // pred_check
          %p836 = pneg %p560
        $region94: #{beatmap_transformer_forward.6} parent=15 // pred_check_branch
          %838 = sbr.rel (%p836) target = $region96
        $region95: #{beatmap_transformer_forward.6} parent=15 // pred_region
          %p839 = scmp.lt.s32.totalorder %s42, 1
          %s840 = scalar_select %p839, %s42, 1
          %s841 = scalar_lea.vmem %s19, %s840
        $region96: #{beatmap_transformer_forward.6} parent=15 // pred_fallthru
          _
        // Predicated region
        $region97: #{beatmap_transformer_forward.6} parent=15 // pred_check
          %p842 = pneg %p586
        $region98: #{beatmap_transformer_forward.6} parent=15 // pred_check_branch
          %844 = sbr.rel (%p842) target = $region100
        $region99: #{beatmap_transformer_forward.6} parent=15 // pred_region
          %p845 = scmp.lt.s32.totalorder %s42, 1
          %s846 = scalar_select %p845, %s42, 1
          %s847 = scalar_lea.vmem %s20, %s846
        $region100: #{beatmap_transformer_forward.6} parent=15 // pred_fallthru
          _
        // Predicated region
        $region101: #{beatmap_transformer_forward.6} parent=15 // pred_check
          %p848 = pneg %p612
        $region102: #{beatmap_transformer_forward.6} parent=15 // pred_check_branch
          %850 = sbr.rel (%p848) target = $region104
        $region103: #{beatmap_transformer_forward.6} parent=15 // pred_region
          %p851 = scmp.lt.s32.totalorder %s42, 1
          %s852 = scalar_select %p851, %s42, 1
          %s853 = scalar_lea.vmem %s21, %s852
        $region104: #{beatmap_transformer_forward.6} parent=15 // pred_fallthru
          _
      $region16: #{beatmap_transformer_forward.6} parent=5 // pred_fallthru
        _
      %p854 = scmp.le.s32.totalorder 1, %s34
      %p855 = scmp.lt.s32.totalorder %s34, 5
      %p856 = pnand %p854, %p855
      %p857 = pneg %p856
      // Predicated region
      $region105: #{beatmap_transformer_forward.6} parent=5 // pred_check
        _
      $region106: #{beatmap_transformer_forward.6} parent=5 // pred_check_branch
        %859 = sbr.rel (%p856) target = $region108
      $region107: #{beatmap_transformer_forward.6} parent=5 // pred_region
        %s860 = ssub.s32 %s34, 1
        %s861 = sand.u32 %s267, 1
        %s862 = scalar_lea.sflag [#allocation3], %s861
        %s863 = sand.u32 %s267, 1
        %s864 = smul.addr %s863, 64
        %s865 = scalar_lea.vmem [#allocation2], %s864
        // Predicated region
        $region109: #{beatmap_transformer_forward.6} parent=107 // pred_check
          %p866 = pneg %p280
        $region110: #{beatmap_transformer_forward.6} parent=107 // pred_check_branch
          %868 = sbr.rel (%p866) target = $region112
        $region111: #{beatmap_transformer_forward.6} parent=107 // pred_region
          %869 = dma.done %s862, 1024
        $region112: #{beatmap_transformer_forward.6} parent=107 // pred_fallthru
          _
        %s870 = sand.u32 %s39, 1
        %s871 = scalar_lea.sflag [#allocation5], %s870
        %s872 = sand.u32 %s319, 1
        %s873 = smul.addr %s872, 128
        %s874 = scalar_lea.vmem [#allocation4], %s873
        // Predicated region
        $region113: #{beatmap_transformer_forward.6} parent=107 // pred_check
          %p875 = pneg %p332
        $region114: #{beatmap_transformer_forward.6} parent=107 // pred_check_branch
          %877 = sbr.rel (%p875) target = $region116
        $region115: #{beatmap_transformer_forward.6} parent=107 // pred_region
          %878 = dma.done %s871, 2048
        $region116: #{beatmap_transformer_forward.6} parent=107 // pred_fallthru
          _
        %s879 = sand.u32 %s39, 1
        %s880 = scalar_lea.sflag [#allocation5], %s879
        %s881 = sand.u32 %s371, 1
        %s882 = smul.addr %s881, 64
        %s883 = scalar_lea.vmem [#allocation6], %s882
        // Predicated region
        $region117: #{beatmap_transformer_forward.6} parent=107 // pred_check
          %p884 = pneg %p384
        $region118: #{beatmap_transformer_forward.6} parent=107 // pred_check_branch
          %886 = sbr.rel (%p884) target = $region120
        $region119: #{beatmap_transformer_forward.6} parent=107 // pred_region
          %887 = dma.done %s880, 1024
        $region120: #{beatmap_transformer_forward.6} parent=107 // pred_fallthru
          _
        %p888 = scmp.lt.s32.totalorder %s43, 1
        %s889 = scalar_select %p888, %s43, 1
        %s890 = smul.addr %s889, 8
        %s891 = scalar_lea.vmem %s0, %s890
        %p892 = pneg %p72
        %p893 = pneg %p69
        %p894 = scmp.lt.s32.totalorder %s43, 1
        %s895 = scalar_select %p894, %s43, 1
        %s896 = smul.addr %s895, 2
        %s897 = smul.addr %s896, 8
        %s898 = scalar_lea.vmem %s1, %s897
        %p899 = pneg %p98
        %p900 = pneg %p95
        %p901 = scmp.lt.s32.totalorder %s44, 1
        %s902 = scalar_select %p901, %s44, 1
        %s903 = smul.addr %s902, 48
        %s904 = smul.addr %s903, 4
        %s905 = scalar_lea.vmem %s2, %s904
        %p906 = pneg %p124
        %p907 = pneg %p121
        %p908 = scmp.lt.s32.totalorder %s44, 1
        %s909 = scalar_select %p908, %s44, 1
        %s910 = smul.addr %s909, 3
        %s911 = scalar_lea.vmem %s3, %s910
        %p912 = pneg %p150
        %p913 = pneg %p147
        %p914 = scmp.lt.s32.totalorder %s44, 1
        %s915 = scalar_select %p914, %s44, 1
        %s916 = smul.addr %s915, 16
        %s917 = smul.addr %s916, 4
        %s918 = scalar_lea.vmem %s4, %s917
        %p919 = pneg %p176
        %p920 = pneg %p173
        %p921 = scmp.lt.s32.totalorder %s44, 1
        %s922 = scalar_select %p921, %s44, 1
        %s923 = scalar_lea.vmem %s5, %s922
        %p924 = pneg %p202
        %p925 = pneg %p199
        %p926 = scmp.lt.s32.totalorder %s44, 1
        %s927 = scalar_select %p926, %s44, 1
        %s928 = scalar_lea.vmem %s6, %s927
        %p929 = pneg %p228
        %p930 = pneg %p225
        %p931 = scmp.lt.s32.totalorder %s44, 1
        %s932 = scalar_select %p931, %s44, 1
        %s933 = scalar_lea.vmem %s7, %s932
        %p934 = pneg %p254
        %p935 = pneg %p251
        %s936 = sand.u32 %s267, 1
        %s937 = scalar_lea.sflag [#allocation3], %s936
        %s938 = sand.u32 %s267, 1
        %s939 = smul.addr %s938, 64
        %s940 = scalar_lea.vmem [#allocation2], %s939
        %p941 = pneg %p280
        %p942 = pneg %p277
        %p943 = scmp.lt.s32.totalorder %s44, 1
        %s944 = scalar_select %p943, %s44, 1
        %s945 = scalar_lea.vmem %s9, %s944
        %p946 = pneg %p306
        %p947 = pneg %p303
        %s948 = sand.u32 %s39, 1
        %s949 = scalar_lea.sflag [#allocation5], %s948
        %s950 = sand.u32 %s319, 1
        %s951 = smul.addr %s950, 128
        %s952 = scalar_lea.vmem [#allocation4], %s951
        %p953 = pneg %p332
        %p954 = pneg %p329
        %p955 = scmp.lt.s32.totalorder %s44, 1
        %s956 = scalar_select %p955, %s44, 1
        %s957 = smul.addr %s956, 2
        %s958 = scalar_lea.vmem %s11, %s957
        %p959 = pneg %p358
        %p960 = pneg %p355
        %s961 = sand.u32 %s39, 1
        %s962 = scalar_lea.sflag [#allocation5], %s961
        %s963 = sand.u32 %s371, 1
        %s964 = smul.addr %s963, 64
        %s965 = scalar_lea.vmem [#allocation6], %s964
        %p966 = pneg %p384
        %p967 = pneg %p381
        %p968 = scmp.lt.s32.totalorder %s44, 1
        %s969 = scalar_select %p968, %s44, 1
        %s970 = scalar_lea.vmem %s13, %s969
        %p971 = pneg %p410
        %p972 = pneg %p407
        %p973 = scmp.lt.s32.totalorder %s44, 1
        %s974 = scalar_select %p973, %s44, 1
        %s975 = scalar_lea.vmem %s14, %s974
        %p976 = pneg %p436
        %p977 = pneg %p433
        %p978 = scmp.lt.s32.totalorder %s44, 1
        %s979 = scalar_select %p978, %s44, 1
        %s980 = scalar_lea.vmem %s15, %s979
        %p981 = pneg %p462
        %p982 = pneg %p459
        %p983 = scmp.lt.s32.totalorder %s44, 1
        %s984 = scalar_select %p983, %s44, 1
        %s985 = smul.addr %s984, 64
        %s986 = smul.addr %s985, 4
        %s987 = scalar_lea.vmem %s16, %s986
        %p988 = pneg %p488
        %p989 = pneg %p485
        %p990 = scmp.lt.s32.totalorder %s44, 1
        %s991 = scalar_select %p990, %s44, 1
        %s992 = smul.addr %s991, 4
        %s993 = scalar_lea.vmem %s17, %s992
        %p994 = pneg %p514
        %p995 = pneg %p511
        %p996 = scmp.lt.s32.totalorder %s44, 1
        %s997 = scalar_select %p996, %s44, 1
        %s998 = smul.addr %s997, 64
        %s999 = smul.addr %s998, 4
        %s1000 = scalar_lea.vmem %s18, %s999
        %p1001 = pneg %p540
        %p1002 = pneg %p537
        %p1003 = scmp.lt.s32.totalorder %s44, 1
        %s1004 = scalar_select %p1003, %s44, 1
        %s1005 = scalar_lea.vmem %s19, %s1004
        %p1006 = pneg %p566
        %p1007 = pneg %p563
        %p1008 = scmp.lt.s32.totalorder %s44, 1
        %s1009 = scalar_select %p1008, %s44, 1
        %s1010 = scalar_lea.vmem %s20, %s1009
        %p1011 = pneg %p592
        %p1012 = pneg %p589
        %p1013 = scmp.lt.s32.totalorder %s44, 1
        %s1014 = scalar_select %p1013, %s44, 1
        %s1015 = scalar_lea.vmem %s21, %s1014
        %p1016 = pneg %p618
        %p1017 = pneg %p615
        %p1018 = pneg %p644
        %p1019 = pneg %p641
        %p1020 = scmp.lt.s32.totalorder %s43, 1
        %s1021 = scalar_select %p1020, %s43, 1
        %s1022 = smul.addr %s1021, 8
        %s1023 = scalar_lea.vmem %s22, %s1022
        %p1024 = scmp.lt.s32.totalorder %s43, 1
        %s1025 = scalar_select %p1024, %s43, 1
        %s1026 = smul.addr %s1025, 8
        %s1027 = scalar_lea.vmem %s0, %s1026
        %p1028 = scmp.lt.s32.totalorder %s43, 1
        %s1029 = scalar_select %p1028, %s43, 1
        %s1030 = smul.addr %s1029, 2
        %s1031 = smul.addr %s1030, 8
        %s1032 = scalar_lea.vmem %s1, %s1031
        %p1033 = scmp.lt.s32.totalorder %s44, 1
        %s1034 = scalar_select %p1033, %s44, 1
        %s1035 = smul.addr %s1034, 48
        %s1036 = smul.addr %s1035, 4
        %s1037 = scalar_lea.vmem %s2, %s1036
        %p1038 = scmp.lt.s32.totalorder %s44, 1
        %s1039 = scalar_select %p1038, %s44, 1
        %s1040 = smul.addr %s1039, 3
        %s1041 = scalar_lea.vmem %s3, %s1040
        %p1042 = scmp.lt.s32.totalorder %s44, 1
        %s1043 = scalar_select %p1042, %s44, 1
        %s1044 = smul.addr %s1043, 16
        %s1045 = smul.addr %s1044, 4
        %s1046 = scalar_lea.vmem %s4, %s1045
        %p1047 = scmp.lt.s32.totalorder %s44, 1
        %s1048 = scalar_select %p1047, %s44, 1
        %s1049 = scalar_lea.vmem %s5, %s1048
        %p1050 = scmp.lt.s32.totalorder %s44, 1
        %s1051 = scalar_select %p1050, %s44, 1
        %s1052 = scalar_lea.vmem %s6, %s1051
        %p1053 = scmp.lt.s32.totalorder %s44, 1
        %s1054 = scalar_select %p1053, %s44, 1
        %s1055 = scalar_lea.vmem %s7, %s1054
        %p1056 = scmp.lt.s32.totalorder %s44, 1
        %s1057 = scalar_select %p1056, %s44, 1
        %s1058 = scalar_lea.vmem %s9, %s1057
        %p1059 = scmp.lt.s32.totalorder %s44, 1
        %s1060 = scalar_select %p1059, %s44, 1
        %s1061 = smul.addr %s1060, 2
        %s1062 = scalar_lea.vmem %s11, %s1061
        %p1063 = scmp.lt.s32.totalorder %s44, 1
        %s1064 = scalar_select %p1063, %s44, 1
        %s1065 = scalar_lea.vmem %s13, %s1064
        %p1066 = scmp.lt.s32.totalorder %s44, 1
        %s1067 = scalar_select %p1066, %s44, 1
        %s1068 = scalar_lea.vmem %s14, %s1067
        %p1069 = scmp.lt.s32.totalorder %s44, 1
        %s1070 = scalar_select %p1069, %s44, 1
        %s1071 = scalar_lea.vmem %s15, %s1070
        %p1072 = scmp.lt.s32.totalorder %s44, 1
        %s1073 = scalar_select %p1072, %s44, 1
        %s1074 = smul.addr %s1073, 64
        %s1075 = smul.addr %s1074, 4
        %s1076 = scalar_lea.vmem %s16, %s1075
        %p1077 = scmp.lt.s32.totalorder %s44, 1
        %s1078 = scalar_select %p1077, %s44, 1
        %s1079 = smul.addr %s1078, 4
        %s1080 = scalar_lea.vmem %s17, %s1079
        %p1081 = scmp.lt.s32.totalorder %s44, 1
        %s1082 = scalar_select %p1081, %s44, 1
        %s1083 = smul.addr %s1082, 64
        %s1084 = smul.addr %s1083, 4
        %s1085 = scalar_lea.vmem %s18, %s1084
        %p1086 = scmp.lt.s32.totalorder %s44, 1
        %s1087 = scalar_select %p1086, %s44, 1
        %s1088 = scalar_lea.vmem %s19, %s1087
        %p1089 = scmp.lt.s32.totalorder %s44, 1
        %s1090 = scalar_select %p1089, %s44, 1
        %s1091 = scalar_lea.vmem %s20, %s1090
        %p1092 = scmp.lt.s32.totalorder %s44, 1
        %s1093 = scalar_select %p1092, %s44, 1
        %s1094 = scalar_lea.vmem %s21, %s1093
        %p1095 = scmp.lt.s32.totalorder %s43, 1
        %s1096 = scalar_select %p1095, %s43, 1
        %s1097 = smul.addr %s1096, 8
        %s1098 = scalar_lea.vmem %s22, %s1097
        %p1100 = scmp.eq.s32.totalorder %s44, 0
        // Predicated region
        $region121: #{beatmap_transformer_forward.6} parent=107 // pred_check
          %p1101 = pneg %p1100
        $region122: #{beatmap_transformer_forward.6} parent=107 // pred_check_branch
          %1103 = sbr.rel (%p1101) target = $region124
        $region123: #{beatmap_transformer_forward.6} parent=107 // pred_region
          %v1104 = vld [vmem:[%s1027] sm:$0xff]
          %1105 = vst [vmem:[%s1098] sm:$0xff] %v1104
        $region124: #{beatmap_transformer_forward.6} parent=107 // pred_fallthru
          _
        %v1106 = vld [vmem:[%s1098] sm:$0xff]
        %v1107 = vld [vmem:[%s1032] sm:$0xff]
        %v1108 = vld [vmem:[%s1032 + $0x8] sm:$0xff]
        %v1109 = vld [vmem:[%s1037] sm:$0xff]
        %v1110 = vld [vmem:[%s1037 + $0x8] sm:$0xf]
        %v1111 = vld [vmem:[%s1037 + $0xc] sm:$0xff]
        %v1112 = vld [vmem:[%s1037 + $0x14] sm:$0xf]
        %v1113 = vld [vmem:[%s1037 + $0x18] sm:$0xff]
        %v1114 = vld [vmem:[%s1037 + $0x20] sm:$0xf]
        %v1115 = vld [vmem:[%s1037 + $0x24] sm:$0xff]
        %v1116 = vld [vmem:[%s1037 + $0x2c] sm:$0xf]
        %v1117 = vld [vmem:[%s1037 + $0x30] sm:$0xff]
        %v1118 = vld [vmem:[%s1037 + $0x38] sm:$0xf]
        %v1119 = vld [vmem:[%s1037 + $0x3c] sm:$0xff]
        %v1120 = vld [vmem:[%s1037 + $0x44] sm:$0xf]
        %v1121 = vld [vmem:[%s1037 + $0x48] sm:$0xff]
        %v1122 = vld [vmem:[%s1037 + $0x50] sm:$0xf]
        %v1123 = vld [vmem:[%s1037 + $0x54] sm:$0xff]
        %v1124 = vld [vmem:[%s1037 + $0x5c] sm:$0xf]
        %v1125 = vld [vmem:[%s1037 + $0x60] sm:$0xff]
        %v1126 = vld [vmem:[%s1037 + $0x68] sm:$0xf]
        %v1127 = vld [vmem:[%s1037 + $0x6c] sm:$0xff]
        %v1128 = vld [vmem:[%s1037 + $0x74] sm:$0xf]
        %v1129 = vld [vmem:[%s1037 + $0x78] sm:$0xff]
        %v1130 = vld [vmem:[%s1037 + $0x80] sm:$0xf]
        %v1131 = vld [vmem:[%s1037 + $0x84] sm:$0xff]
        %v1132 = vld [vmem:[%s1037 + $0x8c] sm:$0xf]
        %v1133 = vld [vmem:[%s1037 + $0x90] sm:$0xff]
        %v1134 = vld [vmem:[%s1037 + $0x98] sm:$0xf]
        %v1135 = vld [vmem:[%s1037 + $0x9c] sm:$0xff]
        %v1136 = vld [vmem:[%s1037 + $0xa4] sm:$0xf]
        %v1137 = vld [vmem:[%s1037 + $0xa8] sm:$0xff]
        %v1138 = vld [vmem:[%s1037 + $0xb0] sm:$0xf]
        %v1139 = vld [vmem:[%s1037 + $0xb4] sm:$0xff]
        %v1140 = vld [vmem:[%s1037 + $0xbc] sm:$0xf]
        %v1141 = vpack.c.bf16 %v1106, %v1106
        %v1142 = vld [vmem:[%s1041] sm:$0x7]
        %v1144 = vlaneseq
        %v1145 = vshrl.u32 %v1144, 7
        %v1146 = vsub.s32 0, %v1145
        %v1147 = vrot.slane %v1142, %v1146
        %v1148 = vlaneseq
        %v1149 = vshrl.u32 %v1148, 7
        %v1150 = vsub.s32 1, %v1149
        %v1151 = vrot.slane %v1142, %v1150
        %v1152 = vlaneseq
        %v1153 = vshrl.u32 %v1152, 7
        %v1154 = vsub.s32 2, %v1153
        %v1155 = vrot.slane %v1142, %v1154
        %v1191 = vunpack.c.l.b16 %v1109
        %v1192 = vunpack.c.h.b16 %v1109
        %v1193 = vunpack.c.l.b16 %v1110
        %v1194 = vunpack.c.l.b16 %v1111
        %v1195 = vunpack.c.h.b16 %v1111
        %v1196 = vunpack.c.l.b16 %v1112
        %v1197 = vunpack.c.l.b16 %v1113
        %v1198 = vunpack.c.h.b16 %v1113
        %v1199 = vunpack.c.l.b16 %v1114
        %v1200 = vunpack.c.l.b16 %v1115
        %v1201 = vunpack.c.h.b16 %v1115
        %v1202 = vunpack.c.l.b16 %v1116
        %v1203 = vunpack.c.l.b16 %v1117
        %v1204 = vunpack.c.h.b16 %v1117
        %v1205 = vunpack.c.l.b16 %v1118
        %v1206 = vunpack.c.l.b16 %v1119
        %v1207 = vunpack.c.h.b16 %v1119
        %v1208 = vunpack.c.l.b16 %v1120
        %v1209 = vunpack.c.l.b16 %v1121
        %v1210 = vunpack.c.h.b16 %v1121
        %v1211 = vunpack.c.l.b16 %v1122
        %v1212 = vunpack.c.l.b16 %v1123
        %v1213 = vunpack.c.h.b16 %v1123
        %v1214 = vunpack.c.l.b16 %v1124
        %v1215 = vunpack.c.l.b16 %v1125
        %v1216 = vunpack.c.h.b16 %v1125
        %v1217 = vunpack.c.l.b16 %v1126
        %v1218 = vunpack.c.l.b16 %v1127
        %v1219 = vunpack.c.h.b16 %v1127
        %v1220 = vunpack.c.l.b16 %v1128
        %v1221 = vunpack.c.l.b16 %v1129
        %v1222 = vunpack.c.h.b16 %v1129
        %v1223 = vunpack.c.l.b16 %v1130
        %v1224 = vunpack.c.l.b16 %v1131
        %v1225 = vunpack.c.h.b16 %v1131
        %v1226 = vunpack.c.l.b16 %v1132
        %v1227 = vunpack.c.l.b16 %v1133
        %v1228 = vunpack.c.h.b16 %v1133
        %v1229 = vunpack.c.l.b16 %v1134
        %v1230 = vunpack.c.l.b16 %v1135
        %v1231 = vunpack.c.h.b16 %v1135
        %v1232 = vunpack.c.l.b16 %v1136
        %v1233 = vunpack.c.l.b16 %v1137
        %v1234 = vunpack.c.h.b16 %v1137
        %v1235 = vunpack.c.l.b16 %v1138
        %v1236 = vunpack.c.l.b16 %v1139
        %v1237 = vunpack.c.h.b16 %v1139
        %v1238 = vunpack.c.l.b16 %v1140
        %v1239 = vpack.c.b16 %v1194, %v1191
        %v1240 = vpack.c.b16 %v1195, %v1192
        %v1241 = vpack.c.b16 %v1196, %v1193
        %v1242 = vpack.c.b16 %v1200, %v1197
        %v1243 = vpack.c.b16 %v1201, %v1198
        %v1244 = vpack.c.b16 %v1202, %v1199
        %v1245 = vpack.c.b16 %v1206, %v1203
        %v1246 = vpack.c.b16 %v1207, %v1204
        %v1247 = vpack.c.b16 %v1208, %v1205
        %v1248 = vpack.c.b16 %v1212, %v1209
        %v1249 = vpack.c.b16 %v1213, %v1210
        %v1250 = vpack.c.b16 %v1214, %v1211
        %v1251 = vpack.c.b16 %v1218, %v1215
        %v1252 = vpack.c.b16 %v1219, %v1216
        %v1253 = vpack.c.b16 %v1220, %v1217
        %v1254 = vpack.c.b16 %v1224, %v1221
        %v1255 = vpack.c.b16 %v1225, %v1222
        %v1256 = vpack.c.b16 %v1226, %v1223
        %v1257 = vpack.c.b16 %v1230, %v1227
        %v1258 = vpack.c.b16 %v1231, %v1228
        %v1259 = vpack.c.b16 %v1232, %v1229
        %v1260 = vpack.c.b16 %v1236, %v1233
        %v1261 = vpack.c.b16 %v1237, %v1234
        %v1262 = vpack.c.b16 %v1238, %v1235
        %1287 = vmatprep.subr.bf16.mxu0 %v1261
        %1288 = vmatpush1.bf16.msra.mxu0 %v1260
        %1289 = vmatprep.subr.bf16.mxu0 %v1258
        %1290 = vmatpush1.bf16.msra.mxu0 %v1257
        %1291 = vmatprep.subr.bf16.mxu0 %v1255
        %1292 = vmatpush1.bf16.msra.mxu0 %v1254
        %1293 = vmatprep.subr.bf16.mxu0 %v1252
        %1294 = vmatpush1.bf16.msra.mxu0 %v1251
        %1295 = vmatprep.subr.bf16.mxu0 %v1249
        %1296 = vmatpush1.bf16.msra.mxu0 %v1248
        %1297 = vmatprep.subr.bf16.mxu0 %v1246
        %1298 = vmatpush1.bf16.msra.mxu0 %v1245
        %1299 = vmatprep.subr.bf16.mxu0 %v1243
        %1300 = vmatpush1.bf16.msra.mxu0 %v1242
        %1301 = vmatprep.subr.bf16.mxu0 %v1240
        %1302 = vmatpush1.bf16.msra.mxu0 %v1239
        %1303 = vmatprep.subr.bf16.mxu0 0
        %1304 = vmatpush2.bf16.msra.mxu0 0
        %1305 = vmatprep.subr.bf16.mxu0 0
        %1306 = vmatpush2.bf16.msra.mxu0 0
        %1307 = vmatprep.subr.bf16.mxu0 0
        %1308 = vmatpush2.bf16.msra.mxu0 0
        %1309 = vmatprep.subr.bf16.mxu0 0
        %1310 = vmatpush2.bf16.msra.mxu0 0
        %1311 = vmatprep.subr.bf16.mxu0 0
        %1312 = vmatpush2.bf16.msra.mxu0 0
        %1313 = vmatprep.subr.bf16.mxu0 0
        %1314 = vmatpush2.bf16.msra.mxu0 0
        %1315 = vmatprep.subr.bf16.mxu0 0
        %1316 = vmatpush2.bf16.msra.mxu0 0
        %1317 = vmatprep.subr.bf16.mxu0 0
        %1318 = vmatpush2.bf16.msra.mxu0 0
        %1319 = vmatprep.mubr.bf16.mxu0 0
        %1320 = vmatmul.mubr.bf16.gmra.mxu0 %v1141
        %v1321 = vpop.f32.mrf.mxu0
        %v1322 = vadd.f32 %v1147, %v1321
        %v1323 = vpop.f32.mrf.mxu0
        %v1324 = vadd.f32 %v1151, %v1323
        %v1325 = vpop.f32.mrf.mxu0
        %v1326 = vpop.f32.mrf.mxu0
        %1327 = vdwg.mxu0
        %1328 = vmatprep.subr.bf16.mxu0 0
        %1329 = vmatpush1.bf16.msra.mxu0 %v1262
        %1330 = vmatprep.subr.bf16.mxu0 0
        %1331 = vmatpush1.bf16.msra.mxu0 %v1259
        %1332 = vmatprep.subr.bf16.mxu0 0
        %1333 = vmatpush1.bf16.msra.mxu0 %v1256
        %1334 = vmatprep.subr.bf16.mxu0 0
        %1335 = vmatpush1.bf16.msra.mxu0 %v1253
        %1336 = vmatprep.subr.bf16.mxu0 0
        %1337 = vmatpush1.bf16.msra.mxu0 %v1250
        %1338 = vmatprep.subr.bf16.mxu0 0
        %1339 = vmatpush1.bf16.msra.mxu0 %v1247
        %1340 = vmatprep.subr.bf16.mxu0 0
        %1341 = vmatpush1.bf16.msra.mxu0 %v1244
        %1342 = vmatprep.subr.bf16.mxu0 0
        %1343 = vmatpush1.bf16.msra.mxu0 %v1241
        %1344 = vmatprep.subr.bf16.mxu0 0
        %1345 = vmatpush2.bf16.msra.mxu0 0
        %1346 = vmatprep.subr.bf16.mxu0 0
        %1347 = vmatpush2.bf16.msra.mxu0 0
        %1348 = vmatprep.subr.bf16.mxu0 0
        %1349 = vmatpush2.bf16.msra.mxu0 0
        %1350 = vmatprep.subr.bf16.mxu0 0
        %1351 = vmatpush2.bf16.msra.mxu0 0
        %1352 = vmatprep.subr.bf16.mxu0 0
        %1353 = vmatpush2.bf16.msra.mxu0 0
        %1354 = vmatprep.subr.bf16.mxu0 0
        %1355 = vmatpush2.bf16.msra.mxu0 0
        %1356 = vmatprep.subr.bf16.mxu0 0
        %1357 = vmatpush2.bf16.msra.mxu0 0
        %1358 = vmatprep.subr.bf16.mxu0 0
        %1359 = vmatpush2.bf16.msra.mxu0 0
        %1360 = vmatprep.mubr.bf16.mxu0 0
        %1361 = vmatmul.mubr.bf16.gmra.mxu0 %v1141
        %v1362 = vpop.f32.mrf.mxu0
        %v1363 = vadd.f32 %v1155, %v1362
        %v1364 = vpop.f32.mrf.mxu0
        %v1365 = vpop.f32.mrf.mxu0
        %v1366 = vpop.f32.mrf.mxu0
        %1367 = vdwg.mxu0
        %v1368 = vld [vmem:[%s1046] sm:$0xf]
        %v1369 = vld [vmem:[%s1046 + $0x4] sm:$0xf]
        %v1370 = vld [vmem:[%s1046 + $0x8] sm:$0xf]
        %v1371 = vld [vmem:[%s1046 + $0xc] sm:$0xf]
        %v1372 = vld [vmem:[%s1046 + $0x10] sm:$0xf]
        %v1373 = vld [vmem:[%s1046 + $0x14] sm:$0xf]
        %v1374 = vld [vmem:[%s1046 + $0x18] sm:$0xf]
        %v1375 = vld [vmem:[%s1046 + $0x1c] sm:$0xf]
        %v1376 = vld [vmem:[%s1046 + $0x20] sm:$0xf]
        %v1377 = vld [vmem:[%s1046 + $0x24] sm:$0xf]
        %v1378 = vld [vmem:[%s1046 + $0x28] sm:$0xf]
        %v1379 = vld [vmem:[%s1046 + $0x2c] sm:$0xf]
        %v1380 = vld [vmem:[%s1046 + $0x30] sm:$0xf]
        %v1381 = vld [vmem:[%s1046 + $0x34] sm:$0xf]
        %v1382 = vld [vmem:[%s1046 + $0x38] sm:$0xf]
        %v1383 = vld [vmem:[%s1046 + $0x3c] sm:$0xf]
        %v1384 = vld [vmem:[%s1049] sm:$0x1]
        %v1385 = vlaneseq
        %v1386 = vshrl.u32 %v1385, 7
        %v1387 = vlaneseq
        %v1388 = vand.u32 %v1387, 127
        %vm1389 = vcmp.ge.s32.totalorder %v1386, %v1388
        %v1390 = vpack.c.bf16 %v1322, %v1322
        %v1391 = vpack.c.bf16 %v1324, %v1324
        %vm1392 = vcmask 261120
        %v1394 = vsel %vm1392, %v1390, 0
        %v1397 = vsel %vm1392, %v1391, 0
        %1399 = vmatprep.subr.bf16.mxu0 0
        %1400 = vmatpush1.bf16.xpose.msra.mxu0 0
        %1401 = vmatprep.subr.bf16.mxu0 0
        %1402 = vmatpush1.bf16.xpose.msra.mxu0 0
        %1403 = vmatprep.subr.bf16.mxu0 0
        %1404 = vmatpush1.bf16.xpose.msra.mxu0 0
        %1405 = vmatprep.subr.bf16.mxu0 0
        %1406 = vmatpush1.bf16.xpose.msra.mxu0 0
        %1407 = vmatprep.subr.bf16.mxu0 0
        %1408 = vmatpush1.bf16.xpose.msra.mxu0 0
        %1409 = vmatprep.subr.bf16.mxu0 0
        %1410 = vmatpush1.bf16.xpose.msra.mxu0 0
        %1411 = vmatprep.subr.bf16.mxu0 0
        %1412 = vmatpush1.bf16.xpose.msra.mxu0 0
        %1413 = vmatprep.subr.bf16.mxu0 0
        %1414 = vmatpush1.bf16.xpose.msra.mxu0 %v1397
        %1415 = vmatprep.subr.bf16.mxu0 0
        %1416 = vmatpush2.bf16.xpose.msra.mxu0 0
        %1417 = vmatprep.subr.bf16.mxu0 0
        %1418 = vmatpush2.bf16.xpose.msra.mxu0 0
        %1419 = vmatprep.subr.bf16.mxu0 0
        %1420 = vmatpush2.bf16.xpose.msra.mxu0 0
        %1421 = vmatprep.subr.bf16.mxu0 0
        %1422 = vmatpush2.bf16.xpose.msra.mxu0 0
        %1423 = vmatprep.subr.bf16.mxu0 0
        %1424 = vmatpush2.bf16.xpose.msra.mxu0 0
        %1425 = vmatprep.subr.bf16.mxu0 0
        %1426 = vmatpush2.bf16.xpose.msra.mxu0 0
        %1427 = vmatprep.subr.bf16.mxu0 0
        %1428 = vmatpush2.bf16.xpose.msra.mxu0 0
        %1429 = vmatprep.subr.bf16.mxu0 0
        %1430 = vmatpush2.bf16.xpose.msra.mxu0 0
        %1431 = vmatprep.mubr.bf16.mxu0 0
        %1432 = vmatmul.mubr.bf16.gmra.mxu0 %v1394
        %v1433 = vpop.f32.mrf.mxu0
        %v1434 = vadd.f32 0.0, %v1433
        %v1435 = vpop.f32.mrf.mxu0
        %v1436 = vpop.f32.mrf.mxu0
        %v1437 = vpop.f32.mrf.mxu0
        %1438 = vdwg.mxu0
        %v1439 = vmul.f32 %v1434, 0.17677669
        %v1440 = vsel %vm1389, %v1439, -1e+30
        %vm1441 = vcmask 64512
        %v1442 = vsel %vm1441, %v1440, -inf
        %1443 = vmax.xlane.f32.xlu0 %v1442
        %v1444 = vpop.xlane.xlu0 %1443
        %v1445 = vsub.f32 %v1440, %v1444
        %v1446 = vmul.f32 %v1445, 1.442695
        %v1447 = vpow.pop %v1446
        %v1448 = vsel %vm1441, %v1447, 0.0
        %1449 = vadd.xlane.f32.xlu0 %v1448
        %v1450 = vpop.xlane.xlu0 %1449
        %v1451 = vrcp.pop %v1450
        %v1452 = vpack.c.bf16 %v1447, %v1447
        %v1453 = vpack.c.bf16 %v1363, %v1363
        %v1455 = vsel %vm1441, %v1452, 0
        %vm1457 = vcmask 1043456
        %v1459 = vsel %vm1457, %v1453, 0
        %1461 = vmatprep.subr.bf16.mxu0 0
        %1462 = vmatpush1.bf16.msra.mxu0 0
        %1463 = vmatprep.subr.bf16.mxu0 0
        %1464 = vmatpush1.bf16.msra.mxu0 0
        %1465 = vmatprep.subr.bf16.mxu0 0
        %1466 = vmatpush1.bf16.msra.mxu0 0
        %1467 = vmatprep.subr.bf16.mxu0 0
        %1468 = vmatpush1.bf16.msra.mxu0 0
        %1469 = vmatprep.subr.bf16.mxu0 0
        %1470 = vmatpush1.bf16.msra.mxu0 0
        %1471 = vmatprep.subr.bf16.mxu0 0
        %1472 = vmatpush1.bf16.msra.mxu0 0
        %1473 = vmatprep.subr.bf16.mxu0 0
        %1474 = vmatpush1.bf16.msra.mxu0 0
        %1475 = vmatprep.subr.bf16.mxu0 0
        %1476 = vmatpush1.bf16.msra.mxu0 %v1459
        %1477 = vmatprep.subr.bf16.mxu0 0
        %1478 = vmatpush2.bf16.msra.mxu0 0
        %1479 = vmatprep.subr.bf16.mxu0 0
        %1480 = vmatpush2.bf16.msra.mxu0 0
        %1481 = vmatprep.subr.bf16.mxu0 0
        %1482 = vmatpush2.bf16.msra.mxu0 0
        %1483 = vmatprep.subr.bf16.mxu0 0
        %1484 = vmatpush2.bf16.msra.mxu0 0
        %1485 = vmatprep.subr.bf16.mxu0 0
        %1486 = vmatpush2.bf16.msra.mxu0 0
        %1487 = vmatprep.subr.bf16.mxu0 0
        %1488 = vmatpush2.bf16.msra.mxu0 0
        %1489 = vmatprep.subr.bf16.mxu0 0
        %1490 = vmatpush2.bf16.msra.mxu0 0
        %1491 = vmatprep.subr.bf16.mxu0 0
        %1492 = vmatpush2.bf16.msra.mxu0 0
        %1493 = vmatprep.mubr.bf16.mxu0 0
        %1494 = vmatmul.mubr.bf16.gmra.mxu0 %v1455
        %v1495 = vpop.f32.mrf.mxu0
        %v1496 = vadd.f32 0.0, %v1495
        %v1497 = vpop.f32.mrf.mxu0
        %v1498 = vpop.f32.mrf.mxu0
        %v1499 = vpop.f32.mrf.mxu0
        %1500 = vdwg.mxu0
        %v1501 = vmul.f32 %v1496, %v1451
        %1503 = vrot.lane.b32.xlu0 %v1390, 96
        %v1504 = vpop.permute.xlu0 %1503
        %1506 = vrot.lane.b32.xlu0 %v1391, 96
        %v1507 = vpop.permute.xlu0 %1506
        %v1509 = vsel %vm1392, %v1504, 0
        %v1512 = vsel %vm1392, %v1507, 0
        %1514 = vmatprep.subr.bf16.mxu0 0
        %1515 = vmatpush1.bf16.xpose.msra.mxu0 0
        %1516 = vmatprep.subr.bf16.mxu0 0
        %1517 = vmatpush1.bf16.xpose.msra.mxu0 0
        %1518 = vmatprep.subr.bf16.mxu0 0
        %1519 = vmatpush1.bf16.xpose.msra.mxu0 0
        %1520 = vmatprep.subr.bf16.mxu0 0
        %1521 = vmatpush1.bf16.xpose.msra.mxu0 0
        %1522 = vmatprep.subr.bf16.mxu0 0
        %1523 = vmatpush1.bf16.xpose.msra.mxu0 0
        %1524 = vmatprep.subr.bf16.mxu0 0
        %1525 = vmatpush1.bf16.xpose.msra.mxu0 0
        %1526 = vmatprep.subr.bf16.mxu0 0
        %1527 = vmatpush1.bf16.xpose.msra.mxu0 0
        %1528 = vmatprep.subr.bf16.mxu0 0
        %1529 = vmatpush1.bf16.xpose.msra.mxu0 %v1512
        %1530 = vmatprep.subr.bf16.mxu0 0
        %1531 = vmatpush2.bf16.xpose.msra.mxu0 0
        %1532 = vmatprep.subr.bf16.mxu0 0
        %1533 = vmatpush2.bf16.xpose.msra.mxu0 0
        %1534 = vmatprep.subr.bf16.mxu0 0
        %1535 = vmatpush2.bf16.xpose.msra.mxu0 0
        %1536 = vmatprep.subr.bf16.mxu0 0
        %1537 = vmatpush2.bf16.xpose.msra.mxu0 0
        %1538 = vmatprep.subr.bf16.mxu0 0
        %1539 = vmatpush2.bf16.xpose.msra.mxu0 0
        %1540 = vmatprep.subr.bf16.mxu0 0
        %1541 = vmatpush2.bf16.xpose.msra.mxu0 0
        %1542 = vmatprep.subr.bf16.mxu0 0
        %1543 = vmatpush2.bf16.xpose.msra.mxu0 0
        %1544 = vmatprep.subr.bf16.mxu0 0
        %1545 = vmatpush2.bf16.xpose.msra.mxu0 0
        %1546 = vmatprep.mubr.bf16.mxu0 0
        %1547 = vmatmul.mubr.bf16.gmra.mxu0 %v1509
        %v1548 = vpop.f32.mrf.mxu0
        %v1549 = vadd.f32 0.0, %v1548
        %v1550 = vpop.f32.mrf.mxu0
        %v1551 = vpop.f32.mrf.mxu0
        %v1552 = vpop.f32.mrf.mxu0
        %1553 = vdwg.mxu0
        %v1554 = vmul.f32 %v1549, 0.17677669
        %v1555 = vsel %vm1389, %v1554, -1e+30
        %v1556 = vsel %vm1441, %v1555, -inf
        %1557 = vmax.xlane.f32.xlu0 %v1556
        %v1558 = vpop.xlane.xlu0 %1557
        %v1559 = vsub.f32 %v1555, %v1558
        %v1560 = vmul.f32 %v1559, 1.442695
        %v1561 = vpow.pop %v1560
        %v1562 = vsel %vm1441, %v1561, 0.0
        %1563 = vadd.xlane.f32.xlu0 %v1562
        %v1564 = vpop.xlane.xlu0 %1563
        %v1565 = vrcp.pop %v1564
        %v1566 = vpack.c.bf16 %v1561, %v1561
        %1568 = vrot.lane.b32.xlu0 %v1453, 96
        %v1569 = vpop.permute.xlu0 %1568
        %v1571 = vsel %vm1441, %v1566, 0
        %v1574 = vsel %vm1457, %v1569, 0
        %1576 = vmatprep.subr.bf16.mxu0 0
        %1577 = vmatpush1.bf16.msra.mxu0 0
        %1578 = vmatprep.subr.bf16.mxu0 0
        %1579 = vmatpush1.bf16.msra.mxu0 0
        %1580 = vmatprep.subr.bf16.mxu0 0
        %1581 = vmatpush1.bf16.msra.mxu0 0
        %1582 = vmatprep.subr.bf16.mxu0 0
        %1583 = vmatpush1.bf16.msra.mxu0 0
        %1584 = vmatprep.subr.bf16.mxu0 0
        %1585 = vmatpush1.bf16.msra.mxu0 0
        %1586 = vmatprep.subr.bf16.mxu0 0
        %1587 = vmatpush1.bf16.msra.mxu0 0
        %1588 = vmatprep.subr.bf16.mxu0 0
        %1589 = vmatpush1.bf16.msra.mxu0 0
        %1590 = vmatprep.subr.bf16.mxu0 0
        %1591 = vmatpush1.bf16.msra.mxu0 %v1574
        %1592 = vmatprep.subr.bf16.mxu0 0
        %1593 = vmatpush2.bf16.msra.mxu0 0
        %1594 = vmatprep.subr.bf16.mxu0 0
        %1595 = vmatpush2.bf16.msra.mxu0 0
        %1596 = vmatprep.subr.bf16.mxu0 0
        %1597 = vmatpush2.bf16.msra.mxu0 0
        %1598 = vmatprep.subr.bf16.mxu0 0
        %1599 = vmatpush2.bf16.msra.mxu0 0
        %1600 = vmatprep.subr.bf16.mxu0 0
        %1601 = vmatpush2.bf16.msra.mxu0 0
        %1602 = vmatprep.subr.bf16.mxu0 0
        %1603 = vmatpush2.bf16.msra.mxu0 0
        %1604 = vmatprep.subr.bf16.mxu0 0
        %1605 = vmatpush2.bf16.msra.mxu0 0
        %1606 = vmatprep.subr.bf16.mxu0 0
        %1607 = vmatpush2.bf16.msra.mxu0 0
        %1608 = vmatprep.mubr.bf16.mxu0 0
        %1609 = vmatmul.mubr.bf16.gmra.mxu0 %v1571
        %v1610 = vpop.f32.mrf.mxu0
        %v1611 = vadd.f32 0.0, %v1610
        %v1612 = vpop.f32.mrf.mxu0
        %v1613 = vpop.f32.mrf.mxu0
        %v1614 = vpop.f32.mrf.mxu0
        %1615 = vdwg.mxu0
        %v1616 = vmul.f32 %v1611, %v1565
        %1617 = vrot.lane.b32.xlu0 %v1390, 64
        %v1618 = vpop.permute.xlu0 %1617
        %1619 = vrot.lane.b32.xlu0 %v1391, 64
        %v1620 = vpop.permute.xlu0 %1619
        %v1622 = vsel %vm1392, %v1618, 0
        %v1625 = vsel %vm1392, %v1620, 0
        %1627 = vmatprep.subr.bf16.mxu0 0
        %1628 = vmatpush1.bf16.xpose.msra.mxu0 0
        %1629 = vmatprep.subr.bf16.mxu0 0
        %1630 = vmatpush1.bf16.xpose.msra.mxu0 0
        %1631 = vmatprep.subr.bf16.mxu0 0
        %1632 = vmatpush1.bf16.xpose.msra.mxu0 0
        %1633 = vmatprep.subr.bf16.mxu0 0
        %1634 = vmatpush1.bf16.xpose.msra.mxu0 0
        %1635 = vmatprep.subr.bf16.mxu0 0
        %1636 = vmatpush1.bf16.xpose.msra.mxu0 0
        %1637 = vmatprep.subr.bf16.mxu0 0
        %1638 = vmatpush1.bf16.xpose.msra.mxu0 0
        %1639 = vmatprep.subr.bf16.mxu0 0
        %1640 = vmatpush1.bf16.xpose.msra.mxu0 0
        %1641 = vmatprep.subr.bf16.mxu0 0
        %1642 = vmatpush1.bf16.xpose.msra.mxu0 %v1625
        %1643 = vmatprep.subr.bf16.mxu0 0
        %1644 = vmatpush2.bf16.xpose.msra.mxu0 0
        %1645 = vmatprep.subr.bf16.mxu0 0
        %1646 = vmatpush2.bf16.xpose.msra.mxu0 0
        %1647 = vmatprep.subr.bf16.mxu0 0
        %1648 = vmatpush2.bf16.xpose.msra.mxu0 0
        %1649 = vmatprep.subr.bf16.mxu0 0
        %1650 = vmatpush2.bf16.xpose.msra.mxu0 0
        %1651 = vmatprep.subr.bf16.mxu0 0
        %1652 = vmatpush2.bf16.xpose.msra.mxu0 0
        %1653 = vmatprep.subr.bf16.mxu0 0
        %1654 = vmatpush2.bf16.xpose.msra.mxu0 0
        %1655 = vmatprep.subr.bf16.mxu0 0
        %1656 = vmatpush2.bf16.xpose.msra.mxu0 0
        %1657 = vmatprep.subr.bf16.mxu0 0
        %1658 = vmatpush2.bf16.xpose.msra.mxu0 0
        %1659 = vmatprep.mubr.bf16.mxu0 0
        %1660 = vmatmul.mubr.bf16.gmra.mxu0 %v1622
        %v1661 = vpop.f32.mrf.mxu0
        %v1662 = vadd.f32 0.0, %v1661
        %v1663 = vpop.f32.mrf.mxu0
        %v1664 = vpop.f32.mrf.mxu0
        %v1665 = vpop.f32.mrf.mxu0
        %1666 = vdwg.mxu0
        %v1667 = vmul.f32 %v1662, 0.17677669
        %v1668 = vsel %vm1389, %v1667, -1e+30
        %v1669 = vsel %vm1441, %v1668, -inf
        %1670 = vmax.xlane.f32.xlu0 %v1669
        %v1671 = vpop.xlane.xlu0 %1670
        %v1672 = vsub.f32 %v1668, %v1671
        %v1673 = vmul.f32 %v1672, 1.442695
        %v1674 = vpow.pop %v1673
        %v1675 = vsel %vm1441, %v1674, 0.0
        %1676 = vadd.xlane.f32.xlu0 %v1675
        %v1677 = vpop.xlane.xlu0 %1676
        %v1678 = vrcp.pop %v1677
        %v1679 = vpack.c.bf16 %v1674, %v1674
        %1680 = vrot.lane.b32.xlu0 %v1453, 64
        %v1681 = vpop.permute.xlu0 %1680
        %v1683 = vsel %vm1441, %v1679, 0
        %v1686 = vsel %vm1457, %v1681, 0
        %1688 = vmatprep.subr.bf16.mxu0 0
        %1689 = vmatpush1.bf16.msra.mxu0 0
        %1690 = vmatprep.subr.bf16.mxu0 0
        %1691 = vmatpush1.bf16.msra.mxu0 0
        %1692 = vmatprep.subr.bf16.mxu0 0
        %1693 = vmatpush1.bf16.msra.mxu0 0
        %1694 = vmatprep.subr.bf16.mxu0 0
        %1695 = vmatpush1.bf16.msra.mxu0 0
        %1696 = vmatprep.subr.bf16.mxu0 0
        %1697 = vmatpush1.bf16.msra.mxu0 0
        %1698 = vmatprep.subr.bf16.mxu0 0
        %1699 = vmatpush1.bf16.msra.mxu0 0
        %1700 = vmatprep.subr.bf16.mxu0 0
        %1701 = vmatpush1.bf16.msra.mxu0 0
        %1702 = vmatprep.subr.bf16.mxu0 0
        %1703 = vmatpush1.bf16.msra.mxu0 %v1686
        %1704 = vmatprep.subr.bf16.mxu0 0
        %1705 = vmatpush2.bf16.msra.mxu0 0
        %1706 = vmatprep.subr.bf16.mxu0 0
        %1707 = vmatpush2.bf16.msra.mxu0 0
        %1708 = vmatprep.subr.bf16.mxu0 0
        %1709 = vmatpush2.bf16.msra.mxu0 0
        %1710 = vmatprep.subr.bf16.mxu0 0
        %1711 = vmatpush2.bf16.msra.mxu0 0
        %1712 = vmatprep.subr.bf16.mxu0 0
        %1713 = vmatpush2.bf16.msra.mxu0 0
        %1714 = vmatprep.subr.bf16.mxu0 0
        %1715 = vmatpush2.bf16.msra.mxu0 0
        %1716 = vmatprep.subr.bf16.mxu0 0
        %1717 = vmatpush2.bf16.msra.mxu0 0
        %1718 = vmatprep.subr.bf16.mxu0 0
        %1719 = vmatpush2.bf16.msra.mxu0 0
        %1720 = vmatprep.mubr.bf16.mxu0 0
        %1721 = vmatmul.mubr.bf16.gmra.mxu0 %v1683
        %v1722 = vpop.f32.mrf.mxu0
        %v1723 = vadd.f32 0.0, %v1722
        %v1724 = vpop.f32.mrf.mxu0
        %v1725 = vpop.f32.mrf.mxu0
        %v1726 = vpop.f32.mrf.mxu0
        %1727 = vdwg.mxu0
        %v1728 = vmul.f32 %v1723, %v1678
        %1729 = vrot.lane.b32.xlu0 %v1390, 32
        %v1730 = vpop.permute.xlu0 %1729
        %1731 = vrot.lane.b32.xlu0 %v1391, 32
        %v1732 = vpop.permute.xlu0 %1731
        %v1734 = vsel %vm1392, %v1730, 0
        %v1737 = vsel %vm1392, %v1732, 0
        %1739 = vmatprep.subr.bf16.mxu0 0
        %1740 = vmatpush1.bf16.xpose.msra.mxu0 0
        %1741 = vmatprep.subr.bf16.mxu0 0
        %1742 = vmatpush1.bf16.xpose.msra.mxu0 0
        %1743 = vmatprep.subr.bf16.mxu0 0
        %1744 = vmatpush1.bf16.xpose.msra.mxu0 0
        %1745 = vmatprep.subr.bf16.mxu0 0
        %1746 = vmatpush1.bf16.xpose.msra.mxu0 0
        %1747 = vmatprep.subr.bf16.mxu0 0
        %1748 = vmatpush1.bf16.xpose.msra.mxu0 0
        %1749 = vmatprep.subr.bf16.mxu0 0
        %1750 = vmatpush1.bf16.xpose.msra.mxu0 0
        %1751 = vmatprep.subr.bf16.mxu0 0
        %1752 = vmatpush1.bf16.xpose.msra.mxu0 0
        %1753 = vmatprep.subr.bf16.mxu0 0
        %1754 = vmatpush1.bf16.xpose.msra.mxu0 %v1737
        %1755 = vmatprep.subr.bf16.mxu0 0
        %1756 = vmatpush2.bf16.xpose.msra.mxu0 0
        %1757 = vmatprep.subr.bf16.mxu0 0
        %1758 = vmatpush2.bf16.xpose.msra.mxu0 0
        %1759 = vmatprep.subr.bf16.mxu0 0
        %1760 = vmatpush2.bf16.xpose.msra.mxu0 0
        %1761 = vmatprep.subr.bf16.mxu0 0
        %1762 = vmatpush2.bf16.xpose.msra.mxu0 0
        %1763 = vmatprep.subr.bf16.mxu0 0
        %1764 = vmatpush2.bf16.xpose.msra.mxu0 0
        %1765 = vmatprep.subr.bf16.mxu0 0
        %1766 = vmatpush2.bf16.xpose.msra.mxu0 0
        %1767 = vmatprep.subr.bf16.mxu0 0
        %1768 = vmatpush2.bf16.xpose.msra.mxu0 0
        %1769 = vmatprep.subr.bf16.mxu0 0
        %1770 = vmatpush2.bf16.xpose.msra.mxu0 0
        %1771 = vmatprep.mubr.bf16.mxu0 0
        %1772 = vmatmul.mubr.bf16.gmra.mxu0 %v1734
        %v1773 = vpop.f32.mrf.mxu0
        %v1774 = vadd.f32 0.0, %v1773
        %v1775 = vpop.f32.mrf.mxu0
        %v1776 = vpop.f32.mrf.mxu0
        %v1777 = vpop.f32.mrf.mxu0
        %1778 = vdwg.mxu0
        %v1779 = vmul.f32 %v1774, 0.17677669
        %v1780 = vsel %vm1389, %v1779, -1e+30
        %v1781 = vsel %vm1441, %v1780, -inf
        %1782 = vmax.xlane.f32.xlu0 %v1781
        %v1783 = vpop.xlane.xlu0 %1782
        %v1784 = vsub.f32 %v1780, %v1783
        %v1785 = vmul.f32 %v1784, 1.442695
        %v1786 = vpow.pop %v1785
        %v1787 = vsel %vm1441, %v1786, 0.0
        %1788 = vadd.xlane.f32.xlu0 %v1787
        %v1789 = vpop.xlane.xlu0 %1788
        %v1790 = vrcp.pop %v1789
        %v1791 = vpack.c.bf16 %v1786, %v1786
        %1792 = vrot.lane.b32.xlu0 %v1453, 32
        %v1793 = vpop.permute.xlu0 %1792
        %v1795 = vsel %vm1441, %v1791, 0
        %v1798 = vsel %vm1457, %v1793, 0
        %1800 = vmatprep.subr.bf16.mxu0 0
        %1801 = vmatpush1.bf16.msra.mxu0 0
        %1802 = vmatprep.subr.bf16.mxu0 0
        %1803 = vmatpush1.bf16.msra.mxu0 0
        %1804 = vmatprep.subr.bf16.mxu0 0
        %1805 = vmatpush1.bf16.msra.mxu0 0
        %1806 = vmatprep.subr.bf16.mxu0 0
        %1807 = vmatpush1.bf16.msra.mxu0 0
        %1808 = vmatprep.subr.bf16.mxu0 0
        %1809 = vmatpush1.bf16.msra.mxu0 0
        %1810 = vmatprep.subr.bf16.mxu0 0
        %1811 = vmatpush1.bf16.msra.mxu0 0
        %1812 = vmatprep.subr.bf16.mxu0 0
        %1813 = vmatpush1.bf16.msra.mxu0 0
        %1814 = vmatprep.subr.bf16.mxu0 0
        %1815 = vmatpush1.bf16.msra.mxu0 %v1798
        %1816 = vmatprep.subr.bf16.mxu0 0
        %1817 = vmatpush2.bf16.msra.mxu0 0
        %1818 = vmatprep.subr.bf16.mxu0 0
        %1819 = vmatpush2.bf16.msra.mxu0 0
        %1820 = vmatprep.subr.bf16.mxu0 0
        %1821 = vmatpush2.bf16.msra.mxu0 0
        %1822 = vmatprep.subr.bf16.mxu0 0
        %1823 = vmatpush2.bf16.msra.mxu0 0
        %1824 = vmatprep.subr.bf16.mxu0 0
        %1825 = vmatpush2.bf16.msra.mxu0 0
        %1826 = vmatprep.subr.bf16.mxu0 0
        %1827 = vmatpush2.bf16.msra.mxu0 0
        %1828 = vmatprep.subr.bf16.mxu0 0
        %1829 = vmatpush2.bf16.msra.mxu0 0
        %1830 = vmatprep.subr.bf16.mxu0 0
        %1831 = vmatpush2.bf16.msra.mxu0 0
        %1832 = vmatprep.mubr.bf16.mxu0 0
        %1833 = vmatmul.mubr.bf16.gmra.mxu0 %v1795
        %v1834 = vpop.f32.mrf.mxu0
        %v1835 = vadd.f32 0.0, %v1834
        %v1836 = vpop.f32.mrf.mxu0
        %v1837 = vpop.f32.mrf.mxu0
        %v1838 = vpop.f32.mrf.mxu0
        %1839 = vdwg.mxu0
        %v1840 = vmul.f32 %v1835, %v1790
        %1842 = vrot.lane.b32.xlu0 %v1616, 32
        %v1843 = vpop.permute.xlu0 %1842
        %1846 = vrot.lane.b32.xlu0 %v1728, 64
        %v1847 = vpop.permute.xlu0 %1846
        %1850 = vrot.lane.b32.xlu0 %v1840, 96
        %v1851 = vpop.permute.xlu0 %1850
        %v1853 = vsel %vm1392, %v1501, %v1843
        %vm1854 = vcmask 523264
        %v1855 = vsel %vm1854, %v1853, %v1847
        %vm1856 = vcmask 785408
        %v1857 = vsel %vm1856, %v1855, %v1851
        %v1858 = vpack.c.bf16 %v1857, %v1857
        %v1860 = vlaneseq
        %v1861 = vshrl.u32 %v1860, 7
        %v1862 = vsub.s32 0, %v1861
        %v1863 = vrot.slane %v1384, %v1862
        %v1881 = vunpack.c.l.b16 %v1368
        %v1882 = vunpack.c.l.b16 %v1369
        %v1883 = vunpack.c.l.b16 %v1370
        %v1884 = vunpack.c.l.b16 %v1371
        %v1885 = vunpack.c.l.b16 %v1372
        %v1886 = vunpack.c.l.b16 %v1373
        %v1887 = vunpack.c.l.b16 %v1374
        %v1888 = vunpack.c.l.b16 %v1375
        %v1889 = vunpack.c.l.b16 %v1376
        %v1890 = vunpack.c.l.b16 %v1377
        %v1891 = vunpack.c.l.b16 %v1378
        %v1892 = vunpack.c.l.b16 %v1379
        %v1893 = vunpack.c.l.b16 %v1380
        %v1894 = vunpack.c.l.b16 %v1381
        %v1895 = vunpack.c.l.b16 %v1382
        %v1896 = vunpack.c.l.b16 %v1383
        %v1897 = vpack.c.b16 %v1882, %v1881
        %v1898 = vpack.c.b16 %v1884, %v1883
        %v1899 = vpack.c.b16 %v1886, %v1885
        %v1900 = vpack.c.b16 %v1888, %v1887
        %v1901 = vpack.c.b16 %v1890, %v1889
        %v1902 = vpack.c.b16 %v1892, %v1891
        %v1903 = vpack.c.b16 %v1894, %v1893
        %v1904 = vpack.c.b16 %v1896, %v1895
        %1913 = vmatprep.subr.bf16.mxu0 0
        %1914 = vmatpush1.bf16.msra.mxu0 %v1904
        %1915 = vmatprep.subr.bf16.mxu0 0
        %1916 = vmatpush1.bf16.msra.mxu0 %v1903
        %1917 = vmatprep.subr.bf16.mxu0 0
        %1918 = vmatpush1.bf16.msra.mxu0 %v1902
        %1919 = vmatprep.subr.bf16.mxu0 0
        %1920 = vmatpush1.bf16.msra.mxu0 %v1901
        %1921 = vmatprep.subr.bf16.mxu0 0
        %1922 = vmatpush1.bf16.msra.mxu0 %v1900
        %1923 = vmatprep.subr.bf16.mxu0 0
        %1924 = vmatpush1.bf16.msra.mxu0 %v1899
        %1925 = vmatprep.subr.bf16.mxu0 0
        %1926 = vmatpush1.bf16.msra.mxu0 %v1898
        %1927 = vmatprep.subr.bf16.mxu0 0
        %1928 = vmatpush1.bf16.msra.mxu0 %v1897
        %1929 = vmatprep.subr.bf16.mxu0 0
        %1930 = vmatpush2.bf16.msra.mxu0 0
        %1931 = vmatprep.subr.bf16.mxu0 0
        %1932 = vmatpush2.bf16.msra.mxu0 0
        %1933 = vmatprep.subr.bf16.mxu0 0
        %1934 = vmatpush2.bf16.msra.mxu0 0
        %1935 = vmatprep.subr.bf16.mxu0 0
        %1936 = vmatpush2.bf16.msra.mxu0 0
        %1937 = vmatprep.subr.bf16.mxu0 0
        %1938 = vmatpush2.bf16.msra.mxu0 0
        %1939 = vmatprep.subr.bf16.mxu0 0
        %1940 = vmatpush2.bf16.msra.mxu0 0
        %1941 = vmatprep.subr.bf16.mxu0 0
        %1942 = vmatpush2.bf16.msra.mxu0 0
        %1943 = vmatprep.subr.bf16.mxu0 0
        %1944 = vmatpush2.bf16.msra.mxu0 0
        %1945 = vmatprep.mubr.bf16.mxu0 0
        %1946 = vmatmul.mubr.bf16.gmra.mxu0 %v1858
        %v1947 = vpop.f32.mrf.mxu0
        %v1948 = vadd.f32 %v1863, %v1947
        %v1949 = vpop.f32.mrf.mxu0
        %v1950 = vpop.f32.mrf.mxu0
        %v1951 = vpop.f32.mrf.mxu0
        %1952 = vdwg.mxu0
        %v1953 = vadd.f32 %v1106, %v1948
        %v1954 = vld [vmem:[%s1052] sm:$0x1]
        %v1955 = vld [vmem:[%s1055] sm:$0x1]
        %1956 = vadd.xlane.f32.xlu0 %v1953
        %v1957 = vpop.xlane.xlu0 %1956
        %v1958 = vrcp.pop 128.0
        %v1959 = vmul.f32 %v1957, %v1958
        %v1960 = vsub.f32 %v1953, %v1959
        %v1961 = vmul.f32 %v1960, %v1960
        %1962 = vadd.xlane.f32.xlu0 %v1961
        %v1963 = vpop.xlane.xlu0 %1962
        %v1964 = vmul.f32 %v1963, %v1958
        %v1965 = vadd.f32 %v1964, 1e-05
        %v1966 = vrsqrt.pop %v1965
        %v1967 = vmul.f32 %v1960, %v1966
        %v1969 = vlaneseq
        %v1970 = vshrl.u32 %v1969, 7
        %v1971 = vsub.s32 0, %v1970
        %v1972 = vrot.slane %v1954, %v1971
        %v1974 = vmul.f32 %v1967, %v1972
        %v1976 = vlaneseq
        %v1977 = vshrl.u32 %v1976, 7
        %v1978 = vsub.s32 0, %v1977
        %v1979 = vrot.slane %v1955, %v1978
        %v1981 = vadd.f32 %v1974, %v1979
        %v1982 = vld [vmem:[%s865] sm:$0xf]
        %v1983 = vld [vmem:[%s865 + $0x4] sm:$0xf]
        %v1984 = vld [vmem:[%s865 + $0x8] sm:$0xf]
        %v1985 = vld [vmem:[%s865 + $0xc] sm:$0xf]
        %v1986 = vld [vmem:[%s865 + $0x10] sm:$0xf]
        %v1987 = vld [vmem:[%s865 + $0x14] sm:$0xf]
        %v1988 = vld [vmem:[%s865 + $0x18] sm:$0xf]
        %v1989 = vld [vmem:[%s865 + $0x1c] sm:$0xf]
        %v1990 = vld [vmem:[%s865 + $0x20] sm:$0xf]
        %v1991 = vld [vmem:[%s865 + $0x24] sm:$0xf]
        %v1992 = vld [vmem:[%s865 + $0x28] sm:$0xf]
        %v1993 = vld [vmem:[%s865 + $0x2c] sm:$0xf]
        %v1994 = vld [vmem:[%s865 + $0x30] sm:$0xf]
        %v1995 = vld [vmem:[%s865 + $0x34] sm:$0xf]
        %v1996 = vld [vmem:[%s865 + $0x38] sm:$0xf]
        %v1997 = vld [vmem:[%s865 + $0x3c] sm:$0xf]
        %v1998 = vpack.c.bf16 %v1981, %v1981
        %v1999 = vld [vmem:[%s1058] sm:$0x1]
        %v2001 = vlaneseq
        %v2002 = vshrl.u32 %v2001, 7
        %v2003 = vsub.s32 0, %v2002
        %v2004 = vrot.slane %v1999, %v2003
        %v2022 = vunpack.c.l.b16 %v1982
        %v2023 = vunpack.c.l.b16 %v1983
        %v2024 = vunpack.c.l.b16 %v1984
        %v2025 = vunpack.c.l.b16 %v1985
        %v2026 = vunpack.c.l.b16 %v1986
        %v2027 = vunpack.c.l.b16 %v1987
        %v2028 = vunpack.c.l.b16 %v1988
        %v2029 = vunpack.c.l.b16 %v1989
        %v2030 = vunpack.c.l.b16 %v1990
        %v2031 = vunpack.c.l.b16 %v1991
        %v2032 = vunpack.c.l.b16 %v1992
        %v2033 = vunpack.c.l.b16 %v1993
        %v2034 = vunpack.c.l.b16 %v1994
        %v2035 = vunpack.c.l.b16 %v1995
        %v2036 = vunpack.c.l.b16 %v1996
        %v2037 = vunpack.c.l.b16 %v1997
        %v2038 = vpack.c.b16 %v2023, %v2022
        %v2039 = vpack.c.b16 %v2025, %v2024
        %v2040 = vpack.c.b16 %v2027, %v2026
        %v2041 = vpack.c.b16 %v2029, %v2028
        %v2042 = vpack.c.b16 %v2031, %v2030
        %v2043 = vpack.c.b16 %v2033, %v2032
        %v2044 = vpack.c.b16 %v2035, %v2034
        %v2045 = vpack.c.b16 %v2037, %v2036
        %2054 = vmatprep.subr.bf16.mxu0 0
        %2055 = vmatpush1.bf16.msra.mxu0 %v2045
        %2056 = vmatprep.subr.bf16.mxu0 0
        %2057 = vmatpush1.bf16.msra.mxu0 %v2044
        %2058 = vmatprep.subr.bf16.mxu0 0
        %2059 = vmatpush1.bf16.msra.mxu0 %v2043
        %2060 = vmatprep.subr.bf16.mxu0 0
        %2061 = vmatpush1.bf16.msra.mxu0 %v2042
        %2062 = vmatprep.subr.bf16.mxu0 0
        %2063 = vmatpush1.bf16.msra.mxu0 %v2041
        %2064 = vmatprep.subr.bf16.mxu0 0
        %2065 = vmatpush1.bf16.msra.mxu0 %v2040
        %2066 = vmatprep.subr.bf16.mxu0 0
        %2067 = vmatpush1.bf16.msra.mxu0 %v2039
        %2068 = vmatprep.subr.bf16.mxu0 0
        %2069 = vmatpush1.bf16.msra.mxu0 %v2038
        %2070 = vmatprep.subr.bf16.mxu0 0
        %2071 = vmatpush2.bf16.msra.mxu0 0
        %2072 = vmatprep.subr.bf16.mxu0 0
        %2073 = vmatpush2.bf16.msra.mxu0 0
        %2074 = vmatprep.subr.bf16.mxu0 0
        %2075 = vmatpush2.bf16.msra.mxu0 0
        %2076 = vmatprep.subr.bf16.mxu0 0
        %2077 = vmatpush2.bf16.msra.mxu0 0
        %2078 = vmatprep.subr.bf16.mxu0 0
        %2079 = vmatpush2.bf16.msra.mxu0 0
        %2080 = vmatprep.subr.bf16.mxu0 0
        %2081 = vmatpush2.bf16.msra.mxu0 0
        %2082 = vmatprep.subr.bf16.mxu0 0
        %2083 = vmatpush2.bf16.msra.mxu0 0
        %2084 = vmatprep.subr.bf16.mxu0 0
        %2085 = vmatpush2.bf16.msra.mxu0 0
        %2086 = vmatprep.mubr.bf16.mxu0 0
        %2087 = vmatmul.mubr.bf16.gmra.mxu0 %v1998
        %v2088 = vpop.f32.mrf.mxu0
        %v2089 = vadd.f32 %v2004, %v2088
        %v2090 = vpop.f32.mrf.mxu0
        %v2091 = vpop.f32.mrf.mxu0
        %v2092 = vpop.f32.mrf.mxu0
        %2093 = vdwg.mxu0
        %v2094 = vld [vmem:[%s874] sm:$0xff]
        %v2095 = vld [vmem:[%s874 + $0x8] sm:$0xff]
        %v2096 = vld [vmem:[%s874 + $0x10] sm:$0xff]
        %v2097 = vld [vmem:[%s874 + $0x18] sm:$0xff]
        %v2098 = vld [vmem:[%s874 + $0x20] sm:$0xff]
        %v2099 = vld [vmem:[%s874 + $0x28] sm:$0xff]
        %v2100 = vld [vmem:[%s874 + $0x30] sm:$0xff]
        %v2101 = vld [vmem:[%s874 + $0x38] sm:$0xff]
        %v2102 = vld [vmem:[%s874 + $0x40] sm:$0xff]
        %v2103 = vld [vmem:[%s874 + $0x48] sm:$0xff]
        %v2104 = vld [vmem:[%s874 + $0x50] sm:$0xff]
        %v2105 = vld [vmem:[%s874 + $0x58] sm:$0xff]
        %v2106 = vld [vmem:[%s874 + $0x60] sm:$0xff]
        %v2107 = vld [vmem:[%s874 + $0x68] sm:$0xff]
        %v2108 = vld [vmem:[%s874 + $0x70] sm:$0xff]
        %v2109 = vld [vmem:[%s874 + $0x78] sm:$0xff]
        %v2110 = vpack.c.bf16 %v1108, %v1107
        %v2111 = vld [vmem:[%s1062] sm:$0x3]
        %v2113 = vlaneseq
        %v2114 = vshrl.u32 %v2113, 7
        %v2115 = vsub.s32 0, %v2114
        %v2116 = vrot.slane %v2111, %v2115
        %v2117 = vlaneseq
        %v2118 = vshrl.u32 %v2117, 7
        %v2119 = vsub.s32 1, %v2118
        %v2120 = vrot.slane %v2111, %v2119
        %v2139 = vunpack.c.l.b16 %v2094
        %v2140 = vunpack.c.h.b16 %v2094
        %v2141 = vunpack.c.l.b16 %v2095
        %v2142 = vunpack.c.h.b16 %v2095
        %v2143 = vunpack.c.l.b16 %v2096
        %v2144 = vunpack.c.h.b16 %v2096
        %v2145 = vunpack.c.l.b16 %v2097
        %v2146 = vunpack.c.h.b16 %v2097
        %v2147 = vunpack.c.l.b16 %v2098
        %v2148 = vunpack.c.h.b16 %v2098
        %v2149 = vunpack.c.l.b16 %v2099
        %v2150 = vunpack.c.h.b16 %v2099
        %v2151 = vunpack.c.l.b16 %v2100
        %v2152 = vunpack.c.h.b16 %v2100
        %v2153 = vunpack.c.l.b16 %v2101
        %v2154 = vunpack.c.h.b16 %v2101
        %v2155 = vunpack.c.l.b16 %v2102
        %v2156 = vunpack.c.h.b16 %v2102
        %v2157 = vunpack.c.l.b16 %v2103
        %v2158 = vunpack.c.h.b16 %v2103
        %v2159 = vunpack.c.l.b16 %v2104
        %v2160 = vunpack.c.h.b16 %v2104
        %v2161 = vunpack.c.l.b16 %v2105
        %v2162 = vunpack.c.h.b16 %v2105
        %v2163 = vunpack.c.l.b16 %v2106
        %v2164 = vunpack.c.h.b16 %v2106
        %v2165 = vunpack.c.l.b16 %v2107
        %v2166 = vunpack.c.h.b16 %v2107
        %v2167 = vunpack.c.l.b16 %v2108
        %v2168 = vunpack.c.h.b16 %v2108
        %v2169 = vunpack.c.l.b16 %v2109
        %v2170 = vunpack.c.h.b16 %v2109
        %v2171 = vpack.c.b16 %v2141, %v2139
        %v2172 = vpack.c.b16 %v2142, %v2140
        %v2173 = vpack.c.b16 %v2145, %v2143
        %v2174 = vpack.c.b16 %v2146, %v2144
        %v2175 = vpack.c.b16 %v2149, %v2147
        %v2176 = vpack.c.b16 %v2150, %v2148
        %v2177 = vpack.c.b16 %v2153, %v2151
        %v2178 = vpack.c.b16 %v2154, %v2152
        %v2179 = vpack.c.b16 %v2157, %v2155
        %v2180 = vpack.c.b16 %v2158, %v2156
        %v2181 = vpack.c.b16 %v2161, %v2159
        %v2182 = vpack.c.b16 %v2162, %v2160
        %v2183 = vpack.c.b16 %v2165, %v2163
        %v2184 = vpack.c.b16 %v2166, %v2164
        %v2185 = vpack.c.b16 %v2169, %v2167
        %v2186 = vpack.c.b16 %v2170, %v2168
        %2203 = vmatprep.subr.bf16.mxu0 %v2186
        %2204 = vmatpush1.bf16.msra.mxu0 %v2185
        %2205 = vmatprep.subr.bf16.mxu0 %v2184
        %2206 = vmatpush1.bf16.msra.mxu0 %v2183
        %2207 = vmatprep.subr.bf16.mxu0 %v2182
        %2208 = vmatpush1.bf16.msra.mxu0 %v2181
        %2209 = vmatprep.subr.bf16.mxu0 %v2180
        %2210 = vmatpush1.bf16.msra.mxu0 %v2179
        %2211 = vmatprep.subr.bf16.mxu0 %v2178
        %2212 = vmatpush1.bf16.msra.mxu0 %v2177
        %2213 = vmatprep.subr.bf16.mxu0 %v2176
        %2214 = vmatpush1.bf16.msra.mxu0 %v2175
        %2215 = vmatprep.subr.bf16.mxu0 %v2174
        %2216 = vmatpush1.bf16.msra.mxu0 %v2173
        %2217 = vmatprep.subr.bf16.mxu0 %v2172
        %2218 = vmatpush1.bf16.msra.mxu0 %v2171
        %2219 = vmatprep.subr.bf16.mxu0 0
        %2220 = vmatpush2.bf16.msra.mxu0 0
        %2221 = vmatprep.subr.bf16.mxu0 0
        %2222 = vmatpush2.bf16.msra.mxu0 0
        %2223 = vmatprep.subr.bf16.mxu0 0
        %2224 = vmatpush2.bf16.msra.mxu0 0
        %2225 = vmatprep.subr.bf16.mxu0 0
        %2226 = vmatpush2.bf16.msra.mxu0 0
        %2227 = vmatprep.subr.bf16.mxu0 0
        %2228 = vmatpush2.bf16.msra.mxu0 0
        %2229 = vmatprep.subr.bf16.mxu0 0
        %2230 = vmatpush2.bf16.msra.mxu0 0
        %2231 = vmatprep.subr.bf16.mxu0 0
        %2232 = vmatpush2.bf16.msra.mxu0 0
        %2233 = vmatprep.subr.bf16.mxu0 0
        %2234 = vmatpush2.bf16.msra.mxu0 0
        %2235 = vmatprep.mubr.bf16.mxu0 0
        %2236 = vmatmul.mubr.bf16.gmra.mxu0 %v2110
        %v2237 = vpop.f32.mrf.mxu0
        %v2238 = vadd.f32 %v2116, %v2237
        %v2239 = vpop.f32.mrf.mxu0
        %v2240 = vadd.f32 %v2120, %v2239
        %v2241 = vpop.f32.mrf.mxu0
        %v2242 = vadd.f32 %v2116, %v2241
        %v2243 = vpop.f32.mrf.mxu0
        %v2244 = vadd.f32 %v2120, %v2243
        %2245 = vdwg.mxu0
        %v2246 = vld [vmem:[%s883] sm:$0xf]
        %v2247 = vld [vmem:[%s883 + $0x4] sm:$0xf]
        %v2248 = vld [vmem:[%s883 + $0x8] sm:$0xf]
        %v2249 = vld [vmem:[%s883 + $0xc] sm:$0xf]
        %v2250 = vld [vmem:[%s883 + $0x10] sm:$0xf]
        %v2251 = vld [vmem:[%s883 + $0x14] sm:$0xf]
        %v2252 = vld [vmem:[%s883 + $0x18] sm:$0xf]
        %v2253 = vld [vmem:[%s883 + $0x1c] sm:$0xf]
        %v2254 = vld [vmem:[%s883 + $0x20] sm:$0xf]
        %v2255 = vld [vmem:[%s883 + $0x24] sm:$0xf]
        %v2256 = vld [vmem:[%s883 + $0x28] sm:$0xf]
        %v2257 = vld [vmem:[%s883 + $0x2c] sm:$0xf]
        %v2258 = vld [vmem:[%s883 + $0x30] sm:$0xf]
        %v2259 = vld [vmem:[%s883 + $0x34] sm:$0xf]
        %v2260 = vld [vmem:[%s883 + $0x38] sm:$0xf]
        %v2261 = vld [vmem:[%s883 + $0x3c] sm:$0xf]
        %v2262 = vld [vmem:[%s1065] sm:$0x1]
        %v2263 = vpack.c.bf16 %v2089, %v2089
        %v2264 = vpack.c.bf16 %v2242, %v2238
        %v2266 = vsel %vm1392, %v2263, 0
        %v2269 = vsel %vm1392, %v2264, 0
        %2271 = vmatprep.subr.bf16.mxu0 0
        %2272 = vmatpush1.bf16.xpose.msra.mxu0 0
        %2273 = vmatprep.subr.bf16.mxu0 0
        %2274 = vmatpush1.bf16.xpose.msra.mxu0 0
        %2275 = vmatprep.subr.bf16.mxu0 0
        %2276 = vmatpush1.bf16.xpose.msra.mxu0 0
        %2277 = vmatprep.subr.bf16.mxu0 0
        %2278 = vmatpush1.bf16.xpose.msra.mxu0 0
        %2279 = vmatprep.subr.bf16.mxu0 0
        %2280 = vmatpush1.bf16.xpose.msra.mxu0 0
        %2281 = vmatprep.subr.bf16.mxu0 0
        %2282 = vmatpush1.bf16.xpose.msra.mxu0 0
        %2283 = vmatprep.subr.bf16.mxu0 0
        %2284 = vmatpush1.bf16.xpose.msra.mxu0 0
        %2285 = vmatprep.subr.bf16.mxu0 0
        %2286 = vmatpush1.bf16.xpose.msra.mxu0 %v2269
        %2287 = vmatprep.subr.bf16.mxu0 0
        %2288 = vmatpush2.bf16.xpose.msra.mxu0 0
        %2289 = vmatprep.subr.bf16.mxu0 0
        %2290 = vmatpush2.bf16.xpose.msra.mxu0 0
        %2291 = vmatprep.subr.bf16.mxu0 0
        %2292 = vmatpush2.bf16.xpose.msra.mxu0 0
        %2293 = vmatprep.subr.bf16.mxu0 0
        %2294 = vmatpush2.bf16.xpose.msra.mxu0 0
        %2295 = vmatprep.subr.bf16.mxu0 0
        %2296 = vmatpush2.bf16.xpose.msra.mxu0 0
        %2297 = vmatprep.subr.bf16.mxu0 0
        %2298 = vmatpush2.bf16.xpose.msra.mxu0 0
        %2299 = vmatprep.subr.bf16.mxu0 0
        %2300 = vmatpush2.bf16.xpose.msra.mxu0 0
        %2301 = vmatprep.subr.bf16.mxu0 0
        %2302 = vmatpush2.bf16.xpose.msra.mxu0 0
        %2303 = vmatprep.mubr.bf16.mxu0 0
        %2304 = vmatmul.mubr.bf16.gmra.mxu0 %v2266
        %v2305 = vpop.f32.mrf.mxu0
        %v2306 = vadd.f32 0.0, %v2305
        %v2307 = vpop.f32.mrf.mxu0
        %v2308 = vpop.f32.mrf.mxu0
        %v2309 = vpop.f32.mrf.mxu0
        %2310 = vdwg.mxu0
        %v2311 = vmul.f32 %v2306, 0.17677669
        %vm2312 = vcmask 130048
        %v2313 = vsel %vm2312, %v2311, -inf
        %2314 = vmax.xlane.f32.xlu0 %v2313
        %v2315 = vpop.xlane.xlu0 %2314
        %v2316 = vsub.f32 %v2311, %v2315
        %v2317 = vmul.f32 %v2316, 1.442695
        %v2318 = vpow.pop %v2317
        %v2319 = vsel %vm2312, %v2318, 0.0
        %2320 = vadd.xlane.f32.xlu0 %v2319
        %v2321 = vpop.xlane.xlu0 %2320
        %v2322 = vrcp.pop %v2321
        %v2323 = vpack.c.bf16 %v2318, %v2318
        %v2324 = vpack.c.bf16 %v2244, %v2240
        %v2326 = vsel %vm2312, %v2323, 0
        %2328 = vmatprep.subr.bf16.mxu0 0
        %2329 = vmatpush1.bf16.msra.mxu0 0
        %2330 = vmatprep.subr.bf16.mxu0 0
        %2331 = vmatpush1.bf16.msra.mxu0 0
        %2332 = vmatprep.subr.bf16.mxu0 0
        %2333 = vmatpush1.bf16.msra.mxu0 0
        %2334 = vmatprep.subr.bf16.mxu0 0
        %2335 = vmatpush1.bf16.msra.mxu0 0
        %2336 = vmatprep.subr.bf16.mxu0 0
        %2337 = vmatpush1.bf16.msra.mxu0 0
        %2338 = vmatprep.subr.bf16.mxu0 0
        %2339 = vmatpush1.bf16.msra.mxu0 0
        %2340 = vmatprep.subr.bf16.mxu0 0
        %2341 = vmatpush1.bf16.msra.mxu0 0
        %2342 = vmatprep.subr.bf16.mxu0 0
        %2343 = vmatpush1.bf16.msra.mxu0 %v2324
        %2344 = vmatprep.subr.bf16.mxu0 0
        %2345 = vmatpush2.bf16.msra.mxu0 0
        %2346 = vmatprep.subr.bf16.mxu0 0
        %2347 = vmatpush2.bf16.msra.mxu0 0
        %2348 = vmatprep.subr.bf16.mxu0 0
        %2349 = vmatpush2.bf16.msra.mxu0 0
        %2350 = vmatprep.subr.bf16.mxu0 0
        %2351 = vmatpush2.bf16.msra.mxu0 0
        %2352 = vmatprep.subr.bf16.mxu0 0
        %2353 = vmatpush2.bf16.msra.mxu0 0
        %2354 = vmatprep.subr.bf16.mxu0 0
        %2355 = vmatpush2.bf16.msra.mxu0 0
        %2356 = vmatprep.subr.bf16.mxu0 0
        %2357 = vmatpush2.bf16.msra.mxu0 0
        %2358 = vmatprep.subr.bf16.mxu0 0
        %2359 = vmatpush2.bf16.msra.mxu0 0
        %2360 = vmatprep.mubr.bf16.mxu0 0
        %2361 = vmatmul.mubr.bf16.gmra.mxu0 %v2326
        %v2362 = vpop.f32.mrf.mxu0
        %v2363 = vadd.f32 0.0, %v2362
        %v2364 = vpop.f32.mrf.mxu0
        %v2365 = vpop.f32.mrf.mxu0
        %v2366 = vpop.f32.mrf.mxu0
        %2367 = vdwg.mxu0
        %v2368 = vmul.f32 %v2363, %v2322
        %2370 = vrot.lane.b32.xlu0 %v2263, 96
        %v2371 = vpop.permute.xlu0 %2370
        %2373 = vrot.lane.b32.xlu0 %v2264, 96
        %v2374 = vpop.permute.xlu0 %2373
        %v2376 = vsel %vm1392, %v2371, 0
        %v2379 = vsel %vm1392, %v2374, 0
        %2381 = vmatprep.subr.bf16.mxu0 0
        %2382 = vmatpush1.bf16.xpose.msra.mxu0 0
        %2383 = vmatprep.subr.bf16.mxu0 0
        %2384 = vmatpush1.bf16.xpose.msra.mxu0 0
        %2385 = vmatprep.subr.bf16.mxu0 0
        %2386 = vmatpush1.bf16.xpose.msra.mxu0 0
        %2387 = vmatprep.subr.bf16.mxu0 0
        %2388 = vmatpush1.bf16.xpose.msra.mxu0 0
        %2389 = vmatprep.subr.bf16.mxu0 0
        %2390 = vmatpush1.bf16.xpose.msra.mxu0 0
        %2391 = vmatprep.subr.bf16.mxu0 0
        %2392 = vmatpush1.bf16.xpose.msra.mxu0 0
        %2393 = vmatprep.subr.bf16.mxu0 0
        %2394 = vmatpush1.bf16.xpose.msra.mxu0 0
        %2395 = vmatprep.subr.bf16.mxu0 0
        %2396 = vmatpush1.bf16.xpose.msra.mxu0 %v2379
        %2397 = vmatprep.subr.bf16.mxu0 0
        %2398 = vmatpush2.bf16.xpose.msra.mxu0 0
        %2399 = vmatprep.subr.bf16.mxu0 0
        %2400 = vmatpush2.bf16.xpose.msra.mxu0 0
        %2401 = vmatprep.subr.bf16.mxu0 0
        %2402 = vmatpush2.bf16.xpose.msra.mxu0 0
        %2403 = vmatprep.subr.bf16.mxu0 0
        %2404 = vmatpush2.bf16.xpose.msra.mxu0 0
        %2405 = vmatprep.subr.bf16.mxu0 0
        %2406 = vmatpush2.bf16.xpose.msra.mxu0 0
        %2407 = vmatprep.subr.bf16.mxu0 0
        %2408 = vmatpush2.bf16.xpose.msra.mxu0 0
        %2409 = vmatprep.subr.bf16.mxu0 0
        %2410 = vmatpush2.bf16.xpose.msra.mxu0 0
        %2411 = vmatprep.subr.bf16.mxu0 0
        %2412 = vmatpush2.bf16.xpose.msra.mxu0 0
        %2413 = vmatprep.mubr.bf16.mxu0 0
        %2414 = vmatmul.mubr.bf16.gmra.mxu0 %v2376
        %v2415 = vpop.f32.mrf.mxu0
        %v2416 = vadd.f32 0.0, %v2415
        %v2417 = vpop.f32.mrf.mxu0
        %v2418 = vpop.f32.mrf.mxu0
        %v2419 = vpop.f32.mrf.mxu0
        %2420 = vdwg.mxu0
        %v2421 = vmul.f32 %v2416, 0.17677669
        %v2422 = vsel %vm2312, %v2421, -inf
        %2423 = vmax.xlane.f32.xlu0 %v2422
        %v2424 = vpop.xlane.xlu0 %2423
        %v2425 = vsub.f32 %v2421, %v2424
        %v2426 = vmul.f32 %v2425, 1.442695
        %v2427 = vpow.pop %v2426
        %v2428 = vsel %vm2312, %v2427, 0.0
        %2429 = vadd.xlane.f32.xlu0 %v2428
        %v2430 = vpop.xlane.xlu0 %2429
        %v2431 = vrcp.pop %v2430
        %v2432 = vpack.c.bf16 %v2427, %v2427
        %2434 = vrot.lane.b32.xlu0 %v2324, 96
        %v2435 = vpop.permute.xlu0 %2434
        %v2438 = vsel %vm2312, %v2432, 0
        %2440 = vmatprep.subr.bf16.mxu0 0
        %2441 = vmatpush1.bf16.msra.mxu0 0
        %2442 = vmatprep.subr.bf16.mxu0 0
        %2443 = vmatpush1.bf16.msra.mxu0 0
        %2444 = vmatprep.subr.bf16.mxu0 0
        %2445 = vmatpush1.bf16.msra.mxu0 0
        %2446 = vmatprep.subr.bf16.mxu0 0
        %2447 = vmatpush1.bf16.msra.mxu0 0
        %2448 = vmatprep.subr.bf16.mxu0 0
        %2449 = vmatpush1.bf16.msra.mxu0 0
        %2450 = vmatprep.subr.bf16.mxu0 0
        %2451 = vmatpush1.bf16.msra.mxu0 0
        %2452 = vmatprep.subr.bf16.mxu0 0
        %2453 = vmatpush1.bf16.msra.mxu0 0
        %2454 = vmatprep.subr.bf16.mxu0 0
        %2455 = vmatpush1.bf16.msra.mxu0 %v2435
        %2456 = vmatprep.subr.bf16.mxu0 0
        %2457 = vmatpush2.bf16.msra.mxu0 0
        %2458 = vmatprep.subr.bf16.mxu0 0
        %2459 = vmatpush2.bf16.msra.mxu0 0
        %2460 = vmatprep.subr.bf16.mxu0 0
        %2461 = vmatpush2.bf16.msra.mxu0 0
        %2462 = vmatprep.subr.bf16.mxu0 0
        %2463 = vmatpush2.bf16.msra.mxu0 0
        %2464 = vmatprep.subr.bf16.mxu0 0
        %2465 = vmatpush2.bf16.msra.mxu0 0
        %2466 = vmatprep.subr.bf16.mxu0 0
        %2467 = vmatpush2.bf16.msra.mxu0 0
        %2468 = vmatprep.subr.bf16.mxu0 0
        %2469 = vmatpush2.bf16.msra.mxu0 0
        %2470 = vmatprep.subr.bf16.mxu0 0
        %2471 = vmatpush2.bf16.msra.mxu0 0
        %2472 = vmatprep.mubr.bf16.mxu0 0
        %2473 = vmatmul.mubr.bf16.gmra.mxu0 %v2438
        %v2474 = vpop.f32.mrf.mxu0
        %v2475 = vadd.f32 0.0, %v2474
        %v2476 = vpop.f32.mrf.mxu0
        %v2477 = vpop.f32.mrf.mxu0
        %v2478 = vpop.f32.mrf.mxu0
        %2479 = vdwg.mxu0
        %v2480 = vmul.f32 %v2475, %v2431
        %2481 = vrot.lane.b32.xlu0 %v2263, 64
        %v2482 = vpop.permute.xlu0 %2481
        %2483 = vrot.lane.b32.xlu0 %v2264, 64
        %v2484 = vpop.permute.xlu0 %2483
        %v2486 = vsel %vm1392, %v2482, 0
        %v2489 = vsel %vm1392, %v2484, 0
        %2491 = vmatprep.subr.bf16.mxu0 0
        %2492 = vmatpush1.bf16.xpose.msra.mxu0 0
        %2493 = vmatprep.subr.bf16.mxu0 0
        %2494 = vmatpush1.bf16.xpose.msra.mxu0 0
        %2495 = vmatprep.subr.bf16.mxu0 0
        %2496 = vmatpush1.bf16.xpose.msra.mxu0 0
        %2497 = vmatprep.subr.bf16.mxu0 0
        %2498 = vmatpush1.bf16.xpose.msra.mxu0 0
        %2499 = vmatprep.subr.bf16.mxu0 0
        %2500 = vmatpush1.bf16.xpose.msra.mxu0 0
        %2501 = vmatprep.subr.bf16.mxu0 0
        %2502 = vmatpush1.bf16.xpose.msra.mxu0 0
        %2503 = vmatprep.subr.bf16.mxu0 0
        %2504 = vmatpush1.bf16.xpose.msra.mxu0 0
        %2505 = vmatprep.subr.bf16.mxu0 0
        %2506 = vmatpush1.bf16.xpose.msra.mxu0 %v2489
        %2507 = vmatprep.subr.bf16.mxu0 0
        %2508 = vmatpush2.bf16.xpose.msra.mxu0 0
        %2509 = vmatprep.subr.bf16.mxu0 0
        %2510 = vmatpush2.bf16.xpose.msra.mxu0 0
        %2511 = vmatprep.subr.bf16.mxu0 0
        %2512 = vmatpush2.bf16.xpose.msra.mxu0 0
        %2513 = vmatprep.subr.bf16.mxu0 0
        %2514 = vmatpush2.bf16.xpose.msra.mxu0 0
        %2515 = vmatprep.subr.bf16.mxu0 0
        %2516 = vmatpush2.bf16.xpose.msra.mxu0 0
        %2517 = vmatprep.subr.bf16.mxu0 0
        %2518 = vmatpush2.bf16.xpose.msra.mxu0 0
        %2519 = vmatprep.subr.bf16.mxu0 0
        %2520 = vmatpush2.bf16.xpose.msra.mxu0 0
        %2521 = vmatprep.subr.bf16.mxu0 0
        %2522 = vmatpush2.bf16.xpose.msra.mxu0 0
        %2523 = vmatprep.mubr.bf16.mxu0 0
        %2524 = vmatmul.mubr.bf16.gmra.mxu0 %v2486
        %v2525 = vpop.f32.mrf.mxu0
        %v2526 = vadd.f32 0.0, %v2525
        %v2527 = vpop.f32.mrf.mxu0
        %v2528 = vpop.f32.mrf.mxu0
        %v2529 = vpop.f32.mrf.mxu0
        %2530 = vdwg.mxu0
        %v2531 = vmul.f32 %v2526, 0.17677669
        %v2532 = vsel %vm2312, %v2531, -inf
        %2533 = vmax.xlane.f32.xlu0 %v2532
        %v2534 = vpop.xlane.xlu0 %2533
        %v2535 = vsub.f32 %v2531, %v2534
        %v2536 = vmul.f32 %v2535, 1.442695
        %v2537 = vpow.pop %v2536
        %v2538 = vsel %vm2312, %v2537, 0.0
        %2539 = vadd.xlane.f32.xlu0 %v2538
        %v2540 = vpop.xlane.xlu0 %2539
        %v2541 = vrcp.pop %v2540
        %v2542 = vpack.c.bf16 %v2537, %v2537
        %2543 = vrot.lane.b32.xlu0 %v2324, 64
        %v2544 = vpop.permute.xlu0 %2543
        %v2547 = vsel %vm2312, %v2542, 0
        %2549 = vmatprep.subr.bf16.mxu0 0
        %2550 = vmatpush1.bf16.msra.mxu0 0
        %2551 = vmatprep.subr.bf16.mxu0 0
        %2552 = vmatpush1.bf16.msra.mxu0 0
        %2553 = vmatprep.subr.bf16.mxu0 0
        %2554 = vmatpush1.bf16.msra.mxu0 0
        %2555 = vmatprep.subr.bf16.mxu0 0
        %2556 = vmatpush1.bf16.msra.mxu0 0
        %2557 = vmatprep.subr.bf16.mxu0 0
        %2558 = vmatpush1.bf16.msra.mxu0 0
        %2559 = vmatprep.subr.bf16.mxu0 0
        %2560 = vmatpush1.bf16.msra.mxu0 0
        %2561 = vmatprep.subr.bf16.mxu0 0
        %2562 = vmatpush1.bf16.msra.mxu0 0
        %2563 = vmatprep.subr.bf16.mxu0 0
        %2564 = vmatpush1.bf16.msra.mxu0 %v2544
        %2565 = vmatprep.subr.bf16.mxu0 0
        %2566 = vmatpush2.bf16.msra.mxu0 0
        %2567 = vmatprep.subr.bf16.mxu0 0
        %2568 = vmatpush2.bf16.msra.mxu0 0
        %2569 = vmatprep.subr.bf16.mxu0 0
        %2570 = vmatpush2.bf16.msra.mxu0 0
        %2571 = vmatprep.subr.bf16.mxu0 0
        %2572 = vmatpush2.bf16.msra.mxu0 0
        %2573 = vmatprep.subr.bf16.mxu0 0
        %2574 = vmatpush2.bf16.msra.mxu0 0
        %2575 = vmatprep.subr.bf16.mxu0 0
        %2576 = vmatpush2.bf16.msra.mxu0 0
        %2577 = vmatprep.subr.bf16.mxu0 0
        %2578 = vmatpush2.bf16.msra.mxu0 0
        %2579 = vmatprep.subr.bf16.mxu0 0
        %2580 = vmatpush2.bf16.msra.mxu0 0
        %2581 = vmatprep.mubr.bf16.mxu0 0
        %2582 = vmatmul.mubr.bf16.gmra.mxu0 %v2547
        %v2583 = vpop.f32.mrf.mxu0
        %v2584 = vadd.f32 0.0, %v2583
        %v2585 = vpop.f32.mrf.mxu0
        %v2586 = vpop.f32.mrf.mxu0
        %v2587 = vpop.f32.mrf.mxu0
        %2588 = vdwg.mxu0
        %v2589 = vmul.f32 %v2584, %v2541
        %2590 = vrot.lane.b32.xlu0 %v2263, 32
        %v2591 = vpop.permute.xlu0 %2590
        %2592 = vrot.lane.b32.xlu0 %v2264, 32
        %v2593 = vpop.permute.xlu0 %2592
        %v2595 = vsel %vm1392, %v2591, 0
        %v2598 = vsel %vm1392, %v2593, 0
        %2600 = vmatprep.subr.bf16.mxu0 0
        %2601 = vmatpush1.bf16.xpose.msra.mxu0 0
        %2602 = vmatprep.subr.bf16.mxu0 0
        %2603 = vmatpush1.bf16.xpose.msra.mxu0 0
        %2604 = vmatprep.subr.bf16.mxu0 0
        %2605 = vmatpush1.bf16.xpose.msra.mxu0 0
        %2606 = vmatprep.subr.bf16.mxu0 0
        %2607 = vmatpush1.bf16.xpose.msra.mxu0 0
        %2608 = vmatprep.subr.bf16.mxu0 0
        %2609 = vmatpush1.bf16.xpose.msra.mxu0 0
        %2610 = vmatprep.subr.bf16.mxu0 0
        %2611 = vmatpush1.bf16.xpose.msra.mxu0 0
        %2612 = vmatprep.subr.bf16.mxu0 0
        %2613 = vmatpush1.bf16.xpose.msra.mxu0 0
        %2614 = vmatprep.subr.bf16.mxu0 0
        %2615 = vmatpush1.bf16.xpose.msra.mxu0 %v2598
        %2616 = vmatprep.subr.bf16.mxu0 0
        %2617 = vmatpush2.bf16.xpose.msra.mxu0 0
        %2618 = vmatprep.subr.bf16.mxu0 0
        %2619 = vmatpush2.bf16.xpose.msra.mxu0 0
        %2620 = vmatprep.subr.bf16.mxu0 0
        %2621 = vmatpush2.bf16.xpose.msra.mxu0 0
        %2622 = vmatprep.subr.bf16.mxu0 0
        %2623 = vmatpush2.bf16.xpose.msra.mxu0 0
        %2624 = vmatprep.subr.bf16.mxu0 0
        %2625 = vmatpush2.bf16.xpose.msra.mxu0 0
        %2626 = vmatprep.subr.bf16.mxu0 0
        %2627 = vmatpush2.bf16.xpose.msra.mxu0 0
        %2628 = vmatprep.subr.bf16.mxu0 0
        %2629 = vmatpush2.bf16.xpose.msra.mxu0 0
        %2630 = vmatprep.subr.bf16.mxu0 0
        %2631 = vmatpush2.bf16.xpose.msra.mxu0 0
        %2632 = vmatprep.mubr.bf16.mxu0 0
        %2633 = vmatmul.mubr.bf16.gmra.mxu0 %v2595
        %v2634 = vpop.f32.mrf.mxu0
        %v2635 = vadd.f32 0.0, %v2634
        %v2636 = vpop.f32.mrf.mxu0
        %v2637 = vpop.f32.mrf.mxu0
        %v2638 = vpop.f32.mrf.mxu0
        %2639 = vdwg.mxu0
        %v2640 = vmul.f32 %v2635, 0.17677669
        %v2641 = vsel %vm2312, %v2640, -inf
        %2642 = vmax.xlane.f32.xlu0 %v2641
        %v2643 = vpop.xlane.xlu0 %2642
        %v2644 = vsub.f32 %v2640, %v2643
        %v2645 = vmul.f32 %v2644, 1.442695
        %v2646 = vpow.pop %v2645
        %v2647 = vsel %vm2312, %v2646, 0.0
        %2648 = vadd.xlane.f32.xlu0 %v2647
        %v2649 = vpop.xlane.xlu0 %2648
        %v2650 = vrcp.pop %v2649
        %v2651 = vpack.c.bf16 %v2646, %v2646
        %2652 = vrot.lane.b32.xlu0 %v2324, 32
        %v2653 = vpop.permute.xlu0 %2652
        %v2656 = vsel %vm2312, %v2651, 0
        %2658 = vmatprep.subr.bf16.mxu0 0
        %2659 = vmatpush1.bf16.msra.mxu0 0
        %2660 = vmatprep.subr.bf16.mxu0 0
        %2661 = vmatpush1.bf16.msra.mxu0 0
        %2662 = vmatprep.subr.bf16.mxu0 0
        %2663 = vmatpush1.bf16.msra.mxu0 0
        %2664 = vmatprep.subr.bf16.mxu0 0
        %2665 = vmatpush1.bf16.msra.mxu0 0
        %2666 = vmatprep.subr.bf16.mxu0 0
        %2667 = vmatpush1.bf16.msra.mxu0 0
        %2668 = vmatprep.subr.bf16.mxu0 0
        %2669 = vmatpush1.bf16.msra.mxu0 0
        %2670 = vmatprep.subr.bf16.mxu0 0
        %2671 = vmatpush1.bf16.msra.mxu0 0
        %2672 = vmatprep.subr.bf16.mxu0 0
        %2673 = vmatpush1.bf16.msra.mxu0 %v2653
        %2674 = vmatprep.subr.bf16.mxu0 0
        %2675 = vmatpush2.bf16.msra.mxu0 0
        %2676 = vmatprep.subr.bf16.mxu0 0
        %2677 = vmatpush2.bf16.msra.mxu0 0
        %2678 = vmatprep.subr.bf16.mxu0 0
        %2679 = vmatpush2.bf16.msra.mxu0 0
        %2680 = vmatprep.subr.bf16.mxu0 0
        %2681 = vmatpush2.bf16.msra.mxu0 0
        %2682 = vmatprep.subr.bf16.mxu0 0
        %2683 = vmatpush2.bf16.msra.mxu0 0
        %2684 = vmatprep.subr.bf16.mxu0 0
        %2685 = vmatpush2.bf16.msra.mxu0 0
        %2686 = vmatprep.subr.bf16.mxu0 0
        %2687 = vmatpush2.bf16.msra.mxu0 0
        %2688 = vmatprep.subr.bf16.mxu0 0
        %2689 = vmatpush2.bf16.msra.mxu0 0
        %2690 = vmatprep.mubr.bf16.mxu0 0
        %2691 = vmatmul.mubr.bf16.gmra.mxu0 %v2656
        %v2692 = vpop.f32.mrf.mxu0
        %v2693 = vadd.f32 0.0, %v2692
        %v2694 = vpop.f32.mrf.mxu0
        %v2695 = vpop.f32.mrf.mxu0
        %v2696 = vpop.f32.mrf.mxu0
        %2697 = vdwg.mxu0
        %v2698 = vmul.f32 %v2693, %v2650
        %2700 = vrot.lane.b32.xlu0 %v2480, 32
        %v2701 = vpop.permute.xlu0 %2700
        %2704 = vrot.lane.b32.xlu0 %v2589, 64
        %v2705 = vpop.permute.xlu0 %2704
        %2708 = vrot.lane.b32.xlu0 %v2698, 96
        %v2709 = vpop.permute.xlu0 %2708
        %v2711 = vsel %vm1392, %v2368, %v2701
        %v2712 = vsel %vm1854, %v2711, %v2705
        %v2713 = vsel %vm1856, %v2712, %v2709
        %v2714 = vpack.c.bf16 %v2713, %v2713
        %v2716 = vlaneseq
        %v2717 = vshrl.u32 %v2716, 7
        %v2718 = vsub.s32 0, %v2717
        %v2719 = vrot.slane %v2262, %v2718
        %v2737 = vunpack.c.l.b16 %v2246
        %v2738 = vunpack.c.l.b16 %v2247
        %v2739 = vunpack.c.l.b16 %v2248
        %v2740 = vunpack.c.l.b16 %v2249
        %v2741 = vunpack.c.l.b16 %v2250
        %v2742 = vunpack.c.l.b16 %v2251
        %v2743 = vunpack.c.l.b16 %v2252
        %v2744 = vunpack.c.l.b16 %v2253
        %v2745 = vunpack.c.l.b16 %v2254
        %v2746 = vunpack.c.l.b16 %v2255
        %v2747 = vunpack.c.l.b16 %v2256
        %v2748 = vunpack.c.l.b16 %v2257
        %v2749 = vunpack.c.l.b16 %v2258
        %v2750 = vunpack.c.l.b16 %v2259
        %v2751 = vunpack.c.l.b16 %v2260
        %v2752 = vunpack.c.l.b16 %v2261
        %v2753 = vpack.c.b16 %v2738, %v2737
        %v2754 = vpack.c.b16 %v2740, %v2739
        %v2755 = vpack.c.b16 %v2742, %v2741
        %v2756 = vpack.c.b16 %v2744, %v2743
        %v2757 = vpack.c.b16 %v2746, %v2745
        %v2758 = vpack.c.b16 %v2748, %v2747
        %v2759 = vpack.c.b16 %v2750, %v2749
        %v2760 = vpack.c.b16 %v2752, %v2751
        %2769 = vmatprep.subr.bf16.mxu0 0
        %2770 = vmatpush1.bf16.msra.mxu0 %v2760
        %2771 = vmatprep.subr.bf16.mxu0 0
        %2772 = vmatpush1.bf16.msra.mxu0 %v2759
        %2773 = vmatprep.subr.bf16.mxu0 0
        %2774 = vmatpush1.bf16.msra.mxu0 %v2758
        %2775 = vmatprep.subr.bf16.mxu0 0
        %2776 = vmatpush1.bf16.msra.mxu0 %v2757
        %2777 = vmatprep.subr.bf16.mxu0 0
        %2778 = vmatpush1.bf16.msra.mxu0 %v2756
        %2779 = vmatprep.subr.bf16.mxu0 0
        %2780 = vmatpush1.bf16.msra.mxu0 %v2755
        %2781 = vmatprep.subr.bf16.mxu0 0
        %2782 = vmatpush1.bf16.msra.mxu0 %v2754
        %2783 = vmatprep.subr.bf16.mxu0 0
        %2784 = vmatpush1.bf16.msra.mxu0 %v2753
        %2785 = vmatprep.subr.bf16.mxu0 0
        %2786 = vmatpush2.bf16.msra.mxu0 0
        %2787 = vmatprep.subr.bf16.mxu0 0
        %2788 = vmatpush2.bf16.msra.mxu0 0
        %2789 = vmatprep.subr.bf16.mxu0 0
        %2790 = vmatpush2.bf16.msra.mxu0 0
        %2791 = vmatprep.subr.bf16.mxu0 0
        %2792 = vmatpush2.bf16.msra.mxu0 0
        %2793 = vmatprep.subr.bf16.mxu0 0
        %2794 = vmatpush2.bf16.msra.mxu0 0
        %2795 = vmatprep.subr.bf16.mxu0 0
        %2796 = vmatpush2.bf16.msra.mxu0 0
        %2797 = vmatprep.subr.bf16.mxu0 0
        %2798 = vmatpush2.bf16.msra.mxu0 0
        %2799 = vmatprep.subr.bf16.mxu0 0
        %2800 = vmatpush2.bf16.msra.mxu0 0
        %2801 = vmatprep.mubr.bf16.mxu0 0
        %2802 = vmatmul.mubr.bf16.gmra.mxu0 %v2714
        %v2803 = vpop.f32.mrf.mxu0
        %v2804 = vadd.f32 %v2719, %v2803
        %v2805 = vpop.f32.mrf.mxu0
        %v2806 = vpop.f32.mrf.mxu0
        %v2807 = vpop.f32.mrf.mxu0
        %2808 = vdwg.mxu0
        %v2809 = vadd.f32 %v1981, %v2804
        %v2810 = vld [vmem:[%s1068] sm:$0x1]
        %v2811 = vld [vmem:[%s1071] sm:$0x1]
        %2812 = vadd.xlane.f32.xlu0 %v2809
        %v2813 = vpop.xlane.xlu0 %2812
        %v2814 = vmul.f32 %v2813, %v1958
        %v2815 = vsub.f32 %v2809, %v2814
        %v2816 = vmul.f32 %v2815, %v2815
        %2817 = vadd.xlane.f32.xlu0 %v2816
        %v2818 = vpop.xlane.xlu0 %2817
        %v2819 = vmul.f32 %v2818, %v1958
        %v2820 = vadd.f32 %v2819, 1e-05
        %v2821 = vrsqrt.pop %v2820
        %v2822 = vmul.f32 %v2815, %v2821
        %v2824 = vlaneseq
        %v2825 = vshrl.u32 %v2824, 7
        %v2826 = vsub.s32 0, %v2825
        %v2827 = vrot.slane %v2810, %v2826
        %v2829 = vmul.f32 %v2822, %v2827
        %v2831 = vlaneseq
        %v2832 = vshrl.u32 %v2831, 7
        %v2833 = vsub.s32 0, %v2832
        %v2834 = vrot.slane %v2811, %v2833
        %v2836 = vadd.f32 %v2829, %v2834
        %v2837 = vld [vmem:[%s1076] sm:$0xff]
        %v2838 = vld [vmem:[%s1076 + $0x8] sm:$0xff]
        %v2839 = vld [vmem:[%s1076 + $0x10] sm:$0xff]
        %v2840 = vld [vmem:[%s1076 + $0x18] sm:$0xff]
        %v2841 = vld [vmem:[%s1076 + $0x20] sm:$0xff]
        %v2842 = vld [vmem:[%s1076 + $0x28] sm:$0xff]
        %v2843 = vld [vmem:[%s1076 + $0x30] sm:$0xff]
        %v2844 = vld [vmem:[%s1076 + $0x38] sm:$0xff]
        %v2845 = vld [vmem:[%s1076 + $0x40] sm:$0xff]
        %v2846 = vld [vmem:[%s1076 + $0x48] sm:$0xff]
        %v2847 = vld [vmem:[%s1076 + $0x50] sm:$0xff]
        %v2848 = vld [vmem:[%s1076 + $0x58] sm:$0xff]
        %v2849 = vld [vmem:[%s1076 + $0x60] sm:$0xff]
        %v2850 = vld [vmem:[%s1076 + $0x68] sm:$0xff]
        %v2851 = vld [vmem:[%s1076 + $0x70] sm:$0xff]
        %v2852 = vld [vmem:[%s1076 + $0x78] sm:$0xff]
        %v2853 = vld [vmem:[%s1076 + $0x80] sm:$0xff]
        %v2854 = vld [vmem:[%s1076 + $0x88] sm:$0xff]
        %v2855 = vld [vmem:[%s1076 + $0x90] sm:$0xff]
        %v2856 = vld [vmem:[%s1076 + $0x98] sm:$0xff]
        %v2857 = vld [vmem:[%s1076 + $0xa0] sm:$0xff]
        %v2858 = vld [vmem:[%s1076 + $0xa8] sm:$0xff]
        %v2859 = vld [vmem:[%s1076 + $0xb0] sm:$0xff]
        %v2860 = vld [vmem:[%s1076 + $0xb8] sm:$0xff]
        %v2861 = vld [vmem:[%s1076 + $0xc0] sm:$0xff]
        %v2862 = vld [vmem:[%s1076 + $0xc8] sm:$0xff]
        %v2863 = vld [vmem:[%s1076 + $0xd0] sm:$0xff]
        %v2864 = vld [vmem:[%s1076 + $0xd8] sm:$0xff]
        %v2865 = vld [vmem:[%s1076 + $0xe0] sm:$0xff]
        %v2866 = vld [vmem:[%s1076 + $0xe8] sm:$0xff]
        %v2867 = vld [vmem:[%s1076 + $0xf0] sm:$0xff]
        %v2868 = vld [vmem:[%s1076 + $0xf8] sm:$0xff]
        %v2869 = vpack.c.bf16 %v2836, %v2836
        %v2870 = vld [vmem:[%s1080] sm:$0xf]
        %v2872 = vlaneseq
        %v2873 = vshrl.u32 %v2872, 7
        %v2874 = vsub.s32 0, %v2873
        %v2875 = vrot.slane %v2870, %v2874
        %v2876 = vlaneseq
        %v2877 = vshrl.u32 %v2876, 7
        %v2878 = vsub.s32 1, %v2877
        %v2879 = vrot.slane %v2870, %v2878
        %v2880 = vlaneseq
        %v2881 = vshrl.u32 %v2880, 7
        %v2882 = vsub.s32 2, %v2881
        %v2883 = vrot.slane %v2870, %v2882
        %v2884 = vlaneseq
        %v2885 = vshrl.u32 %v2884, 7
        %v2886 = vsub.s32 3, %v2885
        %v2887 = vrot.slane %v2870, %v2886
        %v2924 = vunpack.c.l.b16 %v2837
        %v2925 = vunpack.c.h.b16 %v2837
        %v2926 = vunpack.c.l.b16 %v2838
        %v2927 = vunpack.c.h.b16 %v2838
        %v2928 = vunpack.c.l.b16 %v2839
        %v2929 = vunpack.c.h.b16 %v2839
        %v2930 = vunpack.c.l.b16 %v2840
        %v2931 = vunpack.c.h.b16 %v2840
        %v2932 = vunpack.c.l.b16 %v2841
        %v2933 = vunpack.c.h.b16 %v2841
        %v2934 = vunpack.c.l.b16 %v2842
        %v2935 = vunpack.c.h.b16 %v2842
        %v2936 = vunpack.c.l.b16 %v2843
        %v2937 = vunpack.c.h.b16 %v2843
        %v2938 = vunpack.c.l.b16 %v2844
        %v2939 = vunpack.c.h.b16 %v2844
        %v2940 = vunpack.c.l.b16 %v2845
        %v2941 = vunpack.c.h.b16 %v2845
        %v2942 = vunpack.c.l.b16 %v2846
        %v2943 = vunpack.c.h.b16 %v2846
        %v2944 = vunpack.c.l.b16 %v2847
        %v2945 = vunpack.c.h.b16 %v2847
        %v2946 = vunpack.c.l.b16 %v2848
        %v2947 = vunpack.c.h.b16 %v2848
        %v2948 = vunpack.c.l.b16 %v2849
        %v2949 = vunpack.c.h.b16 %v2849
        %v2950 = vunpack.c.l.b16 %v2850
        %v2951 = vunpack.c.h.b16 %v2850
        %v2952 = vunpack.c.l.b16 %v2851
        %v2953 = vunpack.c.h.b16 %v2851
        %v2954 = vunpack.c.l.b16 %v2852
        %v2955 = vunpack.c.h.b16 %v2852
        %v2956 = vunpack.c.l.b16 %v2853
        %v2957 = vunpack.c.h.b16 %v2853
        %v2958 = vunpack.c.l.b16 %v2854
        %v2959 = vunpack.c.h.b16 %v2854
        %v2960 = vunpack.c.l.b16 %v2855
        %v2961 = vunpack.c.h.b16 %v2855
        %v2962 = vunpack.c.l.b16 %v2856
        %v2963 = vunpack.c.h.b16 %v2856
        %v2964 = vunpack.c.l.b16 %v2857
        %v2965 = vunpack.c.h.b16 %v2857
        %v2966 = vunpack.c.l.b16 %v2858
        %v2967 = vunpack.c.h.b16 %v2858
        %v2968 = vunpack.c.l.b16 %v2859
        %v2969 = vunpack.c.h.b16 %v2859
        %v2970 = vunpack.c.l.b16 %v2860
        %v2971 = vunpack.c.h.b16 %v2860
        %v2972 = vunpack.c.l.b16 %v2861
        %v2973 = vunpack.c.h.b16 %v2861
        %v2974 = vunpack.c.l.b16 %v2862
        %v2975 = vunpack.c.h.b16 %v2862
        %v2976 = vunpack.c.l.b16 %v2863
        %v2977 = vunpack.c.h.b16 %v2863
        %v2978 = vunpack.c.l.b16 %v2864
        %v2979 = vunpack.c.h.b16 %v2864
        %v2980 = vunpack.c.l.b16 %v2865
        %v2981 = vunpack.c.h.b16 %v2865
        %v2982 = vunpack.c.l.b16 %v2866
        %v2983 = vunpack.c.h.b16 %v2866
        %v2984 = vunpack.c.l.b16 %v2867
        %v2985 = vunpack.c.h.b16 %v2867
        %v2986 = vunpack.c.l.b16 %v2868
        %v2987 = vunpack.c.h.b16 %v2868
        %v2988 = vpack.c.b16 %v2928, %v2924
        %v2989 = vpack.c.b16 %v2929, %v2925
        %v2990 = vpack.c.b16 %v2930, %v2926
        %v2991 = vpack.c.b16 %v2931, %v2927
        %v2992 = vpack.c.b16 %v2936, %v2932
        %v2993 = vpack.c.b16 %v2937, %v2933
        %v2994 = vpack.c.b16 %v2938, %v2934
        %v2995 = vpack.c.b16 %v2939, %v2935
        %v2996 = vpack.c.b16 %v2944, %v2940
        %v2997 = vpack.c.b16 %v2945, %v2941
        %v2998 = vpack.c.b16 %v2946, %v2942
        %v2999 = vpack.c.b16 %v2947, %v2943
        %v3000 = vpack.c.b16 %v2952, %v2948
        %v3001 = vpack.c.b16 %v2953, %v2949
        %v3002 = vpack.c.b16 %v2954, %v2950
        %v3003 = vpack.c.b16 %v2955, %v2951
        %v3004 = vpack.c.b16 %v2960, %v2956
        %v3005 = vpack.c.b16 %v2961, %v2957
        %v3006 = vpack.c.b16 %v2962, %v2958
        %v3007 = vpack.c.b16 %v2963, %v2959
        %v3008 = vpack.c.b16 %v2968, %v2964
        %v3009 = vpack.c.b16 %v2969, %v2965
        %v3010 = vpack.c.b16 %v2970, %v2966
        %v3011 = vpack.c.b16 %v2971, %v2967
        %v3012 = vpack.c.b16 %v2976, %v2972
        %v3013 = vpack.c.b16 %v2977, %v2973
        %v3014 = vpack.c.b16 %v2978, %v2974
        %v3015 = vpack.c.b16 %v2979, %v2975
        %v3016 = vpack.c.b16 %v2984, %v2980
        %v3017 = vpack.c.b16 %v2985, %v2981
        %v3018 = vpack.c.b16 %v2986, %v2982
        %v3019 = vpack.c.b16 %v2987, %v2983
        %3052 = vmatprep.subr.bf16.mxu0 %v3017
        %3053 = vmatpush1.bf16.msra.mxu0 %v3016
        %3054 = vmatprep.subr.bf16.mxu0 %v3013
        %3055 = vmatpush1.bf16.msra.mxu0 %v3012
        %3056 = vmatprep.subr.bf16.mxu0 %v3009
        %3057 = vmatpush1.bf16.msra.mxu0 %v3008
        %3058 = vmatprep.subr.bf16.mxu0 %v3005
        %3059 = vmatpush1.bf16.msra.mxu0 %v3004
        %3060 = vmatprep.subr.bf16.mxu0 %v3001
        %3061 = vmatpush1.bf16.msra.mxu0 %v3000
        %3062 = vmatprep.subr.bf16.mxu0 %v2997
        %3063 = vmatpush1.bf16.msra.mxu0 %v2996
        %3064 = vmatprep.subr.bf16.mxu0 %v2993
        %3065 = vmatpush1.bf16.msra.mxu0 %v2992
        %3066 = vmatprep.subr.bf16.mxu0 %v2989
        %3067 = vmatpush1.bf16.msra.mxu0 %v2988
        %3068 = vmatprep.subr.bf16.mxu0 0
        %3069 = vmatpush2.bf16.msra.mxu0 0
        %3070 = vmatprep.subr.bf16.mxu0 0
        %3071 = vmatpush2.bf16.msra.mxu0 0
        %3072 = vmatprep.subr.bf16.mxu0 0
        %3073 = vmatpush2.bf16.msra.mxu0 0
        %3074 = vmatprep.subr.bf16.mxu0 0
        %3075 = vmatpush2.bf16.msra.mxu0 0
        %3076 = vmatprep.subr.bf16.mxu0 0
        %3077 = vmatpush2.bf16.msra.mxu0 0
        %3078 = vmatprep.subr.bf16.mxu0 0
        %3079 = vmatpush2.bf16.msra.mxu0 0
        %3080 = vmatprep.subr.bf16.mxu0 0
        %3081 = vmatpush2.bf16.msra.mxu0 0
        %3082 = vmatprep.subr.bf16.mxu0 0
        %3083 = vmatpush2.bf16.msra.mxu0 0
        %3084 = vmatprep.mubr.bf16.mxu0 0
        %3085 = vmatmul.mubr.bf16.gmra.mxu0 %v2869
        %v3086 = vpop.f32.mrf.mxu0
        %v3087 = vadd.f32 %v2875, %v3086
        %v3088 = vpop.f32.mrf.mxu0
        %v3089 = vadd.f32 %v2879, %v3088
        %v3090 = vpop.f32.mrf.mxu0
        %v3091 = vpop.f32.mrf.mxu0
        %3092 = vdwg.mxu0
        %3093 = vmatprep.subr.bf16.mxu0 %v3019
        %3094 = vmatpush1.bf16.msra.mxu0 %v3018
        %3095 = vmatprep.subr.bf16.mxu0 %v3015
        %3096 = vmatpush1.bf16.msra.mxu0 %v3014
        %3097 = vmatprep.subr.bf16.mxu0 %v3011
        %3098 = vmatpush1.bf16.msra.mxu0 %v3010
        %3099 = vmatprep.subr.bf16.mxu0 %v3007
        %3100 = vmatpush1.bf16.msra.mxu0 %v3006
        %3101 = vmatprep.subr.bf16.mxu0 %v3003
        %3102 = vmatpush1.bf16.msra.mxu0 %v3002
        %3103 = vmatprep.subr.bf16.mxu0 %v2999
        %3104 = vmatpush1.bf16.msra.mxu0 %v2998
        %3105 = vmatprep.subr.bf16.mxu0 %v2995
        %3106 = vmatpush1.bf16.msra.mxu0 %v2994
        %3107 = vmatprep.subr.bf16.mxu0 %v2991
        %3108 = vmatpush1.bf16.msra.mxu0 %v2990
        %3109 = vmatprep.subr.bf16.mxu0 0
        %3110 = vmatpush2.bf16.msra.mxu0 0
        %3111 = vmatprep.subr.bf16.mxu0 0
        %3112 = vmatpush2.bf16.msra.mxu0 0
        %3113 = vmatprep.subr.bf16.mxu0 0
        %3114 = vmatpush2.bf16.msra.mxu0 0
        %3115 = vmatprep.subr.bf16.mxu0 0
        %3116 = vmatpush2.bf16.msra.mxu0 0
        %3117 = vmatprep.subr.bf16.mxu0 0
        %3118 = vmatpush2.bf16.msra.mxu0 0
        %3119 = vmatprep.subr.bf16.mxu0 0
        %3120 = vmatpush2.bf16.msra.mxu0 0
        %3121 = vmatprep.subr.bf16.mxu0 0
        %3122 = vmatpush2.bf16.msra.mxu0 0
        %3123 = vmatprep.subr.bf16.mxu0 0
        %3124 = vmatpush2.bf16.msra.mxu0 0
        %3125 = vmatprep.mubr.bf16.mxu0 0
        %3126 = vmatmul.mubr.bf16.gmra.mxu0 %v2869
        %v3127 = vpop.f32.mrf.mxu0
        %v3128 = vadd.f32 %v2883, %v3127
        %v3129 = vpop.f32.mrf.mxu0
        %v3130 = vadd.f32 %v2887, %v3129
        %v3131 = vpop.f32.mrf.mxu0
        %v3132 = vpop.f32.mrf.mxu0
        %3133 = vdwg.mxu0
        %v3134 = vmax.f32 %v3087, 0.0
        %v3135 = vmax.f32 %v3089, 0.0
        %v3136 = vmax.f32 %v3128, 0.0
        %v3137 = vmax.f32 %v3130, 0.0
        %v3138 = vld [vmem:[%s1085] sm:$0xf]
        %v3139 = vld [vmem:[%s1085 + $0x4] sm:$0xf]
        %v3140 = vld [vmem:[%s1085 + $0x8] sm:$0xf]
        %v3141 = vld [vmem:[%s1085 + $0xc] sm:$0xf]
        %v3142 = vld [vmem:[%s1085 + $0x10] sm:$0xf]
        %v3143 = vld [vmem:[%s1085 + $0x14] sm:$0xf]
        %v3144 = vld [vmem:[%s1085 + $0x18] sm:$0xf]
        %v3145 = vld [vmem:[%s1085 + $0x1c] sm:$0xf]
        %v3146 = vld [vmem:[%s1085 + $0x20] sm:$0xf]
        %v3147 = vld [vmem:[%s1085 + $0x24] sm:$0xf]
        %v3148 = vld [vmem:[%s1085 + $0x28] sm:$0xf]
        %v3149 = vld [vmem:[%s1085 + $0x2c] sm:$0xf]
        %v3150 = vld [vmem:[%s1085 + $0x30] sm:$0xf]
        %v3151 = vld [vmem:[%s1085 + $0x34] sm:$0xf]
        %v3152 = vld [vmem:[%s1085 + $0x38] sm:$0xf]
        %v3153 = vld [vmem:[%s1085 + $0x3c] sm:$0xf]
        %v3154 = vld [vmem:[%s1085 + $0x40] sm:$0xf]
        %v3155 = vld [vmem:[%s1085 + $0x44] sm:$0xf]
        %v3156 = vld [vmem:[%s1085 + $0x48] sm:$0xf]
        %v3157 = vld [vmem:[%s1085 + $0x4c] sm:$0xf]
        %v3158 = vld [vmem:[%s1085 + $0x50] sm:$0xf]
        %v3159 = vld [vmem:[%s1085 + $0x54] sm:$0xf]
        %v3160 = vld [vmem:[%s1085 + $0x58] sm:$0xf]
        %v3161 = vld [vmem:[%s1085 + $0x5c] sm:$0xf]
        %v3162 = vld [vmem:[%s1085 + $0x60] sm:$0xf]
        %v3163 = vld [vmem:[%s1085 + $0x64] sm:$0xf]
        %v3164 = vld [vmem:[%s1085 + $0x68] sm:$0xf]
        %v3165 = vld [vmem:[%s1085 + $0x6c] sm:$0xf]
        %v3166 = vld [vmem:[%s1085 + $0x70] sm:$0xf]
        %v3167 = vld [vmem:[%s1085 + $0x74] sm:$0xf]
        %v3168 = vld [vmem:[%s1085 + $0x78] sm:$0xf]
        %v3169 = vld [vmem:[%s1085 + $0x7c] sm:$0xf]
        %v3170 = vld [vmem:[%s1085 + $0x80] sm:$0xf]
        %v3171 = vld [vmem:[%s1085 + $0x84] sm:$0xf]
        %v3172 = vld [vmem:[%s1085 + $0x88] sm:$0xf]
        %v3173 = vld [vmem:[%s1085 + $0x8c] sm:$0xf]
        %v3174 = vld [vmem:[%s1085 + $0x90] sm:$0xf]
        %v3175 = vld [vmem:[%s1085 + $0x94] sm:$0xf]
        %v3176 = vld [vmem:[%s1085 + $0x98] sm:$0xf]
        %v3177 = vld [vmem:[%s1085 + $0x9c] sm:$0xf]
        %v3178 = vld [vmem:[%s1085 + $0xa0] sm:$0xf]
        %v3179 = vld [vmem:[%s1085 + $0xa4] sm:$0xf]
        %v3180 = vld [vmem:[%s1085 + $0xa8] sm:$0xf]
        %v3181 = vld [vmem:[%s1085 + $0xac] sm:$0xf]
        %v3182 = vld [vmem:[%s1085 + $0xb0] sm:$0xf]
        %v3183 = vld [vmem:[%s1085 + $0xb4] sm:$0xf]
        %v3184 = vld [vmem:[%s1085 + $0xb8] sm:$0xf]
        %v3185 = vld [vmem:[%s1085 + $0xbc] sm:$0xf]
        %v3186 = vld [vmem:[%s1085 + $0xc0] sm:$0xf]
        %v3187 = vld [vmem:[%s1085 + $0xc4] sm:$0xf]
        %v3188 = vld [vmem:[%s1085 + $0xc8] sm:$0xf]
        %v3189 = vld [vmem:[%s1085 + $0xcc] sm:$0xf]
        %v3190 = vld [vmem:[%s1085 + $0xd0] sm:$0xf]
        %v3191 = vld [vmem:[%s1085 + $0xd4] sm:$0xf]
        %v3192 = vld [vmem:[%s1085 + $0xd8] sm:$0xf]
        %v3193 = vld [vmem:[%s1085 + $0xdc] sm:$0xf]
        %v3194 = vld [vmem:[%s1085 + $0xe0] sm:$0xf]
        %v3195 = vld [vmem:[%s1085 + $0xe4] sm:$0xf]
        %v3196 = vld [vmem:[%s1085 + $0xe8] sm:$0xf]
        %v3197 = vld [vmem:[%s1085 + $0xec] sm:$0xf]
        %v3198 = vld [vmem:[%s1085 + $0xf0] sm:$0xf]
        %v3199 = vld [vmem:[%s1085 + $0xf4] sm:$0xf]
        %v3200 = vld [vmem:[%s1085 + $0xf8] sm:$0xf]
        %v3201 = vld [vmem:[%s1085 + $0xfc] sm:$0xf]
        %v3202 = vpack.c.bf16 %v3134, %v3134
        %v3203 = vpack.c.bf16 %v3135, %v3135
        %v3204 = vpack.c.bf16 %v3136, %v3136
        %v3205 = vpack.c.bf16 %v3137, %v3137
        %v3206 = vld [vmem:[%s1088] sm:$0x1]
        %v3208 = vlaneseq
        %v3209 = vshrl.u32 %v3208, 7
        %v3210 = vsub.s32 0, %v3209
        %v3211 = vrot.slane %v3206, %v3210
        %v3277 = vunpack.c.l.b16 %v3138
        %v3278 = vunpack.c.l.b16 %v3139
        %v3279 = vunpack.c.l.b16 %v3140
        %v3280 = vunpack.c.l.b16 %v3141
        %v3281 = vunpack.c.l.b16 %v3142
        %v3282 = vunpack.c.l.b16 %v3143
        %v3283 = vunpack.c.l.b16 %v3144
        %v3284 = vunpack.c.l.b16 %v3145
        %v3285 = vunpack.c.l.b16 %v3146
        %v3286 = vunpack.c.l.b16 %v3147
        %v3287 = vunpack.c.l.b16 %v3148
        %v3288 = vunpack.c.l.b16 %v3149
        %v3289 = vunpack.c.l.b16 %v3150
        %v3290 = vunpack.c.l.b16 %v3151
        %v3291 = vunpack.c.l.b16 %v3152
        %v3292 = vunpack.c.l.b16 %v3153
        %v3293 = vunpack.c.l.b16 %v3154
        %v3294 = vunpack.c.l.b16 %v3155
        %v3295 = vunpack.c.l.b16 %v3156
        %v3296 = vunpack.c.l.b16 %v3157
        %v3297 = vunpack.c.l.b16 %v3158
        %v3298 = vunpack.c.l.b16 %v3159
        %v3299 = vunpack.c.l.b16 %v3160
        %v3300 = vunpack.c.l.b16 %v3161
        %v3301 = vunpack.c.l.b16 %v3162
        %v3302 = vunpack.c.l.b16 %v3163
        %v3303 = vunpack.c.l.b16 %v3164
        %v3304 = vunpack.c.l.b16 %v3165
        %v3305 = vunpack.c.l.b16 %v3166
        %v3306 = vunpack.c.l.b16 %v3167
        %v3307 = vunpack.c.l.b16 %v3168
        %v3308 = vunpack.c.l.b16 %v3169
        %v3309 = vunpack.c.l.b16 %v3170
        %v3310 = vunpack.c.l.b16 %v3171
        %v3311 = vunpack.c.l.b16 %v3172
        %v3312 = vunpack.c.l.b16 %v3173
        %v3313 = vunpack.c.l.b16 %v3174
        %v3314 = vunpack.c.l.b16 %v3175
        %v3315 = vunpack.c.l.b16 %v3176
        %v3316 = vunpack.c.l.b16 %v3177
        %v3317 = vunpack.c.l.b16 %v3178
        %v3318 = vunpack.c.l.b16 %v3179
        %v3319 = vunpack.c.l.b16 %v3180
        %v3320 = vunpack.c.l.b16 %v3181
        %v3321 = vunpack.c.l.b16 %v3182
        %v3322 = vunpack.c.l.b16 %v3183
        %v3323 = vunpack.c.l.b16 %v3184
        %v3324 = vunpack.c.l.b16 %v3185
        %v3325 = vunpack.c.l.b16 %v3186
        %v3326 = vunpack.c.l.b16 %v3187
        %v3327 = vunpack.c.l.b16 %v3188
        %v3328 = vunpack.c.l.b16 %v3189
        %v3329 = vunpack.c.l.b16 %v3190
        %v3330 = vunpack.c.l.b16 %v3191
        %v3331 = vunpack.c.l.b16 %v3192
        %v3332 = vunpack.c.l.b16 %v3193
        %v3333 = vunpack.c.l.b16 %v3194
        %v3334 = vunpack.c.l.b16 %v3195
        %v3335 = vunpack.c.l.b16 %v3196
        %v3336 = vunpack.c.l.b16 %v3197
        %v3337 = vunpack.c.l.b16 %v3198
        %v3338 = vunpack.c.l.b16 %v3199
        %v3339 = vunpack.c.l.b16 %v3200
        %v3340 = vunpack.c.l.b16 %v3201
        %v3341 = vpack.c.b16 %v3278, %v3277
        %v3342 = vpack.c.b16 %v3280, %v3279
        %v3343 = vpack.c.b16 %v3282, %v3281
        %v3344 = vpack.c.b16 %v3284, %v3283
        %v3345 = vpack.c.b16 %v3286, %v3285
        %v3346 = vpack.c.b16 %v3288, %v3287
        %v3347 = vpack.c.b16 %v3290, %v3289
        %v3348 = vpack.c.b16 %v3292, %v3291
        %v3349 = vpack.c.b16 %v3294, %v3293
        %v3350 = vpack.c.b16 %v3296, %v3295
        %v3351 = vpack.c.b16 %v3298, %v3297
        %v3352 = vpack.c.b16 %v3300, %v3299
        %v3353 = vpack.c.b16 %v3302, %v3301
        %v3354 = vpack.c.b16 %v3304, %v3303
        %v3355 = vpack.c.b16 %v3306, %v3305
        %v3356 = vpack.c.b16 %v3308, %v3307
        %v3357 = vpack.c.b16 %v3310, %v3309
        %v3358 = vpack.c.b16 %v3312, %v3311
        %v3359 = vpack.c.b16 %v3314, %v3313
        %v3360 = vpack.c.b16 %v3316, %v3315
        %v3361 = vpack.c.b16 %v3318, %v3317
        %v3362 = vpack.c.b16 %v3320, %v3319
        %v3363 = vpack.c.b16 %v3322, %v3321
        %v3364 = vpack.c.b16 %v3324, %v3323
        %v3365 = vpack.c.b16 %v3326, %v3325
        %v3366 = vpack.c.b16 %v3328, %v3327
        %v3367 = vpack.c.b16 %v3330, %v3329
        %v3368 = vpack.c.b16 %v3332, %v3331
        %v3369 = vpack.c.b16 %v3334, %v3333
        %v3370 = vpack.c.b16 %v3336, %v3335
        %v3371 = vpack.c.b16 %v3338, %v3337
        %v3372 = vpack.c.b16 %v3340, %v3339
        %3405 = vmatprep.subr.bf16.mxu0 0
        %3406 = vmatpush1.bf16.msra.mxu0 %v3348
        %3407 = vmatprep.subr.bf16.mxu0 0
        %3408 = vmatpush1.bf16.msra.mxu0 %v3347
        %3409 = vmatprep.subr.bf16.mxu0 0
        %3410 = vmatpush1.bf16.msra.mxu0 %v3346
        %3411 = vmatprep.subr.bf16.mxu0 0
        %3412 = vmatpush1.bf16.msra.mxu0 %v3345
        %3413 = vmatprep.subr.bf16.mxu0 0
        %3414 = vmatpush1.bf16.msra.mxu0 %v3344
        %3415 = vmatprep.subr.bf16.mxu0 0
        %3416 = vmatpush1.bf16.msra.mxu0 %v3343
        %3417 = vmatprep.subr.bf16.mxu0 0
        %3418 = vmatpush1.bf16.msra.mxu0 %v3342
        %3419 = vmatprep.subr.bf16.mxu0 0
        %3420 = vmatpush1.bf16.msra.mxu0 %v3341
        %3421 = vmatprep.subr.bf16.mxu0 0
        %3422 = vmatpush2.bf16.msra.mxu0 %v3356
        %3423 = vmatprep.subr.bf16.mxu0 0
        %3424 = vmatpush2.bf16.msra.mxu0 %v3355
        %3425 = vmatprep.subr.bf16.mxu0 0
        %3426 = vmatpush2.bf16.msra.mxu0 %v3354
        %3427 = vmatprep.subr.bf16.mxu0 0
        %3428 = vmatpush2.bf16.msra.mxu0 %v3353
        %3429 = vmatprep.subr.bf16.mxu0 0
        %3430 = vmatpush2.bf16.msra.mxu0 %v3352
        %3431 = vmatprep.subr.bf16.mxu0 0
        %3432 = vmatpush2.bf16.msra.mxu0 %v3351
        %3433 = vmatprep.subr.bf16.mxu0 0
        %3434 = vmatpush2.bf16.msra.mxu0 %v3350
        %3435 = vmatprep.subr.bf16.mxu0 0
        %3436 = vmatpush2.bf16.msra.mxu0 %v3349
        %3437 = vmatprep.mubr.bf16.mxu0 %v3203
        %3438 = vmatmul.mubr.bf16.gmra.mxu0 %v3202
        %v3439 = vpop.f32.mrf.mxu0
        %v3440 = vadd.f32 %v3211, %v3439
        %v3441 = vpop.f32.mrf.mxu0
        %v3442 = vpop.f32.mrf.mxu0
        %v3443 = vpop.f32.mrf.mxu0
        %3444 = vdwg.mxu0
        %3445 = vmatprep.subr.bf16.mxu0 0
        %3446 = vmatpush1.bf16.msra.mxu0 %v3364
        %3447 = vmatprep.subr.bf16.mxu0 0
        %3448 = vmatpush1.bf16.msra.mxu0 %v3363
        %3449 = vmatprep.subr.bf16.mxu0 0
        %3450 = vmatpush1.bf16.msra.mxu0 %v3362
        %3451 = vmatprep.subr.bf16.mxu0 0
        %3452 = vmatpush1.bf16.msra.mxu0 %v3361
        %3453 = vmatprep.subr.bf16.mxu0 0
        %3454 = vmatpush1.bf16.msra.mxu0 %v3360
        %3455 = vmatprep.subr.bf16.mxu0 0
        %3456 = vmatpush1.bf16.msra.mxu0 %v3359
        %3457 = vmatprep.subr.bf16.mxu0 0
        %3458 = vmatpush1.bf16.msra.mxu0 %v3358
        %3459 = vmatprep.subr.bf16.mxu0 0
        %3460 = vmatpush1.bf16.msra.mxu0 %v3357
        %3461 = vmatprep.subr.bf16.mxu0 0
        %3462 = vmatpush2.bf16.msra.mxu0 %v3372
        %3463 = vmatprep.subr.bf16.mxu0 0
        %3464 = vmatpush2.bf16.msra.mxu0 %v3371
        %3465 = vmatprep.subr.bf16.mxu0 0
        %3466 = vmatpush2.bf16.msra.mxu0 %v3370
        %3467 = vmatprep.subr.bf16.mxu0 0
        %3468 = vmatpush2.bf16.msra.mxu0 %v3369
        %3469 = vmatprep.subr.bf16.mxu0 0
        %3470 = vmatpush2.bf16.msra.mxu0 %v3368
        %3471 = vmatprep.subr.bf16.mxu0 0
        %3472 = vmatpush2.bf16.msra.mxu0 %v3367
        %3473 = vmatprep.subr.bf16.mxu0 0
        %3474 = vmatpush2.bf16.msra.mxu0 %v3366
        %3475 = vmatprep.subr.bf16.mxu0 0
        %3476 = vmatpush2.bf16.msra.mxu0 %v3365
        %3477 = vmatprep.mubr.bf16.mxu0 %v3205
        %3478 = vmatmul.mubr.bf16.gmra.mxu0 %v3204
        %v3479 = vpop.f32.mrf.mxu0
        %v3480 = vadd.f32 %v3440, %v3479
        %v3481 = vpop.f32.mrf.mxu0
        %v3482 = vpop.f32.mrf.mxu0
        %v3483 = vpop.f32.mrf.mxu0
        %3484 = vdwg.mxu0
        %v3485 = vadd.f32 %v2836, %v3480
        %v3486 = vld [vmem:[%s1091] sm:$0x1]
        %v3487 = vld [vmem:[%s1094] sm:$0x1]
        %3488 = vadd.xlane.f32.xlu0 %v3485
        %v3489 = vpop.xlane.xlu0 %3488
        %v3490 = vmul.f32 %v3489, %v1958
        %v3491 = vsub.f32 %v3485, %v3490
        %v3492 = vmul.f32 %v3491, %v3491
        %3493 = vadd.xlane.f32.xlu0 %v3492
        %v3494 = vpop.xlane.xlu0 %3493
        %v3495 = vmul.f32 %v3494, %v1958
        %v3496 = vadd.f32 %v3495, 1e-05
        %v3497 = vrsqrt.pop %v3496
        %v3498 = vmul.f32 %v3491, %v3497
        %v3500 = vlaneseq
        %v3501 = vshrl.u32 %v3500, 7
        %v3502 = vsub.s32 0, %v3501
        %v3503 = vrot.slane %v3486, %v3502
        %v3505 = vmul.f32 %v3498, %v3503
        %v3507 = vlaneseq
        %v3508 = vshrl.u32 %v3507, 7
        %v3509 = vsub.s32 0, %v3508
        %v3510 = vrot.slane %v3487, %v3509
        %v3512 = vadd.f32 %v3505, %v3510
        %3513 = vst [vmem:[%s1098] sm:$0xff] %v3512
        %p3514 = scmp.lt.s32.totalorder %s43, 1
        %s3515 = scalar_select %p3514, %s43, 1
        %s3516 = smul.addr %s3515, 8
        %s3517 = scalar_lea.vmem %s22, %s3516
        // Predicated region
        $region125: #{beatmap_transformer_forward.6} parent=107 // pred_check
          %p3518 = pneg %p641
        $region126: #{beatmap_transformer_forward.6} parent=107 // pred_check_branch
          %3520 = sbr.rel (%p3518) target = $region128
        $region127: #{beatmap_transformer_forward.6} parent=107 // pred_region
          _
        $region128: #{beatmap_transformer_forward.6} parent=107 // pred_fallthru
          _
      $region108: #{beatmap_transformer_forward.6} parent=5 // pred_fallthru
        _
      %p3521 = scmp.le.s32.totalorder 2, %s34
      // Predicated region
      $region129: #{beatmap_transformer_forward.6} parent=5 // pred_check
        %p3522 = pneg %p3521
      $region130: #{beatmap_transformer_forward.6} parent=5 // pred_check_branch
        %3524 = sbr.rel (%p3522) target = $region132
      $region131: #{beatmap_transformer_forward.6} parent=5 // pred_region
        %s3525 = ssub.s32 %s34, 2
        // Predicated region
        $region133: #{beatmap_transformer_forward.6} parent=131 // pred_check
          %p3526 = pneg %p647
        $region134: #{beatmap_transformer_forward.6} parent=131 // pred_check_branch
          %3528 = sbr.rel (%p3526) target = $region136
        $region135: #{beatmap_transformer_forward.6} parent=131 // pred_region
          %p3529 = scmp.lt.s32.totalorder %s45, 1
          %s3530 = scalar_select %p3529, %s45, 1
          %s3531 = smul.addr %s3530, 8
          %s3532 = scalar_lea.vmem %s22, %s3531
        $region136: #{beatmap_transformer_forward.6} parent=131 // pred_fallthru
          _
      $region132: #{beatmap_transformer_forward.6} parent=5 // pred_fallthru
        _
    $region6: #{beatmap_transformer_forward.6} parent=1 // loop_footer
      %s38 = sadd.s32 1, %s34
    $region7: #{beatmap_transformer_forward.6} parent=1 // loop_footer_branch
      %33 = sbr.rel target = $region3
    $region8: #{beatmap_transformer_forward.6} parent=1 // loop_exit
      _
    %3533 = vsyncpa [#allocation3], 1
    %s3534 = scalar_lea.sflag [#allocation3], 1
    %3535 = vsyncpa %s3534, 1
    %3536 = vsyncpa [#allocation5], 1
    %s3537 = scalar_lea.sflag [#allocation5], 1
    %3538 = vsyncpa %s3537, 1

</llo_original>
